<compile_context>
chip_gen: v6e
topology: v6e:2x2x1
jax: 0.10.0
libtpu: 0.0.40
codegen_flags: <defaults>
</compile_context>

<pallas_src>
import functools

import jax
import jax.numpy as jnp
from jax import lax
from jax.experimental import pallas as pl
from jax.experimental.pallas import tpu as pltpu


_TAPS = tuple((dy, dx) for dy in range(3) for dx in range(3))


# ----------------------------------------------------------------------------
# Fused kernel: one (batch, H-tile) step per grid point
# ----------------------------------------------------------------------------
def _detect_kernel(xc_ref, xt0_ref, xt1_ref, xt2_ref, xb0_ref, xb1_ref, xb2_ref,
                   w1_ref, b1_ref, w2_ref, b2_ref, w3_ref, b3_ref,
                   o_ref,
                   pad_x, pad_c, acc1, acc2, acc3,
                   *, th, W, Cin, half, bw, nh):
    """Shapes (per grid step, tile height th, base = i*th):

    xc_ref        : (1, th, W, Cin)   center rows of x
    xt*/xb*_ref   : (1, 1, W, Cin)    3 halo rows above / below (clamped)
    w1/b1         : (9, Cin, half+bw) / (1, half+bw)   [upconv | ctx.inconv]
    w2/b2         : (9, bw, 2*bw)     / (1, 2*bw)      [ctx.upconv | ctx.downconv]
    w3/b3         : (9, bw, bw)       / (1, bw)        ctx.downconv2
    o_ref         : (1, th, W, Cin)   fused concat output rows [base, base+th)
    pad_x         : (th+6, W+2, Cin)  x tile + 3-row halo + 1-px W zero pad
    pad_c         : (th+4, W+2, bw)   c (rows base-2..base+th+2), reused for c_down
    acc1/2/3      : f32 VMEM accumulators for the three packed conv stages
    """
    i = pl.program_id(1)
    cdt = pad_x.dtype
    M1, M2, M3 = th + 4, th + 2, th     # row extents of c, c_down, final output

    # --- zero only the 1-px left/right border columns (interiors are always
    #     fully overwritten below; no full-buffer memsets) --------------------
    pad_x[:, 0:1, :] = jnp.zeros((th + 6, 1, Cin), cdt)
    pad_x[:, W + 1:W + 2, :] = jnp.zeros((th + 6, 1, Cin), cdt)
    pad_c[:, 0:1, :] = jnp.zeros((th + 4, 1, bw), cdt)
    pad_c[:, W + 1:W + 2, :] = jnp.zeros((th + 4, 1, bw), cdt)

    # --- assemble the x tile with its 3-row halo ------------------------------
    pad_x[3:3 + th, 1:W + 1, :] = xc_ref[0].astype(cdt)

    @pl.when(i > 0)
    def _():
        pad_x[0:1, 1:W + 1, :] = xt0_ref[0].astype(cdt)
        pad_x[1:2, 1:W + 1, :] = xt1_ref[0].astype(cdt)
        pad_x[2:3, 1:W + 1, :] = xt2_ref[0].astype(cdt)

    @pl.when(i == 0)
    def _():
        pad_x[0:3, 1:W + 1, :] = jnp.zeros((3, W, Cin), cdt)

    @pl.when(i < nh - 1)
    def _():
        pad_x[3 + th:4 + th, 1:W + 1, :] = xb0_ref[0].astype(cdt)
        pad_x[4 + th:5 + th, 1:W + 1, :] = xb1_ref[0].astype(cdt)
        pad_x[5 + th:6 + th, 1:W + 1, :] = xb2_ref[0].astype(cdt)

    @pl.when(i == nh - 1)
    def _():
        pad_x[3 + th:6 + th, 1:W + 1, :] = jnp.zeros((3, W, Cin), cdt)

    # --- stage 1: packed [upconv | ctx.inconv], 9 accumulating tap matmuls ----
    acc1[...] = jnp.broadcast_to(b1_ref[...], (M1 * W, half + bw))
    for t, (dy, dx) in enumerate(_TAPS):
        patch = pad_x[dy:dy + M1, dx:dx + W, :].reshape(M1 * W, Cin)
        acc1[...] += jnp.dot(patch, w1_ref[t], preferred_element_type=jnp.float32)
    s1 = jnp.maximum(acc1[...], 0.0)                       # (M1*W, half+bw)
    up = s1[:, :half].reshape(M1, W, half)[2:2 + th]       # output rows only
    c = s1[:, half:].reshape(M1, W, bw)                    # rows [base-2, base+th+2)

    # c feeds further convs: out-of-image rows must be conv ZERO padding,
    # not "conv applied to zero-padded x", so zero them explicitly.
    pad_c[0:M1, 1:W + 1, :] = c.astype(cdt)

    @pl.when(i == 0)
    def _():
        pad_c[0:2, 1:W + 1, :] = jnp.zeros((2, W, bw), cdt)

    @pl.when(i == nh - 1)
    def _():
        pad_c[th + 2:th + 4, 1:W + 1, :] = jnp.zeros((2, W, bw), cdt)

    # --- stage 2: packed [ctx.upconv | ctx.downconv] ---------------------------
    acc2[...] = jnp.broadcast_to(b2_ref[...], (M2 * W, 2 * bw))
    for t, (dy, dx) in enumerate(_TAPS):
        patch = pad_c[dy:dy + M2, dx:dx + W, :].reshape(M2 * W, bw)
        acc2[...] += jnp.dot(patch, w2_ref[t], preferred_element_type=jnp.float32)
    s2 = jnp.maximum(acc2[...], 0.0)                       # (M2*W, 2*bw)
    c_up = s2[:, :bw].reshape(M2, W, bw)[1:1 + th]         # output rows only
    c_down = s2[:, bw:].reshape(M2, W, bw)                 # rows [base-1, base+th+1)

    # Reuse pad_c rows [0, th+2) for c_down (border columns still zero).
    pad_c[0:M2, 1:W + 1, :] = c_down.astype(cdt)

    @pl.when(i == 0)
    def _():
        pad_c[0:1, 1:W + 1, :] = jnp.zeros((1, W, bw), cdt)

    @pl.when(i == nh - 1)
    def _():
        pad_c[th + 1:th + 2, 1:W + 1, :] = jnp.zeros((1, W, bw), cdt)

    # --- stage 3: ctx.downconv2 -------------------------------------------------
    acc3[...] = jnp.broadcast_to(b3_ref[...], (M3 * W, bw))
    for t, (dy, dx) in enumerate(_TAPS):
        patch = pad_c[dy:dy + M3, dx:dx + W, :].reshape(M3 * W, bw)
        acc3[...] += jnp.dot(patch, w3_ref[t], preferred_element_type=jnp.float32)
    s3 = jnp.maximum(acc3[...], 0.0).reshape(M3, W, bw)

    # --- fused torch.cat([up, ctx_up, ctx_down2]): three sliced stores -------
    odt = o_ref.dtype
    o_ref[:, :, :, 0:half] = up[None].astype(odt)
    o_ref[:, :, :, half:half + bw] = c_up[None].astype(odt)
    o_ref[:, :, :, half + bw:half + 2 * bw] = s3[None].astype(odt)


# ----------------------------------------------------------------------------
# Parameter preparation: BN folding + Cout packing, done ONCE at init time
# ----------------------------------------------------------------------------
def _fold_bn(p, eps=1e-5):
    """Fold eval-mode BatchNorm2d into the conv.  Returns (9, Cin, Cout) f32
    weights (tap index t = dy*3 + dx) and a (1, Cout) f32 bias."""
    scale = p["gamma"] / jnp.sqrt(p["var"] + eps)
    w = (p["w"] * scale[None, None, None, :]).astype(jnp.float32)   # HWIO
    kh, kw, cin, cout = p["w"].shape
    b = (p["beta"] - p["mean"] * scale).reshape(1, cout).astype(jnp.float32)
    return w.reshape(kh * kw, cin, cout), b


def prepare_detect_params(params, compute_dtype=jnp.bfloat16, eps=1e-5):
    """bf16 weights by default (MXU inputs); biases stay f32 (f32 epilogue)."""
    w_up, b_up = _fold_bn(params["upconv"], eps)
    w_ci, b_ci = _fold_bn(params["ctx_in"], eps)
    w_cu, b_cu = _fold_bn(params["ctx_up"], eps)
    w_cd, b_cd = _fold_bn(params["ctx_down"], eps)
    w_d2, b_d2 = _fold_bn(params["ctx_down2"], eps)
    return {
        "w1": jnp.concatenate([w_up, w_ci], axis=-1).astype(compute_dtype),
        "b1": jnp.concatenate([b_up, b_ci], axis=-1),
        "w2": jnp.concatenate([w_cu, w_cd], axis=-1).astype(compute_dtype),
        "b2": jnp.concatenate([b_cu, b_cd], axis=-1),
        "w3": w_d2.astype(compute_dtype),
        "b3": b_d2,
    }


# ----------------------------------------------------------------------------
# Forward wrappers
# ----------------------------------------------------------------------------
def _pick_tile_h(H, tile_h=None, target=16):
    """Tile height.  v7x (64 MiB VMEM/core): ~8-16 rows at C=256/bf16.
    v5e/v6e (128 MiB): 32-64 rows + larger vmem_limit_bytes amortize the
    per-grid-step overhead better."""
    if tile_h is not None:
        if H % tile_h != 0:
            raise ValueError("tile_h must divide H")
        if tile_h < 3 and tile_h != H:
            raise ValueError("tile_h must be >= 3 (3-deep conv chain halo)")
        return tile_h
    th = min(H, target)
    while th >= 3 and H % th:
        th -= 1
    if th < 3 or H % th:
        th = H
    return th


def detect_module_forward_nhwc(x_nhwc, prep, *, tile_h=None, out_dtype=jnp.float32):
    """Fused DetectModule forward on an NHWC input (preferred entry point)."""
    N, H, W, C = x_nhwc.shape
    if C % 4:
        raise ValueError("in_channels must be divisible by 4")
    half, bw = C // 2, C // 4
    cdt = prep["w1"].dtype                     # compute dtype chosen at prepare time
    th = _pick_tile_h(H, tile_h)
    nh = H // th

    x = x_nhwc.astype(cdt)
    w1, b1 = prep["w1"], prep["b1"]
    w2, b2 = prep["w2"], prep["b2"]
    w3, b3 = prep["w3"], prep["b3"]

    kernel = functools.partial(_detect_kernel, th=th, W=W, Cin=C, half=half,
                               bw=bw, nh=nh)

    def _resident(a):                           # whole array, VMEM-resident
        return pl.BlockSpec(a.shape, lambda n, i, _nd=a.ndim: (0,) * _nd)

    def _halo_row(row_of_i):                    # one x row, clamped index
        return pl.BlockSpec((1, 1, W, C), lambda n, i: (n, row_of_i(i), 0, 0))

    x_center = pl.BlockSpec((1, th, W, C), lambda n, i: (n, i, 0, 0))
    x_top = [_halo_row(lambda i, j=j: jnp.maximum(i * th - 3 + j, 0))
             for j in range(3)]
    x_bot = [_halo_row(lambda i, j=j: jnp.minimum(i * th + th + j, H - 1))
             for j in range(3)]

    return pl.pallas_call(
        kernel,
        out_shape=jax.ShapeDtypeStruct((N, H, W, C), out_dtype),
        grid_spec=pltpu.PrefetchScalarGridSpec(
            num_scalar_prefetch=0,
            grid=(N, nh),
            in_specs=[x_center] + x_top + x_bot + [
                _resident(w1), _resident(b1),
                _resident(w2), _resident(b2),
                _resident(w3), _resident(b3),
            ],
            out_specs=pl.BlockSpec((1, th, W, C), lambda n, i: (n, i, 0, 0)),
            scratch_shapes=[
                pltpu.VMEM((th + 6, W + 2, C), cdt),                 # padded x tile
                pltpu.VMEM((th + 4, W + 2, bw), cdt),                # padded c / c_down
                pltpu.VMEM(((th + 4) * W, half + bw), jnp.float32),  # stage-1 acc
                pltpu.VMEM(((th + 2) * W, 2 * bw), jnp.float32),     # stage-2 acc
                pltpu.VMEM((th * W, bw), jnp.float32),               # stage-3 acc
            ],
        ),
        compiler_params=pltpu.CompilerParams(
            dimension_semantics=("parallel", "parallel"),
            vmem_limit_bytes=48 * 1024 * 1024,   # fits v7x 64 MiB with headroom
        ),
    )(x, x, x, x, x, x, x, w1, b1, w2, b2, w3, b3)


def detect_module_forward(x_nchw, prep, *, tile_h=None, out_dtype=jnp.float32):
    """PyTorch-parity wrapper: NCHW in / NCHW out (adds two transposes)."""
    x = jnp.transpose(x_nchw, (0, 2, 3, 1))
    y = detect_module_forward_nhwc(x, prep, tile_h=tile_h, out_dtype=out_dtype)
    return jnp.transpose(y, (0, 3, 1, 2))


# ----------------------------------------------------------------------------
# Parameter construction (deterministic, synthetic) + pure-JAX reference
# ----------------------------------------------------------------------------
def _init_cba(key, cin, cout):
    kw, kg, kb = jax.random.split(key, 3)
    return {
        "w": jax.random.normal(kw, (3, 3, cin, cout), jnp.float32) * 0.1,  # HWIO
        "gamma": 1.0 + 0.1 * jax.random.normal(kg, (cout,), jnp.float32),
        "beta": 0.1 * jax.random.normal(kb, (cout,), jnp.float32),
        "mean": jnp.zeros((cout,), jnp.float32),
        "var": jnp.ones((cout,), jnp.float32),
    }


def init_detect_module(key, in_channels):
    ks = jax.random.split(key, 5)
    bw = in_channels // 4
    return {
        "upconv":    _init_cba(ks[0], in_channels, in_channels // 2),
        "ctx_in":    _init_cba(ks[1], in_channels, bw),
        "ctx_up":    _init_cba(ks[2], bw, bw),
        "ctx_down":  _init_cba(ks[3], bw, bw),
        "ctx_down2": _init_cba(ks[4], bw, bw),
    }


def _cba_ref(x_nhwc, p, eps=1e-5):
    scale = p["gamma"] / jnp.sqrt(p["var"] + eps)
    w = p["w"] * scale[None, None, None, :]
    b = p["beta"] - p["mean"] * scale
    y = lax.conv_general_dilated(x_nhwc, w, window_strides=(1, 1), padding="SAME",
                                 dimension_numbers=("NHWC", "HWIO", "NHWC"),
                                 precision=lax.Precision.HIGHEST)
    return jnp.maximum(y + b, 0.0)


def _detect_ref(x_nchw, params):
    x = jnp.transpose(x_nchw, (0, 2, 3, 1))
    up = _cba_ref(x, params["upconv"])
    c = _cba_ref(x, params["ctx_in"])
    c_up = _cba_ref(c, params["ctx_up"])
    c_dn = _cba_ref(_cba_ref(c, params["ctx_down"]), params["ctx_down2"])
    return jnp.transpose(jnp.concatenate([up, c_up, c_dn], axis=-1), (0, 3, 1, 2))


if __name__ == "__main__":
    key = jax.random.PRNGKey(0)
    k_x, k_p = jax.random.split(key)

    # Small shapes: batch=2, in_channels=8 (divisible by 4), spatial=16x16.
    N, C, H, W = 2, 8, 16, 16
    x = jax.random.normal(k_x, (N, C, H, W), jnp.float32)
    params = init_detect_module(k_p, C)
    y_ref = _detect_ref(x, params)

    # --- f32 compute path: tight per-dtype tolerance; 2 H-tiles -> halo path ---
    prep_f32 = prepare_detect_params(params, compute_dtype=jnp.float32)
    fwd_f32 = jax.jit(functools.partial(detect_module_forward, tile_h=8))
    y_f32 = jax.block_until_ready(fwd_f32(x, prep_f32))
    assert y_f32.shape == (N, C, H, W), y_f32.shape   # C/2 + C/4 + C/4 == C
    assert y_f32.dtype == jnp.float32
    assert jnp.allclose(y_f32, y_ref, atol=1e-3, rtol=1e-3), \
        float(jnp.max(jnp.abs(y_f32 - y_ref)))        # observed ~1e-6

    # Tiling invariance: single-tile (nh=1) path must agree with the tiled one.
    y_f32_1t = jax.block_until_ready(
        jax.jit(functools.partial(detect_module_forward, tile_h=16))(x, prep_f32))
    assert jnp.allclose(y_f32, y_f32_1t, atol=1e-6, rtol=1e-6), \
        float(jnp.max(jnp.abs(y_f32 - y_f32_1t)))

    # --- default bf16-MXU path (perf default on v5e/v6e/v7x), 4 H-tiles -------
    prep_bf16 = prepare_detect_params(params)          # compute_dtype=bfloat16
    fwd_bf16 = jax.jit(functools.partial(detect_module_forward, tile_h=4))
    y_bf16 = jax.block_until_ready(fwd_bf16(x, prep_bf16))
    assert y_bf16.shape == (N, C, H, W) and y_bf16.dtype == jnp.float32
    assert jnp.allclose(y_bf16, y_ref, atol=6e-2, rtol=6e-2), \
        float(jnp.max(jnp.abs(y_bf16 - y_ref)))

    print("KERNEL_OK")
</pallas_src>

<mosaic_0001>
module attributes {stable_mosaic.version = 11 : i64} {
  func.func @_detect_kernel(%arg0: i32, %arg1: i32, %arg2: memref<1x8x16x8xf32, #tpu.memory_space<vmem>>, %arg3: memref<1x1x16x8xf32, #tpu.memory_space<vmem>>, %arg4: memref<1x1x16x8xf32, #tpu.memory_space<vmem>>, %arg5: memref<1x1x16x8xf32, #tpu.memory_space<vmem>>, %arg6: memref<1x1x16x8xf32, #tpu.memory_space<vmem>>, %arg7: memref<1x1x16x8xf32, #tpu.memory_space<vmem>>, %arg8: memref<1x1x16x8xf32, #tpu.memory_space<vmem>>, %arg9: memref<9x8x6xf32, #tpu.memory_space<vmem>>, %arg10: memref<1x6xf32, #tpu.memory_space<vmem>>, %arg11: memref<9x2x4xf32, #tpu.memory_space<vmem>>, %arg12: memref<1x4xf32, #tpu.memory_space<vmem>>, %arg13: memref<9x2x2xf32, #tpu.memory_space<vmem>>, %arg14: memref<1x2xf32, #tpu.memory_space<vmem>>, %arg15: memref<1x8x16x8xf32, #tpu.memory_space<vmem>>, %arg16: memref<14x18x8xf32, #tpu.memory_space<vmem>>, %arg17: memref<12x18x2xf32, #tpu.memory_space<vmem>>, %arg18: memref<192x6xf32, #tpu.memory_space<vmem>>, %arg19: memref<160x4xf32, #tpu.memory_space<vmem>>, %arg20: memref<128x2xf32, #tpu.memory_space<vmem>>) attributes {dimension_semantics = [#tpu.dimension_semantics<parallel>, #tpu.dimension_semantics<parallel>], iteration_bounds = array<i64: 2, 2>, scalar_prefetch = 0 : i64, scratch_operands = 5 : i64, tpu.core_type = #tpu.core_type<tc>, window_params = [{transform_indices = @transform_0, window_bounds = array<i64: 1, 8, 16, 8>}, {transform_indices = @transform_1, window_bounds = array<i64: 1, 1, 16, 8>}, {transform_indices = @transform_2, window_bounds = array<i64: 1, 1, 16, 8>}, {transform_indices = @transform_3, window_bounds = array<i64: 1, 1, 16, 8>}, {transform_indices = @transform_4, window_bounds = array<i64: 1, 1, 16, 8>}, {transform_indices = @transform_5, window_bounds = array<i64: 1, 1, 16, 8>}, {transform_indices = @transform_6, window_bounds = array<i64: 1, 1, 16, 8>}, {pipeline_mode = #tpu.pipeline_mode<synchronous>, transform_indices = @transform_7, window_bounds = array<i64: 9, 8, 6>}, {pipeline_mode = #tpu.pipeline_mode<synchronous>, transform_indices = @transform_8, window_bounds = array<i64: 1, 6>}, {pipeline_mode = #tpu.pipeline_mode<synchronous>, transform_indices = @transform_9, window_bounds = array<i64: 9, 2, 4>}, {pipeline_mode = #tpu.pipeline_mode<synchronous>, transform_indices = @transform_10, window_bounds = array<i64: 1, 4>}, {pipeline_mode = #tpu.pipeline_mode<synchronous>, transform_indices = @transform_11, window_bounds = array<i64: 9, 2, 2>}, {pipeline_mode = #tpu.pipeline_mode<synchronous>, transform_indices = @transform_12, window_bounds = array<i64: 1, 2>}, {transform_indices = @transform_13, window_bounds = array<i64: 1, 8, 16, 8>}]} {
    %cst = arith.constant 0.000000e+00 : f32
    %0 = vector.broadcast %cst : f32 to vector<14x1x8xf32>
    %c0 = arith.constant 0 : index
    %c0_0 = arith.constant 0 : index
    %c0_1 = arith.constant 0 : index
    %1 = vector.load %arg16[%c0, %c0_0, %c0_1] : memref<14x18x8xf32, #tpu.memory_space<vmem>>, vector<14x1x8xf32>
    tpu.vector_store %arg16[%c0, %c0_0, %c0_1], %0 {strides = array<i32>} : memref<14x18x8xf32, #tpu.memory_space<vmem>>, vector<14x1x8xf32>,
    %cst_2 = arith.constant 0.000000e+00 : f32
    %2 = vector.broadcast %cst_2 : f32 to vector<14x1x8xf32>
    %c0_3 = arith.constant 0 : index
    %c17 = arith.constant 17 : index
    %c0_4 = arith.constant 0 : index
    %3 = vector.load %arg16[%c0_3, %c17, %c0_4] : memref<14x18x8xf32, #tpu.memory_space<vmem>>, vector<14x1x8xf32>
    tpu.vector_store %arg16[%c0_3, %c17, %c0_4], %2 {strides = array<i32>} : memref<14x18x8xf32, #tpu.memory_space<vmem>>, vector<14x1x8xf32>,
    %cst_5 = arith.constant 0.000000e+00 : f32
    %4 = vector.broadcast %cst_5 : f32 to vector<12x1x2xf32>
    %c0_6 = arith.constant 0 : index
    %c0_7 = arith.constant 0 : index
    %c0_8 = arith.constant 0 : index
    %5 = vector.load %arg17[%c0_6, %c0_7, %c0_8] : memref<12x18x2xf32, #tpu.memory_space<vmem>>, vector<12x1x2xf32>
    tpu.vector_store %arg17[%c0_6, %c0_7, %c0_8], %4 {strides = array<i32>} : memref<12x18x2xf32, #tpu.memory_space<vmem>>, vector<12x1x2xf32>,
    %cst_9 = arith.constant 0.000000e+00 : f32
    %6 = vector.broadcast %cst_9 : f32 to vector<12x1x2xf32>
    %c0_10 = arith.constant 0 : index
    %c17_11 = arith.constant 17 : index
    %c0_12 = arith.constant 0 : index
    %7 = vector.load %arg17[%c0_10, %c17_11, %c0_12] : memref<12x18x2xf32, #tpu.memory_space<vmem>>, vector<12x1x2xf32>
    tpu.vector_store %arg17[%c0_10, %c17_11, %c0_12], %6 {strides = array<i32>} : memref<12x18x2xf32, #tpu.memory_space<vmem>>, vector<12x1x2xf32>,
    %c0_13 = arith.constant 0 : index
    %c0_14 = arith.constant 0 : index
    %c0_15 = arith.constant 0 : index
    %c0_16 = arith.constant 0 : index
    %8 = vector.load %arg2[%c0_13, %c0_14, %c0_15, %c0_16] : memref<1x8x16x8xf32, #tpu.memory_space<vmem>>, vector<1x8x16x8xf32>
    %9 = vector.shape_cast %8 : vector<1x8x16x8xf32> to vector<8x16x8xf32>
    %c3 = arith.constant 3 : index
    %c1 = arith.constant 1 : index
    %c0_17 = arith.constant 0 : index
    %10 = vector.load %arg16[%c3, %c1, %c0_17] : memref<14x18x8xf32, #tpu.memory_space<vmem>>, vector<8x16x8xf32>
    tpu.vector_store %arg16[%c3, %c1, %c0_17], %9 {strides = array<i32>} : memref<14x18x8xf32, #tpu.memory_space<vmem>>, vector<8x16x8xf32>,
    %c0_i32 = arith.constant 0 : i32
    %11 = arith.cmpi sgt, %arg1, %c0_i32 : i32
    %12 = arith.extui %11 : i1 to i32
    %c0_i32_18 = arith.constant 0 : i32
    %13 = arith.cmpi ne, %12, %c0_i32_18 : i32
    scf.if %13 {
      %c0_362 = arith.constant 0 : index
      %c0_363 = arith.constant 0 : index
      %c0_364 = arith.constant 0 : index
      %c0_365 = arith.constant 0 : index
      %291 = vector.load %arg3[%c0_362, %c0_363, %c0_364, %c0_365] : memref<1x1x16x8xf32, #tpu.memory_space<vmem>>, vector<1x1x16x8xf32>
      %292 = vector.shape_cast %291 : vector<1x1x16x8xf32> to vector<1x16x8xf32>
      %c0_366 = arith.constant 0 : index
      %c1_367 = arith.constant 1 : index
      %c0_368 = arith.constant 0 : index
      %293 = vector.load %arg16[%c0_366, %c1_367, %c0_368] : memref<14x18x8xf32, #tpu.memory_space<vmem>>, vector<1x16x8xf32>
      tpu.vector_store %arg16[%c0_366, %c1_367, %c0_368], %292 {strides = array<i32>} : memref<14x18x8xf32, #tpu.memory_space<vmem>>, vector<1x16x8xf32>,
      %c0_369 = arith.constant 0 : index
      %c0_370 = arith.constant 0 : index
      %c0_371 = arith.constant 0 : index
      %c0_372 = arith.constant 0 : index
      %294 = vector.load %arg4[%c0_369, %c0_370, %c0_371, %c0_372] : memref<1x1x16x8xf32, #tpu.memory_space<vmem>>, vector<1x1x16x8xf32>
      %295 = vector.shape_cast %294 : vector<1x1x16x8xf32> to vector<1x16x8xf32>
      %c1_373 = arith.constant 1 : index
      %c1_374 = arith.constant 1 : index
      %c0_375 = arith.constant 0 : index
      %296 = vector.load %arg16[%c1_373, %c1_374, %c0_375] : memref<14x18x8xf32, #tpu.memory_space<vmem>>, vector<1x16x8xf32>
      tpu.vector_store %arg16[%c1_373, %c1_374, %c0_375], %295 {strides = array<i32>} : memref<14x18x8xf32, #tpu.memory_space<vmem>>, vector<1x16x8xf32>,
      %c0_376 = arith.constant 0 : index
      %c0_377 = arith.constant 0 : index
      %c0_378 = arith.constant 0 : index
      %c0_379 = arith.constant 0 : index
      %297 = vector.load %arg5[%c0_376, %c0_377, %c0_378, %c0_379] : memref<1x1x16x8xf32, #tpu.memory_space<vmem>>, vector<1x1x16x8xf32>
      %298 = vector.shape_cast %297 : vector<1x1x16x8xf32> to vector<1x16x8xf32>
      %c2_380 = arith.constant 2 : index
      %c1_381 = arith.constant 1 : index
      %c0_382 = arith.constant 0 : index
      %299 = vector.load %arg16[%c2_380, %c1_381, %c0_382] : memref<14x18x8xf32, #tpu.memory_space<vmem>>, vector<1x16x8xf32>
      tpu.vector_store %arg16[%c2_380, %c1_381, %c0_382], %298 {strides = array<i32>} : memref<14x18x8xf32, #tpu.memory_space<vmem>>, vector<1x16x8xf32>,
    } else {
    }
    %c0_i32_19 = arith.constant 0 : i32
    %14 = arith.cmpi eq, %arg1, %c0_i32_19 : i32
    %15 = arith.extui %14 : i1 to i32
    %c0_i32_20 = arith.constant 0 : i32
    %16 = arith.cmpi ne, %15, %c0_i32_20 : i32
    scf.if %16 {
      %cst_362 = arith.constant 0.000000e+00 : f32
      %291 = vector.broadcast %cst_362 : f32 to vector<3x16x8xf32>
      %c0_363 = arith.constant 0 : index
      %c1_364 = arith.constant 1 : index
      %c0_365 = arith.constant 0 : index
      %292 = vector.load %arg16[%c0_363, %c1_364, %c0_365] : memref<14x18x8xf32, #tpu.memory_space<vmem>>, vector<3x16x8xf32>
      tpu.vector_store %arg16[%c0_363, %c1_364, %c0_365], %291 {strides = array<i32>} : memref<14x18x8xf32, #tpu.memory_space<vmem>>, vector<3x16x8xf32>,
    } else {
    }
    %c1_i32 = arith.constant 1 : i32
    %17 = arith.cmpi slt, %arg1, %c1_i32 : i32
    %18 = arith.extui %17 : i1 to i32
    %c0_i32_21 = arith.constant 0 : i32
    %19 = arith.cmpi ne, %18, %c0_i32_21 : i32
    scf.if %19 {
      %c0_362 = arith.constant 0 : index
      %c0_363 = arith.constant 0 : index
      %c0_364 = arith.constant 0 : index
      %c0_365 = arith.constant 0 : index
      %291 = vector.load %arg6[%c0_362, %c0_363, %c0_364, %c0_365] : memref<1x1x16x8xf32, #tpu.memory_space<vmem>>, vector<1x1x16x8xf32>
      %292 = vector.shape_cast %291 : vector<1x1x16x8xf32> to vector<1x16x8xf32>
      %c11 = arith.constant 11 : index
      %c1_366 = arith.constant 1 : index
      %c0_367 = arith.constant 0 : index
      %293 = vector.load %arg16[%c11, %c1_366, %c0_367] : memref<14x18x8xf32, #tpu.memory_space<vmem>>, vector<1x16x8xf32>
      tpu.vector_store %arg16[%c11, %c1_366, %c0_367], %292 {strides = array<i32>} : memref<14x18x8xf32, #tpu.memory_space<vmem>>, vector<1x16x8xf32>,
      %c0_368 = arith.constant 0 : index
      %c0_369 = arith.constant 0 : index
      %c0_370 = arith.constant 0 : index
      %c0_371 = arith.constant 0 : index
      %294 = vector.load %arg7[%c0_368, %c0_369, %c0_370, %c0_371] : memref<1x1x16x8xf32, #tpu.memory_space<vmem>>, vector<1x1x16x8xf32>
      %295 = vector.shape_cast %294 : vector<1x1x16x8xf32> to vector<1x16x8xf32>
      %c12 = arith.constant 12 : index
      %c1_372 = arith.constant 1 : index
      %c0_373 = arith.constant 0 : index
      %296 = vector.load %arg16[%c12, %c1_372, %c0_373] : memref<14x18x8xf32, #tpu.memory_space<vmem>>, vector<1x16x8xf32>
      tpu.vector_store %arg16[%c12, %c1_372, %c0_373], %295 {strides = array<i32>} : memref<14x18x8xf32, #tpu.memory_space<vmem>>, vector<1x16x8xf32>,
      %c0_374 = arith.constant 0 : index
      %c0_375 = arith.constant 0 : index
      %c0_376 = arith.constant 0 : index
      %c0_377 = arith.constant 0 : index
      %297 = vector.load %arg8[%c0_374, %c0_375, %c0_376, %c0_377] : memref<1x1x16x8xf32, #tpu.memory_space<vmem>>, vector<1x1x16x8xf32>
      %298 = vector.shape_cast %297 : vector<1x1x16x8xf32> to vector<1x16x8xf32>
      %c13 = arith.constant 13 : index
      %c1_378 = arith.constant 1 : index
      %c0_379 = arith.constant 0 : index
      %299 = vector.load %arg16[%c13, %c1_378, %c0_379] : memref<14x18x8xf32, #tpu.memory_space<vmem>>, vector<1x16x8xf32>
      tpu.vector_store %arg16[%c13, %c1_378, %c0_379], %298 {strides = array<i32>} : memref<14x18x8xf32, #tpu.memory_space<vmem>>, vector<1x16x8xf32>,
    } else {
    }
    %c1_i32_22 = arith.constant 1 : i32
    %20 = arith.cmpi eq, %arg1, %c1_i32_22 : i32
    %21 = arith.extui %20 : i1 to i32
    %c0_i32_23 = arith.constant 0 : i32
    %22 = arith.cmpi ne, %21, %c0_i32_23 : i32
    scf.if %22 {
      %cst_362 = arith.constant 0.000000e+00 : f32
      %291 = vector.broadcast %cst_362 : f32 to vector<3x16x8xf32>
      %c11 = arith.constant 11 : index
      %c1_363 = arith.constant 1 : index
      %c0_364 = arith.constant 0 : index
      %292 = vector.load %arg16[%c11, %c1_363, %c0_364] : memref<14x18x8xf32, #tpu.memory_space<vmem>>, vector<3x16x8xf32>
      tpu.vector_store %arg16[%c11, %c1_363, %c0_364], %291 {strides = array<i32>} : memref<14x18x8xf32, #tpu.memory_space<vmem>>, vector<3x16x8xf32>,
    } else {
    }
    %c0_24 = arith.constant 0 : index
    %c0_25 = arith.constant 0 : index
    %23 = vector.load %arg10[%c0_24, %c0_25] : memref<1x6xf32, #tpu.memory_space<vmem>>, vector<1x6xf32>
    %24 = vector.shape_cast %23 : vector<1x6xf32> to vector<1x6xf32>
    %25 = vector.broadcast %24 : vector<1x6xf32> to vector<192x6xf32>
    %c0_26 = arith.constant 0 : index
    %c0_27 = arith.constant 0 : index
    %26 = vector.load %arg18[%c0_26, %c0_27] : memref<192x6xf32, #tpu.memory_space<vmem>>, vector<192x6xf32>
    tpu.vector_store %arg18[%c0_26, %c0_27], %25 {strides = array<i32>} : memref<192x6xf32, #tpu.memory_space<vmem>>, vector<192x6xf32>,
    %c0_28 = arith.constant 0 : index
    %c0_29 = arith.constant 0 : index
    %c0_30 = arith.constant 0 : index
    %27 = vector.load %arg16[%c0_28, %c0_29, %c0_30] : memref<14x18x8xf32, #tpu.memory_space<vmem>>, vector<12x16x8xf32>
    %28 = vector.shape_cast %27 : vector<12x16x8xf32> to vector<192x8xf32>
    %c0_31 = arith.constant 0 : index
    %c0_32 = arith.constant 0 : index
    %29 = vector.load %arg18[%c0_31, %c0_32] : memref<192x6xf32, #tpu.memory_space<vmem>>, vector<192x6xf32>
    %c0_33 = arith.constant 0 : index
    %c0_34 = arith.constant 0 : index
    %c0_35 = arith.constant 0 : index
    %30 = vector.load %arg9[%c0_33, %c0_34, %c0_35] : memref<9x8x6xf32, #tpu.memory_space<vmem>>, vector<1x8x6xf32>
    %31 = vector.shape_cast %30 : vector<1x8x6xf32> to vector<8x6xf32>
    %cst_36 = arith.constant dense<0.000000e+00> : vector<192x6xf32>
    %32 = tpu.matmul %28, %31, %cst_36 {dimension_numbers = #tpu.dot_dimension_numbers<[1], [0], [0], [1], [0, 0, 1, 1], [], []>} : vector<192x8xf32>, vector<8x6xf32>, vector<192x6xf32> -> vector<192x6xf32>
    %33 = arith.addf %29, %32 : vector<192x6xf32>
    %c0_37 = arith.constant 0 : index
    %c0_38 = arith.constant 0 : index
    %34 = vector.load %arg18[%c0_37, %c0_38] : memref<192x6xf32, #tpu.memory_space<vmem>>, vector<192x6xf32>
    tpu.vector_store %arg18[%c0_37, %c0_38], %33 {strides = array<i32>} : memref<192x6xf32, #tpu.memory_space<vmem>>, vector<192x6xf32>,
    %c0_39 = arith.constant 0 : index
    %c1_40 = arith.constant 1 : index
    %c0_41 = arith.constant 0 : index
    %35 = vector.load %arg16[%c0_39, %c1_40, %c0_41] : memref<14x18x8xf32, #tpu.memory_space<vmem>>, vector<12x16x8xf32>
    %36 = vector.shape_cast %35 : vector<12x16x8xf32> to vector<192x8xf32>
    %c0_42 = arith.constant 0 : index
    %c0_43 = arith.constant 0 : index
    %37 = vector.load %arg18[%c0_42, %c0_43] : memref<192x6xf32, #tpu.memory_space<vmem>>, vector<192x6xf32>
    %c1_44 = arith.constant 1 : index
    %c0_45 = arith.constant 0 : index
    %c0_46 = arith.constant 0 : index
    %38 = vector.load %arg9[%c1_44, %c0_45, %c0_46] : memref<9x8x6xf32, #tpu.memory_space<vmem>>, vector<1x8x6xf32>
    %39 = vector.shape_cast %38 : vector<1x8x6xf32> to vector<8x6xf32>
    %cst_47 = arith.constant dense<0.000000e+00> : vector<192x6xf32>
    %40 = tpu.matmul %36, %39, %cst_47 {dimension_numbers = #tpu.dot_dimension_numbers<[1], [0], [0], [1], [0, 0, 1, 1], [], []>} : vector<192x8xf32>, vector<8x6xf32>, vector<192x6xf32> -> vector<192x6xf32>
    %41 = arith.addf %37, %40 : vector<192x6xf32>
    %c0_48 = arith.constant 0 : index
    %c0_49 = arith.constant 0 : index
    %42 = vector.load %arg18[%c0_48, %c0_49] : memref<192x6xf32, #tpu.memory_space<vmem>>, vector<192x6xf32>
    tpu.vector_store %arg18[%c0_48, %c0_49], %41 {strides = array<i32>} : memref<192x6xf32, #tpu.memory_space<vmem>>, vector<192x6xf32>,
    %c0_50 = arith.constant 0 : index
    %c2 = arith.constant 2 : index
    %c0_51 = arith.constant 0 : index
    %43 = vector.load %arg16[%c0_50, %c2, %c0_51] : memref<14x18x8xf32, #tpu.memory_space<vmem>>, vector<12x16x8xf32>
    %44 = vector.shape_cast %43 : vector<12x16x8xf32> to vector<192x8xf32>
    %c0_52 = arith.constant 0 : index
    %c0_53 = arith.constant 0 : index
    %45 = vector.load %arg18[%c0_52, %c0_53] : memref<192x6xf32, #tpu.memory_space<vmem>>, vector<192x6xf32>
    %c2_54 = arith.constant 2 : index
    %c0_55 = arith.constant 0 : index
    %c0_56 = arith.constant 0 : index
    %46 = vector.load %arg9[%c2_54, %c0_55, %c0_56] : memref<9x8x6xf32, #tpu.memory_space<vmem>>, vector<1x8x6xf32>
    %47 = vector.shape_cast %46 : vector<1x8x6xf32> to vector<8x6xf32>
    %cst_57 = arith.constant dense<0.000000e+00> : vector<192x6xf32>
    %48 = tpu.matmul %44, %47, %cst_57 {dimension_numbers = #tpu.dot_dimension_numbers<[1], [0], [0], [1], [0, 0, 1, 1], [], []>} : vector<192x8xf32>, vector<8x6xf32>, vector<192x6xf32> -> vector<192x6xf32>
    %49 = arith.addf %45, %48 : vector<192x6xf32>
    %c0_58 = arith.constant 0 : index
    %c0_59 = arith.constant 0 : index
    %50 = vector.load %arg18[%c0_58, %c0_59] : memref<192x6xf32, #tpu.memory_space<vmem>>, vector<192x6xf32>
    tpu.vector_store %arg18[%c0_58, %c0_59], %49 {strides = array<i32>} : memref<192x6xf32, #tpu.memory_space<vmem>>, vector<192x6xf32>,
    %c1_60 = arith.constant 1 : index
    %c0_61 = arith.constant 0 : index
    %c0_62 = arith.constant 0 : index
    %51 = vector.load %arg16[%c1_60, %c0_61, %c0_62] : memref<14x18x8xf32, #tpu.memory_space<vmem>>, vector<12x16x8xf32>
    %52 = vector.shape_cast %51 : vector<12x16x8xf32> to vector<192x8xf32>
    %c0_63 = arith.constant 0 : index
    %c0_64 = arith.constant 0 : index
    %53 = vector.load %arg18[%c0_63, %c0_64] : memref<192x6xf32, #tpu.memory_space<vmem>>, vector<192x6xf32>
    %c3_65 = arith.constant 3 : index
    %c0_66 = arith.constant 0 : index
    %c0_67 = arith.constant 0 : index
    %54 = vector.load %arg9[%c3_65, %c0_66, %c0_67] : memref<9x8x6xf32, #tpu.memory_space<vmem>>, vector<1x8x6xf32>
    %55 = vector.shape_cast %54 : vector<1x8x6xf32> to vector<8x6xf32>
    %cst_68 = arith.constant dense<0.000000e+00> : vector<192x6xf32>
    %56 = tpu.matmul %52, %55, %cst_68 {dimension_numbers = #tpu.dot_dimension_numbers<[1], [0], [0], [1], [0, 0, 1, 1], [], []>} : vector<192x8xf32>, vector<8x6xf32>, vector<192x6xf32> -> vector<192x6xf32>
    %57 = arith.addf %53, %56 : vector<192x6xf32>
    %c0_69 = arith.constant 0 : index
    %c0_70 = arith.constant 0 : index
    %58 = vector.load %arg18[%c0_69, %c0_70] : memref<192x6xf32, #tpu.memory_space<vmem>>, vector<192x6xf32>
    tpu.vector_store %arg18[%c0_69, %c0_70], %57 {strides = array<i32>} : memref<192x6xf32, #tpu.memory_space<vmem>>, vector<192x6xf32>,
    %c1_71 = arith.constant 1 : index
    %c1_72 = arith.constant 1 : index
    %c0_73 = arith.constant 0 : index
    %59 = vector.load %arg16[%c1_71, %c1_72, %c0_73] : memref<14x18x8xf32, #tpu.memory_space<vmem>>, vector<12x16x8xf32>
    %60 = vector.shape_cast %59 : vector<12x16x8xf32> to vector<192x8xf32>
    %c0_74 = arith.constant 0 : index
    %c0_75 = arith.constant 0 : index
    %61 = vector.load %arg18[%c0_74, %c0_75] : memref<192x6xf32, #tpu.memory_space<vmem>>, vector<192x6xf32>
    %c4 = arith.constant 4 : index
    %c0_76 = arith.constant 0 : index
    %c0_77 = arith.constant 0 : index
    %62 = vector.load %arg9[%c4, %c0_76, %c0_77] : memref<9x8x6xf32, #tpu.memory_space<vmem>>, vector<1x8x6xf32>
    %63 = vector.shape_cast %62 : vector<1x8x6xf32> to vector<8x6xf32>
    %cst_78 = arith.constant dense<0.000000e+00> : vector<192x6xf32>
    %64 = tpu.matmul %60, %63, %cst_78 {dimension_numbers = #tpu.dot_dimension_numbers<[1], [0], [0], [1], [0, 0, 1, 1], [], []>} : vector<192x8xf32>, vector<8x6xf32>, vector<192x6xf32> -> vector<192x6xf32>
    %65 = arith.addf %61, %64 : vector<192x6xf32>
    %c0_79 = arith.constant 0 : index
    %c0_80 = arith.constant 0 : index
    %66 = vector.load %arg18[%c0_79, %c0_80] : memref<192x6xf32, #tpu.memory_space<vmem>>, vector<192x6xf32>
    tpu.vector_store %arg18[%c0_79, %c0_80], %65 {strides = array<i32>} : memref<192x6xf32, #tpu.memory_space<vmem>>, vector<192x6xf32>,
    %c1_81 = arith.constant 1 : index
    %c2_82 = arith.constant 2 : index
    %c0_83 = arith.constant 0 : index
    %67 = vector.load %arg16[%c1_81, %c2_82, %c0_83] : memref<14x18x8xf32, #tpu.memory_space<vmem>>, vector<12x16x8xf32>
    %68 = vector.shape_cast %67 : vector<12x16x8xf32> to vector<192x8xf32>
    %c0_84 = arith.constant 0 : index
    %c0_85 = arith.constant 0 : index
    %69 = vector.load %arg18[%c0_84, %c0_85] : memref<192x6xf32, #tpu.memory_space<vmem>>, vector<192x6xf32>
    %c5 = arith.constant 5 : index
    %c0_86 = arith.constant 0 : index
    %c0_87 = arith.constant 0 : index
    %70 = vector.load %arg9[%c5, %c0_86, %c0_87] : memref<9x8x6xf32, #tpu.memory_space<vmem>>, vector<1x8x6xf32>
    %71 = vector.shape_cast %70 : vector<1x8x6xf32> to vector<8x6xf32>
    %cst_88 = arith.constant dense<0.000000e+00> : vector<192x6xf32>
    %72 = tpu.matmul %68, %71, %cst_88 {dimension_numbers = #tpu.dot_dimension_numbers<[1], [0], [0], [1], [0, 0, 1, 1], [], []>} : vector<192x8xf32>, vector<8x6xf32>, vector<192x6xf32> -> vector<192x6xf32>
    %73 = arith.addf %69, %72 : vector<192x6xf32>
    %c0_89 = arith.constant 0 : index
    %c0_90 = arith.constant 0 : index
    %74 = vector.load %arg18[%c0_89, %c0_90] : memref<192x6xf32, #tpu.memory_space<vmem>>, vector<192x6xf32>
    tpu.vector_store %arg18[%c0_89, %c0_90], %73 {strides = array<i32>} : memref<192x6xf32, #tpu.memory_space<vmem>>, vector<192x6xf32>,
    %c2_91 = arith.constant 2 : index
    %c0_92 = arith.constant 0 : index
    %c0_93 = arith.constant 0 : index
    %75 = vector.load %arg16[%c2_91, %c0_92, %c0_93] : memref<14x18x8xf32, #tpu.memory_space<vmem>>, vector<12x16x8xf32>
    %76 = vector.shape_cast %75 : vector<12x16x8xf32> to vector<192x8xf32>
    %c0_94 = arith.constant 0 : index
    %c0_95 = arith.constant 0 : index
    %77 = vector.load %arg18[%c0_94, %c0_95] : memref<192x6xf32, #tpu.memory_space<vmem>>, vector<192x6xf32>
    %c6 = arith.constant 6 : index
    %c0_96 = arith.constant 0 : index
    %c0_97 = arith.constant 0 : index
    %78 = vector.load %arg9[%c6, %c0_96, %c0_97] : memref<9x8x6xf32, #tpu.memory_space<vmem>>, vector<1x8x6xf32>
    %79 = vector.shape_cast %78 : vector<1x8x6xf32> to vector<8x6xf32>
    %cst_98 = arith.constant dense<0.000000e+00> : vector<192x6xf32>
    %80 = tpu.matmul %76, %79, %cst_98 {dimension_numbers = #tpu.dot_dimension_numbers<[1], [0], [0], [1], [0, 0, 1, 1], [], []>} : vector<192x8xf32>, vector<8x6xf32>, vector<192x6xf32> -> vector<192x6xf32>
    %81 = arith.addf %77, %80 : vector<192x6xf32>
    %c0_99 = arith.constant 0 : index
    %c0_100 = arith.constant 0 : index
    %82 = vector.load %arg18[%c0_99, %c0_100] : memref<192x6xf32, #tpu.memory_space<vmem>>, vector<192x6xf32>
    tpu.vector_store %arg18[%c0_99, %c0_100], %81 {strides = array<i32>} : memref<192x6xf32, #tpu.memory_space<vmem>>, vector<192x6xf32>,
    %c2_101 = arith.constant 2 : index
    %c1_102 = arith.constant 1 : index
    %c0_103 = arith.constant 0 : index
    %83 = vector.load %arg16[%c2_101, %c1_102, %c0_103] : memref<14x18x8xf32, #tpu.memory_space<vmem>>, vector<12x16x8xf32>
    %84 = vector.shape_cast %83 : vector<12x16x8xf32> to vector<192x8xf32>
    %c0_104 = arith.constant 0 : index
    %c0_105 = arith.constant 0 : index
    %85 = vector.load %arg18[%c0_104, %c0_105] : memref<192x6xf32, #tpu.memory_space<vmem>>, vector<192x6xf32>
    %c7 = arith.constant 7 : index
    %c0_106 = arith.constant 0 : index
    %c0_107 = arith.constant 0 : index
    %86 = vector.load %arg9[%c7, %c0_106, %c0_107] : memref<9x8x6xf32, #tpu.memory_space<vmem>>, vector<1x8x6xf32>
    %87 = vector.shape_cast %86 : vector<1x8x6xf32> to vector<8x6xf32>
    %cst_108 = arith.constant dense<0.000000e+00> : vector<192x6xf32>
    %88 = tpu.matmul %84, %87, %cst_108 {dimension_numbers = #tpu.dot_dimension_numbers<[1], [0], [0], [1], [0, 0, 1, 1], [], []>} : vector<192x8xf32>, vector<8x6xf32>, vector<192x6xf32> -> vector<192x6xf32>
    %89 = arith.addf %85, %88 : vector<192x6xf32>
    %c0_109 = arith.constant 0 : index
    %c0_110 = arith.constant 0 : index
    %90 = vector.load %arg18[%c0_109, %c0_110] : memref<192x6xf32, #tpu.memory_space<vmem>>, vector<192x6xf32>
    tpu.vector_store %arg18[%c0_109, %c0_110], %89 {strides = array<i32>} : memref<192x6xf32, #tpu.memory_space<vmem>>, vector<192x6xf32>,
    %c2_111 = arith.constant 2 : index
    %c2_112 = arith.constant 2 : index
    %c0_113 = arith.constant 0 : index
    %91 = vector.load %arg16[%c2_111, %c2_112, %c0_113] : memref<14x18x8xf32, #tpu.memory_space<vmem>>, vector<12x16x8xf32>
    %92 = vector.shape_cast %91 : vector<12x16x8xf32> to vector<192x8xf32>
    %c0_114 = arith.constant 0 : index
    %c0_115 = arith.constant 0 : index
    %93 = vector.load %arg18[%c0_114, %c0_115] : memref<192x6xf32, #tpu.memory_space<vmem>>, vector<192x6xf32>
    %c8 = arith.constant 8 : index
    %c0_116 = arith.constant 0 : index
    %c0_117 = arith.constant 0 : index
    %94 = vector.load %arg9[%c8, %c0_116, %c0_117] : memref<9x8x6xf32, #tpu.memory_space<vmem>>, vector<1x8x6xf32>
    %95 = vector.shape_cast %94 : vector<1x8x6xf32> to vector<8x6xf32>
    %cst_118 = arith.constant dense<0.000000e+00> : vector<192x6xf32>
    %96 = tpu.matmul %92, %95, %cst_118 {dimension_numbers = #tpu.dot_dimension_numbers<[1], [0], [0], [1], [0, 0, 1, 1], [], []>} : vector<192x8xf32>, vector<8x6xf32>, vector<192x6xf32> -> vector<192x6xf32>
    %97 = arith.addf %93, %96 : vector<192x6xf32>
    %c0_119 = arith.constant 0 : index
    %c0_120 = arith.constant 0 : index
    %98 = vector.load %arg18[%c0_119, %c0_120] : memref<192x6xf32, #tpu.memory_space<vmem>>, vector<192x6xf32>
    tpu.vector_store %arg18[%c0_119, %c0_120], %97 {strides = array<i32>} : memref<192x6xf32, #tpu.memory_space<vmem>>, vector<192x6xf32>,
    %c0_121 = arith.constant 0 : index
    %c0_122 = arith.constant 0 : index
    %99 = vector.load %arg18[%c0_121, %c0_122] : memref<192x6xf32, #tpu.memory_space<vmem>>, vector<192x6xf32>
    %cst_123 = arith.constant 0.000000e+00 : f32
    %100 = vector.broadcast %cst_123 : f32 to vector<192x6xf32>
    %101 = arith.maximumf %99, %100 : vector<192x6xf32>
    %102 = vector.extract_strided_slice %101 {offsets = [0, 0], sizes = [192, 4], strides = [1, 1]} : vector<192x6xf32> to vector<192x4xf32>
    %103 = vector.shape_cast %102 : vector<192x4xf32> to vector<12x16x4xf32>
    %104 = vector.extract_strided_slice %103 {offsets = [2, 0, 0], sizes = [8, 16, 4], strides = [1, 1, 1]} : vector<12x16x4xf32> to vector<8x16x4xf32>
    %105 = vector.extract_strided_slice %101 {offsets = [0, 4], sizes = [192, 2], strides = [1, 1]} : vector<192x6xf32> to vector<192x2xf32>
    %106 = vector.shape_cast %105 : vector<192x2xf32> to vector<12x16x2xf32>
    %c0_124 = arith.constant 0 : index
    %c1_125 = arith.constant 1 : index
    %c0_126 = arith.constant 0 : index
    %107 = vector.load %arg17[%c0_124, %c1_125, %c0_126] : memref<12x18x2xf32, #tpu.memory_space<vmem>>, vector<12x16x2xf32>
    tpu.vector_store %arg17[%c0_124, %c1_125, %c0_126], %106 {strides = array<i32>} : memref<12x18x2xf32, #tpu.memory_space<vmem>>, vector<12x16x2xf32>,
    %c0_i32_127 = arith.constant 0 : i32
    %108 = arith.cmpi eq, %arg1, %c0_i32_127 : i32
    %109 = arith.extui %108 : i1 to i32
    %c0_i32_128 = arith.constant 0 : i32
    %110 = arith.cmpi ne, %109, %c0_i32_128 : i32
    scf.if %110 {
      %cst_362 = arith.constant 0.000000e+00 : f32
      %291 = vector.broadcast %cst_362 : f32 to vector<2x16x2xf32>
      %c0_363 = arith.constant 0 : index
      %c1_364 = arith.constant 1 : index
      %c0_365 = arith.constant 0 : index
      %292 = vector.load %arg17[%c0_363, %c1_364, %c0_365] : memref<12x18x2xf32, #tpu.memory_space<vmem>>, vector<2x16x2xf32>
      tpu.vector_store %arg17[%c0_363, %c1_364, %c0_365], %291 {strides = array<i32>} : memref<12x18x2xf32, #tpu.memory_space<vmem>>, vector<2x16x2xf32>,
    } else {
    }
    %c1_i32_129 = arith.constant 1 : i32
    %111 = arith.cmpi eq, %arg1, %c1_i32_129 : i32
    %112 = arith.extui %111 : i1 to i32
    %c0_i32_130 = arith.constant 0 : i32
    %113 = arith.cmpi ne, %112, %c0_i32_130 : i32
    scf.if %113 {
      %cst_362 = arith.constant 0.000000e+00 : f32
      %291 = vector.broadcast %cst_362 : f32 to vector<2x16x2xf32>
      %c10 = arith.constant 10 : index
      %c1_363 = arith.constant 1 : index
      %c0_364 = arith.constant 0 : index
      %292 = vector.load %arg17[%c10, %c1_363, %c0_364] : memref<12x18x2xf32, #tpu.memory_space<vmem>>, vector<2x16x2xf32>
      tpu.vector_store %arg17[%c10, %c1_363, %c0_364], %291 {strides = array<i32>} : memref<12x18x2xf32, #tpu.memory_space<vmem>>, vector<2x16x2xf32>,
    } else {
    }
    %c0_131 = arith.constant 0 : index
    %c0_132 = arith.constant 0 : index
    %114 = vector.load %arg12[%c0_131, %c0_132] : memref<1x4xf32, #tpu.memory_space<vmem>>, vector<1x4xf32>
    %115 = vector.shape_cast %114 : vector<1x4xf32> to vector<1x4xf32>
    %116 = vector.broadcast %115 : vector<1x4xf32> to vector<160x4xf32>
    %c0_133 = arith.constant 0 : index
    %c0_134 = arith.constant 0 : index
    %117 = vector.load %arg19[%c0_133, %c0_134] : memref<160x4xf32, #tpu.memory_space<vmem>>, vector<160x4xf32>
    tpu.vector_store %arg19[%c0_133, %c0_134], %116 {strides = array<i32>} : memref<160x4xf32, #tpu.memory_space<vmem>>, vector<160x4xf32>,
    %c0_135 = arith.constant 0 : index
    %c0_136 = arith.constant 0 : index
    %c0_137 = arith.constant 0 : index
    %118 = vector.load %arg17[%c0_135, %c0_136, %c0_137] : memref<12x18x2xf32, #tpu.memory_space<vmem>>, vector<10x16x2xf32>
    %119 = vector.shape_cast %118 : vector<10x16x2xf32> to vector<160x2xf32>
    %c0_138 = arith.constant 0 : index
    %c0_139 = arith.constant 0 : index
    %120 = vector.load %arg19[%c0_138, %c0_139] : memref<160x4xf32, #tpu.memory_space<vmem>>, vector<160x4xf32>
    %c0_140 = arith.constant 0 : index
    %c0_141 = arith.constant 0 : index
    %c0_142 = arith.constant 0 : index
    %121 = vector.load %arg11[%c0_140, %c0_141, %c0_142] : memref<9x2x4xf32, #tpu.memory_space<vmem>>, vector<1x2x4xf32>
    %122 = vector.shape_cast %121 : vector<1x2x4xf32> to vector<2x4xf32>
    %cst_143 = arith.constant dense<0.000000e+00> : vector<160x4xf32>
    %123 = tpu.matmul %119, %122, %cst_143 {dimension_numbers = #tpu.dot_dimension_numbers<[1], [0], [0], [1], [0, 0, 1, 1], [], []>} : vector<160x2xf32>, vector<2x4xf32>, vector<160x4xf32> -> vector<160x4xf32>
    %124 = arith.addf %120, %123 : vector<160x4xf32>
    %c0_144 = arith.constant 0 : index
    %c0_145 = arith.constant 0 : index
    %125 = vector.load %arg19[%c0_144, %c0_145] : memref<160x4xf32, #tpu.memory_space<vmem>>, vector<160x4xf32>
    tpu.vector_store %arg19[%c0_144, %c0_145], %124 {strides = array<i32>} : memref<160x4xf32, #tpu.memory_space<vmem>>, vector<160x4xf32>,
    %c0_146 = arith.constant 0 : index
    %c1_147 = arith.constant 1 : index
    %c0_148 = arith.constant 0 : index
    %126 = vector.load %arg17[%c0_146, %c1_147, %c0_148] : memref<12x18x2xf32, #tpu.memory_space<vmem>>, vector<10x16x2xf32>
    %127 = vector.shape_cast %126 : vector<10x16x2xf32> to vector<160x2xf32>
    %c0_149 = arith.constant 0 : index
    %c0_150 = arith.constant 0 : index
    %128 = vector.load %arg19[%c0_149, %c0_150] : memref<160x4xf32, #tpu.memory_space<vmem>>, vector<160x4xf32>
    %c1_151 = arith.constant 1 : index
    %c0_152 = arith.constant 0 : index
    %c0_153 = arith.constant 0 : index
    %129 = vector.load %arg11[%c1_151, %c0_152, %c0_153] : memref<9x2x4xf32, #tpu.memory_space<vmem>>, vector<1x2x4xf32>
    %130 = vector.shape_cast %129 : vector<1x2x4xf32> to vector<2x4xf32>
    %cst_154 = arith.constant dense<0.000000e+00> : vector<160x4xf32>
    %131 = tpu.matmul %127, %130, %cst_154 {dimension_numbers = #tpu.dot_dimension_numbers<[1], [0], [0], [1], [0, 0, 1, 1], [], []>} : vector<160x2xf32>, vector<2x4xf32>, vector<160x4xf32> -> vector<160x4xf32>
    %132 = arith.addf %128, %131 : vector<160x4xf32>
    %c0_155 = arith.constant 0 : index
    %c0_156 = arith.constant 0 : index
    %133 = vector.load %arg19[%c0_155, %c0_156] : memref<160x4xf32, #tpu.memory_space<vmem>>, vector<160x4xf32>
    tpu.vector_store %arg19[%c0_155, %c0_156], %132 {strides = array<i32>} : memref<160x4xf32, #tpu.memory_space<vmem>>, vector<160x4xf32>,
    %c0_157 = arith.constant 0 : index
    %c2_158 = arith.constant 2 : index
    %c0_159 = arith.constant 0 : index
    %134 = vector.load %arg17[%c0_157, %c2_158, %c0_159] : memref<12x18x2xf32, #tpu.memory_space<vmem>>, vector<10x16x2xf32>
    %135 = vector.shape_cast %134 : vector<10x16x2xf32> to vector<160x2xf32>
    %c0_160 = arith.constant 0 : index
    %c0_161 = arith.constant 0 : index
    %136 = vector.load %arg19[%c0_160, %c0_161] : memref<160x4xf32, #tpu.memory_space<vmem>>, vector<160x4xf32>
    %c2_162 = arith.constant 2 : index
    %c0_163 = arith.constant 0 : index
    %c0_164 = arith.constant 0 : index
    %137 = vector.load %arg11[%c2_162, %c0_163, %c0_164] : memref<9x2x4xf32, #tpu.memory_space<vmem>>, vector<1x2x4xf32>
    %138 = vector.shape_cast %137 : vector<1x2x4xf32> to vector<2x4xf32>
    %cst_165 = arith.constant dense<0.000000e+00> : vector<160x4xf32>
    %139 = tpu.matmul %135, %138, %cst_165 {dimension_numbers = #tpu.dot_dimension_numbers<[1], [0], [0], [1], [0, 0, 1, 1], [], []>} : vector<160x2xf32>, vector<2x4xf32>, vector<160x4xf32> -> vector<160x4xf32>
    %140 = arith.addf %136, %139 : vector<160x4xf32>
    %c0_166 = arith.constant 0 : index
    %c0_167 = arith.constant 0 : index
    %141 = vector.load %arg19[%c0_166, %c0_167] : memref<160x4xf32, #tpu.memory_space<vmem>>, vector<160x4xf32>
    tpu.vector_store %arg19[%c0_166, %c0_167], %140 {strides = array<i32>} : memref<160x4xf32, #tpu.memory_space<vmem>>, vector<160x4xf32>,
    %c1_168 = arith.constant 1 : index
    %c0_169 = arith.constant 0 : index
    %c0_170 = arith.constant 0 : index
    %142 = vector.load %arg17[%c1_168, %c0_169, %c0_170] : memref<12x18x2xf32, #tpu.memory_space<vmem>>, vector<10x16x2xf32>
    %143 = vector.shape_cast %142 : vector<10x16x2xf32> to vector<160x2xf32>
    %c0_171 = arith.constant 0 : index
    %c0_172 = arith.constant 0 : index
    %144 = vector.load %arg19[%c0_171, %c0_172] : memref<160x4xf32, #tpu.memory_space<vmem>>, vector<160x4xf32>
    %c3_173 = arith.constant 3 : index
    %c0_174 = arith.constant 0 : index
    %c0_175 = arith.constant 0 : index
    %145 = vector.load %arg11[%c3_173, %c0_174, %c0_175] : memref<9x2x4xf32, #tpu.memory_space<vmem>>, vector<1x2x4xf32>
    %146 = vector.shape_cast %145 : vector<1x2x4xf32> to vector<2x4xf32>
    %cst_176 = arith.constant dense<0.000000e+00> : vector<160x4xf32>
    %147 = tpu.matmul %143, %146, %cst_176 {dimension_numbers = #tpu.dot_dimension_numbers<[1], [0], [0], [1], [0, 0, 1, 1], [], []>} : vector<160x2xf32>, vector<2x4xf32>, vector<160x4xf32> -> vector<160x4xf32>
    %148 = arith.addf %144, %147 : vector<160x4xf32>
    %c0_177 = arith.constant 0 : index
    %c0_178 = arith.constant 0 : index
    %149 = vector.load %arg19[%c0_177, %c0_178] : memref<160x4xf32, #tpu.memory_space<vmem>>, vector<160x4xf32>
    tpu.vector_store %arg19[%c0_177, %c0_178], %148 {strides = array<i32>} : memref<160x4xf32, #tpu.memory_space<vmem>>, vector<160x4xf32>,
    %c1_179 = arith.constant 1 : index
    %c1_180 = arith.constant 1 : index
    %c0_181 = arith.constant 0 : index
    %150 = vector.load %arg17[%c1_179, %c1_180, %c0_181] : memref<12x18x2xf32, #tpu.memory_space<vmem>>, vector<10x16x2xf32>
    %151 = vector.shape_cast %150 : vector<10x16x2xf32> to vector<160x2xf32>
    %c0_182 = arith.constant 0 : index
    %c0_183 = arith.constant 0 : index
    %152 = vector.load %arg19[%c0_182, %c0_183] : memref<160x4xf32, #tpu.memory_space<vmem>>, vector<160x4xf32>
    %c4_184 = arith.constant 4 : index
    %c0_185 = arith.constant 0 : index
    %c0_186 = arith.constant 0 : index
    %153 = vector.load %arg11[%c4_184, %c0_185, %c0_186] : memref<9x2x4xf32, #tpu.memory_space<vmem>>, vector<1x2x4xf32>
    %154 = vector.shape_cast %153 : vector<1x2x4xf32> to vector<2x4xf32>
    %cst_187 = arith.constant dense<0.000000e+00> : vector<160x4xf32>
    %155 = tpu.matmul %151, %154, %cst_187 {dimension_numbers = #tpu.dot_dimension_numbers<[1], [0], [0], [1], [0, 0, 1, 1], [], []>} : vector<160x2xf32>, vector<2x4xf32>, vector<160x4xf32> -> vector<160x4xf32>
    %156 = arith.addf %152, %155 : vector<160x4xf32>
    %c0_188 = arith.constant 0 : index
    %c0_189 = arith.constant 0 : index
    %157 = vector.load %arg19[%c0_188, %c0_189] : memref<160x4xf32, #tpu.memory_space<vmem>>, vector<160x4xf32>
    tpu.vector_store %arg19[%c0_188, %c0_189], %156 {strides = array<i32>} : memref<160x4xf32, #tpu.memory_space<vmem>>, vector<160x4xf32>,
    %c1_190 = arith.constant 1 : index
    %c2_191 = arith.constant 2 : index
    %c0_192 = arith.constant 0 : index
    %158 = vector.load %arg17[%c1_190, %c2_191, %c0_192] : memref<12x18x2xf32, #tpu.memory_space<vmem>>, vector<10x16x2xf32>
    %159 = vector.shape_cast %158 : vector<10x16x2xf32> to vector<160x2xf32>
    %c0_193 = arith.constant 0 : index
    %c0_194 = arith.constant 0 : index
    %160 = vector.load %arg19[%c0_193, %c0_194] : memref<160x4xf32, #tpu.memory_space<vmem>>, vector<160x4xf32>
    %c5_195 = arith.constant 5 : index
    %c0_196 = arith.constant 0 : index
    %c0_197 = arith.constant 0 : index
    %161 = vector.load %arg11[%c5_195, %c0_196, %c0_197] : memref<9x2x4xf32, #tpu.memory_space<vmem>>, vector<1x2x4xf32>
    %162 = vector.shape_cast %161 : vector<1x2x4xf32> to vector<2x4xf32>
    %cst_198 = arith.constant dense<0.000000e+00> : vector<160x4xf32>
    %163 = tpu.matmul %159, %162, %cst_198 {dimension_numbers = #tpu.dot_dimension_numbers<[1], [0], [0], [1], [0, 0, 1, 1], [], []>} : vector<160x2xf32>, vector<2x4xf32>, vector<160x4xf32> -> vector<160x4xf32>
    %164 = arith.addf %160, %163 : vector<160x4xf32>
    %c0_199 = arith.constant 0 : index
    %c0_200 = arith.constant 0 : index
    %165 = vector.load %arg19[%c0_199, %c0_200] : memref<160x4xf32, #tpu.memory_space<vmem>>, vector<160x4xf32>
    tpu.vector_store %arg19[%c0_199, %c0_200], %164 {strides = array<i32>} : memref<160x4xf32, #tpu.memory_space<vmem>>, vector<160x4xf32>,
    %c2_201 = arith.constant 2 : index
    %c0_202 = arith.constant 0 : index
    %c0_203 = arith.constant 0 : index
    %166 = vector.load %arg17[%c2_201, %c0_202, %c0_203] : memref<12x18x2xf32, #tpu.memory_space<vmem>>, vector<10x16x2xf32>
    %167 = vector.shape_cast %166 : vector<10x16x2xf32> to vector<160x2xf32>
    %c0_204 = arith.constant 0 : index
    %c0_205 = arith.constant 0 : index
    %168 = vector.load %arg19[%c0_204, %c0_205] : memref<160x4xf32, #tpu.memory_space<vmem>>, vector<160x4xf32>
    %c6_206 = arith.constant 6 : index
    %c0_207 = arith.constant 0 : index
    %c0_208 = arith.constant 0 : index
    %169 = vector.load %arg11[%c6_206, %c0_207, %c0_208] : memref<9x2x4xf32, #tpu.memory_space<vmem>>, vector<1x2x4xf32>
    %170 = vector.shape_cast %169 : vector<1x2x4xf32> to vector<2x4xf32>
    %cst_209 = arith.constant dense<0.000000e+00> : vector<160x4xf32>
    %171 = tpu.matmul %167, %170, %cst_209 {dimension_numbers = #tpu.dot_dimension_numbers<[1], [0], [0], [1], [0, 0, 1, 1], [], []>} : vector<160x2xf32>, vector<2x4xf32>, vector<160x4xf32> -> vector<160x4xf32>
    %172 = arith.addf %168, %171 : vector<160x4xf32>
    %c0_210 = arith.constant 0 : index
    %c0_211 = arith.constant 0 : index
    %173 = vector.load %arg19[%c0_210, %c0_211] : memref<160x4xf32, #tpu.memory_space<vmem>>, vector<160x4xf32>
    tpu.vector_store %arg19[%c0_210, %c0_211], %172 {strides = array<i32>} : memref<160x4xf32, #tpu.memory_space<vmem>>, vector<160x4xf32>,
    %c2_212 = arith.constant 2 : index
    %c1_213 = arith.constant 1 : index
    %c0_214 = arith.constant 0 : index
    %174 = vector.load %arg17[%c2_212, %c1_213, %c0_214] : memref<12x18x2xf32, #tpu.memory_space<vmem>>, vector<10x16x2xf32>
    %175 = vector.shape_cast %174 : vector<10x16x2xf32> to vector<160x2xf32>
    %c0_215 = arith.constant 0 : index
    %c0_216 = arith.constant 0 : index
    %176 = vector.load %arg19[%c0_215, %c0_216] : memref<160x4xf32, #tpu.memory_space<vmem>>, vector<160x4xf32>
    %c7_217 = arith.constant 7 : index
    %c0_218 = arith.constant 0 : index
    %c0_219 = arith.constant 0 : index
    %177 = vector.load %arg11[%c7_217, %c0_218, %c0_219] : memref<9x2x4xf32, #tpu.memory_space<vmem>>, vector<1x2x4xf32>
    %178 = vector.shape_cast %177 : vector<1x2x4xf32> to vector<2x4xf32>
    %cst_220 = arith.constant dense<0.000000e+00> : vector<160x4xf32>
    %179 = tpu.matmul %175, %178, %cst_220 {dimension_numbers = #tpu.dot_dimension_numbers<[1], [0], [0], [1], [0, 0, 1, 1], [], []>} : vector<160x2xf32>, vector<2x4xf32>, vector<160x4xf32> -> vector<160x4xf32>
    %180 = arith.addf %176, %179 : vector<160x4xf32>
    %c0_221 = arith.constant 0 : index
    %c0_222 = arith.constant 0 : index
    %181 = vector.load %arg19[%c0_221, %c0_222] : memref<160x4xf32, #tpu.memory_space<vmem>>, vector<160x4xf32>
    tpu.vector_store %arg19[%c0_221, %c0_222], %180 {strides = array<i32>} : memref<160x4xf32, #tpu.memory_space<vmem>>, vector<160x4xf32>,
    %c2_223 = arith.constant 2 : index
    %c2_224 = arith.constant 2 : index
    %c0_225 = arith.constant 0 : index
    %182 = vector.load %arg17[%c2_223, %c2_224, %c0_225] : memref<12x18x2xf32, #tpu.memory_space<vmem>>, vector<10x16x2xf32>
    %183 = vector.shape_cast %182 : vector<10x16x2xf32> to vector<160x2xf32>
    %c0_226 = arith.constant 0 : index
    %c0_227 = arith.constant 0 : index
    %184 = vector.load %arg19[%c0_226, %c0_227] : memref<160x4xf32, #tpu.memory_space<vmem>>, vector<160x4xf32>
    %c8_228 = arith.constant 8 : index
    %c0_229 = arith.constant 0 : index
    %c0_230 = arith.constant 0 : index
    %185 = vector.load %arg11[%c8_228, %c0_229, %c0_230] : memref<9x2x4xf32, #tpu.memory_space<vmem>>, vector<1x2x4xf32>
    %186 = vector.shape_cast %185 : vector<1x2x4xf32> to vector<2x4xf32>
    %cst_231 = arith.constant dense<0.000000e+00> : vector<160x4xf32>
    %187 = tpu.matmul %183, %186, %cst_231 {dimension_numbers = #tpu.dot_dimension_numbers<[1], [0], [0], [1], [0, 0, 1, 1], [], []>} : vector<160x2xf32>, vector<2x4xf32>, vector<160x4xf32> -> vector<160x4xf32>
    %188 = arith.addf %184, %187 : vector<160x4xf32>
    %c0_232 = arith.constant 0 : index
    %c0_233 = arith.constant 0 : index
    %189 = vector.load %arg19[%c0_232, %c0_233] : memref<160x4xf32, #tpu.memory_space<vmem>>, vector<160x4xf32>
    tpu.vector_store %arg19[%c0_232, %c0_233], %188 {strides = array<i32>} : memref<160x4xf32, #tpu.memory_space<vmem>>, vector<160x4xf32>,
    %c0_234 = arith.constant 0 : index
    %c0_235 = arith.constant 0 : index
    %190 = vector.load %arg19[%c0_234, %c0_235] : memref<160x4xf32, #tpu.memory_space<vmem>>, vector<160x4xf32>
    %cst_236 = arith.constant 0.000000e+00 : f32
    %191 = vector.broadcast %cst_236 : f32 to vector<160x4xf32>
    %192 = arith.maximumf %190, %191 : vector<160x4xf32>
    %193 = vector.extract_strided_slice %192 {offsets = [0, 0], sizes = [160, 2], strides = [1, 1]} : vector<160x4xf32> to vector<160x2xf32>
    %194 = vector.shape_cast %193 : vector<160x2xf32> to vector<10x16x2xf32>
    %195 = vector.extract_strided_slice %194 {offsets = [1, 0, 0], sizes = [8, 16, 2], strides = [1, 1, 1]} : vector<10x16x2xf32> to vector<8x16x2xf32>
    %196 = vector.extract_strided_slice %192 {offsets = [0, 2], sizes = [160, 2], strides = [1, 1]} : vector<160x4xf32> to vector<160x2xf32>
    %197 = vector.shape_cast %196 : vector<160x2xf32> to vector<10x16x2xf32>
    %c0_237 = arith.constant 0 : index
    %c1_238 = arith.constant 1 : index
    %c0_239 = arith.constant 0 : index
    %198 = vector.load %arg17[%c0_237, %c1_238, %c0_239] : memref<12x18x2xf32, #tpu.memory_space<vmem>>, vector<10x16x2xf32>
    tpu.vector_store %arg17[%c0_237, %c1_238, %c0_239], %197 {strides = array<i32>} : memref<12x18x2xf32, #tpu.memory_space<vmem>>, vector<10x16x2xf32>,
    %c0_i32_240 = arith.constant 0 : i32
    %199 = arith.cmpi eq, %arg1, %c0_i32_240 : i32
    %200 = arith.extui %199 : i1 to i32
    %c0_i32_241 = arith.constant 0 : i32
    %201 = arith.cmpi ne, %200, %c0_i32_241 : i32
    scf.if %201 {
      %cst_362 = arith.constant 0.000000e+00 : f32
      %291 = vector.broadcast %cst_362 : f32 to vector<1x16x2xf32>
      %c0_363 = arith.constant 0 : index
      %c1_364 = arith.constant 1 : index
      %c0_365 = arith.constant 0 : index
      %292 = vector.load %arg17[%c0_363, %c1_364, %c0_365] : memref<12x18x2xf32, #tpu.memory_space<vmem>>, vector<1x16x2xf32>
      tpu.vector_store %arg17[%c0_363, %c1_364, %c0_365], %291 {strides = array<i32>} : memref<12x18x2xf32, #tpu.memory_space<vmem>>, vector<1x16x2xf32>,
    } else {
    }
    %c1_i32_242 = arith.constant 1 : i32
    %202 = arith.cmpi eq, %arg1, %c1_i32_242 : i32
    %203 = arith.extui %202 : i1 to i32
    %c0_i32_243 = arith.constant 0 : i32
    %204 = arith.cmpi ne, %203, %c0_i32_243 : i32
    scf.if %204 {
      %cst_362 = arith.constant 0.000000e+00 : f32
      %291 = vector.broadcast %cst_362 : f32 to vector<1x16x2xf32>
      %c9 = arith.constant 9 : index
      %c1_363 = arith.constant 1 : index
      %c0_364 = arith.constant 0 : index
      %292 = vector.load %arg17[%c9, %c1_363, %c0_364] : memref<12x18x2xf32, #tpu.memory_space<vmem>>, vector<1x16x2xf32>
      tpu.vector_store %arg17[%c9, %c1_363, %c0_364], %291 {strides = array<i32>} : memref<12x18x2xf32, #tpu.memory_space<vmem>>, vector<1x16x2xf32>,
    } else {
    }
    %c0_244 = arith.constant 0 : index
    %c0_245 = arith.constant 0 : index
    %205 = vector.load %arg14[%c0_244, %c0_245] : memref<1x2xf32, #tpu.memory_space<vmem>>, vector<1x2xf32>
    %206 = vector.shape_cast %205 : vector<1x2xf32> to vector<1x2xf32>
    %207 = vector.broadcast %206 : vector<1x2xf32> to vector<128x2xf32>
    %c0_246 = arith.constant 0 : index
    %c0_247 = arith.constant 0 : index
    %208 = vector.load %arg20[%c0_246, %c0_247] : memref<128x2xf32, #tpu.memory_space<vmem>>, vector<128x2xf32>
    tpu.vector_store %arg20[%c0_246, %c0_247], %207 {strides = array<i32>} : memref<128x2xf32, #tpu.memory_space<vmem>>, vector<128x2xf32>,
    %c0_248 = arith.constant 0 : index
    %c0_249 = arith.constant 0 : index
    %c0_250 = arith.constant 0 : index
    %209 = vector.load %arg17[%c0_248, %c0_249, %c0_250] : memref<12x18x2xf32, #tpu.memory_space<vmem>>, vector<8x16x2xf32>
    %210 = vector.shape_cast %209 : vector<8x16x2xf32> to vector<128x2xf32>
    %c0_251 = arith.constant 0 : index
    %c0_252 = arith.constant 0 : index
    %211 = vector.load %arg20[%c0_251, %c0_252] : memref<128x2xf32, #tpu.memory_space<vmem>>, vector<128x2xf32>
    %c0_253 = arith.constant 0 : index
    %c0_254 = arith.constant 0 : index
    %c0_255 = arith.constant 0 : index
    %212 = vector.load %arg13[%c0_253, %c0_254, %c0_255] : memref<9x2x2xf32, #tpu.memory_space<vmem>>, vector<1x2x2xf32>
    %213 = vector.shape_cast %212 : vector<1x2x2xf32> to vector<2x2xf32>
    %cst_256 = arith.constant dense<0.000000e+00> : vector<128x2xf32>
    %214 = tpu.matmul %210, %213, %cst_256 {dimension_numbers = #tpu.dot_dimension_numbers<[1], [0], [0], [1], [0, 0, 1, 1], [], []>} : vector<128x2xf32>, vector<2x2xf32>, vector<128x2xf32> -> vector<128x2xf32>
    %215 = arith.addf %211, %214 : vector<128x2xf32>
    %c0_257 = arith.constant 0 : index
    %c0_258 = arith.constant 0 : index
    %216 = vector.load %arg20[%c0_257, %c0_258] : memref<128x2xf32, #tpu.memory_space<vmem>>, vector<128x2xf32>
    tpu.vector_store %arg20[%c0_257, %c0_258], %215 {strides = array<i32>} : memref<128x2xf32, #tpu.memory_space<vmem>>, vector<128x2xf32>,
    %c0_259 = arith.constant 0 : index
    %c1_260 = arith.constant 1 : index
    %c0_261 = arith.constant 0 : index
    %217 = vector.load %arg17[%c0_259, %c1_260, %c0_261] : memref<12x18x2xf32, #tpu.memory_space<vmem>>, vector<8x16x2xf32>
    %218 = vector.shape_cast %217 : vector<8x16x2xf32> to vector<128x2xf32>
    %c0_262 = arith.constant 0 : index
    %c0_263 = arith.constant 0 : index
    %219 = vector.load %arg20[%c0_262, %c0_263] : memref<128x2xf32, #tpu.memory_space<vmem>>, vector<128x2xf32>
    %c1_264 = arith.constant 1 : index
    %c0_265 = arith.constant 0 : index
    %c0_266 = arith.constant 0 : index
    %220 = vector.load %arg13[%c1_264, %c0_265, %c0_266] : memref<9x2x2xf32, #tpu.memory_space<vmem>>, vector<1x2x2xf32>
    %221 = vector.shape_cast %220 : vector<1x2x2xf32> to vector<2x2xf32>
    %cst_267 = arith.constant dense<0.000000e+00> : vector<128x2xf32>
    %222 = tpu.matmul %218, %221, %cst_267 {dimension_numbers = #tpu.dot_dimension_numbers<[1], [0], [0], [1], [0, 0, 1, 1], [], []>} : vector<128x2xf32>, vector<2x2xf32>, vector<128x2xf32> -> vector<128x2xf32>
    %223 = arith.addf %219, %222 : vector<128x2xf32>
    %c0_268 = arith.constant 0 : index
    %c0_269 = arith.constant 0 : index
    %224 = vector.load %arg20[%c0_268, %c0_269] : memref<128x2xf32, #tpu.memory_space<vmem>>, vector<128x2xf32>
    tpu.vector_store %arg20[%c0_268, %c0_269], %223 {strides = array<i32>} : memref<128x2xf32, #tpu.memory_space<vmem>>, vector<128x2xf32>,
    %c0_270 = arith.constant 0 : index
    %c2_271 = arith.constant 2 : index
    %c0_272 = arith.constant 0 : index
    %225 = vector.load %arg17[%c0_270, %c2_271, %c0_272] : memref<12x18x2xf32, #tpu.memory_space<vmem>>, vector<8x16x2xf32>
    %226 = vector.shape_cast %225 : vector<8x16x2xf32> to vector<128x2xf32>
    %c0_273 = arith.constant 0 : index
    %c0_274 = arith.constant 0 : index
    %227 = vector.load %arg20[%c0_273, %c0_274] : memref<128x2xf32, #tpu.memory_space<vmem>>, vector<128x2xf32>
    %c2_275 = arith.constant 2 : index
    %c0_276 = arith.constant 0 : index
    %c0_277 = arith.constant 0 : index
    %228 = vector.load %arg13[%c2_275, %c0_276, %c0_277] : memref<9x2x2xf32, #tpu.memory_space<vmem>>, vector<1x2x2xf32>
    %229 = vector.shape_cast %228 : vector<1x2x2xf32> to vector<2x2xf32>
    %cst_278 = arith.constant dense<0.000000e+00> : vector<128x2xf32>
    %230 = tpu.matmul %226, %229, %cst_278 {dimension_numbers = #tpu.dot_dimension_numbers<[1], [0], [0], [1], [0, 0, 1, 1], [], []>} : vector<128x2xf32>, vector<2x2xf32>, vector<128x2xf32> -> vector<128x2xf32>
    %231 = arith.addf %227, %230 : vector<128x2xf32>
    %c0_279 = arith.constant 0 : index
    %c0_280 = arith.constant 0 : index
    %232 = vector.load %arg20[%c0_279, %c0_280] : memref<128x2xf32, #tpu.memory_space<vmem>>, vector<128x2xf32>
    tpu.vector_store %arg20[%c0_279, %c0_280], %231 {strides = array<i32>} : memref<128x2xf32, #tpu.memory_space<vmem>>, vector<128x2xf32>,
    %c1_281 = arith.constant 1 : index
    %c0_282 = arith.constant 0 : index
    %c0_283 = arith.constant 0 : index
    %233 = vector.load %arg17[%c1_281, %c0_282, %c0_283] : memref<12x18x2xf32, #tpu.memory_space<vmem>>, vector<8x16x2xf32>
    %234 = vector.shape_cast %233 : vector<8x16x2xf32> to vector<128x2xf32>
    %c0_284 = arith.constant 0 : index
    %c0_285 = arith.constant 0 : index
    %235 = vector.load %arg20[%c0_284, %c0_285] : memref<128x2xf32, #tpu.memory_space<vmem>>, vector<128x2xf32>
    %c3_286 = arith.constant 3 : index
    %c0_287 = arith.constant 0 : index
    %c0_288 = arith.constant 0 : index
    %236 = vector.load %arg13[%c3_286, %c0_287, %c0_288] : memref<9x2x2xf32, #tpu.memory_space<vmem>>, vector<1x2x2xf32>
    %237 = vector.shape_cast %236 : vector<1x2x2xf32> to vector<2x2xf32>
    %cst_289 = arith.constant dense<0.000000e+00> : vector<128x2xf32>
    %238 = tpu.matmul %234, %237, %cst_289 {dimension_numbers = #tpu.dot_dimension_numbers<[1], [0], [0], [1], [0, 0, 1, 1], [], []>} : vector<128x2xf32>, vector<2x2xf32>, vector<128x2xf32> -> vector<128x2xf32>
    %239 = arith.addf %235, %238 : vector<128x2xf32>
    %c0_290 = arith.constant 0 : index
    %c0_291 = arith.constant 0 : index
    %240 = vector.load %arg20[%c0_290, %c0_291] : memref<128x2xf32, #tpu.memory_space<vmem>>, vector<128x2xf32>
    tpu.vector_store %arg20[%c0_290, %c0_291], %239 {strides = array<i32>} : memref<128x2xf32, #tpu.memory_space<vmem>>, vector<128x2xf32>,
    %c1_292 = arith.constant 1 : index
    %c1_293 = arith.constant 1 : index
    %c0_294 = arith.constant 0 : index
    %241 = vector.load %arg17[%c1_292, %c1_293, %c0_294] : memref<12x18x2xf32, #tpu.memory_space<vmem>>, vector<8x16x2xf32>
    %242 = vector.shape_cast %241 : vector<8x16x2xf32> to vector<128x2xf32>
    %c0_295 = arith.constant 0 : index
    %c0_296 = arith.constant 0 : index
    %243 = vector.load %arg20[%c0_295, %c0_296] : memref<128x2xf32, #tpu.memory_space<vmem>>, vector<128x2xf32>
    %c4_297 = arith.constant 4 : index
    %c0_298 = arith.constant 0 : index
    %c0_299 = arith.constant 0 : index
    %244 = vector.load %arg13[%c4_297, %c0_298, %c0_299] : memref<9x2x2xf32, #tpu.memory_space<vmem>>, vector<1x2x2xf32>
    %245 = vector.shape_cast %244 : vector<1x2x2xf32> to vector<2x2xf32>
    %cst_300 = arith.constant dense<0.000000e+00> : vector<128x2xf32>
    %246 = tpu.matmul %242, %245, %cst_300 {dimension_numbers = #tpu.dot_dimension_numbers<[1], [0], [0], [1], [0, 0, 1, 1], [], []>} : vector<128x2xf32>, vector<2x2xf32>, vector<128x2xf32> -> vector<128x2xf32>
    %247 = arith.addf %243, %246 : vector<128x2xf32>
    %c0_301 = arith.constant 0 : index
    %c0_302 = arith.constant 0 : index
    %248 = vector.load %arg20[%c0_301, %c0_302] : memref<128x2xf32, #tpu.memory_space<vmem>>, vector<128x2xf32>
    tpu.vector_store %arg20[%c0_301, %c0_302], %247 {strides = array<i32>} : memref<128x2xf32, #tpu.memory_space<vmem>>, vector<128x2xf32>,
    %c1_303 = arith.constant 1 : index
    %c2_304 = arith.constant 2 : index
    %c0_305 = arith.constant 0 : index
    %249 = vector.load %arg17[%c1_303, %c2_304, %c0_305] : memref<12x18x2xf32, #tpu.memory_space<vmem>>, vector<8x16x2xf32>
    %250 = vector.shape_cast %249 : vector<8x16x2xf32> to vector<128x2xf32>
    %c0_306 = arith.constant 0 : index
    %c0_307 = arith.constant 0 : index
    %251 = vector.load %arg20[%c0_306, %c0_307] : memref<128x2xf32, #tpu.memory_space<vmem>>, vector<128x2xf32>
    %c5_308 = arith.constant 5 : index
    %c0_309 = arith.constant 0 : index
    %c0_310 = arith.constant 0 : index
    %252 = vector.load %arg13[%c5_308, %c0_309, %c0_310] : memref<9x2x2xf32, #tpu.memory_space<vmem>>, vector<1x2x2xf32>
    %253 = vector.shape_cast %252 : vector<1x2x2xf32> to vector<2x2xf32>
    %cst_311 = arith.constant dense<0.000000e+00> : vector<128x2xf32>
    %254 = tpu.matmul %250, %253, %cst_311 {dimension_numbers = #tpu.dot_dimension_numbers<[1], [0], [0], [1], [0, 0, 1, 1], [], []>} : vector<128x2xf32>, vector<2x2xf32>, vector<128x2xf32> -> vector<128x2xf32>
    %255 = arith.addf %251, %254 : vector<128x2xf32>
    %c0_312 = arith.constant 0 : index
    %c0_313 = arith.constant 0 : index
    %256 = vector.load %arg20[%c0_312, %c0_313] : memref<128x2xf32, #tpu.memory_space<vmem>>, vector<128x2xf32>
    tpu.vector_store %arg20[%c0_312, %c0_313], %255 {strides = array<i32>} : memref<128x2xf32, #tpu.memory_space<vmem>>, vector<128x2xf32>,
    %c2_314 = arith.constant 2 : index
    %c0_315 = arith.constant 0 : index
    %c0_316 = arith.constant 0 : index
    %257 = vector.load %arg17[%c2_314, %c0_315, %c0_316] : memref<12x18x2xf32, #tpu.memory_space<vmem>>, vector<8x16x2xf32>
    %258 = vector.shape_cast %257 : vector<8x16x2xf32> to vector<128x2xf32>
    %c0_317 = arith.constant 0 : index
    %c0_318 = arith.constant 0 : index
    %259 = vector.load %arg20[%c0_317, %c0_318] : memref<128x2xf32, #tpu.memory_space<vmem>>, vector<128x2xf32>
    %c6_319 = arith.constant 6 : index
    %c0_320 = arith.constant 0 : index
    %c0_321 = arith.constant 0 : index
    %260 = vector.load %arg13[%c6_319, %c0_320, %c0_321] : memref<9x2x2xf32, #tpu.memory_space<vmem>>, vector<1x2x2xf32>
    %261 = vector.shape_cast %260 : vector<1x2x2xf32> to vector<2x2xf32>
    %cst_322 = arith.constant dense<0.000000e+00> : vector<128x2xf32>
    %262 = tpu.matmul %258, %261, %cst_322 {dimension_numbers = #tpu.dot_dimension_numbers<[1], [0], [0], [1], [0, 0, 1, 1], [], []>} : vector<128x2xf32>, vector<2x2xf32>, vector<128x2xf32> -> vector<128x2xf32>
    %263 = arith.addf %259, %262 : vector<128x2xf32>
    %c0_323 = arith.constant 0 : index
    %c0_324 = arith.constant 0 : index
    %264 = vector.load %arg20[%c0_323, %c0_324] : memref<128x2xf32, #tpu.memory_space<vmem>>, vector<128x2xf32>
    tpu.vector_store %arg20[%c0_323, %c0_324], %263 {strides = array<i32>} : memref<128x2xf32, #tpu.memory_space<vmem>>, vector<128x2xf32>,
    %c2_325 = arith.constant 2 : index
    %c1_326 = arith.constant 1 : index
    %c0_327 = arith.constant 0 : index
    %265 = vector.load %arg17[%c2_325, %c1_326, %c0_327] : memref<12x18x2xf32, #tpu.memory_space<vmem>>, vector<8x16x2xf32>
    %266 = vector.shape_cast %265 : vector<8x16x2xf32> to vector<128x2xf32>
    %c0_328 = arith.constant 0 : index
    %c0_329 = arith.constant 0 : index
    %267 = vector.load %arg20[%c0_328, %c0_329] : memref<128x2xf32, #tpu.memory_space<vmem>>, vector<128x2xf32>
    %c7_330 = arith.constant 7 : index
    %c0_331 = arith.constant 0 : index
    %c0_332 = arith.constant 0 : index
    %268 = vector.load %arg13[%c7_330, %c0_331, %c0_332] : memref<9x2x2xf32, #tpu.memory_space<vmem>>, vector<1x2x2xf32>
    %269 = vector.shape_cast %268 : vector<1x2x2xf32> to vector<2x2xf32>
    %cst_333 = arith.constant dense<0.000000e+00> : vector<128x2xf32>
    %270 = tpu.matmul %266, %269, %cst_333 {dimension_numbers = #tpu.dot_dimension_numbers<[1], [0], [0], [1], [0, 0, 1, 1], [], []>} : vector<128x2xf32>, vector<2x2xf32>, vector<128x2xf32> -> vector<128x2xf32>
    %271 = arith.addf %267, %270 : vector<128x2xf32>
    %c0_334 = arith.constant 0 : index
    %c0_335 = arith.constant 0 : index
    %272 = vector.load %arg20[%c0_334, %c0_335] : memref<128x2xf32, #tpu.memory_space<vmem>>, vector<128x2xf32>
    tpu.vector_store %arg20[%c0_334, %c0_335], %271 {strides = array<i32>} : memref<128x2xf32, #tpu.memory_space<vmem>>, vector<128x2xf32>,
    %c2_336 = arith.constant 2 : index
    %c2_337 = arith.constant 2 : index
    %c0_338 = arith.constant 0 : index
    %273 = vector.load %arg17[%c2_336, %c2_337, %c0_338] : memref<12x18x2xf32, #tpu.memory_space<vmem>>, vector<8x16x2xf32>
    %274 = vector.shape_cast %273 : vector<8x16x2xf32> to vector<128x2xf32>
    %c0_339 = arith.constant 0 : index
    %c0_340 = arith.constant 0 : index
    %275 = vector.load %arg20[%c0_339, %c0_340] : memref<128x2xf32, #tpu.memory_space<vmem>>, vector<128x2xf32>
    %c8_341 = arith.constant 8 : index
    %c0_342 = arith.constant 0 : index
    %c0_343 = arith.constant 0 : index
    %276 = vector.load %arg13[%c8_341, %c0_342, %c0_343] : memref<9x2x2xf32, #tpu.memory_space<vmem>>, vector<1x2x2xf32>
    %277 = vector.shape_cast %276 : vector<1x2x2xf32> to vector<2x2xf32>
    %cst_344 = arith.constant dense<0.000000e+00> : vector<128x2xf32>
    %278 = tpu.matmul %274, %277, %cst_344 {dimension_numbers = #tpu.dot_dimension_numbers<[1], [0], [0], [1], [0, 0, 1, 1], [], []>} : vector<128x2xf32>, vector<2x2xf32>, vector<128x2xf32> -> vector<128x2xf32>
    %279 = arith.addf %275, %278 : vector<128x2xf32>
    %c0_345 = arith.constant 0 : index
    %c0_346 = arith.constant 0 : index
    %280 = vector.load %arg20[%c0_345, %c0_346] : memref<128x2xf32, #tpu.memory_space<vmem>>, vector<128x2xf32>
    tpu.vector_store %arg20[%c0_345, %c0_346], %279 {strides = array<i32>} : memref<128x2xf32, #tpu.memory_space<vmem>>, vector<128x2xf32>,
    %c0_347 = arith.constant 0 : index
    %c0_348 = arith.constant 0 : index
    %281 = vector.load %arg20[%c0_347, %c0_348] : memref<128x2xf32, #tpu.memory_space<vmem>>, vector<128x2xf32>
    %cst_349 = arith.constant 0.000000e+00 : f32
    %282 = vector.broadcast %cst_349 : f32 to vector<128x2xf32>
    %283 = arith.maximumf %281, %282 : vector<128x2xf32>
    %284 = vector.shape_cast %283 : vector<128x2xf32> to vector<8x16x2xf32>
    %285 = vector.shape_cast %104 : vector<8x16x4xf32> to vector<1x8x16x4xf32>
    %c0_350 = arith.constant 0 : index
    %c0_351 = arith.constant 0 : index
    %c0_352 = arith.constant 0 : index
    %c0_353 = arith.constant 0 : index
    %286 = vector.load %arg15[%c0_350, %c0_351, %c0_352, %c0_353] : memref<1x8x16x8xf32, #tpu.memory_space<vmem>>, vector<1x8x16x4xf32>
    tpu.vector_store %arg15[%c0_350, %c0_351, %c0_352, %c0_353], %285 {strides = array<i32>} : memref<1x8x16x8xf32, #tpu.memory_space<vmem>>, vector<1x8x16x4xf32>,
    %287 = vector.shape_cast %195 : vector<8x16x2xf32> to vector<1x8x16x2xf32>
    %c0_354 = arith.constant 0 : index
    %c0_355 = arith.constant 0 : index
    %c0_356 = arith.constant 0 : index
    %c4_357 = arith.constant 4 : index
    %288 = vector.load %arg15[%c0_354, %c0_355, %c0_356, %c4_357] : memref<1x8x16x8xf32, #tpu.memory_space<vmem>>, vector<1x8x16x2xf32>
    tpu.vector_store %arg15[%c0_354, %c0_355, %c0_356, %c4_357], %287 {strides = array<i32>} : memref<1x8x16x8xf32, #tpu.memory_space<vmem>>, vector<1x8x16x2xf32>,
    %289 = vector.shape_cast %284 : vector<8x16x2xf32> to vector<1x8x16x2xf32>
    %c0_358 = arith.constant 0 : index
    %c0_359 = arith.constant 0 : index
    %c0_360 = arith.constant 0 : index
    %c6_361 = arith.constant 6 : index
    %290 = vector.load %arg15[%c0_358, %c0_359, %c0_360, %c6_361] : memref<1x8x16x8xf32, #tpu.memory_space<vmem>>, vector<1x8x16x2xf32>
    tpu.vector_store %arg15[%c0_358, %c0_359, %c0_360, %c6_361], %289 {strides = array<i32>} : memref<1x8x16x8xf32, #tpu.memory_space<vmem>>, vector<1x8x16x2xf32>,
    return
  }
  func.func @transform_0(%arg0: i32, %arg1: i32) -> (i32, i32, i32, i32) {
    %c0_i32 = arith.constant 0 : i32
    %c0_i32_0 = arith.constant 0 : i32
    %c0_i32_1 = arith.constant 0 : i32
    return %arg0, %arg1, %c0_i32, %c0_i32_0 : i32, i32, i32, i32
  }
  func.func @transform_1(%arg0: i32, %arg1: i32) -> (i32, i32, i32, i32) {
    %c8_i32 = arith.constant 8 : i32
    %0 = arith.muli %arg1, %c8_i32 : i32
    %c3_i32 = arith.constant 3 : i32
    %1 = arith.subi %0, %c3_i32 : i32
    %c0_i32 = arith.constant 0 : i32
    %2 = arith.addi %1, %c0_i32 : i32
    %c0_i32_0 = arith.constant 0 : i32
    %3 = arith.maxsi %2, %c0_i32_0 : i32
    %c0_i32_1 = arith.constant 0 : i32
    %c0_i32_2 = arith.constant 0 : i32
    %c0_i32_3 = arith.constant 0 : i32
    return %arg0, %3, %c0_i32_1, %c0_i32_2 : i32, i32, i32, i32
  }
  func.func @transform_2(%arg0: i32, %arg1: i32) -> (i32, i32, i32, i32) {
    %c8_i32 = arith.constant 8 : i32
    %0 = arith.muli %arg1, %c8_i32 : i32
    %c3_i32 = arith.constant 3 : i32
    %1 = arith.subi %0, %c3_i32 : i32
    %c1_i32 = arith.constant 1 : i32
    %2 = arith.addi %1, %c1_i32 : i32
    %c0_i32 = arith.constant 0 : i32
    %3 = arith.maxsi %2, %c0_i32 : i32
    %c0_i32_0 = arith.constant 0 : i32
    %c0_i32_1 = arith.constant 0 : i32
    %c0_i32_2 = arith.constant 0 : i32
    return %arg0, %3, %c0_i32_0, %c0_i32_1 : i32, i32, i32, i32
  }
  func.func @transform_3(%arg0: i32, %arg1: i32) -> (i32, i32, i32, i32) {
    %c8_i32 = arith.constant 8 : i32
    %0 = arith.muli %arg1, %c8_i32 : i32
    %c3_i32 = arith.constant 3 : i32
    %1 = arith.subi %0, %c3_i32 : i32
    %c2_i32 = arith.constant 2 : i32
    %2 = arith.addi %1, %c2_i32 : i32
    %c0_i32 = arith.constant 0 : i32
    %3 = arith.maxsi %2, %c0_i32 : i32
    %c0_i32_0 = arith.constant 0 : i32
    %c0_i32_1 = arith.constant 0 : i32
    %c0_i32_2 = arith.constant 0 : i32
    return %arg0, %3, %c0_i32_0, %c0_i32_1 : i32, i32, i32, i32
  }
  func.func @transform_4(%arg0: i32, %arg1: i32) -> (i32, i32, i32, i32) {
    %c8_i32 = arith.constant 8 : i32
    %0 = arith.muli %arg1, %c8_i32 : i32
    %c8_i32_0 = arith.constant 8 : i32
    %1 = arith.addi %0, %c8_i32_0 : i32
    %c0_i32 = arith.constant 0 : i32
    %2 = arith.addi %1, %c0_i32 : i32
    %c15_i32 = arith.constant 15 : i32
    %3 = arith.minsi %2, %c15_i32 : i32
    %c0_i32_1 = arith.constant 0 : i32
    %c0_i32_2 = arith.constant 0 : i32
    %c0_i32_3 = arith.constant 0 : i32
    return %arg0, %3, %c0_i32_1, %c0_i32_2 : i32, i32, i32, i32
  }
  func.func @transform_5(%arg0: i32, %arg1: i32) -> (i32, i32, i32, i32) {
    %c8_i32 = arith.constant 8 : i32
    %0 = arith.muli %arg1, %c8_i32 : i32
    %c8_i32_0 = arith.constant 8 : i32
    %1 = arith.addi %0, %c8_i32_0 : i32
    %c1_i32 = arith.constant 1 : i32
    %2 = arith.addi %1, %c1_i32 : i32
    %c15_i32 = arith.constant 15 : i32
    %3 = arith.minsi %2, %c15_i32 : i32
    %c0_i32 = arith.constant 0 : i32
    %c0_i32_1 = arith.constant 0 : i32
    %c0_i32_2 = arith.constant 0 : i32
    return %arg0, %3, %c0_i32, %c0_i32_1 : i32, i32, i32, i32
  }
  func.func @transform_6(%arg0: i32, %arg1: i32) -> (i32, i32, i32, i32) {
    %c8_i32 = arith.constant 8 : i32
    %0 = arith.muli %arg1, %c8_i32 : i32
    %c8_i32_0 = arith.constant 8 : i32
    %1 = arith.addi %0, %c8_i32_0 : i32
    %c2_i32 = arith.constant 2 : i32
    %2 = arith.addi %1, %c2_i32 : i32
    %c15_i32 = arith.constant 15 : i32
    %3 = arith.minsi %2, %c15_i32 : i32
    %c0_i32 = arith.constant 0 : i32
    %c0_i32_1 = arith.constant 0 : i32
    %c0_i32_2 = arith.constant 0 : i32
    return %arg0, %3, %c0_i32, %c0_i32_1 : i32, i32, i32, i32
  }
  func.func @transform_7(%arg0: i32, %arg1: i32) -> (i32, i32, i32) {
    %c0_i32 = arith.constant 0 : i32
    %c0_i32_0 = arith.constant 0 : i32
    %c0_i32_1 = arith.constant 0 : i32
    %c0_i32_2 = arith.constant 0 : i32
    return %c0_i32, %c0_i32_0, %c0_i32_1 : i32, i32, i32
  }
  func.func @transform_8(%arg0: i32, %arg1: i32) -> (i32, i32) {
    %c0_i32 = arith.constant 0 : i32
    %c0_i32_0 = arith.constant 0 : i32
    %c0_i32_1 = arith.constant 0 : i32
    return %c0_i32, %c0_i32_0 : i32, i32
  }
  func.func @transform_9(%arg0: i32, %arg1: i32) -> (i32, i32, i32) {
    %c0_i32 = arith.constant 0 : i32
    %c0_i32_0 = arith.constant 0 : i32
    %c0_i32_1 = arith.constant 0 : i32
    %c0_i32_2 = arith.constant 0 : i32
    return %c0_i32, %c0_i32_0, %c0_i32_1 : i32, i32, i32
  }
  func.func @transform_10(%arg0: i32, %arg1: i32) -> (i32, i32) {
    %c0_i32 = arith.constant 0 : i32
    %c0_i32_0 = arith.constant 0 : i32
    %c0_i32_1 = arith.constant 0 : i32
    return %c0_i32, %c0_i32_0 : i32, i32
  }
  func.func @transform_11(%arg0: i32, %arg1: i32) -> (i32, i32, i32) {
    %c0_i32 = arith.constant 0 : i32
    %c0_i32_0 = arith.constant 0 : i32
    %c0_i32_1 = arith.constant 0 : i32
    %c0_i32_2 = arith.constant 0 : i32
    return %c0_i32, %c0_i32_0, %c0_i32_1 : i32, i32, i32
  }
  func.func @transform_12(%arg0: i32, %arg1: i32) -> (i32, i32) {
    %c0_i32 = arith.constant 0 : i32
    %c0_i32_0 = arith.constant 0 : i32
    %c0_i32_1 = arith.constant 0 : i32
    return %c0_i32, %c0_i32_0 : i32, i32
  }
  func.func @transform_13(%arg0: i32, %arg1: i32) -> (i32, i32, i32, i32) {
    %c0_i32 = arith.constant 0 : i32
    %c0_i32_0 = arith.constant 0 : i32
    %c0_i32_1 = arith.constant 0 : i32
    return %arg0, %arg1, %c0_i32, %c0_i32_0 : i32, i32, i32, i32
  }
}

</mosaic_0001>

<llo_original>
// kernel: detect_module_forward.1
$region0: #{detect_module_forward.1}
  #allocation0 [shape = 'u32[]', space=smem, size = 0x4, offset = 0x4, fixed_abs, tag = 'smem constant byte address 0x4 - core index']
  #allocation1 [shape = 'u32[144,128]{1,0:T(1,128)}', space=vmem, size = 0x12000, scoped, tag = 'internal scratch']
  #allocation2 [shape = 'f32[14,18,8]{2,1,0:T(8,128)}', space=vmem, size = 0x2a000, scoped, tag = 'scratch operand']
  #allocation3 [shape = 'f32[12,18,2]{2,1,0:T(8,128)}', space=vmem, size = 0x24000, scoped, tag = 'scratch operand']
  #allocation4 [shape = 'f32[192,6]{1,0:T(8,128)}', space=vmem, size = 0x18000, scoped, tag = 'scratch operand']
  #allocation5 [shape = 'f32[160,4]{1,0:T(8,128)}', space=vmem, size = 0x14000, scoped, tag = 'scratch operand']
  #allocation6 [shape = 'f32[128,2]{1,0:T(8,128)}', space=vmem, size = 0x10000, scoped, tag = 'scratch operand']
  %s0 = inlined_call_operand.vmem [shape: f32[2,16,16,8], index: 0, kind: input, shape index: {}, may-alias: {0,1,2,3,4,5,6}]
  %s1 = inlined_call_operand.vmem [shape: f32[2,16,16,8], index: 1, kind: input, shape index: {}, may-alias: {0,1,2,3,4,5,6}]
  %s2 = inlined_call_operand.vmem [shape: f32[2,16,16,8], index: 2, kind: input, shape index: {}, may-alias: {0,1,2,3,4,5,6}]
  %s3 = inlined_call_operand.vmem [shape: f32[2,16,16,8], index: 3, kind: input, shape index: {}, may-alias: {0,1,2,3,4,5,6}]
  %s4 = inlined_call_operand.vmem [shape: f32[2,16,16,8], index: 4, kind: input, shape index: {}, may-alias: {0,1,2,3,4,5,6}]
  %s5 = inlined_call_operand.vmem [shape: f32[2,16,16,8], index: 5, kind: input, shape index: {}, may-alias: {0,1,2,3,4,5,6}]
  %s6 = inlined_call_operand.vmem [shape: f32[2,16,16,8], index: 6, kind: input, shape index: {}, may-alias: {0,1,2,3,4,5,6}]
  %s7 = inlined_call_operand.vmem [shape: f32[9,8,6], index: 7, kind: input, shape index: {}]
  %s8 = inlined_call_operand.vmem [shape: f32[1,6], index: 8, kind: input, shape index: {}]
  %s9 = inlined_call_operand.vmem [shape: f32[9,2,4], index: 9, kind: input, shape index: {}]
  %s10 = inlined_call_operand.vmem [shape: f32[1,4], index: 10, kind: input, shape index: {}]
  %s11 = inlined_call_operand.vmem [shape: f32[9,2,2], index: 11, kind: input, shape index: {}]
  %s12 = inlined_call_operand.vmem [shape: f32[1,2], index: 12, kind: input, shape index: {}]
  %s13 = inlined_call_operand.vmem [shape: f32[2,16,16,8], index: 13, kind: output, shape index: {}]
  %s14 = sld [smem:[#allocation0]]
  $region117: #{detect_module_forward.1} parent=0
    _
  %s16 = ssub.s32 1, %s14
  %s17 = scalar_select 0, %s16, %s14
  loop: start=0, step=1, limit=6
  $region2: #{detect_module_forward.1} parent=0 // loop_pre_header
    _
  $region3: #{detect_module_forward.1} parent=0 // loop_header
    %s19 = sphi 0, %s23
    %p20 = scmp.ge.s32.totalorder %s19, 6
    %s26 = sphi 0, %s38
    %s27 = sphi 0, %s34
    %s28 = sphi 0, %s26
    %s29 = sphi 0, %s27
    %s30 = sphi 0, %s28
    %s31 = sphi 0, %s29
    %s43 = sphi 0, %s45
    %s46 = sphi 0, %s43
    %s47 = sphi 0, %s46
    %s63 = sphi 0, %s47
    %s79 = sphi 0, %s81
    %s82 = sphi 0, %s79
    %s83 = sphi 0, %s82
    %s99 = sphi 0, %s83
    %s115 = sphi 0, %s117
    %s118 = sphi 0, %s115
    %s119 = sphi 0, %s118
    %s135 = sphi 0, %s119
    %s151 = sphi 0, %s153
    %s154 = sphi 0, %s151
    %s155 = sphi 0, %s154
    %s171 = sphi 0, %s155
    %s187 = sphi 0, %s189
    %s190 = sphi 0, %s187
    %s191 = sphi 0, %s190
    %s207 = sphi 0, %s191
    %s223 = sphi 0, %s225
    %s226 = sphi 0, %s223
    %s227 = sphi 0, %s226
    %s243 = sphi 0, %s227
    %s259 = sphi 0, %s261
    %s262 = sphi 0, %s259
    %s263 = sphi 0, %s262
    %s279 = sphi 0, %s263
    %s283 = sphi 0, %s283
    %s285 = sphi 0, %s283
    %s286 = sphi 0, %s285
    %s300 = sphi 0, %s286
    %s304 = sphi 0, %s304
    %s306 = sphi 0, %s304
    %s307 = sphi 0, %s306
    %s321 = sphi 0, %s307
    %s325 = sphi 0, %s325
    %s327 = sphi 0, %s325
    %s328 = sphi 0, %s327
    %s342 = sphi 0, %s328
    %s346 = sphi 0, %s346
    %s348 = sphi 0, %s346
    %s349 = sphi 0, %s348
    %s363 = sphi 0, %s349
    %s367 = sphi 0, %s367
    %s369 = sphi 0, %s367
    %s370 = sphi 0, %s369
    %s384 = sphi 0, %s370
    %s388 = sphi 0, %s388
    %s390 = sphi 0, %s388
    %s391 = sphi 0, %s390
    %s405 = sphi 0, %s391
    %s413 = sphi 0, %s415
    %s416 = sphi 0, %s413
    %s417 = sphi 0, %s416
    %s433 = sphi 0, %s417
  $region4: #{detect_module_forward.1} parent=0 // loop_header_branch
    %22 = sbr.rel (%p20) target = $region8
  $region5: #{detect_module_forward.1} parent=0 // loop_body
    %s24 = ssub.s32 %s19, 1
    %s25 = ssub.s32 %s19, 2
    %s32 = sadd.s32 1, %s27
    %p33 = scmp.ge.s32.totalorder %s32, 2
    %s34 = scalar_select %p33, 0, %s32
    %s35 = sadd.s32 1, %s26
    %s36 = scalar_select %p33, %s35, %s26
    %p37 = scmp.ge.s32.totalorder %s36, 2
    %s38 = scalar_select %p37, 0, %s36
    %s39 = ssub.s32 %s26, %s38
    %s40 = ssub.s32 %s27, %s34
    %s41 = sor.u32 %s39, %s40
    %p42 = scmp.eq.s32.totalorder %s41, 0
    %s44 = sadd.s32 %s43, 1
    %s45 = scalar_select %p42, %s43, %s44
    %p48 = pneg %p42
    %p49 = scmp.eq.s32.totalorder %s19, 3
    %p50 = por %p48, %p49
    %p51 = scmp.ne.s32.totalorder %s43, %s46
    %p52 = scmp.eq.s32.totalorder %s19, 0
    %p53 = por %p51, %p52
    %p54 = scmp.ne.s32.totalorder %s43, %s46
    %p55 = scmp.eq.s32.totalorder %s24, 3
    %p56 = por %p54, %p55
    %p57 = scmp.ne.s32.totalorder %s46, %s47
    %p58 = scmp.eq.s32.totalorder %s24, 0
    %p59 = por %p57, %p58
    %p60 = scmp.ne.s32.totalorder %s46, %s47
    %p61 = scmp.eq.s32.totalorder %s25, 3
    %p62 = por %p60, %p61
    %p64 = scmp.ne.s32.totalorder %s47, %s63
    %p65 = scmp.eq.s32.totalorder %s25, 0
    %p66 = por %p64, %p65
    %s67 = smul.u32 %s27, 8
    %s68 = ssub.s32 %s67, 3
    %p69 = scmp.gt.s32.totalorder %s68, 0
    %s70 = scalar_select %p69, %s68, 0
    %s71 = smul.u32 %s34, 8
    %s72 = ssub.s32 %s71, 3
    %p73 = scmp.gt.s32.totalorder %s72, 0
    %s74 = scalar_select %p73, %s72, 0
    %s75 = ssub.s32 %s26, %s38
    %s76 = ssub.s32 %s70, %s74
    %s77 = sor.u32 %s75, %s76
    %p78 = scmp.eq.s32.totalorder %s77, 0
    %s80 = sadd.s32 %s79, 1
    %s81 = scalar_select %p78, %s79, %s80
    %p84 = pneg %p78
    %p85 = scmp.eq.s32.totalorder %s19, 3
    %p86 = por %p84, %p85
    %p87 = scmp.ne.s32.totalorder %s79, %s82
    %p88 = scmp.eq.s32.totalorder %s19, 0
    %p89 = por %p87, %p88
    %p90 = scmp.ne.s32.totalorder %s79, %s82
    %p91 = scmp.eq.s32.totalorder %s24, 3
    %p92 = por %p90, %p91
    %p93 = scmp.ne.s32.totalorder %s82, %s83
    %p94 = scmp.eq.s32.totalorder %s24, 0
    %p95 = por %p93, %p94
    %p96 = scmp.ne.s32.totalorder %s82, %s83
    %p97 = scmp.eq.s32.totalorder %s25, 3
    %p98 = por %p96, %p97
    %p100 = scmp.ne.s32.totalorder %s83, %s99
    %p101 = scmp.eq.s32.totalorder %s25, 0
    %p102 = por %p100, %p101
    %s103 = smul.u32 %s27, 8
    %s104 = sadd.s32 %s103, 4294967294
    %p105 = scmp.gt.s32.totalorder %s104, 0
    %s106 = scalar_select %p105, %s104, 0
    %s107 = smul.u32 %s34, 8
    %s108 = sadd.s32 %s107, 4294967294
    %p109 = scmp.gt.s32.totalorder %s108, 0
    %s110 = scalar_select %p109, %s108, 0
    %s111 = ssub.s32 %s26, %s38
    %s112 = ssub.s32 %s106, %s110
    %s113 = sor.u32 %s111, %s112
    %p114 = scmp.eq.s32.totalorder %s113, 0
    %s116 = sadd.s32 %s115, 1
    %s117 = scalar_select %p114, %s115, %s116
    %p120 = pneg %p114
    %p121 = scmp.eq.s32.totalorder %s19, 3
    %p122 = por %p120, %p121
    %p123 = scmp.ne.s32.totalorder %s115, %s118
    %p124 = scmp.eq.s32.totalorder %s19, 0
    %p125 = por %p123, %p124
    %p126 = scmp.ne.s32.totalorder %s115, %s118
    %p127 = scmp.eq.s32.totalorder %s24, 3
    %p128 = por %p126, %p127
    %p129 = scmp.ne.s32.totalorder %s118, %s119
    %p130 = scmp.eq.s32.totalorder %s24, 0
    %p131 = por %p129, %p130
    %p132 = scmp.ne.s32.totalorder %s118, %s119
    %p133 = scmp.eq.s32.totalorder %s25, 3
    %p134 = por %p132, %p133
    %p136 = scmp.ne.s32.totalorder %s119, %s135
    %p137 = scmp.eq.s32.totalorder %s25, 0
    %p138 = por %p136, %p137
    %s139 = smul.u32 %s27, 8
    %s140 = sadd.s32 %s139, 4294967295
    %p141 = scmp.gt.s32.totalorder %s140, 0
    %s142 = scalar_select %p141, %s140, 0
    %s143 = smul.u32 %s34, 8
    %s144 = sadd.s32 %s143, 4294967295
    %p145 = scmp.gt.s32.totalorder %s144, 0
    %s146 = scalar_select %p145, %s144, 0
    %s147 = ssub.s32 %s26, %s38
    %s148 = ssub.s32 %s142, %s146
    %s149 = sor.u32 %s147, %s148
    %p150 = scmp.eq.s32.totalorder %s149, 0
    %s152 = sadd.s32 %s151, 1
    %s153 = scalar_select %p150, %s151, %s152
    %p156 = pneg %p150
    %p157 = scmp.eq.s32.totalorder %s19, 3
    %p158 = por %p156, %p157
    %p159 = scmp.ne.s32.totalorder %s151, %s154
    %p160 = scmp.eq.s32.totalorder %s19, 0
    %p161 = por %p159, %p160
    %p162 = scmp.ne.s32.totalorder %s151, %s154
    %p163 = scmp.eq.s32.totalorder %s24, 3
    %p164 = por %p162, %p163
    %p165 = scmp.ne.s32.totalorder %s154, %s155
    %p166 = scmp.eq.s32.totalorder %s24, 0
    %p167 = por %p165, %p166
    %p168 = scmp.ne.s32.totalorder %s154, %s155
    %p169 = scmp.eq.s32.totalorder %s25, 3
    %p170 = por %p168, %p169
    %p172 = scmp.ne.s32.totalorder %s155, %s171
    %p173 = scmp.eq.s32.totalorder %s25, 0
    %p174 = por %p172, %p173
    %s175 = smul.u32 %s27, 8
    %s176 = sadd.s32 %s175, 8
    %p177 = scmp.lt.s32.totalorder %s176, 15
    %s178 = scalar_select %p177, %s176, 15
    %s179 = smul.u32 %s34, 8
    %s180 = sadd.s32 %s179, 8
    %p181 = scmp.lt.s32.totalorder %s180, 15
    %s182 = scalar_select %p181, %s180, 15
    %s183 = ssub.s32 %s26, %s38
    %s184 = ssub.s32 %s178, %s182
    %s185 = sor.u32 %s183, %s184
    %p186 = scmp.eq.s32.totalorder %s185, 0
    %s188 = sadd.s32 %s187, 1
    %s189 = scalar_select %p186, %s187, %s188
    %p192 = pneg %p186
    %p193 = scmp.eq.s32.totalorder %s19, 3
    %p194 = por %p192, %p193
    %p195 = scmp.ne.s32.totalorder %s187, %s190
    %p196 = scmp.eq.s32.totalorder %s19, 0
    %p197 = por %p195, %p196
    %p198 = scmp.ne.s32.totalorder %s187, %s190
    %p199 = scmp.eq.s32.totalorder %s24, 3
    %p200 = por %p198, %p199
    %p201 = scmp.ne.s32.totalorder %s190, %s191
    %p202 = scmp.eq.s32.totalorder %s24, 0
    %p203 = por %p201, %p202
    %p204 = scmp.ne.s32.totalorder %s190, %s191
    %p205 = scmp.eq.s32.totalorder %s25, 3
    %p206 = por %p204, %p205
    %p208 = scmp.ne.s32.totalorder %s191, %s207
    %p209 = scmp.eq.s32.totalorder %s25, 0
    %p210 = por %p208, %p209
    %s211 = smul.u32 %s27, 8
    %s212 = sadd.s32 %s211, 9
    %p213 = scmp.lt.s32.totalorder %s212, 15
    %s214 = scalar_select %p213, %s212, 15
    %s215 = smul.u32 %s34, 8
    %s216 = sadd.s32 %s215, 9
    %p217 = scmp.lt.s32.totalorder %s216, 15
    %s218 = scalar_select %p217, %s216, 15
    %s219 = ssub.s32 %s26, %s38
    %s220 = ssub.s32 %s214, %s218
    %s221 = sor.u32 %s219, %s220
    %p222 = scmp.eq.s32.totalorder %s221, 0
    %s224 = sadd.s32 %s223, 1
    %s225 = scalar_select %p222, %s223, %s224
    %p228 = pneg %p222
    %p229 = scmp.eq.s32.totalorder %s19, 3
    %p230 = por %p228, %p229
    %p231 = scmp.ne.s32.totalorder %s223, %s226
    %p232 = scmp.eq.s32.totalorder %s19, 0
    %p233 = por %p231, %p232
    %p234 = scmp.ne.s32.totalorder %s223, %s226
    %p235 = scmp.eq.s32.totalorder %s24, 3
    %p236 = por %p234, %p235
    %p237 = scmp.ne.s32.totalorder %s226, %s227
    %p238 = scmp.eq.s32.totalorder %s24, 0
    %p239 = por %p237, %p238
    %p240 = scmp.ne.s32.totalorder %s226, %s227
    %p241 = scmp.eq.s32.totalorder %s25, 3
    %p242 = por %p240, %p241
    %p244 = scmp.ne.s32.totalorder %s227, %s243
    %p245 = scmp.eq.s32.totalorder %s25, 0
    %p246 = por %p244, %p245
    %s247 = smul.u32 %s27, 8
    %s248 = sadd.s32 %s247, 10
    %p249 = scmp.lt.s32.totalorder %s248, 15
    %s250 = scalar_select %p249, %s248, 15
    %s251 = smul.u32 %s34, 8
    %s252 = sadd.s32 %s251, 10
    %p253 = scmp.lt.s32.totalorder %s252, 15
    %s254 = scalar_select %p253, %s252, 15
    %s255 = ssub.s32 %s26, %s38
    %s256 = ssub.s32 %s250, %s254
    %s257 = sor.u32 %s255, %s256
    %p258 = scmp.eq.s32.totalorder %s257, 0
    %s260 = sadd.s32 %s259, 1
    %s261 = scalar_select %p258, %s259, %s260
    %p264 = pneg %p258
    %p265 = scmp.eq.s32.totalorder %s19, 3
    %p266 = por %p264, %p265
    %p267 = scmp.ne.s32.totalorder %s259, %s262
    %p268 = scmp.eq.s32.totalorder %s19, 0
    %p269 = por %p267, %p268
    %p270 = scmp.ne.s32.totalorder %s259, %s262
    %p271 = scmp.eq.s32.totalorder %s24, 3
    %p272 = por %p270, %p271
    %p273 = scmp.ne.s32.totalorder %s262, %s263
    %p274 = scmp.eq.s32.totalorder %s24, 0
    %p275 = por %p273, %p274
    %p276 = scmp.ne.s32.totalorder %s262, %s263
    %p277 = scmp.eq.s32.totalorder %s25, 3
    %p278 = por %p276, %p277
    %p280 = scmp.ne.s32.totalorder %s263, %s279
    %p281 = scmp.eq.s32.totalorder %s25, 0
    %p282 = por %p280, %p281
    %s284 = sadd.s32 %s283, 1
    %p287 = scmp.eq.s32.totalorder %s19, 3
    %p288 = scmp.ne.s32.totalorder %s283, %s285
    %p289 = scmp.eq.s32.totalorder %s19, 0
    %p290 = por %p288, %p289
    %p291 = scmp.ne.s32.totalorder %s283, %s285
    %p292 = scmp.eq.s32.totalorder %s24, 3
    %p293 = por %p291, %p292
    %p294 = scmp.ne.s32.totalorder %s285, %s286
    %p295 = scmp.eq.s32.totalorder %s24, 0
    %p296 = por %p294, %p295
    %p297 = scmp.ne.s32.totalorder %s285, %s286
    %p298 = scmp.eq.s32.totalorder %s25, 3
    %p299 = por %p297, %p298
    %p301 = scmp.ne.s32.totalorder %s286, %s300
    %p302 = scmp.eq.s32.totalorder %s25, 0
    %p303 = por %p301, %p302
    %s305 = sadd.s32 %s304, 1
    %p308 = scmp.eq.s32.totalorder %s19, 3
    %p309 = scmp.ne.s32.totalorder %s304, %s306
    %p310 = scmp.eq.s32.totalorder %s19, 0
    %p311 = por %p309, %p310
    %p312 = scmp.ne.s32.totalorder %s304, %s306
    %p313 = scmp.eq.s32.totalorder %s24, 3
    %p314 = por %p312, %p313
    %p315 = scmp.ne.s32.totalorder %s306, %s307
    %p316 = scmp.eq.s32.totalorder %s24, 0
    %p317 = por %p315, %p316
    %p318 = scmp.ne.s32.totalorder %s306, %s307
    %p319 = scmp.eq.s32.totalorder %s25, 3
    %p320 = por %p318, %p319
    %p322 = scmp.ne.s32.totalorder %s307, %s321
    %p323 = scmp.eq.s32.totalorder %s25, 0
    %p324 = por %p322, %p323
    %s326 = sadd.s32 %s325, 1
    %p329 = scmp.eq.s32.totalorder %s19, 3
    %p330 = scmp.ne.s32.totalorder %s325, %s327
    %p331 = scmp.eq.s32.totalorder %s19, 0
    %p332 = por %p330, %p331
    %p333 = scmp.ne.s32.totalorder %s325, %s327
    %p334 = scmp.eq.s32.totalorder %s24, 3
    %p335 = por %p333, %p334
    %p336 = scmp.ne.s32.totalorder %s327, %s328
    %p337 = scmp.eq.s32.totalorder %s24, 0
    %p338 = por %p336, %p337
    %p339 = scmp.ne.s32.totalorder %s327, %s328
    %p340 = scmp.eq.s32.totalorder %s25, 3
    %p341 = por %p339, %p340
    %p343 = scmp.ne.s32.totalorder %s328, %s342
    %p344 = scmp.eq.s32.totalorder %s25, 0
    %p345 = por %p343, %p344
    %s347 = sadd.s32 %s346, 1
    %p350 = scmp.eq.s32.totalorder %s19, 3
    %p351 = scmp.ne.s32.totalorder %s346, %s348
    %p352 = scmp.eq.s32.totalorder %s19, 0
    %p353 = por %p351, %p352
    %p354 = scmp.ne.s32.totalorder %s346, %s348
    %p355 = scmp.eq.s32.totalorder %s24, 3
    %p356 = por %p354, %p355
    %p357 = scmp.ne.s32.totalorder %s348, %s349
    %p358 = scmp.eq.s32.totalorder %s24, 0
    %p359 = por %p357, %p358
    %p360 = scmp.ne.s32.totalorder %s348, %s349
    %p361 = scmp.eq.s32.totalorder %s25, 3
    %p362 = por %p360, %p361
    %p364 = scmp.ne.s32.totalorder %s349, %s363
    %p365 = scmp.eq.s32.totalorder %s25, 0
    %p366 = por %p364, %p365
    %s368 = sadd.s32 %s367, 1
    %p371 = scmp.eq.s32.totalorder %s19, 3
    %p372 = scmp.ne.s32.totalorder %s367, %s369
    %p373 = scmp.eq.s32.totalorder %s19, 0
    %p374 = por %p372, %p373
    %p375 = scmp.ne.s32.totalorder %s367, %s369
    %p376 = scmp.eq.s32.totalorder %s24, 3
    %p377 = por %p375, %p376
    %p378 = scmp.ne.s32.totalorder %s369, %s370
    %p379 = scmp.eq.s32.totalorder %s24, 0
    %p380 = por %p378, %p379
    %p381 = scmp.ne.s32.totalorder %s369, %s370
    %p382 = scmp.eq.s32.totalorder %s25, 3
    %p383 = por %p381, %p382
    %p385 = scmp.ne.s32.totalorder %s370, %s384
    %p386 = scmp.eq.s32.totalorder %s25, 0
    %p387 = por %p385, %p386
    %s389 = sadd.s32 %s388, 1
    %p392 = scmp.eq.s32.totalorder %s19, 3
    %p393 = scmp.ne.s32.totalorder %s388, %s390
    %p394 = scmp.eq.s32.totalorder %s19, 0
    %p395 = por %p393, %p394
    %p396 = scmp.ne.s32.totalorder %s388, %s390
    %p397 = scmp.eq.s32.totalorder %s24, 3
    %p398 = por %p396, %p397
    %p399 = scmp.ne.s32.totalorder %s390, %s391
    %p400 = scmp.eq.s32.totalorder %s24, 0
    %p401 = por %p399, %p400
    %p402 = scmp.ne.s32.totalorder %s390, %s391
    %p403 = scmp.eq.s32.totalorder %s25, 3
    %p404 = por %p402, %p403
    %p406 = scmp.ne.s32.totalorder %s391, %s405
    %p407 = scmp.eq.s32.totalorder %s25, 0
    %p408 = por %p406, %p407
    %s409 = ssub.s32 %s26, %s38
    %s410 = ssub.s32 %s27, %s34
    %s411 = sor.u32 %s409, %s410
    %p412 = scmp.eq.s32.totalorder %s411, 0
    %s414 = sadd.s32 %s413, 1
    %s415 = scalar_select %p412, %s413, %s414
    %p418 = pneg %p412
    %p419 = scmp.eq.s32.totalorder %s19, 3
    %p420 = por %p418, %p419
    %p421 = scmp.ne.s32.totalorder %s413, %s416
    %p422 = scmp.eq.s32.totalorder %s19, 0
    %p423 = por %p421, %p422
    %p424 = scmp.ne.s32.totalorder %s413, %s416
    %p425 = scmp.eq.s32.totalorder %s24, 3
    %p426 = por %p424, %p425
    %p427 = scmp.ne.s32.totalorder %s416, %s417
    %p428 = scmp.eq.s32.totalorder %s24, 0
    %p429 = por %p427, %p428
    %p430 = scmp.ne.s32.totalorder %s416, %s417
    %p431 = scmp.eq.s32.totalorder %s25, 3
    %p432 = por %p430, %p431
    %p434 = scmp.ne.s32.totalorder %s417, %s433
    %p435 = scmp.eq.s32.totalorder %s25, 0
    %p436 = por %p434, %p435
    %p437 = scmp.le.s32.totalorder 1, %s19
    %p438 = scmp.lt.s32.totalorder %s19, 5
    %p439 = pnand %p437, %p438
    %p440 = pneg %p439
    // Predicated region
    $region9: #{detect_module_forward.1} parent=5 // pred_check
      _
    $region10: #{detect_module_forward.1} parent=5 // pred_check_branch
      %442 = sbr.rel (%p439) target = $region12
    $region11: #{detect_module_forward.1} parent=5 // pred_region
      %s443 = ssub.s32 %s19, 1
      // Predicated region
      $region13: #{detect_module_forward.1} parent=11 // pred_check
        %p444 = pneg %p296
      $region14: #{detect_module_forward.1} parent=11 // pred_check_branch
        %446 = sbr.rel (%p444) target = $region16
      $region15: #{detect_module_forward.1} parent=11 // pred_region
        _
      $region16: #{detect_module_forward.1} parent=11 // pred_fallthru
        _
      // Predicated region
      $region17: #{detect_module_forward.1} parent=11 // pred_check
        %p447 = pneg %p317
      $region18: #{detect_module_forward.1} parent=11 // pred_check_branch
        %449 = sbr.rel (%p447) target = $region20
      $region19: #{detect_module_forward.1} parent=11 // pred_region
        _
      $region20: #{detect_module_forward.1} parent=11 // pred_fallthru
        _
      // Predicated region
      $region21: #{detect_module_forward.1} parent=11 // pred_check
        %p450 = pneg %p338
      $region22: #{detect_module_forward.1} parent=11 // pred_check_branch
        %452 = sbr.rel (%p450) target = $region24
      $region23: #{detect_module_forward.1} parent=11 // pred_region
        _
      $region24: #{detect_module_forward.1} parent=11 // pred_fallthru
        _
      // Predicated region
      $region25: #{detect_module_forward.1} parent=11 // pred_check
        %p453 = pneg %p359
      $region26: #{detect_module_forward.1} parent=11 // pred_check_branch
        %455 = sbr.rel (%p453) target = $region28
      $region27: #{detect_module_forward.1} parent=11 // pred_region
        _
      $region28: #{detect_module_forward.1} parent=11 // pred_fallthru
        _
      // Predicated region
      $region29: #{detect_module_forward.1} parent=11 // pred_check
        %p456 = pneg %p380
      $region30: #{detect_module_forward.1} parent=11 // pred_check_branch
        %458 = sbr.rel (%p456) target = $region32
      $region31: #{detect_module_forward.1} parent=11 // pred_region
        _
      $region32: #{detect_module_forward.1} parent=11 // pred_fallthru
        _
      // Predicated region
      $region33: #{detect_module_forward.1} parent=11 // pred_check
        %p459 = pneg %p401
      $region34: #{detect_module_forward.1} parent=11 // pred_check_branch
        %461 = sbr.rel (%p459) target = $region36
      $region35: #{detect_module_forward.1} parent=11 // pred_region
        _
      $region36: #{detect_module_forward.1} parent=11 // pred_fallthru
        _
    $region12: #{detect_module_forward.1} parent=5 // pred_fallthru
      _
    %p462 = scmp.lt.s32.totalorder %s19, 4
    // Predicated region
    $region37: #{detect_module_forward.1} parent=5 // pred_check
      %p463 = pneg %p462
    $region38: #{detect_module_forward.1} parent=5 // pred_check_branch
      %465 = sbr.rel (%p463) target = $region40
    $region39: #{detect_module_forward.1} parent=5 // pred_region
      // Predicated region
      $region41: #{detect_module_forward.1} parent=39 // pred_check
        %p466 = pneg %p53
      $region42: #{detect_module_forward.1} parent=39 // pred_check_branch
        %468 = sbr.rel (%p466) target = $region44
      $region43: #{detect_module_forward.1} parent=39 // pred_region
        %s469 = smul.u32 8, %s27
        %p470 = scmp.lt.s32.totalorder %s26, 1
        %s471 = scalar_select %p470, %s26, 1
        %p472 = scmp.lt.s32.totalorder %s469, 15
        %s473 = scalar_select %p472, %s469, 15
        %s474 = smul.addr %s473, 2
        %s475 = smul.addr %s471, 32
        %s476 = sadd.s32 %s474, %s475
        %s477 = smul.addr %s476, 8
        %s478 = scalar_lea.vmem %s0, %s477
        %s479 = smul.u32 8, %s27
      $region44: #{detect_module_forward.1} parent=39 // pred_fallthru
        _
      // Predicated region
      $region45: #{detect_module_forward.1} parent=39 // pred_check
        %p480 = pneg %p89
      $region46: #{detect_module_forward.1} parent=39 // pred_check_branch
        %482 = sbr.rel (%p480) target = $region48
      $region47: #{detect_module_forward.1} parent=39 // pred_region
        %s483 = smul.u32 %s27, 8
        %s484 = ssub.s32 %s483, 3
        %p485 = scmp.gt.s32.totalorder %s484, 0
        %s486 = scalar_select %p485, %s484, 0
        %p487 = scmp.lt.s32.totalorder %s26, 1
        %s488 = scalar_select %p487, %s26, 1
        %p489 = scmp.lt.s32.totalorder %s486, 15
        %s490 = scalar_select %p489, %s486, 15
        %s491 = smul.addr %s490, 2
        %s492 = smul.addr %s488, 32
        %s493 = sadd.s32 %s491, %s492
        %s494 = smul.addr %s493, 8
        %s495 = scalar_lea.vmem %s1, %s494
        %s496 = smul.u32 %s27, 8
        %s497 = ssub.s32 %s496, 3
        %p498 = scmp.gt.s32.totalorder %s497, 0
        %s499 = scalar_select %p498, %s497, 0
      $region48: #{detect_module_forward.1} parent=39 // pred_fallthru
        _
      // Predicated region
      $region49: #{detect_module_forward.1} parent=39 // pred_check
        %p500 = pneg %p125
      $region50: #{detect_module_forward.1} parent=39 // pred_check_branch
        %502 = sbr.rel (%p500) target = $region52
      $region51: #{detect_module_forward.1} parent=39 // pred_region
        %s503 = smul.u32 %s27, 8
        %s504 = sadd.s32 %s503, 4294967294
        %p505 = scmp.gt.s32.totalorder %s504, 0
        %s506 = scalar_select %p505, %s504, 0
        %p507 = scmp.lt.s32.totalorder %s26, 1
        %s508 = scalar_select %p507, %s26, 1
        %p509 = scmp.lt.s32.totalorder %s506, 15
        %s510 = scalar_select %p509, %s506, 15
        %s511 = smul.addr %s510, 2
        %s512 = smul.addr %s508, 32
        %s513 = sadd.s32 %s511, %s512
        %s514 = smul.addr %s513, 8
        %s515 = scalar_lea.vmem %s2, %s514
        %s516 = smul.u32 %s27, 8
        %s517 = sadd.s32 %s516, 4294967294
        %p518 = scmp.gt.s32.totalorder %s517, 0
        %s519 = scalar_select %p518, %s517, 0
      $region52: #{detect_module_forward.1} parent=39 // pred_fallthru
        _
      // Predicated region
      $region53: #{detect_module_forward.1} parent=39 // pred_check
        %p520 = pneg %p161
      $region54: #{detect_module_forward.1} parent=39 // pred_check_branch
        %522 = sbr.rel (%p520) target = $region56
      $region55: #{detect_module_forward.1} parent=39 // pred_region
        %s523 = smul.u32 %s27, 8
        %s524 = sadd.s32 %s523, 4294967295
        %p525 = scmp.gt.s32.totalorder %s524, 0
        %s526 = scalar_select %p525, %s524, 0
        %p527 = scmp.lt.s32.totalorder %s26, 1
        %s528 = scalar_select %p527, %s26, 1
        %p529 = scmp.lt.s32.totalorder %s526, 15
        %s530 = scalar_select %p529, %s526, 15
        %s531 = smul.addr %s530, 2
        %s532 = smul.addr %s528, 32
        %s533 = sadd.s32 %s531, %s532
        %s534 = smul.addr %s533, 8
        %s535 = scalar_lea.vmem %s3, %s534
        %s536 = smul.u32 %s27, 8
        %s537 = sadd.s32 %s536, 4294967295
        %p538 = scmp.gt.s32.totalorder %s537, 0
        %s539 = scalar_select %p538, %s537, 0
      $region56: #{detect_module_forward.1} parent=39 // pred_fallthru
        _
      // Predicated region
      $region57: #{detect_module_forward.1} parent=39 // pred_check
        %p540 = pneg %p197
      $region58: #{detect_module_forward.1} parent=39 // pred_check_branch
        %542 = sbr.rel (%p540) target = $region60
      $region59: #{detect_module_forward.1} parent=39 // pred_region
        %s543 = smul.u32 %s27, 8
        %s544 = sadd.s32 %s543, 8
        %p545 = scmp.lt.s32.totalorder %s544, 15
        %s546 = scalar_select %p545, %s544, 15
        %p547 = scmp.lt.s32.totalorder %s26, 1
        %s548 = scalar_select %p547, %s26, 1
        %p549 = scmp.lt.s32.totalorder %s546, 15
        %s550 = scalar_select %p549, %s546, 15
        %s551 = smul.addr %s550, 2
        %s552 = smul.addr %s548, 32
        %s553 = sadd.s32 %s551, %s552
        %s554 = smul.addr %s553, 8
        %s555 = scalar_lea.vmem %s4, %s554
        %s556 = smul.u32 %s27, 8
        %s557 = sadd.s32 %s556, 8
        %p558 = scmp.lt.s32.totalorder %s557, 15
        %s559 = scalar_select %p558, %s557, 15
      $region60: #{detect_module_forward.1} parent=39 // pred_fallthru
        _
      // Predicated region
      $region61: #{detect_module_forward.1} parent=39 // pred_check
        %p560 = pneg %p233
      $region62: #{detect_module_forward.1} parent=39 // pred_check_branch
        %562 = sbr.rel (%p560) target = $region64
      $region63: #{detect_module_forward.1} parent=39 // pred_region
        %s563 = smul.u32 %s27, 8
        %s564 = sadd.s32 %s563, 9
        %p565 = scmp.lt.s32.totalorder %s564, 15
        %s566 = scalar_select %p565, %s564, 15
        %p567 = scmp.lt.s32.totalorder %s26, 1
        %s568 = scalar_select %p567, %s26, 1
        %p569 = scmp.lt.s32.totalorder %s566, 15
        %s570 = scalar_select %p569, %s566, 15
        %s571 = smul.addr %s570, 2
        %s572 = smul.addr %s568, 32
        %s573 = sadd.s32 %s571, %s572
        %s574 = smul.addr %s573, 8
        %s575 = scalar_lea.vmem %s5, %s574
        %s576 = smul.u32 %s27, 8
        %s577 = sadd.s32 %s576, 9
        %p578 = scmp.lt.s32.totalorder %s577, 15
        %s579 = scalar_select %p578, %s577, 15
      $region64: #{detect_module_forward.1} parent=39 // pred_fallthru
        _
      // Predicated region
      $region65: #{detect_module_forward.1} parent=39 // pred_check
        %p580 = pneg %p269
      $region66: #{detect_module_forward.1} parent=39 // pred_check_branch
        %582 = sbr.rel (%p580) target = $region68
      $region67: #{detect_module_forward.1} parent=39 // pred_region
        %s583 = smul.u32 %s27, 8
        %s584 = sadd.s32 %s583, 10
        %p585 = scmp.lt.s32.totalorder %s584, 15
        %s586 = scalar_select %p585, %s584, 15
        %p587 = scmp.lt.s32.totalorder %s26, 1
        %s588 = scalar_select %p587, %s26, 1
        %p589 = scmp.lt.s32.totalorder %s586, 15
        %s590 = scalar_select %p589, %s586, 15
        %s591 = smul.addr %s590, 2
        %s592 = smul.addr %s588, 32
        %s593 = sadd.s32 %s591, %s592
        %s594 = smul.addr %s593, 8
        %s595 = scalar_lea.vmem %s6, %s594
        %s596 = smul.u32 %s27, 8
        %s597 = sadd.s32 %s596, 10
        %p598 = scmp.lt.s32.totalorder %s597, 15
        %s599 = scalar_select %p598, %s597, 15
      $region68: #{detect_module_forward.1} parent=39 // pred_fallthru
        _
    $region40: #{detect_module_forward.1} parent=5 // pred_fallthru
      _
    %p600 = scmp.le.s32.totalorder 1, %s19
    %p601 = scmp.lt.s32.totalorder %s19, 5
    %p602 = pnand %p600, %p601
    %p603 = pneg %p602
    // Predicated region
    $region69: #{detect_module_forward.1} parent=5 // pred_check
      _
    $region70: #{detect_module_forward.1} parent=5 // pred_check_branch
      %605 = sbr.rel (%p602) target = $region72
    $region71: #{detect_module_forward.1} parent=5 // pred_region
      %s606 = ssub.s32 %s19, 1
      %s607 = smul.u32 8, %s29
      %p608 = scmp.lt.s32.totalorder %s28, 1
      %s609 = scalar_select %p608, %s28, 1
      %p610 = scmp.lt.s32.totalorder %s607, 15
      %s611 = scalar_select %p610, %s607, 15
      %s612 = smul.addr %s611, 2
      %s613 = smul.addr %s609, 32
      %s614 = sadd.s32 %s612, %s613
      %s615 = smul.addr %s614, 8
      %s616 = scalar_lea.vmem %s0, %s615
      %p617 = pneg %p59
      %p618 = pneg %p56
      %s619 = smul.u32 %s29, 8
      %s620 = ssub.s32 %s619, 3
      %p621 = scmp.gt.s32.totalorder %s620, 0
      %s622 = scalar_select %p621, %s620, 0
      %p623 = scmp.lt.s32.totalorder %s28, 1
      %s624 = scalar_select %p623, %s28, 1
      %p625 = scmp.lt.s32.totalorder %s622, 15
      %s626 = scalar_select %p625, %s622, 15
      %s627 = smul.addr %s626, 2
      %s628 = smul.addr %s624, 32
      %s629 = sadd.s32 %s627, %s628
      %s630 = smul.addr %s629, 8
      %s631 = scalar_lea.vmem %s1, %s630
      %p632 = pneg %p95
      %p633 = pneg %p92
      %s634 = smul.u32 %s29, 8
      %s635 = sadd.s32 %s634, 4294967294
      %p636 = scmp.gt.s32.totalorder %s635, 0
      %s637 = scalar_select %p636, %s635, 0
      %p638 = scmp.lt.s32.totalorder %s28, 1
      %s639 = scalar_select %p638, %s28, 1
      %p640 = scmp.lt.s32.totalorder %s637, 15
      %s641 = scalar_select %p640, %s637, 15
      %s642 = smul.addr %s641, 2
      %s643 = smul.addr %s639, 32
      %s644 = sadd.s32 %s642, %s643
      %s645 = smul.addr %s644, 8
      %s646 = scalar_lea.vmem %s2, %s645
      %p647 = pneg %p131
      %p648 = pneg %p128
      %s649 = smul.u32 %s29, 8
      %s650 = sadd.s32 %s649, 4294967295
      %p651 = scmp.gt.s32.totalorder %s650, 0
      %s652 = scalar_select %p651, %s650, 0
      %p653 = scmp.lt.s32.totalorder %s28, 1
      %s654 = scalar_select %p653, %s28, 1
      %p655 = scmp.lt.s32.totalorder %s652, 15
      %s656 = scalar_select %p655, %s652, 15
      %s657 = smul.addr %s656, 2
      %s658 = smul.addr %s654, 32
      %s659 = sadd.s32 %s657, %s658
      %s660 = smul.addr %s659, 8
      %s661 = scalar_lea.vmem %s3, %s660
      %p662 = pneg %p167
      %p663 = pneg %p164
      %s664 = smul.u32 %s29, 8
      %s665 = sadd.s32 %s664, 8
      %p666 = scmp.lt.s32.totalorder %s665, 15
      %s667 = scalar_select %p666, %s665, 15
      %p668 = scmp.lt.s32.totalorder %s28, 1
      %s669 = scalar_select %p668, %s28, 1
      %p670 = scmp.lt.s32.totalorder %s667, 15
      %s671 = scalar_select %p670, %s667, 15
      %s672 = smul.addr %s671, 2
      %s673 = smul.addr %s669, 32
      %s674 = sadd.s32 %s672, %s673
      %s675 = smul.addr %s674, 8
      %s676 = scalar_lea.vmem %s4, %s675
      %p677 = pneg %p203
      %p678 = pneg %p200
      %s679 = smul.u32 %s29, 8
      %s680 = sadd.s32 %s679, 9
      %p681 = scmp.lt.s32.totalorder %s680, 15
      %s682 = scalar_select %p681, %s680, 15
      %p683 = scmp.lt.s32.totalorder %s28, 1
      %s684 = scalar_select %p683, %s28, 1
      %p685 = scmp.lt.s32.totalorder %s682, 15
      %s686 = scalar_select %p685, %s682, 15
      %s687 = smul.addr %s686, 2
      %s688 = smul.addr %s684, 32
      %s689 = sadd.s32 %s687, %s688
      %s690 = smul.addr %s689, 8
      %s691 = scalar_lea.vmem %s5, %s690
      %p692 = pneg %p239
      %p693 = pneg %p236
      %s694 = smul.u32 %s29, 8
      %s695 = sadd.s32 %s694, 10
      %p696 = scmp.lt.s32.totalorder %s695, 15
      %s697 = scalar_select %p696, %s695, 15
      %p698 = scmp.lt.s32.totalorder %s28, 1
      %s699 = scalar_select %p698, %s28, 1
      %p700 = scmp.lt.s32.totalorder %s697, 15
      %s701 = scalar_select %p700, %s697, 15
      %s702 = smul.addr %s701, 2
      %s703 = smul.addr %s699, 32
      %s704 = sadd.s32 %s702, %s703
      %s705 = smul.addr %s704, 8
      %s706 = scalar_lea.vmem %s6, %s705
      %p707 = pneg %p275
      %p708 = pneg %p272
      %p709 = pneg %p296
      %p710 = pneg %p293
      %p711 = pneg %p317
      %p712 = pneg %p314
      %p713 = pneg %p338
      %p714 = pneg %p335
      %p715 = pneg %p359
      %p716 = pneg %p356
      %p717 = pneg %p380
      %p718 = pneg %p377
      %p719 = pneg %p401
      %p720 = pneg %p398
      %p721 = pneg %p429
      %p722 = pneg %p426
      %s723 = smul.u32 8, %s29
      %p724 = scmp.lt.s32.totalorder %s28, 1
      %s725 = scalar_select %p724, %s28, 1
      %p726 = scmp.lt.s32.totalorder %s723, 15
      %s727 = scalar_select %p726, %s723, 15
      %s728 = smul.addr %s727, 2
      %s729 = smul.addr %s725, 32
      %s730 = sadd.s32 %s728, %s729
      %s731 = smul.addr %s730, 8
      %s732 = scalar_lea.vmem %s13, %s731
      %s733 = smul.u32 8, %s29
      %p734 = scmp.lt.s32.totalorder %s28, 1
      %s735 = scalar_select %p734, %s28, 1
      %p736 = scmp.lt.s32.totalorder %s733, 15
      %s737 = scalar_select %p736, %s733, 15
      %s738 = smul.addr %s737, 2
      %s739 = smul.addr %s735, 32
      %s740 = sadd.s32 %s738, %s739
      %s741 = smul.addr %s740, 8
      %s742 = scalar_lea.vmem %s0, %s741
      %s743 = smul.u32 8, %s29
      %s744 = smul.u32 %s29, 8
      %s745 = ssub.s32 %s744, 3
      %p746 = scmp.gt.s32.totalorder %s745, 0
      %s747 = scalar_select %p746, %s745, 0
      %p748 = scmp.lt.s32.totalorder %s28, 1
      %s749 = scalar_select %p748, %s28, 1
      %p750 = scmp.lt.s32.totalorder %s747, 15
      %s751 = scalar_select %p750, %s747, 15
      %s752 = smul.addr %s751, 2
      %s753 = smul.addr %s749, 32
      %s754 = sadd.s32 %s752, %s753
      %s755 = smul.addr %s754, 8
      %s756 = scalar_lea.vmem %s1, %s755
      %s757 = smul.u32 %s29, 8
      %s758 = ssub.s32 %s757, 3
      %p759 = scmp.gt.s32.totalorder %s758, 0
      %s760 = scalar_select %p759, %s758, 0
      %s761 = smul.u32 %s29, 8
      %s762 = sadd.s32 %s761, 4294967294
      %p763 = scmp.gt.s32.totalorder %s762, 0
      %s764 = scalar_select %p763, %s762, 0
      %p765 = scmp.lt.s32.totalorder %s28, 1
      %s766 = scalar_select %p765, %s28, 1
      %p767 = scmp.lt.s32.totalorder %s764, 15
      %s768 = scalar_select %p767, %s764, 15
      %s769 = smul.addr %s768, 2
      %s770 = smul.addr %s766, 32
      %s771 = sadd.s32 %s769, %s770
      %s772 = smul.addr %s771, 8
      %s773 = scalar_lea.vmem %s2, %s772
      %s774 = smul.u32 %s29, 8
      %s775 = sadd.s32 %s774, 4294967294
      %p776 = scmp.gt.s32.totalorder %s775, 0
      %s777 = scalar_select %p776, %s775, 0
      %s778 = smul.u32 %s29, 8
      %s779 = sadd.s32 %s778, 4294967295
      %p780 = scmp.gt.s32.totalorder %s779, 0
      %s781 = scalar_select %p780, %s779, 0
      %p782 = scmp.lt.s32.totalorder %s28, 1
      %s783 = scalar_select %p782, %s28, 1
      %p784 = scmp.lt.s32.totalorder %s781, 15
      %s785 = scalar_select %p784, %s781, 15
      %s786 = smul.addr %s785, 2
      %s787 = smul.addr %s783, 32
      %s788 = sadd.s32 %s786, %s787
      %s789 = smul.addr %s788, 8
      %s790 = scalar_lea.vmem %s3, %s789
      %s791 = smul.u32 %s29, 8
      %s792 = sadd.s32 %s791, 4294967295
      %p793 = scmp.gt.s32.totalorder %s792, 0
      %s794 = scalar_select %p793, %s792, 0
      %s795 = smul.u32 %s29, 8
      %s796 = sadd.s32 %s795, 8
      %p797 = scmp.lt.s32.totalorder %s796, 15
      %s798 = scalar_select %p797, %s796, 15
      %p799 = scmp.lt.s32.totalorder %s28, 1
      %s800 = scalar_select %p799, %s28, 1
      %p801 = scmp.lt.s32.totalorder %s798, 15
      %s802 = scalar_select %p801, %s798, 15
      %s803 = smul.addr %s802, 2
      %s804 = smul.addr %s800, 32
      %s805 = sadd.s32 %s803, %s804
      %s806 = smul.addr %s805, 8
      %s807 = scalar_lea.vmem %s4, %s806
      %s808 = smul.u32 %s29, 8
      %s809 = sadd.s32 %s808, 8
      %p810 = scmp.lt.s32.totalorder %s809, 15
      %s811 = scalar_select %p810, %s809, 15
      %s812 = smul.u32 %s29, 8
      %s813 = sadd.s32 %s812, 9
      %p814 = scmp.lt.s32.totalorder %s813, 15
      %s815 = scalar_select %p814, %s813, 15
      %p816 = scmp.lt.s32.totalorder %s28, 1
      %s817 = scalar_select %p816, %s28, 1
      %p818 = scmp.lt.s32.totalorder %s815, 15
      %s819 = scalar_select %p818, %s815, 15
      %s820 = smul.addr %s819, 2
      %s821 = smul.addr %s817, 32
      %s822 = sadd.s32 %s820, %s821
      %s823 = smul.addr %s822, 8
      %s824 = scalar_lea.vmem %s5, %s823
      %s825 = smul.u32 %s29, 8
      %s826 = sadd.s32 %s825, 9
      %p827 = scmp.lt.s32.totalorder %s826, 15
      %s828 = scalar_select %p827, %s826, 15
      %s829 = smul.u32 %s29, 8
      %s830 = sadd.s32 %s829, 10
      %p831 = scmp.lt.s32.totalorder %s830, 15
      %s832 = scalar_select %p831, %s830, 15
      %p833 = scmp.lt.s32.totalorder %s28, 1
      %s834 = scalar_select %p833, %s28, 1
      %p835 = scmp.lt.s32.totalorder %s832, 15
      %s836 = scalar_select %p835, %s832, 15
      %s837 = smul.addr %s836, 2
      %s838 = smul.addr %s834, 32
      %s839 = sadd.s32 %s837, %s838
      %s840 = smul.addr %s839, 8
      %s841 = scalar_lea.vmem %s6, %s840
      %s842 = smul.u32 %s29, 8
      %s843 = sadd.s32 %s842, 10
      %p844 = scmp.lt.s32.totalorder %s843, 15
      %s845 = scalar_select %p844, %s843, 15
      %s846 = smul.u32 8, %s29
      %p847 = scmp.lt.s32.totalorder %s28, 1
      %s848 = scalar_select %p847, %s28, 1
      %p849 = scmp.lt.s32.totalorder %s846, 15
      %s850 = scalar_select %p849, %s846, 15
      %s851 = smul.addr %s850, 2
      %s852 = smul.addr %s848, 32
      %s853 = sadd.s32 %s851, %s852
      %s854 = smul.addr %s853, 8
      %s855 = scalar_lea.vmem %s13, %s854
      %s856 = smul.u32 8, %s29
      %vm857 = vcmask 57344
      %858 = vst.msk [vmem:[#allocation2] sm:$0x1] %vm857, 0.0
      %859 = vst.msk [vmem:[#allocation2 + $0x18] sm:$0x1] %vm857, 0.0
      %860 = vst.msk [vmem:[#allocation2 + $0x30] sm:$0x1] %vm857, 0.0
      %861 = vst.msk [vmem:[#allocation2 + $0x48] sm:$0x1] %vm857, 0.0
      %862 = vst.msk [vmem:[#allocation2 + $0x60] sm:$0x1] %vm857, 0.0
      %863 = vst.msk [vmem:[#allocation2 + $0x78] sm:$0x1] %vm857, 0.0
      %864 = vst.msk [vmem:[#allocation2 + $0x90] sm:$0x1] %vm857, 0.0
      %865 = vst.msk [vmem:[#allocation2 + $0xa8] sm:$0x1] %vm857, 0.0
      %866 = vst.msk [vmem:[#allocation2 + $0xc0] sm:$0x1] %vm857, 0.0
      %867 = vst.msk [vmem:[#allocation2 + $0xd8] sm:$0x1] %vm857, 0.0
      %868 = vst.msk [vmem:[#allocation2 + $0xf0] sm:$0x1] %vm857, 0.0
      %869 = vst.msk [vmem:[#allocation2 + $0x108] sm:$0x1] %vm857, 0.0
      %870 = vst.msk [vmem:[#allocation2 + $0x120] sm:$0x1] %vm857, 0.0
      %871 = vst.msk [vmem:[#allocation2 + $0x138] sm:$0x1] %vm857, 0.0
      %872 = vst.msk [vmem:[#allocation2 + $0x11] sm:$0x1] %vm857, 0.0
      %873 = vst.msk [vmem:[#allocation2 + $0x29] sm:$0x1] %vm857, 0.0
      %874 = vst.msk [vmem:[#allocation2 + $0x41] sm:$0x1] %vm857, 0.0
      %875 = vst.msk [vmem:[#allocation2 + $0x59] sm:$0x1] %vm857, 0.0
      %876 = vst.msk [vmem:[#allocation2 + $0x71] sm:$0x1] %vm857, 0.0
      %877 = vst.msk [vmem:[#allocation2 + $0x89] sm:$0x1] %vm857, 0.0
      %878 = vst.msk [vmem:[#allocation2 + $0xa1] sm:$0x1] %vm857, 0.0
      %879 = vst.msk [vmem:[#allocation2 + $0xb9] sm:$0x1] %vm857, 0.0
      %880 = vst.msk [vmem:[#allocation2 + $0xd1] sm:$0x1] %vm857, 0.0
      %881 = vst.msk [vmem:[#allocation2 + $0xe9] sm:$0x1] %vm857, 0.0
      %882 = vst.msk [vmem:[#allocation2 + $0x101] sm:$0x1] %vm857, 0.0
      %883 = vst.msk [vmem:[#allocation2 + $0x119] sm:$0x1] %vm857, 0.0
      %884 = vst.msk [vmem:[#allocation2 + $0x131] sm:$0x1] %vm857, 0.0
      %885 = vst.msk [vmem:[#allocation2 + $0x149] sm:$0x1] %vm857, 0.0
      %vm886 = vcmask 8192
      %887 = vst.msk [vmem:[#allocation3] sm:$0x1] %vm886, 0.0
      %888 = vst.msk [vmem:[#allocation3 + $0x18] sm:$0x1] %vm886, 0.0
      %889 = vst.msk [vmem:[#allocation3 + $0x30] sm:$0x1] %vm886, 0.0
      %890 = vst.msk [vmem:[#allocation3 + $0x48] sm:$0x1] %vm886, 0.0
      %891 = vst.msk [vmem:[#allocation3 + $0x60] sm:$0x1] %vm886, 0.0
      %892 = vst.msk [vmem:[#allocation3 + $0x78] sm:$0x1] %vm886, 0.0
      %893 = vst.msk [vmem:[#allocation3 + $0x90] sm:$0x1] %vm886, 0.0
      %894 = vst.msk [vmem:[#allocation3 + $0xa8] sm:$0x1] %vm886, 0.0
      %895 = vst.msk [vmem:[#allocation3 + $0xc0] sm:$0x1] %vm886, 0.0
      %896 = vst.msk [vmem:[#allocation3 + $0xd8] sm:$0x1] %vm886, 0.0
      %897 = vst.msk [vmem:[#allocation3 + $0xf0] sm:$0x1] %vm886, 0.0
      %898 = vst.msk [vmem:[#allocation3 + $0x108] sm:$0x1] %vm886, 0.0
      %899 = vst.msk [vmem:[#allocation3 + $0x11] sm:$0x1] %vm886, 0.0
      %900 = vst.msk [vmem:[#allocation3 + $0x29] sm:$0x1] %vm886, 0.0
      %901 = vst.msk [vmem:[#allocation3 + $0x41] sm:$0x1] %vm886, 0.0
      %902 = vst.msk [vmem:[#allocation3 + $0x59] sm:$0x1] %vm886, 0.0
      %903 = vst.msk [vmem:[#allocation3 + $0x71] sm:$0x1] %vm886, 0.0
      %904 = vst.msk [vmem:[#allocation3 + $0x89] sm:$0x1] %vm886, 0.0
      %905 = vst.msk [vmem:[#allocation3 + $0xa1] sm:$0x1] %vm886, 0.0
      %906 = vst.msk [vmem:[#allocation3 + $0xb9] sm:$0x1] %vm886, 0.0
      %907 = vst.msk [vmem:[#allocation3 + $0xd1] sm:$0x1] %vm886, 0.0
      %908 = vst.msk [vmem:[#allocation3 + $0xe9] sm:$0x1] %vm886, 0.0
      %909 = vst.msk [vmem:[#allocation3 + $0x101] sm:$0x1] %vm886, 0.0
      %910 = vst.msk [vmem:[#allocation3 + $0x119] sm:$0x1] %vm886, 0.0
      %v911 = vld [vmem:[%s742] sm:$0xff]
      %v912 = vld [vmem:[%s742 + $0x8] sm:$0xff]
      %v913 = vld [vmem:[%s742 + $0x10] sm:$0xff]
      %v914 = vld [vmem:[%s742 + $0x18] sm:$0xff]
      %v915 = vld [vmem:[%s742 + $0x20] sm:$0xff]
      %v916 = vld [vmem:[%s742 + $0x28] sm:$0xff]
      %v917 = vld [vmem:[%s742 + $0x30] sm:$0xff]
      %v918 = vld [vmem:[%s742 + $0x38] sm:$0xff]
      %v919 = vld [vmem:[%s742 + $0x40] sm:$0xff]
      %v920 = vld [vmem:[%s742 + $0x48] sm:$0xff]
      %v921 = vld [vmem:[%s742 + $0x50] sm:$0xff]
      %v922 = vld [vmem:[%s742 + $0x58] sm:$0xff]
      %v923 = vld [vmem:[%s742 + $0x60] sm:$0xff]
      %v924 = vld [vmem:[%s742 + $0x68] sm:$0xff]
      %v925 = vld [vmem:[%s742 + $0x70] sm:$0xff]
      %v926 = vld [vmem:[%s742 + $0x78] sm:$0xff]
      %s927 = scalar_lea.vmem [#allocation2], 72
      %vm928 = vcmask 64512
      %929 = vst.msk [vmem:[%s927 + $0x1] sm:$0xff] %vm928, %v911
      %930 = vst.msk [vmem:[%s927 + $0x9] sm:$0xff] %vm928, %v912
      %931 = vst.msk [vmem:[%s927 + $0x19] sm:$0xff] %vm928, %v913
      %932 = vst.msk [vmem:[%s927 + $0x21] sm:$0xff] %vm928, %v914
      %933 = vst.msk [vmem:[%s927 + $0x31] sm:$0xff] %vm928, %v915
      %934 = vst.msk [vmem:[%s927 + $0x39] sm:$0xff] %vm928, %v916
      %935 = vst.msk [vmem:[%s927 + $0x49] sm:$0xff] %vm928, %v917
      %936 = vst.msk [vmem:[%s927 + $0x51] sm:$0xff] %vm928, %v918
      %937 = vst.msk [vmem:[%s927 + $0x61] sm:$0xff] %vm928, %v919
      %938 = vst.msk [vmem:[%s927 + $0x69] sm:$0xff] %vm928, %v920
      %939 = vst.msk [vmem:[%s927 + $0x79] sm:$0xff] %vm928, %v921
      %940 = vst.msk [vmem:[%s927 + $0x81] sm:$0xff] %vm928, %v922
      %941 = vst.msk [vmem:[%s927 + $0x91] sm:$0xff] %vm928, %v923
      %942 = vst.msk [vmem:[%s927 + $0x99] sm:$0xff] %vm928, %v924
      %943 = vst.msk [vmem:[%s927 + $0xa9] sm:$0xff] %vm928, %v925
      %944 = vst.msk [vmem:[%s927 + $0xb1] sm:$0xff] %vm928, %v926
      %p945 = scmp.gt.s32.totalorder %s29, 0
      // Predicated region
      $region73: #{detect_module_forward.1} parent=71 // pred_check
        %p946 = pneg %p945
      $region74: #{detect_module_forward.1} parent=71 // pred_check_branch
        %948 = sbr.rel (%p946) target = $region76
      $region75: #{detect_module_forward.1} parent=71 // pred_region
        %v949 = vld [vmem:[%s756] sm:$0xff]
        %v950 = vld [vmem:[%s756 + $0x8] sm:$0xff]
        %951 = vst.msk [vmem:[#allocation2 + $0x1] sm:$0xff] %vm928, %v949
        %952 = vst.msk [vmem:[#allocation2 + $0x9] sm:$0xff] %vm928, %v950
        %v953 = vld [vmem:[%s773] sm:$0xff]
        %v954 = vld [vmem:[%s773 + $0x8] sm:$0xff]
        %s955 = scalar_lea.vmem [#allocation2], 24
        %956 = vst.msk [vmem:[%s955 + $0x1] sm:$0xff] %vm928, %v953
        %957 = vst.msk [vmem:[%s955 + $0x9] sm:$0xff] %vm928, %v954
        %v958 = vld [vmem:[%s790] sm:$0xff]
        %v959 = vld [vmem:[%s790 + $0x8] sm:$0xff]
        %s960 = scalar_lea.vmem [#allocation2], 48
        %961 = vst.msk [vmem:[%s960 + $0x1] sm:$0xff] %vm928, %v958
        %962 = vst.msk [vmem:[%s960 + $0x9] sm:$0xff] %vm928, %v959
      $region76: #{detect_module_forward.1} parent=71 // pred_fallthru
        _
      %p963 = scmp.eq.s32.totalorder %s29, 0
      // Predicated region
      $region77: #{detect_module_forward.1} parent=71 // pred_check
        %p964 = pneg %p963
      $region78: #{detect_module_forward.1} parent=71 // pred_check_branch
        %966 = sbr.rel (%p964) target = $region80
      $region79: #{detect_module_forward.1} parent=71 // pred_region
        %967 = vst.msk [vmem:[#allocation2 + $0x1] sm:$0xff] %vm928, 0.0
        %968 = vst.msk [vmem:[#allocation2 + $0x9] sm:$0xff] %vm928, 0.0
        %969 = vst.msk [vmem:[#allocation2 + $0x19] sm:$0xff] %vm928, 0.0
        %970 = vst.msk [vmem:[#allocation2 + $0x21] sm:$0xff] %vm928, 0.0
        %971 = vst.msk [vmem:[#allocation2 + $0x31] sm:$0xff] %vm928, 0.0
        %972 = vst.msk [vmem:[#allocation2 + $0x39] sm:$0xff] %vm928, 0.0
      $region80: #{detect_module_forward.1} parent=71 // pred_fallthru
        _
      %p973 = scmp.lt.s32.totalorder %s29, 1
      // Predicated region
      $region81: #{detect_module_forward.1} parent=71 // pred_check
        %p974 = pneg %p973
      $region82: #{detect_module_forward.1} parent=71 // pred_check_branch
        %976 = sbr.rel (%p974) target = $region84
      $region83: #{detect_module_forward.1} parent=71 // pred_region
        %v977 = vld [vmem:[%s807] sm:$0xff]
        %v978 = vld [vmem:[%s807 + $0x8] sm:$0xff]
        %s979 = scalar_lea.vmem [#allocation2], 264
        %980 = vst.msk [vmem:[%s979 + $0x1] sm:$0xff] %vm928, %v977
        %981 = vst.msk [vmem:[%s979 + $0x9] sm:$0xff] %vm928, %v978
        %v982 = vld [vmem:[%s824] sm:$0xff]
        %v983 = vld [vmem:[%s824 + $0x8] sm:$0xff]
        %s984 = scalar_lea.vmem [#allocation2], 288
        %985 = vst.msk [vmem:[%s984 + $0x1] sm:$0xff] %vm928, %v982
        %986 = vst.msk [vmem:[%s984 + $0x9] sm:$0xff] %vm928, %v983
        %v987 = vld [vmem:[%s841] sm:$0xff]
        %v988 = vld [vmem:[%s841 + $0x8] sm:$0xff]
        %s989 = scalar_lea.vmem [#allocation2], 312
        %990 = vst.msk [vmem:[%s989 + $0x1] sm:$0xff] %vm928, %v987
        %991 = vst.msk [vmem:[%s989 + $0x9] sm:$0xff] %vm928, %v988
      $region84: #{detect_module_forward.1} parent=71 // pred_fallthru
        _
      %p992 = scmp.eq.s32.totalorder %s29, 1
      // Predicated region
      $region85: #{detect_module_forward.1} parent=71 // pred_check
        %p993 = pneg %p992
      $region86: #{detect_module_forward.1} parent=71 // pred_check_branch
        %995 = sbr.rel (%p993) target = $region88
      $region87: #{detect_module_forward.1} parent=71 // pred_region
        %s996 = scalar_lea.vmem [#allocation2], 264
        %997 = vst.msk [vmem:[%s996 + $0x1] sm:$0xff] %vm928, 0.0
        %998 = vst.msk [vmem:[%s996 + $0x9] sm:$0xff] %vm928, 0.0
        %999 = vst.msk [vmem:[%s996 + $0x19] sm:$0xff] %vm928, 0.0
        %1000 = vst.msk [vmem:[%s996 + $0x21] sm:$0xff] %vm928, 0.0
        %1001 = vst.msk [vmem:[%s996 + $0x31] sm:$0xff] %vm928, 0.0
        %1002 = vst.msk [vmem:[%s996 + $0x39] sm:$0xff] %vm928, 0.0
      $region88: #{detect_module_forward.1} parent=71 // pred_fallthru
        _
      %v1003 = vld [vmem:[%s8] sm:$0x1]
      %v1005 = vlaneseq
      %v1006 = vshrl.u32 %v1005, 7
      %v1007 = vsub.s32 0, %v1006
      %v1008 = vrot.slane %v1003, %v1007
      %vm1010 = vcmask 48128
      %1011 = vst.msk [vmem:[#allocation4] sm:$0xff] %vm1010, %v1008
      %1012 = vst.msk [vmem:[#allocation4 + $0x8] sm:$0xff] %vm1010, %v1008
      %1013 = vst.msk [vmem:[#allocation4 + $0x10] sm:$0xff] %vm1010, %v1008
      %1014 = vst.msk [vmem:[#allocation4 + $0x18] sm:$0xff] %vm1010, %v1008
      %1015 = vst.msk [vmem:[#allocation4 + $0x20] sm:$0xff] %vm1010, %v1008
      %1016 = vst.msk [vmem:[#allocation4 + $0x28] sm:$0xff] %vm1010, %v1008
      %1017 = vst.msk [vmem:[#allocation4 + $0x30] sm:$0xff] %vm1010, %v1008
      %1018 = vst.msk [vmem:[#allocation4 + $0x38] sm:$0xff] %vm1010, %v1008
      %1019 = vst.msk [vmem:[#allocation4 + $0x40] sm:$0xff] %vm1010, %v1008
      %1020 = vst.msk [vmem:[#allocation4 + $0x48] sm:$0xff] %vm1010, %v1008
      %1021 = vst.msk [vmem:[#allocation4 + $0x50] sm:$0xff] %vm1010, %v1008
      %1022 = vst.msk [vmem:[#allocation4 + $0x58] sm:$0xff] %vm1010, %v1008
      %1023 = vst.msk [vmem:[#allocation4 + $0x60] sm:$0xff] %vm1010, %v1008
      %1024 = vst.msk [vmem:[#allocation4 + $0x68] sm:$0xff] %vm1010, %v1008
      %1025 = vst.msk [vmem:[#allocation4 + $0x70] sm:$0xff] %vm1010, %v1008
      %1026 = vst.msk [vmem:[#allocation4 + $0x78] sm:$0xff] %vm1010, %v1008
      %1027 = vst.msk [vmem:[#allocation4 + $0x80] sm:$0xff] %vm1010, %v1008
      %1028 = vst.msk [vmem:[#allocation4 + $0x88] sm:$0xff] %vm1010, %v1008
      %1029 = vst.msk [vmem:[#allocation4 + $0x90] sm:$0xff] %vm1010, %v1008
      %1030 = vst.msk [vmem:[#allocation4 + $0x98] sm:$0xff] %vm1010, %v1008
      %1031 = vst.msk [vmem:[#allocation4 + $0xa0] sm:$0xff] %vm1010, %v1008
      %1032 = vst.msk [vmem:[#allocation4 + $0xa8] sm:$0xff] %vm1010, %v1008
      %1033 = vst.msk [vmem:[#allocation4 + $0xb0] sm:$0xff] %vm1010, %v1008
      %1034 = vst.msk [vmem:[#allocation4 + $0xb8] sm:$0xff] %vm1010, %v1008
      %v1035 = vld [vmem:[#allocation2] sm:$0xff]
      %v1036 = vld [vmem:[#allocation2 + $0x8] sm:$0xff]
      %v1037 = vld [vmem:[#allocation2 + $0x18] sm:$0xff]
      %v1038 = vld [vmem:[#allocation2 + $0x20] sm:$0xff]
      %v1039 = vld [vmem:[#allocation2 + $0x30] sm:$0xff]
      %v1040 = vld [vmem:[#allocation2 + $0x38] sm:$0xff]
      %v1041 = vld [vmem:[#allocation2 + $0x48] sm:$0xff]
      %v1042 = vld [vmem:[#allocation2 + $0x50] sm:$0xff]
      %v1043 = vld [vmem:[#allocation2 + $0x60] sm:$0xff]
      %v1044 = vld [vmem:[#allocation2 + $0x68] sm:$0xff]
      %v1045 = vld [vmem:[#allocation2 + $0x78] sm:$0xff]
      %v1046 = vld [vmem:[#allocation2 + $0x80] sm:$0xff]
      %v1047 = vld [vmem:[#allocation2 + $0x90] sm:$0xff]
      %v1048 = vld [vmem:[#allocation2 + $0x98] sm:$0xff]
      %v1049 = vld [vmem:[#allocation2 + $0xa8] sm:$0xff]
      %v1050 = vld [vmem:[#allocation2 + $0xb0] sm:$0xff]
      %v1051 = vld [vmem:[#allocation2 + $0xc0] sm:$0xff]
      %v1052 = vld [vmem:[#allocation2 + $0xc8] sm:$0xff]
      %v1053 = vld [vmem:[#allocation2 + $0xd8] sm:$0xff]
      %v1054 = vld [vmem:[#allocation2 + $0xe0] sm:$0xff]
      %v1055 = vld [vmem:[#allocation2 + $0xf0] sm:$0xff]
      %v1056 = vld [vmem:[#allocation2 + $0xf8] sm:$0xff]
      %v1057 = vld [vmem:[#allocation2 + $0x108] sm:$0xff]
      %v1058 = vld [vmem:[#allocation2 + $0x110] sm:$0xff]
      %v1059 = vld [vmem:[#allocation4] sm:$0xff]
      %v1060 = vld [vmem:[#allocation4 + $0x8] sm:$0xff]
      %v1061 = vld [vmem:[#allocation4 + $0x10] sm:$0xff]
      %v1062 = vld [vmem:[#allocation4 + $0x18] sm:$0xff]
      %v1063 = vld [vmem:[#allocation4 + $0x20] sm:$0xff]
      %v1064 = vld [vmem:[#allocation4 + $0x28] sm:$0xff]
      %v1065 = vld [vmem:[#allocation4 + $0x30] sm:$0xff]
      %v1066 = vld [vmem:[#allocation4 + $0x38] sm:$0xff]
      %v1067 = vld [vmem:[#allocation4 + $0x40] sm:$0xff]
      %v1068 = vld [vmem:[#allocation4 + $0x48] sm:$0xff]
      %v1069 = vld [vmem:[#allocation4 + $0x50] sm:$0xff]
      %v1070 = vld [vmem:[#allocation4 + $0x58] sm:$0xff]
      %v1071 = vld [vmem:[#allocation4 + $0x60] sm:$0xff]
      %v1072 = vld [vmem:[#allocation4 + $0x68] sm:$0xff]
      %v1073 = vld [vmem:[#allocation4 + $0x70] sm:$0xff]
      %v1074 = vld [vmem:[#allocation4 + $0x78] sm:$0xff]
      %v1075 = vld [vmem:[#allocation4 + $0x80] sm:$0xff]
      %v1076 = vld [vmem:[#allocation4 + $0x88] sm:$0xff]
      %v1077 = vld [vmem:[#allocation4 + $0x90] sm:$0xff]
      %v1078 = vld [vmem:[#allocation4 + $0x98] sm:$0xff]
      %v1079 = vld [vmem:[#allocation4 + $0xa0] sm:$0xff]
      %v1080 = vld [vmem:[#allocation4 + $0xa8] sm:$0xff]
      %v1081 = vld [vmem:[#allocation4 + $0xb0] sm:$0xff]
      %v1082 = vld [vmem:[#allocation4 + $0xb8] sm:$0xff]
      %v1083 = vld [vmem:[%s7] sm:$0xff]
      %v1085 = vsel %vm928, %v1035, 0
      %v1088 = vsel %vm928, %v1036, 0
      %v1091 = vsel %vm928, %v1037, 0
      %v1094 = vsel %vm928, %v1038, 0
      %v1097 = vsel %vm928, %v1039, 0
      %v1100 = vsel %vm928, %v1040, 0
      %v1103 = vsel %vm928, %v1041, 0
      %v1106 = vsel %vm928, %v1042, 0
      %v1109 = vsel %vm928, %v1043, 0
      %v1112 = vsel %vm928, %v1044, 0
      %v1115 = vsel %vm928, %v1045, 0
      %v1118 = vsel %vm928, %v1046, 0
      %v1121 = vsel %vm928, %v1047, 0
      %v1124 = vsel %vm928, %v1048, 0
      %v1127 = vsel %vm928, %v1049, 0
      %v1130 = vsel %vm928, %v1050, 0
      %v1133 = vsel %vm928, %v1051, 0
      %v1136 = vsel %vm928, %v1052, 0
      %v1139 = vsel %vm928, %v1053, 0
      %v1142 = vsel %vm928, %v1054, 0
      %v1145 = vsel %vm928, %v1055, 0
      %v1148 = vsel %vm928, %v1056, 0
      %v1151 = vsel %vm928, %v1057, 0
      %v1154 = vsel %vm928, %v1058, 0
      %1156 = vmatprep.subr.mxu0 0.0
      %1157 = vmatpush1.msra.mxu0 0.0
      %1158 = vmatprep.subr.mxu0 0.0
      %1159 = vmatpush1.msra.mxu0 0.0
      %1160 = vmatprep.subr.mxu0 0.0
      %1161 = vmatpush1.msra.mxu0 0.0
      %1162 = vmatprep.subr.mxu0 0.0
      %1163 = vmatpush1.msra.mxu0 0.0
      %1164 = vmatprep.subr.mxu0 0.0
      %1165 = vmatpush1.msra.mxu0 0.0
      %1166 = vmatprep.subr.mxu0 0.0
      %1167 = vmatpush1.msra.mxu0 0.0
      %1168 = vmatprep.subr.mxu0 0.0
      %1169 = vmatpush1.msra.mxu0 0.0
      %1170 = vmatprep.subr.mxu0 0.0
      %1171 = vmatpush1.msra.mxu0 0.0
      %1172 = vmatprep.subr.mxu0 0.0
      %1173 = vmatpush1.msra.mxu0 0.0
      %1174 = vmatprep.subr.mxu0 0.0
      %1175 = vmatpush1.msra.mxu0 0.0
      %1176 = vmatprep.subr.mxu0 0.0
      %1177 = vmatpush1.msra.mxu0 0.0
      %1178 = vmatprep.subr.mxu0 0.0
      %1179 = vmatpush1.msra.mxu0 0.0
      %1180 = vmatprep.subr.mxu0 0.0
      %1181 = vmatpush1.msra.mxu0 0.0
      %1182 = vmatprep.subr.mxu0 0.0
      %1183 = vmatpush1.msra.mxu0 0.0
      %1184 = vmatprep.subr.mxu0 0.0
      %1185 = vmatpush1.msra.mxu0 0.0
      %1186 = vmatprep.subr.mxu0 0.0
      %1187 = vmatpush1.msra.mxu0 %v1083
      %1188 = vmatprep.subr.mxu0 0.0
      %1189 = vmatpush2.msra.mxu0 0.0
      %1190 = vmatprep.subr.mxu0 0.0
      %1191 = vmatpush2.msra.mxu0 0.0
      %1192 = vmatprep.subr.mxu0 0.0
      %1193 = vmatpush2.msra.mxu0 0.0
      %1194 = vmatprep.subr.mxu0 0.0
      %1195 = vmatpush2.msra.mxu0 0.0
      %1196 = vmatprep.subr.mxu0 0.0
      %1197 = vmatpush2.msra.mxu0 0.0
      %1198 = vmatprep.subr.mxu0 0.0
      %1199 = vmatpush2.msra.mxu0 0.0
      %1200 = vmatprep.subr.mxu0 0.0
      %1201 = vmatpush2.msra.mxu0 0.0
      %1202 = vmatprep.subr.mxu0 0.0
      %1203 = vmatpush2.msra.mxu0 0.0
      %1204 = vmatprep.subr.mxu0 0.0
      %1205 = vmatpush2.msra.mxu0 0.0
      %1206 = vmatprep.subr.mxu0 0.0
      %1207 = vmatpush2.msra.mxu0 0.0
      %1208 = vmatprep.subr.mxu0 0.0
      %1209 = vmatpush2.msra.mxu0 0.0
      %1210 = vmatprep.subr.mxu0 0.0
      %1211 = vmatpush2.msra.mxu0 0.0
      %1212 = vmatprep.subr.mxu0 0.0
      %1213 = vmatpush2.msra.mxu0 0.0
      %1214 = vmatprep.subr.mxu0 0.0
      %1215 = vmatpush2.msra.mxu0 0.0
      %1216 = vmatprep.subr.mxu0 0.0
      %1217 = vmatpush2.msra.mxu0 0.0
      %1218 = vmatprep.subr.mxu0 0.0
      %1219 = vmatpush2.msra.mxu0 0.0
      %1220 = vmatprep.mubr.f32.mxu0 0.0
      %1221 = vmatmul.mubr.f32.gmra.mxu0 %v1085
      %v1222 = vpop.f32.mrf.mxu0
      %v1223 = vadd.f32 0.0, %v1222
      %v1224 = vpop.f32.mrf.mxu0
      %1225 = vmatprep.mubr.f32.mxu0 0.0
      %1226 = vmatmul.mubr.f32.gmra.mxu0 %v1088
      %v1227 = vpop.f32.mrf.mxu0
      %v1228 = vadd.f32 0.0, %v1227
      %v1229 = vpop.f32.mrf.mxu0
      %1230 = vmatprep.mubr.f32.mxu0 0.0
      %1231 = vmatmul.mubr.f32.gmra.mxu0 %v1091
      %v1232 = vpop.f32.mrf.mxu0
      %v1233 = vadd.f32 0.0, %v1232
      %v1234 = vpop.f32.mrf.mxu0
      %1235 = vmatprep.mubr.f32.mxu0 0.0
      %1236 = vmatmul.mubr.f32.gmra.mxu0 %v1094
      %v1237 = vpop.f32.mrf.mxu0
      %v1238 = vadd.f32 0.0, %v1237
      %v1239 = vpop.f32.mrf.mxu0
      %1240 = vmatprep.mubr.f32.mxu0 0.0
      %1241 = vmatmul.mubr.f32.gmra.mxu0 %v1097
      %v1242 = vpop.f32.mrf.mxu0
      %v1243 = vadd.f32 0.0, %v1242
      %v1244 = vpop.f32.mrf.mxu0
      %1245 = vmatprep.mubr.f32.mxu0 0.0
      %1246 = vmatmul.mubr.f32.gmra.mxu0 %v1100
      %v1247 = vpop.f32.mrf.mxu0
      %v1248 = vadd.f32 0.0, %v1247
      %v1249 = vpop.f32.mrf.mxu0
      %1250 = vmatprep.mubr.f32.mxu0 0.0
      %1251 = vmatmul.mubr.f32.gmra.mxu0 %v1103
      %v1252 = vpop.f32.mrf.mxu0
      %v1253 = vadd.f32 0.0, %v1252
      %v1254 = vpop.f32.mrf.mxu0
      %1255 = vmatprep.mubr.f32.mxu0 0.0
      %1256 = vmatmul.mubr.f32.gmra.mxu0 %v1106
      %v1257 = vpop.f32.mrf.mxu0
      %v1258 = vadd.f32 0.0, %v1257
      %v1259 = vpop.f32.mrf.mxu0
      %1260 = vmatprep.mubr.f32.mxu0 0.0
      %1261 = vmatmul.mubr.f32.gmra.mxu0 %v1109
      %v1262 = vpop.f32.mrf.mxu0
      %v1263 = vadd.f32 0.0, %v1262
      %v1264 = vpop.f32.mrf.mxu0
      %1265 = vmatprep.mubr.f32.mxu0 0.0
      %1266 = vmatmul.mubr.f32.gmra.mxu0 %v1112
      %v1267 = vpop.f32.mrf.mxu0
      %v1268 = vadd.f32 0.0, %v1267
      %v1269 = vpop.f32.mrf.mxu0
      %1270 = vmatprep.mubr.f32.mxu0 0.0
      %1271 = vmatmul.mubr.f32.gmra.mxu0 %v1115
      %v1272 = vpop.f32.mrf.mxu0
      %v1273 = vadd.f32 0.0, %v1272
      %v1274 = vpop.f32.mrf.mxu0
      %1275 = vmatprep.mubr.f32.mxu0 0.0
      %1276 = vmatmul.mubr.f32.gmra.mxu0 %v1118
      %v1277 = vpop.f32.mrf.mxu0
      %v1278 = vadd.f32 0.0, %v1277
      %v1279 = vpop.f32.mrf.mxu0
      %1280 = vmatprep.mubr.f32.mxu0 0.0
      %1281 = vmatmul.mubr.f32.gmra.mxu0 %v1121
      %v1282 = vpop.f32.mrf.mxu0
      %v1283 = vadd.f32 0.0, %v1282
      %v1284 = vpop.f32.mrf.mxu0
      %1285 = vmatprep.mubr.f32.mxu0 0.0
      %1286 = vmatmul.mubr.f32.gmra.mxu0 %v1124
      %v1287 = vpop.f32.mrf.mxu0
      %v1288 = vadd.f32 0.0, %v1287
      %v1289 = vpop.f32.mrf.mxu0
      %1290 = vmatprep.mubr.f32.mxu0 0.0
      %1291 = vmatmul.mubr.f32.gmra.mxu0 %v1127
      %v1292 = vpop.f32.mrf.mxu0
      %v1293 = vadd.f32 0.0, %v1292
      %v1294 = vpop.f32.mrf.mxu0
      %1295 = vmatprep.mubr.f32.mxu0 0.0
      %1296 = vmatmul.mubr.f32.gmra.mxu0 %v1130
      %v1297 = vpop.f32.mrf.mxu0
      %v1298 = vadd.f32 0.0, %v1297
      %v1299 = vpop.f32.mrf.mxu0
      %1300 = vmatprep.mubr.f32.mxu0 0.0
      %1301 = vmatmul.mubr.f32.gmra.mxu0 %v1133
      %v1302 = vpop.f32.mrf.mxu0
      %v1303 = vadd.f32 0.0, %v1302
      %v1304 = vpop.f32.mrf.mxu0
      %1305 = vmatprep.mubr.f32.mxu0 0.0
      %1306 = vmatmul.mubr.f32.gmra.mxu0 %v1136
      %v1307 = vpop.f32.mrf.mxu0
      %v1308 = vadd.f32 0.0, %v1307
      %v1309 = vpop.f32.mrf.mxu0
      %1310 = vmatprep.mubr.f32.mxu0 0.0
      %1311 = vmatmul.mubr.f32.gmra.mxu0 %v1139
      %v1312 = vpop.f32.mrf.mxu0
      %v1313 = vadd.f32 0.0, %v1312
      %v1314 = vpop.f32.mrf.mxu0
      %1315 = vmatprep.mubr.f32.mxu0 0.0
      %1316 = vmatmul.mubr.f32.gmra.mxu0 %v1142
      %v1317 = vpop.f32.mrf.mxu0
      %v1318 = vadd.f32 0.0, %v1317
      %v1319 = vpop.f32.mrf.mxu0
      %1320 = vmatprep.mubr.f32.mxu0 0.0
      %1321 = vmatmul.mubr.f32.gmra.mxu0 %v1145
      %v1322 = vpop.f32.mrf.mxu0
      %v1323 = vadd.f32 0.0, %v1322
      %v1324 = vpop.f32.mrf.mxu0
      %1325 = vmatprep.mubr.f32.mxu0 0.0
      %1326 = vmatmul.mubr.f32.gmra.mxu0 %v1148
      %v1327 = vpop.f32.mrf.mxu0
      %v1328 = vadd.f32 0.0, %v1327
      %v1329 = vpop.f32.mrf.mxu0
      %1330 = vmatprep.mubr.f32.mxu0 0.0
      %1331 = vmatmul.mubr.f32.gmra.mxu0 %v1151
      %v1332 = vpop.f32.mrf.mxu0
      %v1333 = vadd.f32 0.0, %v1332
      %v1334 = vpop.f32.mrf.mxu0
      %1335 = vmatprep.mubr.f32.mxu0 0.0
      %1336 = vmatmul.mubr.f32.gmra.mxu0 %v1154
      %v1337 = vpop.f32.mrf.mxu0
      %v1338 = vadd.f32 0.0, %v1337
      %v1339 = vpop.f32.mrf.mxu0
      %1340 = vdwg.mxu0
      %v1341 = vadd.f32 %v1059, %v1223
      %v1342 = vadd.f32 %v1060, %v1228
      %v1343 = vadd.f32 %v1061, %v1233
      %v1344 = vadd.f32 %v1062, %v1238
      %v1345 = vadd.f32 %v1063, %v1243
      %v1346 = vadd.f32 %v1064, %v1248
      %v1347 = vadd.f32 %v1065, %v1253
      %v1348 = vadd.f32 %v1066, %v1258
      %v1349 = vadd.f32 %v1067, %v1263
      %v1350 = vadd.f32 %v1068, %v1268
      %v1351 = vadd.f32 %v1069, %v1273
      %v1352 = vadd.f32 %v1070, %v1278
      %v1353 = vadd.f32 %v1071, %v1283
      %v1354 = vadd.f32 %v1072, %v1288
      %v1355 = vadd.f32 %v1073, %v1293
      %v1356 = vadd.f32 %v1074, %v1298
      %v1357 = vadd.f32 %v1075, %v1303
      %v1358 = vadd.f32 %v1076, %v1308
      %v1359 = vadd.f32 %v1077, %v1313
      %v1360 = vadd.f32 %v1078, %v1318
      %v1361 = vadd.f32 %v1079, %v1323
      %v1362 = vadd.f32 %v1080, %v1328
      %v1363 = vadd.f32 %v1081, %v1333
      %v1364 = vadd.f32 %v1082, %v1338
      %1365 = vst.msk [vmem:[#allocation4] sm:$0xff] %vm1010, %v1341
      %1366 = vst.msk [vmem:[#allocation4 + $0x8] sm:$0xff] %vm1010, %v1342
      %1367 = vst.msk [vmem:[#allocation4 + $0x10] sm:$0xff] %vm1010, %v1343
      %1368 = vst.msk [vmem:[#allocation4 + $0x18] sm:$0xff] %vm1010, %v1344
      %1369 = vst.msk [vmem:[#allocation4 + $0x20] sm:$0xff] %vm1010, %v1345
      %1370 = vst.msk [vmem:[#allocation4 + $0x28] sm:$0xff] %vm1010, %v1346
      %1371 = vst.msk [vmem:[#allocation4 + $0x30] sm:$0xff] %vm1010, %v1347
      %1372 = vst.msk [vmem:[#allocation4 + $0x38] sm:$0xff] %vm1010, %v1348
      %1373 = vst.msk [vmem:[#allocation4 + $0x40] sm:$0xff] %vm1010, %v1349
      %1374 = vst.msk [vmem:[#allocation4 + $0x48] sm:$0xff] %vm1010, %v1350
      %1375 = vst.msk [vmem:[#allocation4 + $0x50] sm:$0xff] %vm1010, %v1351
      %1376 = vst.msk [vmem:[#allocation4 + $0x58] sm:$0xff] %vm1010, %v1352
      %1377 = vst.msk [vmem:[#allocation4 + $0x60] sm:$0xff] %vm1010, %v1353
      %1378 = vst.msk [vmem:[#allocation4 + $0x68] sm:$0xff] %vm1010, %v1354
      %1379 = vst.msk [vmem:[#allocation4 + $0x70] sm:$0xff] %vm1010, %v1355
      %1380 = vst.msk [vmem:[#allocation4 + $0x78] sm:$0xff] %vm1010, %v1356
      %1381 = vst.msk [vmem:[#allocation4 + $0x80] sm:$0xff] %vm1010, %v1357
      %1382 = vst.msk [vmem:[#allocation4 + $0x88] sm:$0xff] %vm1010, %v1358
      %1383 = vst.msk [vmem:[#allocation4 + $0x90] sm:$0xff] %vm1010, %v1359
      %1384 = vst.msk [vmem:[#allocation4 + $0x98] sm:$0xff] %vm1010, %v1360
      %1385 = vst.msk [vmem:[#allocation4 + $0xa0] sm:$0xff] %vm1010, %v1361
      %1386 = vst.msk [vmem:[#allocation4 + $0xa8] sm:$0xff] %vm1010, %v1362
      %1387 = vst.msk [vmem:[#allocation4 + $0xb0] sm:$0xff] %vm1010, %v1363
      %1388 = vst.msk [vmem:[#allocation4 + $0xb8] sm:$0xff] %vm1010, %v1364
      %v1389 = vld [vmem:[#allocation2 + $0x1] sm:$0xff]
      %v1390 = vld [vmem:[#allocation2 + $0x9] sm:$0xff]
      %v1391 = vld [vmem:[#allocation2 + $0x19] sm:$0xff]
      %v1392 = vld [vmem:[#allocation2 + $0x21] sm:$0xff]
      %v1393 = vld [vmem:[#allocation2 + $0x31] sm:$0xff]
      %v1394 = vld [vmem:[#allocation2 + $0x39] sm:$0xff]
      %v1395 = vld [vmem:[#allocation2 + $0x49] sm:$0xff]
      %v1396 = vld [vmem:[#allocation2 + $0x51] sm:$0xff]
      %v1397 = vld [vmem:[#allocation2 + $0x61] sm:$0xff]
      %v1398 = vld [vmem:[#allocation2 + $0x69] sm:$0xff]
      %v1399 = vld [vmem:[#allocation2 + $0x79] sm:$0xff]
      %v1400 = vld [vmem:[#allocation2 + $0x81] sm:$0xff]
      %v1401 = vld [vmem:[#allocation2 + $0x91] sm:$0xff]
      %v1402 = vld [vmem:[#allocation2 + $0x99] sm:$0xff]
      %v1403 = vld [vmem:[#allocation2 + $0xa9] sm:$0xff]
      %v1404 = vld [vmem:[#allocation2 + $0xb1] sm:$0xff]
      %v1405 = vld [vmem:[#allocation2 + $0xc1] sm:$0xff]
      %v1406 = vld [vmem:[#allocation2 + $0xc9] sm:$0xff]
      %v1407 = vld [vmem:[#allocation2 + $0xd9] sm:$0xff]
      %v1408 = vld [vmem:[#allocation2 + $0xe1] sm:$0xff]
      %v1409 = vld [vmem:[#allocation2 + $0xf1] sm:$0xff]
      %v1410 = vld [vmem:[#allocation2 + $0xf9] sm:$0xff]
      %v1411 = vld [vmem:[#allocation2 + $0x109] sm:$0xff]
      %v1412 = vld [vmem:[#allocation2 + $0x111] sm:$0xff]
      %v1413 = vld [vmem:[#allocation4] sm:$0xff]
      %v1414 = vld [vmem:[#allocation4 + $0x8] sm:$0xff]
      %v1415 = vld [vmem:[#allocation4 + $0x10] sm:$0xff]
      %v1416 = vld [vmem:[#allocation4 + $0x18] sm:$0xff]
      %v1417 = vld [vmem:[#allocation4 + $0x20] sm:$0xff]
      %v1418 = vld [vmem:[#allocation4 + $0x28] sm:$0xff]
      %v1419 = vld [vmem:[#allocation4 + $0x30] sm:$0xff]
      %v1420 = vld [vmem:[#allocation4 + $0x38] sm:$0xff]
      %v1421 = vld [vmem:[#allocation4 + $0x40] sm:$0xff]
      %v1422 = vld [vmem:[#allocation4 + $0x48] sm:$0xff]
      %v1423 = vld [vmem:[#allocation4 + $0x50] sm:$0xff]
      %v1424 = vld [vmem:[#allocation4 + $0x58] sm:$0xff]
      %v1425 = vld [vmem:[#allocation4 + $0x60] sm:$0xff]
      %v1426 = vld [vmem:[#allocation4 + $0x68] sm:$0xff]
      %v1427 = vld [vmem:[#allocation4 + $0x70] sm:$0xff]
      %v1428 = vld [vmem:[#allocation4 + $0x78] sm:$0xff]
      %v1429 = vld [vmem:[#allocation4 + $0x80] sm:$0xff]
      %v1430 = vld [vmem:[#allocation4 + $0x88] sm:$0xff]
      %v1431 = vld [vmem:[#allocation4 + $0x90] sm:$0xff]
      %v1432 = vld [vmem:[#allocation4 + $0x98] sm:$0xff]
      %v1433 = vld [vmem:[#allocation4 + $0xa0] sm:$0xff]
      %v1434 = vld [vmem:[#allocation4 + $0xa8] sm:$0xff]
      %v1435 = vld [vmem:[#allocation4 + $0xb0] sm:$0xff]
      %v1436 = vld [vmem:[#allocation4 + $0xb8] sm:$0xff]
      %s1437 = scalar_lea.vmem %s7, 8
      %v1438 = vld [vmem:[%s1437] sm:$0xff]
      %v1440 = vsel %vm928, %v1389, 0
      %v1443 = vsel %vm928, %v1390, 0
      %v1446 = vsel %vm928, %v1391, 0
      %v1449 = vsel %vm928, %v1392, 0
      %v1452 = vsel %vm928, %v1393, 0
      %v1455 = vsel %vm928, %v1394, 0
      %v1458 = vsel %vm928, %v1395, 0
      %v1461 = vsel %vm928, %v1396, 0
      %v1464 = vsel %vm928, %v1397, 0
      %v1467 = vsel %vm928, %v1398, 0
      %v1470 = vsel %vm928, %v1399, 0
      %v1473 = vsel %vm928, %v1400, 0
      %v1476 = vsel %vm928, %v1401, 0
      %v1479 = vsel %vm928, %v1402, 0
      %v1482 = vsel %vm928, %v1403, 0
      %v1485 = vsel %vm928, %v1404, 0
      %v1488 = vsel %vm928, %v1405, 0
      %v1491 = vsel %vm928, %v1406, 0
      %v1494 = vsel %vm928, %v1407, 0
      %v1497 = vsel %vm928, %v1408, 0
      %v1500 = vsel %vm928, %v1409, 0
      %v1503 = vsel %vm928, %v1410, 0
      %v1506 = vsel %vm928, %v1411, 0
      %v1509 = vsel %vm928, %v1412, 0
      %1511 = vmatprep.subr.mxu0 0.0
      %1512 = vmatpush1.msra.mxu0 0.0
      %1513 = vmatprep.subr.mxu0 0.0
      %1514 = vmatpush1.msra.mxu0 0.0
      %1515 = vmatprep.subr.mxu0 0.0
      %1516 = vmatpush1.msra.mxu0 0.0
      %1517 = vmatprep.subr.mxu0 0.0
      %1518 = vmatpush1.msra.mxu0 0.0
      %1519 = vmatprep.subr.mxu0 0.0
      %1520 = vmatpush1.msra.mxu0 0.0
      %1521 = vmatprep.subr.mxu0 0.0
      %1522 = vmatpush1.msra.mxu0 0.0
      %1523 = vmatprep.subr.mxu0 0.0
      %1524 = vmatpush1.msra.mxu0 0.0
      %1525 = vmatprep.subr.mxu0 0.0
      %1526 = vmatpush1.msra.mxu0 0.0
      %1527 = vmatprep.subr.mxu0 0.0
      %1528 = vmatpush1.msra.mxu0 0.0
      %1529 = vmatprep.subr.mxu0 0.0
      %1530 = vmatpush1.msra.mxu0 0.0
      %1531 = vmatprep.subr.mxu0 0.0
      %1532 = vmatpush1.msra.mxu0 0.0
      %1533 = vmatprep.subr.mxu0 0.0
      %1534 = vmatpush1.msra.mxu0 0.0
      %1535 = vmatprep.subr.mxu0 0.0
      %1536 = vmatpush1.msra.mxu0 0.0
      %1537 = vmatprep.subr.mxu0 0.0
      %1538 = vmatpush1.msra.mxu0 0.0
      %1539 = vmatprep.subr.mxu0 0.0
      %1540 = vmatpush1.msra.mxu0 0.0
      %1541 = vmatprep.subr.mxu0 0.0
      %1542 = vmatpush1.msra.mxu0 %v1438
      %1543 = vmatprep.subr.mxu0 0.0
      %1544 = vmatpush2.msra.mxu0 0.0
      %1545 = vmatprep.subr.mxu0 0.0
      %1546 = vmatpush2.msra.mxu0 0.0
      %1547 = vmatprep.subr.mxu0 0.0
      %1548 = vmatpush2.msra.mxu0 0.0
      %1549 = vmatprep.subr.mxu0 0.0
      %1550 = vmatpush2.msra.mxu0 0.0
      %1551 = vmatprep.subr.mxu0 0.0
      %1552 = vmatpush2.msra.mxu0 0.0
      %1553 = vmatprep.subr.mxu0 0.0
      %1554 = vmatpush2.msra.mxu0 0.0
      %1555 = vmatprep.subr.mxu0 0.0
      %1556 = vmatpush2.msra.mxu0 0.0
      %1557 = vmatprep.subr.mxu0 0.0
      %1558 = vmatpush2.msra.mxu0 0.0
      %1559 = vmatprep.subr.mxu0 0.0
      %1560 = vmatpush2.msra.mxu0 0.0
      %1561 = vmatprep.subr.mxu0 0.0
      %1562 = vmatpush2.msra.mxu0 0.0
      %1563 = vmatprep.subr.mxu0 0.0
      %1564 = vmatpush2.msra.mxu0 0.0
      %1565 = vmatprep.subr.mxu0 0.0
      %1566 = vmatpush2.msra.mxu0 0.0
      %1567 = vmatprep.subr.mxu0 0.0
      %1568 = vmatpush2.msra.mxu0 0.0
      %1569 = vmatprep.subr.mxu0 0.0
      %1570 = vmatpush2.msra.mxu0 0.0
      %1571 = vmatprep.subr.mxu0 0.0
      %1572 = vmatpush2.msra.mxu0 0.0
      %1573 = vmatprep.subr.mxu0 0.0
      %1574 = vmatpush2.msra.mxu0 0.0
      %1575 = vmatprep.mubr.f32.mxu0 0.0
      %1576 = vmatmul.mubr.f32.gmra.mxu0 %v1440
      %v1577 = vpop.f32.mrf.mxu0
      %v1578 = vadd.f32 0.0, %v1577
      %v1579 = vpop.f32.mrf.mxu0
      %1580 = vmatprep.mubr.f32.mxu0 0.0
      %1581 = vmatmul.mubr.f32.gmra.mxu0 %v1443
      %v1582 = vpop.f32.mrf.mxu0
      %v1583 = vadd.f32 0.0, %v1582
      %v1584 = vpop.f32.mrf.mxu0
      %1585 = vmatprep.mubr.f32.mxu0 0.0
      %1586 = vmatmul.mubr.f32.gmra.mxu0 %v1446
      %v1587 = vpop.f32.mrf.mxu0
      %v1588 = vadd.f32 0.0, %v1587
      %v1589 = vpop.f32.mrf.mxu0
      %1590 = vmatprep.mubr.f32.mxu0 0.0
      %1591 = vmatmul.mubr.f32.gmra.mxu0 %v1449
      %v1592 = vpop.f32.mrf.mxu0
      %v1593 = vadd.f32 0.0, %v1592
      %v1594 = vpop.f32.mrf.mxu0
      %1595 = vmatprep.mubr.f32.mxu0 0.0
      %1596 = vmatmul.mubr.f32.gmra.mxu0 %v1452
      %v1597 = vpop.f32.mrf.mxu0
      %v1598 = vadd.f32 0.0, %v1597
      %v1599 = vpop.f32.mrf.mxu0
      %1600 = vmatprep.mubr.f32.mxu0 0.0
      %1601 = vmatmul.mubr.f32.gmra.mxu0 %v1455
      %v1602 = vpop.f32.mrf.mxu0
      %v1603 = vadd.f32 0.0, %v1602
      %v1604 = vpop.f32.mrf.mxu0
      %1605 = vmatprep.mubr.f32.mxu0 0.0
      %1606 = vmatmul.mubr.f32.gmra.mxu0 %v1458
      %v1607 = vpop.f32.mrf.mxu0
      %v1608 = vadd.f32 0.0, %v1607
      %v1609 = vpop.f32.mrf.mxu0
      %1610 = vmatprep.mubr.f32.mxu0 0.0
      %1611 = vmatmul.mubr.f32.gmra.mxu0 %v1461
      %v1612 = vpop.f32.mrf.mxu0
      %v1613 = vadd.f32 0.0, %v1612
      %v1614 = vpop.f32.mrf.mxu0
      %1615 = vmatprep.mubr.f32.mxu0 0.0
      %1616 = vmatmul.mubr.f32.gmra.mxu0 %v1464
      %v1617 = vpop.f32.mrf.mxu0
      %v1618 = vadd.f32 0.0, %v1617
      %v1619 = vpop.f32.mrf.mxu0
      %1620 = vmatprep.mubr.f32.mxu0 0.0
      %1621 = vmatmul.mubr.f32.gmra.mxu0 %v1467
      %v1622 = vpop.f32.mrf.mxu0
      %v1623 = vadd.f32 0.0, %v1622
      %v1624 = vpop.f32.mrf.mxu0
      %1625 = vmatprep.mubr.f32.mxu0 0.0
      %1626 = vmatmul.mubr.f32.gmra.mxu0 %v1470
      %v1627 = vpop.f32.mrf.mxu0
      %v1628 = vadd.f32 0.0, %v1627
      %v1629 = vpop.f32.mrf.mxu0
      %1630 = vmatprep.mubr.f32.mxu0 0.0
      %1631 = vmatmul.mubr.f32.gmra.mxu0 %v1473
      %v1632 = vpop.f32.mrf.mxu0
      %v1633 = vadd.f32 0.0, %v1632
      %v1634 = vpop.f32.mrf.mxu0
      %1635 = vmatprep.mubr.f32.mxu0 0.0
      %1636 = vmatmul.mubr.f32.gmra.mxu0 %v1476
      %v1637 = vpop.f32.mrf.mxu0
      %v1638 = vadd.f32 0.0, %v1637
      %v1639 = vpop.f32.mrf.mxu0
      %1640 = vmatprep.mubr.f32.mxu0 0.0
      %1641 = vmatmul.mubr.f32.gmra.mxu0 %v1479
      %v1642 = vpop.f32.mrf.mxu0
      %v1643 = vadd.f32 0.0, %v1642
      %v1644 = vpop.f32.mrf.mxu0
      %1645 = vmatprep.mubr.f32.mxu0 0.0
      %1646 = vmatmul.mubr.f32.gmra.mxu0 %v1482
      %v1647 = vpop.f32.mrf.mxu0
      %v1648 = vadd.f32 0.0, %v1647
      %v1649 = vpop.f32.mrf.mxu0
      %1650 = vmatprep.mubr.f32.mxu0 0.0
      %1651 = vmatmul.mubr.f32.gmra.mxu0 %v1485
      %v1652 = vpop.f32.mrf.mxu0
      %v1653 = vadd.f32 0.0, %v1652
      %v1654 = vpop.f32.mrf.mxu0
      %1655 = vmatprep.mubr.f32.mxu0 0.0
      %1656 = vmatmul.mubr.f32.gmra.mxu0 %v1488
      %v1657 = vpop.f32.mrf.mxu0
      %v1658 = vadd.f32 0.0, %v1657
      %v1659 = vpop.f32.mrf.mxu0
      %1660 = vmatprep.mubr.f32.mxu0 0.0
      %1661 = vmatmul.mubr.f32.gmra.mxu0 %v1491
      %v1662 = vpop.f32.mrf.mxu0
      %v1663 = vadd.f32 0.0, %v1662
      %v1664 = vpop.f32.mrf.mxu0
      %1665 = vmatprep.mubr.f32.mxu0 0.0
      %1666 = vmatmul.mubr.f32.gmra.mxu0 %v1494
      %v1667 = vpop.f32.mrf.mxu0
      %v1668 = vadd.f32 0.0, %v1667
      %v1669 = vpop.f32.mrf.mxu0
      %1670 = vmatprep.mubr.f32.mxu0 0.0
      %1671 = vmatmul.mubr.f32.gmra.mxu0 %v1497
      %v1672 = vpop.f32.mrf.mxu0
      %v1673 = vadd.f32 0.0, %v1672
      %v1674 = vpop.f32.mrf.mxu0
      %1675 = vmatprep.mubr.f32.mxu0 0.0
      %1676 = vmatmul.mubr.f32.gmra.mxu0 %v1500
      %v1677 = vpop.f32.mrf.mxu0
      %v1678 = vadd.f32 0.0, %v1677
      %v1679 = vpop.f32.mrf.mxu0
      %1680 = vmatprep.mubr.f32.mxu0 0.0
      %1681 = vmatmul.mubr.f32.gmra.mxu0 %v1503
      %v1682 = vpop.f32.mrf.mxu0
      %v1683 = vadd.f32 0.0, %v1682
      %v1684 = vpop.f32.mrf.mxu0
      %1685 = vmatprep.mubr.f32.mxu0 0.0
      %1686 = vmatmul.mubr.f32.gmra.mxu0 %v1506
      %v1687 = vpop.f32.mrf.mxu0
      %v1688 = vadd.f32 0.0, %v1687
      %v1689 = vpop.f32.mrf.mxu0
      %1690 = vmatprep.mubr.f32.mxu0 0.0
      %1691 = vmatmul.mubr.f32.gmra.mxu0 %v1509
      %v1692 = vpop.f32.mrf.mxu0
      %v1693 = vadd.f32 0.0, %v1692
      %v1694 = vpop.f32.mrf.mxu0
      %1695 = vdwg.mxu0
      %v1696 = vadd.f32 %v1413, %v1578
      %v1697 = vadd.f32 %v1414, %v1583
      %v1698 = vadd.f32 %v1415, %v1588
      %v1699 = vadd.f32 %v1416, %v1593
      %v1700 = vadd.f32 %v1417, %v1598
      %v1701 = vadd.f32 %v1418, %v1603
      %v1702 = vadd.f32 %v1419, %v1608
      %v1703 = vadd.f32 %v1420, %v1613
      %v1704 = vadd.f32 %v1421, %v1618
      %v1705 = vadd.f32 %v1422, %v1623
      %v1706 = vadd.f32 %v1423, %v1628
      %v1707 = vadd.f32 %v1424, %v1633
      %v1708 = vadd.f32 %v1425, %v1638
      %v1709 = vadd.f32 %v1426, %v1643
      %v1710 = vadd.f32 %v1427, %v1648
      %v1711 = vadd.f32 %v1428, %v1653
      %v1712 = vadd.f32 %v1429, %v1658
      %v1713 = vadd.f32 %v1430, %v1663
      %v1714 = vadd.f32 %v1431, %v1668
      %v1715 = vadd.f32 %v1432, %v1673
      %v1716 = vadd.f32 %v1433, %v1678
      %v1717 = vadd.f32 %v1434, %v1683
      %v1718 = vadd.f32 %v1435, %v1688
      %v1719 = vadd.f32 %v1436, %v1693
      %1720 = vst.msk [vmem:[#allocation4] sm:$0xff] %vm1010, %v1696
      %1721 = vst.msk [vmem:[#allocation4 + $0x8] sm:$0xff] %vm1010, %v1697
      %1722 = vst.msk [vmem:[#allocation4 + $0x10] sm:$0xff] %vm1010, %v1698
      %1723 = vst.msk [vmem:[#allocation4 + $0x18] sm:$0xff] %vm1010, %v1699
      %1724 = vst.msk [vmem:[#allocation4 + $0x20] sm:$0xff] %vm1010, %v1700
      %1725 = vst.msk [vmem:[#allocation4 + $0x28] sm:$0xff] %vm1010, %v1701
      %1726 = vst.msk [vmem:[#allocation4 + $0x30] sm:$0xff] %vm1010, %v1702
      %1727 = vst.msk [vmem:[#allocation4 + $0x38] sm:$0xff] %vm1010, %v1703
      %1728 = vst.msk [vmem:[#allocation4 + $0x40] sm:$0xff] %vm1010, %v1704
      %1729 = vst.msk [vmem:[#allocation4 + $0x48] sm:$0xff] %vm1010, %v1705
      %1730 = vst.msk [vmem:[#allocation4 + $0x50] sm:$0xff] %vm1010, %v1706
      %1731 = vst.msk [vmem:[#allocation4 + $0x58] sm:$0xff] %vm1010, %v1707
      %1732 = vst.msk [vmem:[#allocation4 + $0x60] sm:$0xff] %vm1010, %v1708
      %1733 = vst.msk [vmem:[#allocation4 + $0x68] sm:$0xff] %vm1010, %v1709
      %1734 = vst.msk [vmem:[#allocation4 + $0x70] sm:$0xff] %vm1010, %v1710
      %1735 = vst.msk [vmem:[#allocation4 + $0x78] sm:$0xff] %vm1010, %v1711
      %1736 = vst.msk [vmem:[#allocation4 + $0x80] sm:$0xff] %vm1010, %v1712
      %1737 = vst.msk [vmem:[#allocation4 + $0x88] sm:$0xff] %vm1010, %v1713
      %1738 = vst.msk [vmem:[#allocation4 + $0x90] sm:$0xff] %vm1010, %v1714
      %1739 = vst.msk [vmem:[#allocation4 + $0x98] sm:$0xff] %vm1010, %v1715
      %1740 = vst.msk [vmem:[#allocation4 + $0xa0] sm:$0xff] %vm1010, %v1716
      %1741 = vst.msk [vmem:[#allocation4 + $0xa8] sm:$0xff] %vm1010, %v1717
      %1742 = vst.msk [vmem:[#allocation4 + $0xb0] sm:$0xff] %vm1010, %v1718
      %1743 = vst.msk [vmem:[#allocation4 + $0xb8] sm:$0xff] %vm1010, %v1719
      %v1744 = vld [vmem:[#allocation2 + $0x2] sm:$0xff]
      %v1745 = vld [vmem:[#allocation2 + $0xa] sm:$0xff]
      %v1746 = vld [vmem:[#allocation2 + $0x1a] sm:$0xff]
      %v1747 = vld [vmem:[#allocation2 + $0x22] sm:$0xff]
      %v1748 = vld [vmem:[#allocation2 + $0x32] sm:$0xff]
      %v1749 = vld [vmem:[#allocation2 + $0x3a] sm:$0xff]
      %v1750 = vld [vmem:[#allocation2 + $0x4a] sm:$0xff]
      %v1751 = vld [vmem:[#allocation2 + $0x52] sm:$0xff]
      %v1752 = vld [vmem:[#allocation2 + $0x62] sm:$0xff]
      %v1753 = vld [vmem:[#allocation2 + $0x6a] sm:$0xff]
      %v1754 = vld [vmem:[#allocation2 + $0x7a] sm:$0xff]
      %v1755 = vld [vmem:[#allocation2 + $0x82] sm:$0xff]
      %v1756 = vld [vmem:[#allocation2 + $0x92] sm:$0xff]
      %v1757 = vld [vmem:[#allocation2 + $0x9a] sm:$0xff]
      %v1758 = vld [vmem:[#allocation2 + $0xaa] sm:$0xff]
      %v1759 = vld [vmem:[#allocation2 + $0xb2] sm:$0xff]
      %v1760 = vld [vmem:[#allocation2 + $0xc2] sm:$0xff]
      %v1761 = vld [vmem:[#allocation2 + $0xca] sm:$0xff]
      %v1762 = vld [vmem:[#allocation2 + $0xda] sm:$0xff]
      %v1763 = vld [vmem:[#allocation2 + $0xe2] sm:$0xff]
      %v1764 = vld [vmem:[#allocation2 + $0xf2] sm:$0xff]
      %v1765 = vld [vmem:[#allocation2 + $0xfa] sm:$0xff]
      %v1766 = vld [vmem:[#allocation2 + $0x10a] sm:$0xff]
      %v1767 = vld [vmem:[#allocation2 + $0x112] sm:$0xff]
      %v1768 = vld [vmem:[#allocation4] sm:$0xff]
      %v1769 = vld [vmem:[#allocation4 + $0x8] sm:$0xff]
      %v1770 = vld [vmem:[#allocation4 + $0x10] sm:$0xff]
      %v1771 = vld [vmem:[#allocation4 + $0x18] sm:$0xff]
      %v1772 = vld [vmem:[#allocation4 + $0x20] sm:$0xff]
      %v1773 = vld [vmem:[#allocation4 + $0x28] sm:$0xff]
      %v1774 = vld [vmem:[#allocation4 + $0x30] sm:$0xff]
      %v1775 = vld [vmem:[#allocation4 + $0x38] sm:$0xff]
      %v1776 = vld [vmem:[#allocation4 + $0x40] sm:$0xff]
      %v1777 = vld [vmem:[#allocation4 + $0x48] sm:$0xff]
      %v1778 = vld [vmem:[#allocation4 + $0x50] sm:$0xff]
      %v1779 = vld [vmem:[#allocation4 + $0x58] sm:$0xff]
      %v1780 = vld [vmem:[#allocation4 + $0x60] sm:$0xff]
      %v1781 = vld [vmem:[#allocation4 + $0x68] sm:$0xff]
      %v1782 = vld [vmem:[#allocation4 + $0x70] sm:$0xff]
      %v1783 = vld [vmem:[#allocation4 + $0x78] sm:$0xff]
      %v1784 = vld [vmem:[#allocation4 + $0x80] sm:$0xff]
      %v1785 = vld [vmem:[#allocation4 + $0x88] sm:$0xff]
      %v1786 = vld [vmem:[#allocation4 + $0x90] sm:$0xff]
      %v1787 = vld [vmem:[#allocation4 + $0x98] sm:$0xff]
      %v1788 = vld [vmem:[#allocation4 + $0xa0] sm:$0xff]
      %v1789 = vld [vmem:[#allocation4 + $0xa8] sm:$0xff]
      %v1790 = vld [vmem:[#allocation4 + $0xb0] sm:$0xff]
      %v1791 = vld [vmem:[#allocation4 + $0xb8] sm:$0xff]
      %s1792 = scalar_lea.vmem %s7, 16
      %v1793 = vld [vmem:[%s1792] sm:$0xff]
      %v1795 = vsel %vm928, %v1744, 0
      %v1798 = vsel %vm928, %v1745, 0
      %v1801 = vsel %vm928, %v1746, 0
      %v1804 = vsel %vm928, %v1747, 0
      %v1807 = vsel %vm928, %v1748, 0
      %v1810 = vsel %vm928, %v1749, 0
      %v1813 = vsel %vm928, %v1750, 0
      %v1816 = vsel %vm928, %v1751, 0
      %v1819 = vsel %vm928, %v1752, 0
      %v1822 = vsel %vm928, %v1753, 0
      %v1825 = vsel %vm928, %v1754, 0
      %v1828 = vsel %vm928, %v1755, 0
      %v1831 = vsel %vm928, %v1756, 0
      %v1834 = vsel %vm928, %v1757, 0
      %v1837 = vsel %vm928, %v1758, 0
      %v1840 = vsel %vm928, %v1759, 0
      %v1843 = vsel %vm928, %v1760, 0
      %v1846 = vsel %vm928, %v1761, 0
      %v1849 = vsel %vm928, %v1762, 0
      %v1852 = vsel %vm928, %v1763, 0
      %v1855 = vsel %vm928, %v1764, 0
      %v1858 = vsel %vm928, %v1765, 0
      %v1861 = vsel %vm928, %v1766, 0
      %v1864 = vsel %vm928, %v1767, 0
      %1866 = vmatprep.subr.mxu0 0.0
      %1867 = vmatpush1.msra.mxu0 0.0
      %1868 = vmatprep.subr.mxu0 0.0
      %1869 = vmatpush1.msra.mxu0 0.0
      %1870 = vmatprep.subr.mxu0 0.0
      %1871 = vmatpush1.msra.mxu0 0.0
      %1872 = vmatprep.subr.mxu0 0.0
      %1873 = vmatpush1.msra.mxu0 0.0
      %1874 = vmatprep.subr.mxu0 0.0
      %1875 = vmatpush1.msra.mxu0 0.0
      %1876 = vmatprep.subr.mxu0 0.0
      %1877 = vmatpush1.msra.mxu0 0.0
      %1878 = vmatprep.subr.mxu0 0.0
      %1879 = vmatpush1.msra.mxu0 0.0
      %1880 = vmatprep.subr.mxu0 0.0
      %1881 = vmatpush1.msra.mxu0 0.0
      %1882 = vmatprep.subr.mxu0 0.0
      %1883 = vmatpush1.msra.mxu0 0.0
      %1884 = vmatprep.subr.mxu0 0.0
      %1885 = vmatpush1.msra.mxu0 0.0
      %1886 = vmatprep.subr.mxu0 0.0
      %1887 = vmatpush1.msra.mxu0 0.0
      %1888 = vmatprep.subr.mxu0 0.0
      %1889 = vmatpush1.msra.mxu0 0.0
      %1890 = vmatprep.subr.mxu0 0.0
      %1891 = vmatpush1.msra.mxu0 0.0
      %1892 = vmatprep.subr.mxu0 0.0
      %1893 = vmatpush1.msra.mxu0 0.0
      %1894 = vmatprep.subr.mxu0 0.0
      %1895 = vmatpush1.msra.mxu0 0.0
      %1896 = vmatprep.subr.mxu0 0.0
      %1897 = vmatpush1.msra.mxu0 %v1793
      %1898 = vmatprep.subr.mxu0 0.0
      %1899 = vmatpush2.msra.mxu0 0.0
      %1900 = vmatprep.subr.mxu0 0.0
      %1901 = vmatpush2.msra.mxu0 0.0
      %1902 = vmatprep.subr.mxu0 0.0
      %1903 = vmatpush2.msra.mxu0 0.0
      %1904 = vmatprep.subr.mxu0 0.0
      %1905 = vmatpush2.msra.mxu0 0.0
      %1906 = vmatprep.subr.mxu0 0.0
      %1907 = vmatpush2.msra.mxu0 0.0
      %1908 = vmatprep.subr.mxu0 0.0
      %1909 = vmatpush2.msra.mxu0 0.0
      %1910 = vmatprep.subr.mxu0 0.0
      %1911 = vmatpush2.msra.mxu0 0.0
      %1912 = vmatprep.subr.mxu0 0.0
      %1913 = vmatpush2.msra.mxu0 0.0
      %1914 = vmatprep.subr.mxu0 0.0
      %1915 = vmatpush2.msra.mxu0 0.0
      %1916 = vmatprep.subr.mxu0 0.0
      %1917 = vmatpush2.msra.mxu0 0.0
      %1918 = vmatprep.subr.mxu0 0.0
      %1919 = vmatpush2.msra.mxu0 0.0
      %1920 = vmatprep.subr.mxu0 0.0
      %1921 = vmatpush2.msra.mxu0 0.0
      %1922 = vmatprep.subr.mxu0 0.0
      %1923 = vmatpush2.msra.mxu0 0.0
      %1924 = vmatprep.subr.mxu0 0.0
      %1925 = vmatpush2.msra.mxu0 0.0
      %1926 = vmatprep.subr.mxu0 0.0
      %1927 = vmatpush2.msra.mxu0 0.0
      %1928 = vmatprep.subr.mxu0 0.0
      %1929 = vmatpush2.msra.mxu0 0.0
      %1930 = vmatprep.mubr.f32.mxu0 0.0
      %1931 = vmatmul.mubr.f32.gmra.mxu0 %v1795
      %v1932 = vpop.f32.mrf.mxu0
      %v1933 = vadd.f32 0.0, %v1932
      %v1934 = vpop.f32.mrf.mxu0
      %1935 = vmatprep.mubr.f32.mxu0 0.0
      %1936 = vmatmul.mubr.f32.gmra.mxu0 %v1798
      %v1937 = vpop.f32.mrf.mxu0
      %v1938 = vadd.f32 0.0, %v1937
      %v1939 = vpop.f32.mrf.mxu0
      %1940 = vmatprep.mubr.f32.mxu0 0.0
      %1941 = vmatmul.mubr.f32.gmra.mxu0 %v1801
      %v1942 = vpop.f32.mrf.mxu0
      %v1943 = vadd.f32 0.0, %v1942
      %v1944 = vpop.f32.mrf.mxu0
      %1945 = vmatprep.mubr.f32.mxu0 0.0
      %1946 = vmatmul.mubr.f32.gmra.mxu0 %v1804
      %v1947 = vpop.f32.mrf.mxu0
      %v1948 = vadd.f32 0.0, %v1947
      %v1949 = vpop.f32.mrf.mxu0
      %1950 = vmatprep.mubr.f32.mxu0 0.0
      %1951 = vmatmul.mubr.f32.gmra.mxu0 %v1807
      %v1952 = vpop.f32.mrf.mxu0
      %v1953 = vadd.f32 0.0, %v1952
      %v1954 = vpop.f32.mrf.mxu0
      %1955 = vmatprep.mubr.f32.mxu0 0.0
      %1956 = vmatmul.mubr.f32.gmra.mxu0 %v1810
      %v1957 = vpop.f32.mrf.mxu0
      %v1958 = vadd.f32 0.0, %v1957
      %v1959 = vpop.f32.mrf.mxu0
      %1960 = vmatprep.mubr.f32.mxu0 0.0
      %1961 = vmatmul.mubr.f32.gmra.mxu0 %v1813
      %v1962 = vpop.f32.mrf.mxu0
      %v1963 = vadd.f32 0.0, %v1962
      %v1964 = vpop.f32.mrf.mxu0
      %1965 = vmatprep.mubr.f32.mxu0 0.0
      %1966 = vmatmul.mubr.f32.gmra.mxu0 %v1816
      %v1967 = vpop.f32.mrf.mxu0
      %v1968 = vadd.f32 0.0, %v1967
      %v1969 = vpop.f32.mrf.mxu0
      %1970 = vmatprep.mubr.f32.mxu0 0.0
      %1971 = vmatmul.mubr.f32.gmra.mxu0 %v1819
      %v1972 = vpop.f32.mrf.mxu0
      %v1973 = vadd.f32 0.0, %v1972
      %v1974 = vpop.f32.mrf.mxu0
      %1975 = vmatprep.mubr.f32.mxu0 0.0
      %1976 = vmatmul.mubr.f32.gmra.mxu0 %v1822
      %v1977 = vpop.f32.mrf.mxu0
      %v1978 = vadd.f32 0.0, %v1977
      %v1979 = vpop.f32.mrf.mxu0
      %1980 = vmatprep.mubr.f32.mxu0 0.0
      %1981 = vmatmul.mubr.f32.gmra.mxu0 %v1825
      %v1982 = vpop.f32.mrf.mxu0
      %v1983 = vadd.f32 0.0, %v1982
      %v1984 = vpop.f32.mrf.mxu0
      %1985 = vmatprep.mubr.f32.mxu0 0.0
      %1986 = vmatmul.mubr.f32.gmra.mxu0 %v1828
      %v1987 = vpop.f32.mrf.mxu0
      %v1988 = vadd.f32 0.0, %v1987
      %v1989 = vpop.f32.mrf.mxu0
      %1990 = vmatprep.mubr.f32.mxu0 0.0
      %1991 = vmatmul.mubr.f32.gmra.mxu0 %v1831
      %v1992 = vpop.f32.mrf.mxu0
      %v1993 = vadd.f32 0.0, %v1992
      %v1994 = vpop.f32.mrf.mxu0
      %1995 = vmatprep.mubr.f32.mxu0 0.0
      %1996 = vmatmul.mubr.f32.gmra.mxu0 %v1834
      %v1997 = vpop.f32.mrf.mxu0
      %v1998 = vadd.f32 0.0, %v1997
      %v1999 = vpop.f32.mrf.mxu0
      %2000 = vmatprep.mubr.f32.mxu0 0.0
      %2001 = vmatmul.mubr.f32.gmra.mxu0 %v1837
      %v2002 = vpop.f32.mrf.mxu0
      %v2003 = vadd.f32 0.0, %v2002
      %v2004 = vpop.f32.mrf.mxu0
      %2005 = vmatprep.mubr.f32.mxu0 0.0
      %2006 = vmatmul.mubr.f32.gmra.mxu0 %v1840
      %v2007 = vpop.f32.mrf.mxu0
      %v2008 = vadd.f32 0.0, %v2007
      %v2009 = vpop.f32.mrf.mxu0
      %2010 = vmatprep.mubr.f32.mxu0 0.0
      %2011 = vmatmul.mubr.f32.gmra.mxu0 %v1843
      %v2012 = vpop.f32.mrf.mxu0
      %v2013 = vadd.f32 0.0, %v2012
      %v2014 = vpop.f32.mrf.mxu0
      %2015 = vmatprep.mubr.f32.mxu0 0.0
      %2016 = vmatmul.mubr.f32.gmra.mxu0 %v1846
      %v2017 = vpop.f32.mrf.mxu0
      %v2018 = vadd.f32 0.0, %v2017
      %v2019 = vpop.f32.mrf.mxu0
      %2020 = vmatprep.mubr.f32.mxu0 0.0
      %2021 = vmatmul.mubr.f32.gmra.mxu0 %v1849
      %v2022 = vpop.f32.mrf.mxu0
      %v2023 = vadd.f32 0.0, %v2022
      %v2024 = vpop.f32.mrf.mxu0
      %2025 = vmatprep.mubr.f32.mxu0 0.0
      %2026 = vmatmul.mubr.f32.gmra.mxu0 %v1852
      %v2027 = vpop.f32.mrf.mxu0
      %v2028 = vadd.f32 0.0, %v2027
      %v2029 = vpop.f32.mrf.mxu0
      %2030 = vmatprep.mubr.f32.mxu0 0.0
      %2031 = vmatmul.mubr.f32.gmra.mxu0 %v1855
      %v2032 = vpop.f32.mrf.mxu0
      %v2033 = vadd.f32 0.0, %v2032
      %v2034 = vpop.f32.mrf.mxu0
      %2035 = vmatprep.mubr.f32.mxu0 0.0
      %2036 = vmatmul.mubr.f32.gmra.mxu0 %v1858
      %v2037 = vpop.f32.mrf.mxu0
      %v2038 = vadd.f32 0.0, %v2037
      %v2039 = vpop.f32.mrf.mxu0
      %2040 = vmatprep.mubr.f32.mxu0 0.0
      %2041 = vmatmul.mubr.f32.gmra.mxu0 %v1861
      %v2042 = vpop.f32.mrf.mxu0
      %v2043 = vadd.f32 0.0, %v2042
      %v2044 = vpop.f32.mrf.mxu0
      %2045 = vmatprep.mubr.f32.mxu0 0.0
      %2046 = vmatmul.mubr.f32.gmra.mxu0 %v1864
      %v2047 = vpop.f32.mrf.mxu0
      %v2048 = vadd.f32 0.0, %v2047
      %v2049 = vpop.f32.mrf.mxu0
      %2050 = vdwg.mxu0
      %v2051 = vadd.f32 %v1768, %v1933
      %v2052 = vadd.f32 %v1769, %v1938
      %v2053 = vadd.f32 %v1770, %v1943
      %v2054 = vadd.f32 %v1771, %v1948
      %v2055 = vadd.f32 %v1772, %v1953
      %v2056 = vadd.f32 %v1773, %v1958
      %v2057 = vadd.f32 %v1774, %v1963
      %v2058 = vadd.f32 %v1775, %v1968
      %v2059 = vadd.f32 %v1776, %v1973
      %v2060 = vadd.f32 %v1777, %v1978
      %v2061 = vadd.f32 %v1778, %v1983
      %v2062 = vadd.f32 %v1779, %v1988
      %v2063 = vadd.f32 %v1780, %v1993
      %v2064 = vadd.f32 %v1781, %v1998
      %v2065 = vadd.f32 %v1782, %v2003
      %v2066 = vadd.f32 %v1783, %v2008
      %v2067 = vadd.f32 %v1784, %v2013
      %v2068 = vadd.f32 %v1785, %v2018
      %v2069 = vadd.f32 %v1786, %v2023
      %v2070 = vadd.f32 %v1787, %v2028
      %v2071 = vadd.f32 %v1788, %v2033
      %v2072 = vadd.f32 %v1789, %v2038
      %v2073 = vadd.f32 %v1790, %v2043
      %v2074 = vadd.f32 %v1791, %v2048
      %2075 = vst.msk [vmem:[#allocation4] sm:$0xff] %vm1010, %v2051
      %2076 = vst.msk [vmem:[#allocation4 + $0x8] sm:$0xff] %vm1010, %v2052
      %2077 = vst.msk [vmem:[#allocation4 + $0x10] sm:$0xff] %vm1010, %v2053
      %2078 = vst.msk [vmem:[#allocation4 + $0x18] sm:$0xff] %vm1010, %v2054
      %2079 = vst.msk [vmem:[#allocation4 + $0x20] sm:$0xff] %vm1010, %v2055
      %2080 = vst.msk [vmem:[#allocation4 + $0x28] sm:$0xff] %vm1010, %v2056
      %2081 = vst.msk [vmem:[#allocation4 + $0x30] sm:$0xff] %vm1010, %v2057
      %2082 = vst.msk [vmem:[#allocation4 + $0x38] sm:$0xff] %vm1010, %v2058
      %2083 = vst.msk [vmem:[#allocation4 + $0x40] sm:$0xff] %vm1010, %v2059
      %2084 = vst.msk [vmem:[#allocation4 + $0x48] sm:$0xff] %vm1010, %v2060
      %2085 = vst.msk [vmem:[#allocation4 + $0x50] sm:$0xff] %vm1010, %v2061
      %2086 = vst.msk [vmem:[#allocation4 + $0x58] sm:$0xff] %vm1010, %v2062
      %2087 = vst.msk [vmem:[#allocation4 + $0x60] sm:$0xff] %vm1010, %v2063
      %2088 = vst.msk [vmem:[#allocation4 + $0x68] sm:$0xff] %vm1010, %v2064
      %2089 = vst.msk [vmem:[#allocation4 + $0x70] sm:$0xff] %vm1010, %v2065
      %2090 = vst.msk [vmem:[#allocation4 + $0x78] sm:$0xff] %vm1010, %v2066
      %2091 = vst.msk [vmem:[#allocation4 + $0x80] sm:$0xff] %vm1010, %v2067
      %2092 = vst.msk [vmem:[#allocation4 + $0x88] sm:$0xff] %vm1010, %v2068
      %2093 = vst.msk [vmem:[#allocation4 + $0x90] sm:$0xff] %vm1010, %v2069
      %2094 = vst.msk [vmem:[#allocation4 + $0x98] sm:$0xff] %vm1010, %v2070
      %2095 = vst.msk [vmem:[#allocation4 + $0xa0] sm:$0xff] %vm1010, %v2071
      %2096 = vst.msk [vmem:[#allocation4 + $0xa8] sm:$0xff] %vm1010, %v2072
      %2097 = vst.msk [vmem:[#allocation4 + $0xb0] sm:$0xff] %vm1010, %v2073
      %2098 = vst.msk [vmem:[#allocation4 + $0xb8] sm:$0xff] %vm1010, %v2074
      %s2099 = scalar_lea.vmem [#allocation2], 24
      %v2100 = vld [vmem:[%s2099] sm:$0xff]
      %v2101 = vld [vmem:[%s2099 + $0x8] sm:$0xff]
      %v2102 = vld [vmem:[%s2099 + $0x18] sm:$0xff]
      %v2103 = vld [vmem:[%s2099 + $0x20] sm:$0xff]
      %v2104 = vld [vmem:[%s2099 + $0x30] sm:$0xff]
      %v2105 = vld [vmem:[%s2099 + $0x38] sm:$0xff]
      %v2106 = vld [vmem:[%s2099 + $0x48] sm:$0xff]
      %v2107 = vld [vmem:[%s2099 + $0x50] sm:$0xff]
      %v2108 = vld [vmem:[%s2099 + $0x60] sm:$0xff]
      %v2109 = vld [vmem:[%s2099 + $0x68] sm:$0xff]
      %v2110 = vld [vmem:[%s2099 + $0x78] sm:$0xff]
      %v2111 = vld [vmem:[%s2099 + $0x80] sm:$0xff]
      %v2112 = vld [vmem:[%s2099 + $0x90] sm:$0xff]
      %v2113 = vld [vmem:[%s2099 + $0x98] sm:$0xff]
      %v2114 = vld [vmem:[%s2099 + $0xa8] sm:$0xff]
      %v2115 = vld [vmem:[%s2099 + $0xb0] sm:$0xff]
      %v2116 = vld [vmem:[%s2099 + $0xc0] sm:$0xff]
      %v2117 = vld [vmem:[%s2099 + $0xc8] sm:$0xff]
      %v2118 = vld [vmem:[%s2099 + $0xd8] sm:$0xff]
      %v2119 = vld [vmem:[%s2099 + $0xe0] sm:$0xff]
      %v2120 = vld [vmem:[%s2099 + $0xf0] sm:$0xff]
      %v2121 = vld [vmem:[%s2099 + $0xf8] sm:$0xff]
      %v2122 = vld [vmem:[%s2099 + $0x108] sm:$0xff]
      %v2123 = vld [vmem:[%s2099 + $0x110] sm:$0xff]
      %v2124 = vld [vmem:[#allocation4] sm:$0xff]
      %v2125 = vld [vmem:[#allocation4 + $0x8] sm:$0xff]
      %v2126 = vld [vmem:[#allocation4 + $0x10] sm:$0xff]
      %v2127 = vld [vmem:[#allocation4 + $0x18] sm:$0xff]
      %v2128 = vld [vmem:[#allocation4 + $0x20] sm:$0xff]
      %v2129 = vld [vmem:[#allocation4 + $0x28] sm:$0xff]
      %v2130 = vld [vmem:[#allocation4 + $0x30] sm:$0xff]
      %v2131 = vld [vmem:[#allocation4 + $0x38] sm:$0xff]
      %v2132 = vld [vmem:[#allocation4 + $0x40] sm:$0xff]
      %v2133 = vld [vmem:[#allocation4 + $0x48] sm:$0xff]
      %v2134 = vld [vmem:[#allocation4 + $0x50] sm:$0xff]
      %v2135 = vld [vmem:[#allocation4 + $0x58] sm:$0xff]
      %v2136 = vld [vmem:[#allocation4 + $0x60] sm:$0xff]
      %v2137 = vld [vmem:[#allocation4 + $0x68] sm:$0xff]
      %v2138 = vld [vmem:[#allocation4 + $0x70] sm:$0xff]
      %v2139 = vld [vmem:[#allocation4 + $0x78] sm:$0xff]
      %v2140 = vld [vmem:[#allocation4 + $0x80] sm:$0xff]
      %v2141 = vld [vmem:[#allocation4 + $0x88] sm:$0xff]
      %v2142 = vld [vmem:[#allocation4 + $0x90] sm:$0xff]
      %v2143 = vld [vmem:[#allocation4 + $0x98] sm:$0xff]
      %v2144 = vld [vmem:[#allocation4 + $0xa0] sm:$0xff]
      %v2145 = vld [vmem:[#allocation4 + $0xa8] sm:$0xff]
      %v2146 = vld [vmem:[#allocation4 + $0xb0] sm:$0xff]
      %v2147 = vld [vmem:[#allocation4 + $0xb8] sm:$0xff]
      %s2148 = scalar_lea.vmem %s7, 24
      %v2149 = vld [vmem:[%s2148] sm:$0xff]
      %v2151 = vsel %vm928, %v2100, 0
      %v2154 = vsel %vm928, %v2101, 0
      %v2157 = vsel %vm928, %v2102, 0
      %v2160 = vsel %vm928, %v2103, 0
      %v2163 = vsel %vm928, %v2104, 0
      %v2166 = vsel %vm928, %v2105, 0
      %v2169 = vsel %vm928, %v2106, 0
      %v2172 = vsel %vm928, %v2107, 0
      %v2175 = vsel %vm928, %v2108, 0
      %v2178 = vsel %vm928, %v2109, 0
      %v2181 = vsel %vm928, %v2110, 0
      %v2184 = vsel %vm928, %v2111, 0
      %v2187 = vsel %vm928, %v2112, 0
      %v2190 = vsel %vm928, %v2113, 0
      %v2193 = vsel %vm928, %v2114, 0
      %v2196 = vsel %vm928, %v2115, 0
      %v2199 = vsel %vm928, %v2116, 0
      %v2202 = vsel %vm928, %v2117, 0
      %v2205 = vsel %vm928, %v2118, 0
      %v2208 = vsel %vm928, %v2119, 0
      %v2211 = vsel %vm928, %v2120, 0
      %v2214 = vsel %vm928, %v2121, 0
      %v2217 = vsel %vm928, %v2122, 0
      %v2220 = vsel %vm928, %v2123, 0
      %2222 = vmatprep.subr.mxu0 0.0
      %2223 = vmatpush1.msra.mxu0 0.0
      %2224 = vmatprep.subr.mxu0 0.0
      %2225 = vmatpush1.msra.mxu0 0.0
      %2226 = vmatprep.subr.mxu0 0.0
      %2227 = vmatpush1.msra.mxu0 0.0
      %2228 = vmatprep.subr.mxu0 0.0
      %2229 = vmatpush1.msra.mxu0 0.0
      %2230 = vmatprep.subr.mxu0 0.0
      %2231 = vmatpush1.msra.mxu0 0.0
      %2232 = vmatprep.subr.mxu0 0.0
      %2233 = vmatpush1.msra.mxu0 0.0
      %2234 = vmatprep.subr.mxu0 0.0
      %2235 = vmatpush1.msra.mxu0 0.0
      %2236 = vmatprep.subr.mxu0 0.0
      %2237 = vmatpush1.msra.mxu0 0.0
      %2238 = vmatprep.subr.mxu0 0.0
      %2239 = vmatpush1.msra.mxu0 0.0
      %2240 = vmatprep.subr.mxu0 0.0
      %2241 = vmatpush1.msra.mxu0 0.0
      %2242 = vmatprep.subr.mxu0 0.0
      %2243 = vmatpush1.msra.mxu0 0.0
      %2244 = vmatprep.subr.mxu0 0.0
      %2245 = vmatpush1.msra.mxu0 0.0
      %2246 = vmatprep.subr.mxu0 0.0
      %2247 = vmatpush1.msra.mxu0 0.0
      %2248 = vmatprep.subr.mxu0 0.0
      %2249 = vmatpush1.msra.mxu0 0.0
      %2250 = vmatprep.subr.mxu0 0.0
      %2251 = vmatpush1.msra.mxu0 0.0
      %2252 = vmatprep.subr.mxu0 0.0
      %2253 = vmatpush1.msra.mxu0 %v2149
      %2254 = vmatprep.subr.mxu0 0.0
      %2255 = vmatpush2.msra.mxu0 0.0
      %2256 = vmatprep.subr.mxu0 0.0
      %2257 = vmatpush2.msra.mxu0 0.0
      %2258 = vmatprep.subr.mxu0 0.0
      %2259 = vmatpush2.msra.mxu0 0.0
      %2260 = vmatprep.subr.mxu0 0.0
      %2261 = vmatpush2.msra.mxu0 0.0
      %2262 = vmatprep.subr.mxu0 0.0
      %2263 = vmatpush2.msra.mxu0 0.0
      %2264 = vmatprep.subr.mxu0 0.0
      %2265 = vmatpush2.msra.mxu0 0.0
      %2266 = vmatprep.subr.mxu0 0.0
      %2267 = vmatpush2.msra.mxu0 0.0
      %2268 = vmatprep.subr.mxu0 0.0
      %2269 = vmatpush2.msra.mxu0 0.0
      %2270 = vmatprep.subr.mxu0 0.0
      %2271 = vmatpush2.msra.mxu0 0.0
      %2272 = vmatprep.subr.mxu0 0.0
      %2273 = vmatpush2.msra.mxu0 0.0
      %2274 = vmatprep.subr.mxu0 0.0
      %2275 = vmatpush2.msra.mxu0 0.0
      %2276 = vmatprep.subr.mxu0 0.0
      %2277 = vmatpush2.msra.mxu0 0.0
      %2278 = vmatprep.subr.mxu0 0.0
      %2279 = vmatpush2.msra.mxu0 0.0
      %2280 = vmatprep.subr.mxu0 0.0
      %2281 = vmatpush2.msra.mxu0 0.0
      %2282 = vmatprep.subr.mxu0 0.0
      %2283 = vmatpush2.msra.mxu0 0.0
      %2284 = vmatprep.subr.mxu0 0.0
      %2285 = vmatpush2.msra.mxu0 0.0
      %2286 = vmatprep.mubr.f32.mxu0 0.0
      %2287 = vmatmul.mubr.f32.gmra.mxu0 %v2151
      %v2288 = vpop.f32.mrf.mxu0
      %v2289 = vadd.f32 0.0, %v2288
      %v2290 = vpop.f32.mrf.mxu0
      %2291 = vmatprep.mubr.f32.mxu0 0.0
      %2292 = vmatmul.mubr.f32.gmra.mxu0 %v2154
      %v2293 = vpop.f32.mrf.mxu0
      %v2294 = vadd.f32 0.0, %v2293
      %v2295 = vpop.f32.mrf.mxu0
      %2296 = vmatprep.mubr.f32.mxu0 0.0
      %2297 = vmatmul.mubr.f32.gmra.mxu0 %v2157
      %v2298 = vpop.f32.mrf.mxu0
      %v2299 = vadd.f32 0.0, %v2298
      %v2300 = vpop.f32.mrf.mxu0
      %2301 = vmatprep.mubr.f32.mxu0 0.0
      %2302 = vmatmul.mubr.f32.gmra.mxu0 %v2160
      %v2303 = vpop.f32.mrf.mxu0
      %v2304 = vadd.f32 0.0, %v2303
      %v2305 = vpop.f32.mrf.mxu0
      %2306 = vmatprep.mubr.f32.mxu0 0.0
      %2307 = vmatmul.mubr.f32.gmra.mxu0 %v2163
      %v2308 = vpop.f32.mrf.mxu0
      %v2309 = vadd.f32 0.0, %v2308
      %v2310 = vpop.f32.mrf.mxu0
      %2311 = vmatprep.mubr.f32.mxu0 0.0
      %2312 = vmatmul.mubr.f32.gmra.mxu0 %v2166
      %v2313 = vpop.f32.mrf.mxu0
      %v2314 = vadd.f32 0.0, %v2313
      %v2315 = vpop.f32.mrf.mxu0
      %2316 = vmatprep.mubr.f32.mxu0 0.0
      %2317 = vmatmul.mubr.f32.gmra.mxu0 %v2169
      %v2318 = vpop.f32.mrf.mxu0
      %v2319 = vadd.f32 0.0, %v2318
      %v2320 = vpop.f32.mrf.mxu0
      %2321 = vmatprep.mubr.f32.mxu0 0.0
      %2322 = vmatmul.mubr.f32.gmra.mxu0 %v2172
      %v2323 = vpop.f32.mrf.mxu0
      %v2324 = vadd.f32 0.0, %v2323
      %v2325 = vpop.f32.mrf.mxu0
      %2326 = vmatprep.mubr.f32.mxu0 0.0
      %2327 = vmatmul.mubr.f32.gmra.mxu0 %v2175
      %v2328 = vpop.f32.mrf.mxu0
      %v2329 = vadd.f32 0.0, %v2328
      %v2330 = vpop.f32.mrf.mxu0
      %2331 = vmatprep.mubr.f32.mxu0 0.0
      %2332 = vmatmul.mubr.f32.gmra.mxu0 %v2178
      %v2333 = vpop.f32.mrf.mxu0
      %v2334 = vadd.f32 0.0, %v2333
      %v2335 = vpop.f32.mrf.mxu0
      %2336 = vmatprep.mubr.f32.mxu0 0.0
      %2337 = vmatmul.mubr.f32.gmra.mxu0 %v2181
      %v2338 = vpop.f32.mrf.mxu0
      %v2339 = vadd.f32 0.0, %v2338
      %v2340 = vpop.f32.mrf.mxu0
      %2341 = vmatprep.mubr.f32.mxu0 0.0
      %2342 = vmatmul.mubr.f32.gmra.mxu0 %v2184
      %v2343 = vpop.f32.mrf.mxu0
      %v2344 = vadd.f32 0.0, %v2343
      %v2345 = vpop.f32.mrf.mxu0
      %2346 = vmatprep.mubr.f32.mxu0 0.0
      %2347 = vmatmul.mubr.f32.gmra.mxu0 %v2187
      %v2348 = vpop.f32.mrf.mxu0
      %v2349 = vadd.f32 0.0, %v2348
      %v2350 = vpop.f32.mrf.mxu0
      %2351 = vmatprep.mubr.f32.mxu0 0.0
      %2352 = vmatmul.mubr.f32.gmra.mxu0 %v2190
      %v2353 = vpop.f32.mrf.mxu0
      %v2354 = vadd.f32 0.0, %v2353
      %v2355 = vpop.f32.mrf.mxu0
      %2356 = vmatprep.mubr.f32.mxu0 0.0
      %2357 = vmatmul.mubr.f32.gmra.mxu0 %v2193
      %v2358 = vpop.f32.mrf.mxu0
      %v2359 = vadd.f32 0.0, %v2358
      %v2360 = vpop.f32.mrf.mxu0
      %2361 = vmatprep.mubr.f32.mxu0 0.0
      %2362 = vmatmul.mubr.f32.gmra.mxu0 %v2196
      %v2363 = vpop.f32.mrf.mxu0
      %v2364 = vadd.f32 0.0, %v2363
      %v2365 = vpop.f32.mrf.mxu0
      %2366 = vmatprep.mubr.f32.mxu0 0.0
      %2367 = vmatmul.mubr.f32.gmra.mxu0 %v2199
      %v2368 = vpop.f32.mrf.mxu0
      %v2369 = vadd.f32 0.0, %v2368
      %v2370 = vpop.f32.mrf.mxu0
      %2371 = vmatprep.mubr.f32.mxu0 0.0
      %2372 = vmatmul.mubr.f32.gmra.mxu0 %v2202
      %v2373 = vpop.f32.mrf.mxu0
      %v2374 = vadd.f32 0.0, %v2373
      %v2375 = vpop.f32.mrf.mxu0
      %2376 = vmatprep.mubr.f32.mxu0 0.0
      %2377 = vmatmul.mubr.f32.gmra.mxu0 %v2205
      %v2378 = vpop.f32.mrf.mxu0
      %v2379 = vadd.f32 0.0, %v2378
      %v2380 = vpop.f32.mrf.mxu0
      %2381 = vmatprep.mubr.f32.mxu0 0.0
      %2382 = vmatmul.mubr.f32.gmra.mxu0 %v2208
      %v2383 = vpop.f32.mrf.mxu0
      %v2384 = vadd.f32 0.0, %v2383
      %v2385 = vpop.f32.mrf.mxu0
      %2386 = vmatprep.mubr.f32.mxu0 0.0
      %2387 = vmatmul.mubr.f32.gmra.mxu0 %v2211
      %v2388 = vpop.f32.mrf.mxu0
      %v2389 = vadd.f32 0.0, %v2388
      %v2390 = vpop.f32.mrf.mxu0
      %2391 = vmatprep.mubr.f32.mxu0 0.0
      %2392 = vmatmul.mubr.f32.gmra.mxu0 %v2214
      %v2393 = vpop.f32.mrf.mxu0
      %v2394 = vadd.f32 0.0, %v2393
      %v2395 = vpop.f32.mrf.mxu0
      %2396 = vmatprep.mubr.f32.mxu0 0.0
      %2397 = vmatmul.mubr.f32.gmra.mxu0 %v2217
      %v2398 = vpop.f32.mrf.mxu0
      %v2399 = vadd.f32 0.0, %v2398
      %v2400 = vpop.f32.mrf.mxu0
      %2401 = vmatprep.mubr.f32.mxu0 0.0
      %2402 = vmatmul.mubr.f32.gmra.mxu0 %v2220
      %v2403 = vpop.f32.mrf.mxu0
      %v2404 = vadd.f32 0.0, %v2403
      %v2405 = vpop.f32.mrf.mxu0
      %2406 = vdwg.mxu0
      %v2407 = vadd.f32 %v2124, %v2289
      %v2408 = vadd.f32 %v2125, %v2294
      %v2409 = vadd.f32 %v2126, %v2299
      %v2410 = vadd.f32 %v2127, %v2304
      %v2411 = vadd.f32 %v2128, %v2309
      %v2412 = vadd.f32 %v2129, %v2314
      %v2413 = vadd.f32 %v2130, %v2319
      %v2414 = vadd.f32 %v2131, %v2324
      %v2415 = vadd.f32 %v2132, %v2329
      %v2416 = vadd.f32 %v2133, %v2334
      %v2417 = vadd.f32 %v2134, %v2339
      %v2418 = vadd.f32 %v2135, %v2344
      %v2419 = vadd.f32 %v2136, %v2349
      %v2420 = vadd.f32 %v2137, %v2354
      %v2421 = vadd.f32 %v2138, %v2359
      %v2422 = vadd.f32 %v2139, %v2364
      %v2423 = vadd.f32 %v2140, %v2369
      %v2424 = vadd.f32 %v2141, %v2374
      %v2425 = vadd.f32 %v2142, %v2379
      %v2426 = vadd.f32 %v2143, %v2384
      %v2427 = vadd.f32 %v2144, %v2389
      %v2428 = vadd.f32 %v2145, %v2394
      %v2429 = vadd.f32 %v2146, %v2399
      %v2430 = vadd.f32 %v2147, %v2404
      %2431 = vst.msk [vmem:[#allocation4] sm:$0xff] %vm1010, %v2407
      %2432 = vst.msk [vmem:[#allocation4 + $0x8] sm:$0xff] %vm1010, %v2408
      %2433 = vst.msk [vmem:[#allocation4 + $0x10] sm:$0xff] %vm1010, %v2409
      %2434 = vst.msk [vmem:[#allocation4 + $0x18] sm:$0xff] %vm1010, %v2410
      %2435 = vst.msk [vmem:[#allocation4 + $0x20] sm:$0xff] %vm1010, %v2411
      %2436 = vst.msk [vmem:[#allocation4 + $0x28] sm:$0xff] %vm1010, %v2412
      %2437 = vst.msk [vmem:[#allocation4 + $0x30] sm:$0xff] %vm1010, %v2413
      %2438 = vst.msk [vmem:[#allocation4 + $0x38] sm:$0xff] %vm1010, %v2414
      %2439 = vst.msk [vmem:[#allocation4 + $0x40] sm:$0xff] %vm1010, %v2415
      %2440 = vst.msk [vmem:[#allocation4 + $0x48] sm:$0xff] %vm1010, %v2416
      %2441 = vst.msk [vmem:[#allocation4 + $0x50] sm:$0xff] %vm1010, %v2417
      %2442 = vst.msk [vmem:[#allocation4 + $0x58] sm:$0xff] %vm1010, %v2418
      %2443 = vst.msk [vmem:[#allocation4 + $0x60] sm:$0xff] %vm1010, %v2419
      %2444 = vst.msk [vmem:[#allocation4 + $0x68] sm:$0xff] %vm1010, %v2420
      %2445 = vst.msk [vmem:[#allocation4 + $0x70] sm:$0xff] %vm1010, %v2421
      %2446 = vst.msk [vmem:[#allocation4 + $0x78] sm:$0xff] %vm1010, %v2422
      %2447 = vst.msk [vmem:[#allocation4 + $0x80] sm:$0xff] %vm1010, %v2423
      %2448 = vst.msk [vmem:[#allocation4 + $0x88] sm:$0xff] %vm1010, %v2424
      %2449 = vst.msk [vmem:[#allocation4 + $0x90] sm:$0xff] %vm1010, %v2425
      %2450 = vst.msk [vmem:[#allocation4 + $0x98] sm:$0xff] %vm1010, %v2426
      %2451 = vst.msk [vmem:[#allocation4 + $0xa0] sm:$0xff] %vm1010, %v2427
      %2452 = vst.msk [vmem:[#allocation4 + $0xa8] sm:$0xff] %vm1010, %v2428
      %2453 = vst.msk [vmem:[#allocation4 + $0xb0] sm:$0xff] %vm1010, %v2429
      %2454 = vst.msk [vmem:[#allocation4 + $0xb8] sm:$0xff] %vm1010, %v2430
      %v2455 = vld [vmem:[%s2099 + $0x1] sm:$0xff]
      %v2456 = vld [vmem:[%s2099 + $0x9] sm:$0xff]
      %v2457 = vld [vmem:[%s2099 + $0x19] sm:$0xff]
      %v2458 = vld [vmem:[%s2099 + $0x21] sm:$0xff]
      %v2459 = vld [vmem:[%s2099 + $0x31] sm:$0xff]
      %v2460 = vld [vmem:[%s2099 + $0x39] sm:$0xff]
      %v2461 = vld [vmem:[%s2099 + $0x49] sm:$0xff]
      %v2462 = vld [vmem:[%s2099 + $0x51] sm:$0xff]
      %v2463 = vld [vmem:[%s2099 + $0x61] sm:$0xff]
      %v2464 = vld [vmem:[%s2099 + $0x69] sm:$0xff]
      %v2465 = vld [vmem:[%s2099 + $0x79] sm:$0xff]
      %v2466 = vld [vmem:[%s2099 + $0x81] sm:$0xff]
      %v2467 = vld [vmem:[%s2099 + $0x91] sm:$0xff]
      %v2468 = vld [vmem:[%s2099 + $0x99] sm:$0xff]
      %v2469 = vld [vmem:[%s2099 + $0xa9] sm:$0xff]
      %v2470 = vld [vmem:[%s2099 + $0xb1] sm:$0xff]
      %v2471 = vld [vmem:[%s2099 + $0xc1] sm:$0xff]
      %v2472 = vld [vmem:[%s2099 + $0xc9] sm:$0xff]
      %v2473 = vld [vmem:[%s2099 + $0xd9] sm:$0xff]
      %v2474 = vld [vmem:[%s2099 + $0xe1] sm:$0xff]
      %v2475 = vld [vmem:[%s2099 + $0xf1] sm:$0xff]
      %v2476 = vld [vmem:[%s2099 + $0xf9] sm:$0xff]
      %v2477 = vld [vmem:[%s2099 + $0x109] sm:$0xff]
      %v2478 = vld [vmem:[%s2099 + $0x111] sm:$0xff]
      %v2479 = vld [vmem:[#allocation4] sm:$0xff]
      %v2480 = vld [vmem:[#allocation4 + $0x8] sm:$0xff]
      %v2481 = vld [vmem:[#allocation4 + $0x10] sm:$0xff]
      %v2482 = vld [vmem:[#allocation4 + $0x18] sm:$0xff]
      %v2483 = vld [vmem:[#allocation4 + $0x20] sm:$0xff]
      %v2484 = vld [vmem:[#allocation4 + $0x28] sm:$0xff]
      %v2485 = vld [vmem:[#allocation4 + $0x30] sm:$0xff]
      %v2486 = vld [vmem:[#allocation4 + $0x38] sm:$0xff]
      %v2487 = vld [vmem:[#allocation4 + $0x40] sm:$0xff]
      %v2488 = vld [vmem:[#allocation4 + $0x48] sm:$0xff]
      %v2489 = vld [vmem:[#allocation4 + $0x50] sm:$0xff]
      %v2490 = vld [vmem:[#allocation4 + $0x58] sm:$0xff]
      %v2491 = vld [vmem:[#allocation4 + $0x60] sm:$0xff]
      %v2492 = vld [vmem:[#allocation4 + $0x68] sm:$0xff]
      %v2493 = vld [vmem:[#allocation4 + $0x70] sm:$0xff]
      %v2494 = vld [vmem:[#allocation4 + $0x78] sm:$0xff]
      %v2495 = vld [vmem:[#allocation4 + $0x80] sm:$0xff]
      %v2496 = vld [vmem:[#allocation4 + $0x88] sm:$0xff]
      %v2497 = vld [vmem:[#allocation4 + $0x90] sm:$0xff]
      %v2498 = vld [vmem:[#allocation4 + $0x98] sm:$0xff]
      %v2499 = vld [vmem:[#allocation4 + $0xa0] sm:$0xff]
      %v2500 = vld [vmem:[#allocation4 + $0xa8] sm:$0xff]
      %v2501 = vld [vmem:[#allocation4 + $0xb0] sm:$0xff]
      %v2502 = vld [vmem:[#allocation4 + $0xb8] sm:$0xff]
      %s2503 = scalar_lea.vmem %s7, 32
      %v2504 = vld [vmem:[%s2503] sm:$0xff]
      %v2506 = vsel %vm928, %v2455, 0
      %v2509 = vsel %vm928, %v2456, 0
      %v2512 = vsel %vm928, %v2457, 0
      %v2515 = vsel %vm928, %v2458, 0
      %v2518 = vsel %vm928, %v2459, 0
      %v2521 = vsel %vm928, %v2460, 0
      %v2524 = vsel %vm928, %v2461, 0
      %v2527 = vsel %vm928, %v2462, 0
      %v2530 = vsel %vm928, %v2463, 0
      %v2533 = vsel %vm928, %v2464, 0
      %v2536 = vsel %vm928, %v2465, 0
      %v2539 = vsel %vm928, %v2466, 0
      %v2542 = vsel %vm928, %v2467, 0
      %v2545 = vsel %vm928, %v2468, 0
      %v2548 = vsel %vm928, %v2469, 0
      %v2551 = vsel %vm928, %v2470, 0
      %v2554 = vsel %vm928, %v2471, 0
      %v2557 = vsel %vm928, %v2472, 0
      %v2560 = vsel %vm928, %v2473, 0
      %v2563 = vsel %vm928, %v2474, 0
      %v2566 = vsel %vm928, %v2475, 0
      %v2569 = vsel %vm928, %v2476, 0
      %v2572 = vsel %vm928, %v2477, 0
      %v2575 = vsel %vm928, %v2478, 0
      %2577 = vmatprep.subr.mxu0 0.0
      %2578 = vmatpush1.msra.mxu0 0.0
      %2579 = vmatprep.subr.mxu0 0.0
      %2580 = vmatpush1.msra.mxu0 0.0
      %2581 = vmatprep.subr.mxu0 0.0
      %2582 = vmatpush1.msra.mxu0 0.0
      %2583 = vmatprep.subr.mxu0 0.0
      %2584 = vmatpush1.msra.mxu0 0.0
      %2585 = vmatprep.subr.mxu0 0.0
      %2586 = vmatpush1.msra.mxu0 0.0
      %2587 = vmatprep.subr.mxu0 0.0
      %2588 = vmatpush1.msra.mxu0 0.0
      %2589 = vmatprep.subr.mxu0 0.0
      %2590 = vmatpush1.msra.mxu0 0.0
      %2591 = vmatprep.subr.mxu0 0.0
      %2592 = vmatpush1.msra.mxu0 0.0
      %2593 = vmatprep.subr.mxu0 0.0
      %2594 = vmatpush1.msra.mxu0 0.0
      %2595 = vmatprep.subr.mxu0 0.0
      %2596 = vmatpush1.msra.mxu0 0.0
      %2597 = vmatprep.subr.mxu0 0.0
      %2598 = vmatpush1.msra.mxu0 0.0
      %2599 = vmatprep.subr.mxu0 0.0
      %2600 = vmatpush1.msra.mxu0 0.0
      %2601 = vmatprep.subr.mxu0 0.0
      %2602 = vmatpush1.msra.mxu0 0.0
      %2603 = vmatprep.subr.mxu0 0.0
      %2604 = vmatpush1.msra.mxu0 0.0
      %2605 = vmatprep.subr.mxu0 0.0
      %2606 = vmatpush1.msra.mxu0 0.0
      %2607 = vmatprep.subr.mxu0 0.0
      %2608 = vmatpush1.msra.mxu0 %v2504
      %2609 = vmatprep.subr.mxu0 0.0
      %2610 = vmatpush2.msra.mxu0 0.0
      %2611 = vmatprep.subr.mxu0 0.0
      %2612 = vmatpush2.msra.mxu0 0.0
      %2613 = vmatprep.subr.mxu0 0.0
      %2614 = vmatpush2.msra.mxu0 0.0
      %2615 = vmatprep.subr.mxu0 0.0
      %2616 = vmatpush2.msra.mxu0 0.0
      %2617 = vmatprep.subr.mxu0 0.0
      %2618 = vmatpush2.msra.mxu0 0.0
      %2619 = vmatprep.subr.mxu0 0.0
      %2620 = vmatpush2.msra.mxu0 0.0
      %2621 = vmatprep.subr.mxu0 0.0
      %2622 = vmatpush2.msra.mxu0 0.0
      %2623 = vmatprep.subr.mxu0 0.0
      %2624 = vmatpush2.msra.mxu0 0.0
      %2625 = vmatprep.subr.mxu0 0.0
      %2626 = vmatpush2.msra.mxu0 0.0
      %2627 = vmatprep.subr.mxu0 0.0
      %2628 = vmatpush2.msra.mxu0 0.0
      %2629 = vmatprep.subr.mxu0 0.0
      %2630 = vmatpush2.msra.mxu0 0.0
      %2631 = vmatprep.subr.mxu0 0.0
      %2632 = vmatpush2.msra.mxu0 0.0
      %2633 = vmatprep.subr.mxu0 0.0
      %2634 = vmatpush2.msra.mxu0 0.0
      %2635 = vmatprep.subr.mxu0 0.0
      %2636 = vmatpush2.msra.mxu0 0.0
      %2637 = vmatprep.subr.mxu0 0.0
      %2638 = vmatpush2.msra.mxu0 0.0
      %2639 = vmatprep.subr.mxu0 0.0
      %2640 = vmatpush2.msra.mxu0 0.0
      %2641 = vmatprep.mubr.f32.mxu0 0.0
      %2642 = vmatmul.mubr.f32.gmra.mxu0 %v2506
      %v2643 = vpop.f32.mrf.mxu0
      %v2644 = vadd.f32 0.0, %v2643
      %v2645 = vpop.f32.mrf.mxu0
      %2646 = vmatprep.mubr.f32.mxu0 0.0
      %2647 = vmatmul.mubr.f32.gmra.mxu0 %v2509
      %v2648 = vpop.f32.mrf.mxu0
      %v2649 = vadd.f32 0.0, %v2648
      %v2650 = vpop.f32.mrf.mxu0
      %2651 = vmatprep.mubr.f32.mxu0 0.0
      %2652 = vmatmul.mubr.f32.gmra.mxu0 %v2512
      %v2653 = vpop.f32.mrf.mxu0
      %v2654 = vadd.f32 0.0, %v2653
      %v2655 = vpop.f32.mrf.mxu0
      %2656 = vmatprep.mubr.f32.mxu0 0.0
      %2657 = vmatmul.mubr.f32.gmra.mxu0 %v2515
      %v2658 = vpop.f32.mrf.mxu0
      %v2659 = vadd.f32 0.0, %v2658
      %v2660 = vpop.f32.mrf.mxu0
      %2661 = vmatprep.mubr.f32.mxu0 0.0
      %2662 = vmatmul.mubr.f32.gmra.mxu0 %v2518
      %v2663 = vpop.f32.mrf.mxu0
      %v2664 = vadd.f32 0.0, %v2663
      %v2665 = vpop.f32.mrf.mxu0
      %2666 = vmatprep.mubr.f32.mxu0 0.0
      %2667 = vmatmul.mubr.f32.gmra.mxu0 %v2521
      %v2668 = vpop.f32.mrf.mxu0
      %v2669 = vadd.f32 0.0, %v2668
      %v2670 = vpop.f32.mrf.mxu0
      %2671 = vmatprep.mubr.f32.mxu0 0.0
      %2672 = vmatmul.mubr.f32.gmra.mxu0 %v2524
      %v2673 = vpop.f32.mrf.mxu0
      %v2674 = vadd.f32 0.0, %v2673
      %v2675 = vpop.f32.mrf.mxu0
      %2676 = vmatprep.mubr.f32.mxu0 0.0
      %2677 = vmatmul.mubr.f32.gmra.mxu0 %v2527
      %v2678 = vpop.f32.mrf.mxu0
      %v2679 = vadd.f32 0.0, %v2678
      %v2680 = vpop.f32.mrf.mxu0
      %2681 = vmatprep.mubr.f32.mxu0 0.0
      %2682 = vmatmul.mubr.f32.gmra.mxu0 %v2530
      %v2683 = vpop.f32.mrf.mxu0
      %v2684 = vadd.f32 0.0, %v2683
      %v2685 = vpop.f32.mrf.mxu0
      %2686 = vmatprep.mubr.f32.mxu0 0.0
      %2687 = vmatmul.mubr.f32.gmra.mxu0 %v2533
      %v2688 = vpop.f32.mrf.mxu0
      %v2689 = vadd.f32 0.0, %v2688
      %v2690 = vpop.f32.mrf.mxu0
      %2691 = vmatprep.mubr.f32.mxu0 0.0
      %2692 = vmatmul.mubr.f32.gmra.mxu0 %v2536
      %v2693 = vpop.f32.mrf.mxu0
      %v2694 = vadd.f32 0.0, %v2693
      %v2695 = vpop.f32.mrf.mxu0
      %2696 = vmatprep.mubr.f32.mxu0 0.0
      %2697 = vmatmul.mubr.f32.gmra.mxu0 %v2539
      %v2698 = vpop.f32.mrf.mxu0
      %v2699 = vadd.f32 0.0, %v2698
      %v2700 = vpop.f32.mrf.mxu0
      %2701 = vmatprep.mubr.f32.mxu0 0.0
      %2702 = vmatmul.mubr.f32.gmra.mxu0 %v2542
      %v2703 = vpop.f32.mrf.mxu0
      %v2704 = vadd.f32 0.0, %v2703
      %v2705 = vpop.f32.mrf.mxu0
      %2706 = vmatprep.mubr.f32.mxu0 0.0
      %2707 = vmatmul.mubr.f32.gmra.mxu0 %v2545
      %v2708 = vpop.f32.mrf.mxu0
      %v2709 = vadd.f32 0.0, %v2708
      %v2710 = vpop.f32.mrf.mxu0
      %2711 = vmatprep.mubr.f32.mxu0 0.0
      %2712 = vmatmul.mubr.f32.gmra.mxu0 %v2548
      %v2713 = vpop.f32.mrf.mxu0
      %v2714 = vadd.f32 0.0, %v2713
      %v2715 = vpop.f32.mrf.mxu0
      %2716 = vmatprep.mubr.f32.mxu0 0.0
      %2717 = vmatmul.mubr.f32.gmra.mxu0 %v2551
      %v2718 = vpop.f32.mrf.mxu0
      %v2719 = vadd.f32 0.0, %v2718
      %v2720 = vpop.f32.mrf.mxu0
      %2721 = vmatprep.mubr.f32.mxu0 0.0
      %2722 = vmatmul.mubr.f32.gmra.mxu0 %v2554
      %v2723 = vpop.f32.mrf.mxu0
      %v2724 = vadd.f32 0.0, %v2723
      %v2725 = vpop.f32.mrf.mxu0
      %2726 = vmatprep.mubr.f32.mxu0 0.0
      %2727 = vmatmul.mubr.f32.gmra.mxu0 %v2557
      %v2728 = vpop.f32.mrf.mxu0
      %v2729 = vadd.f32 0.0, %v2728
      %v2730 = vpop.f32.mrf.mxu0
      %2731 = vmatprep.mubr.f32.mxu0 0.0
      %2732 = vmatmul.mubr.f32.gmra.mxu0 %v2560
      %v2733 = vpop.f32.mrf.mxu0
      %v2734 = vadd.f32 0.0, %v2733
      %v2735 = vpop.f32.mrf.mxu0
      %2736 = vmatprep.mubr.f32.mxu0 0.0
      %2737 = vmatmul.mubr.f32.gmra.mxu0 %v2563
      %v2738 = vpop.f32.mrf.mxu0
      %v2739 = vadd.f32 0.0, %v2738
      %v2740 = vpop.f32.mrf.mxu0
      %2741 = vmatprep.mubr.f32.mxu0 0.0
      %2742 = vmatmul.mubr.f32.gmra.mxu0 %v2566
      %v2743 = vpop.f32.mrf.mxu0
      %v2744 = vadd.f32 0.0, %v2743
      %v2745 = vpop.f32.mrf.mxu0
      %2746 = vmatprep.mubr.f32.mxu0 0.0
      %2747 = vmatmul.mubr.f32.gmra.mxu0 %v2569
      %v2748 = vpop.f32.mrf.mxu0
      %v2749 = vadd.f32 0.0, %v2748
      %v2750 = vpop.f32.mrf.mxu0
      %2751 = vmatprep.mubr.f32.mxu0 0.0
      %2752 = vmatmul.mubr.f32.gmra.mxu0 %v2572
      %v2753 = vpop.f32.mrf.mxu0
      %v2754 = vadd.f32 0.0, %v2753
      %v2755 = vpop.f32.mrf.mxu0
      %2756 = vmatprep.mubr.f32.mxu0 0.0
      %2757 = vmatmul.mubr.f32.gmra.mxu0 %v2575
      %v2758 = vpop.f32.mrf.mxu0
      %v2759 = vadd.f32 0.0, %v2758
      %v2760 = vpop.f32.mrf.mxu0
      %2761 = vdwg.mxu0
      %v2762 = vadd.f32 %v2479, %v2644
      %v2763 = vadd.f32 %v2480, %v2649
      %v2764 = vadd.f32 %v2481, %v2654
      %v2765 = vadd.f32 %v2482, %v2659
      %v2766 = vadd.f32 %v2483, %v2664
      %v2767 = vadd.f32 %v2484, %v2669
      %v2768 = vadd.f32 %v2485, %v2674
      %v2769 = vadd.f32 %v2486, %v2679
      %v2770 = vadd.f32 %v2487, %v2684
      %v2771 = vadd.f32 %v2488, %v2689
      %v2772 = vadd.f32 %v2489, %v2694
      %v2773 = vadd.f32 %v2490, %v2699
      %v2774 = vadd.f32 %v2491, %v2704
      %v2775 = vadd.f32 %v2492, %v2709
      %v2776 = vadd.f32 %v2493, %v2714
      %v2777 = vadd.f32 %v2494, %v2719
      %v2778 = vadd.f32 %v2495, %v2724
      %v2779 = vadd.f32 %v2496, %v2729
      %v2780 = vadd.f32 %v2497, %v2734
      %v2781 = vadd.f32 %v2498, %v2739
      %v2782 = vadd.f32 %v2499, %v2744
      %v2783 = vadd.f32 %v2500, %v2749
      %v2784 = vadd.f32 %v2501, %v2754
      %v2785 = vadd.f32 %v2502, %v2759
      %2786 = vst.msk [vmem:[#allocation4] sm:$0xff] %vm1010, %v2762
      %2787 = vst.msk [vmem:[#allocation4 + $0x8] sm:$0xff] %vm1010, %v2763
      %2788 = vst.msk [vmem:[#allocation4 + $0x10] sm:$0xff] %vm1010, %v2764
      %2789 = vst.msk [vmem:[#allocation4 + $0x18] sm:$0xff] %vm1010, %v2765
      %2790 = vst.msk [vmem:[#allocation4 + $0x20] sm:$0xff] %vm1010, %v2766
      %2791 = vst.msk [vmem:[#allocation4 + $0x28] sm:$0xff] %vm1010, %v2767
      %2792 = vst.msk [vmem:[#allocation4 + $0x30] sm:$0xff] %vm1010, %v2768
      %2793 = vst.msk [vmem:[#allocation4 + $0x38] sm:$0xff] %vm1010, %v2769
      %2794 = vst.msk [vmem:[#allocation4 + $0x40] sm:$0xff] %vm1010, %v2770
      %2795 = vst.msk [vmem:[#allocation4 + $0x48] sm:$0xff] %vm1010, %v2771
      %2796 = vst.msk [vmem:[#allocation4 + $0x50] sm:$0xff] %vm1010, %v2772
      %2797 = vst.msk [vmem:[#allocation4 + $0x58] sm:$0xff] %vm1010, %v2773
      %2798 = vst.msk [vmem:[#allocation4 + $0x60] sm:$0xff] %vm1010, %v2774
      %2799 = vst.msk [vmem:[#allocation4 + $0x68] sm:$0xff] %vm1010, %v2775
      %2800 = vst.msk [vmem:[#allocation4 + $0x70] sm:$0xff] %vm1010, %v2776
      %2801 = vst.msk [vmem:[#allocation4 + $0x78] sm:$0xff] %vm1010, %v2777
      %2802 = vst.msk [vmem:[#allocation4 + $0x80] sm:$0xff] %vm1010, %v2778
      %2803 = vst.msk [vmem:[#allocation4 + $0x88] sm:$0xff] %vm1010, %v2779
      %2804 = vst.msk [vmem:[#allocation4 + $0x90] sm:$0xff] %vm1010, %v2780
      %2805 = vst.msk [vmem:[#allocation4 + $0x98] sm:$0xff] %vm1010, %v2781
      %2806 = vst.msk [vmem:[#allocation4 + $0xa0] sm:$0xff] %vm1010, %v2782
      %2807 = vst.msk [vmem:[#allocation4 + $0xa8] sm:$0xff] %vm1010, %v2783
      %2808 = vst.msk [vmem:[#allocation4 + $0xb0] sm:$0xff] %vm1010, %v2784
      %2809 = vst.msk [vmem:[#allocation4 + $0xb8] sm:$0xff] %vm1010, %v2785
      %v2810 = vld [vmem:[%s2099 + $0x2] sm:$0xff]
      %v2811 = vld [vmem:[%s2099 + $0xa] sm:$0xff]
      %v2812 = vld [vmem:[%s2099 + $0x1a] sm:$0xff]
      %v2813 = vld [vmem:[%s2099 + $0x22] sm:$0xff]
      %v2814 = vld [vmem:[%s2099 + $0x32] sm:$0xff]
      %v2815 = vld [vmem:[%s2099 + $0x3a] sm:$0xff]
      %v2816 = vld [vmem:[%s2099 + $0x4a] sm:$0xff]
      %v2817 = vld [vmem:[%s2099 + $0x52] sm:$0xff]
      %v2818 = vld [vmem:[%s2099 + $0x62] sm:$0xff]
      %v2819 = vld [vmem:[%s2099 + $0x6a] sm:$0xff]
      %v2820 = vld [vmem:[%s2099 + $0x7a] sm:$0xff]
      %v2821 = vld [vmem:[%s2099 + $0x82] sm:$0xff]
      %v2822 = vld [vmem:[%s2099 + $0x92] sm:$0xff]
      %v2823 = vld [vmem:[%s2099 + $0x9a] sm:$0xff]
      %v2824 = vld [vmem:[%s2099 + $0xaa] sm:$0xff]
      %v2825 = vld [vmem:[%s2099 + $0xb2] sm:$0xff]
      %v2826 = vld [vmem:[%s2099 + $0xc2] sm:$0xff]
      %v2827 = vld [vmem:[%s2099 + $0xca] sm:$0xff]
      %v2828 = vld [vmem:[%s2099 + $0xda] sm:$0xff]
      %v2829 = vld [vmem:[%s2099 + $0xe2] sm:$0xff]
      %v2830 = vld [vmem:[%s2099 + $0xf2] sm:$0xff]
      %v2831 = vld [vmem:[%s2099 + $0xfa] sm:$0xff]
      %v2832 = vld [vmem:[%s2099 + $0x10a] sm:$0xff]
      %v2833 = vld [vmem:[%s2099 + $0x112] sm:$0xff]
      %v2834 = vld [vmem:[#allocation4] sm:$0xff]
      %v2835 = vld [vmem:[#allocation4 + $0x8] sm:$0xff]
      %v2836 = vld [vmem:[#allocation4 + $0x10] sm:$0xff]
      %v2837 = vld [vmem:[#allocation4 + $0x18] sm:$0xff]
      %v2838 = vld [vmem:[#allocation4 + $0x20] sm:$0xff]
      %v2839 = vld [vmem:[#allocation4 + $0x28] sm:$0xff]
      %v2840 = vld [vmem:[#allocation4 + $0x30] sm:$0xff]
      %v2841 = vld [vmem:[#allocation4 + $0x38] sm:$0xff]
      %v2842 = vld [vmem:[#allocation4 + $0x40] sm:$0xff]
      %v2843 = vld [vmem:[#allocation4 + $0x48] sm:$0xff]
      %v2844 = vld [vmem:[#allocation4 + $0x50] sm:$0xff]
      %v2845 = vld [vmem:[#allocation4 + $0x58] sm:$0xff]
      %v2846 = vld [vmem:[#allocation4 + $0x60] sm:$0xff]
      %v2847 = vld [vmem:[#allocation4 + $0x68] sm:$0xff]
      %v2848 = vld [vmem:[#allocation4 + $0x70] sm:$0xff]
      %v2849 = vld [vmem:[#allocation4 + $0x78] sm:$0xff]
      %v2850 = vld [vmem:[#allocation4 + $0x80] sm:$0xff]
      %v2851 = vld [vmem:[#allocation4 + $0x88] sm:$0xff]
      %v2852 = vld [vmem:[#allocation4 + $0x90] sm:$0xff]
      %v2853 = vld [vmem:[#allocation4 + $0x98] sm:$0xff]
      %v2854 = vld [vmem:[#allocation4 + $0xa0] sm:$0xff]
      %v2855 = vld [vmem:[#allocation4 + $0xa8] sm:$0xff]
      %v2856 = vld [vmem:[#allocation4 + $0xb0] sm:$0xff]
      %v2857 = vld [vmem:[#allocation4 + $0xb8] sm:$0xff]
      %s2858 = scalar_lea.vmem %s7, 40
      %v2859 = vld [vmem:[%s2858] sm:$0xff]
      %v2861 = vsel %vm928, %v2810, 0
      %v2864 = vsel %vm928, %v2811, 0
      %v2867 = vsel %vm928, %v2812, 0
      %v2870 = vsel %vm928, %v2813, 0
      %v2873 = vsel %vm928, %v2814, 0
      %v2876 = vsel %vm928, %v2815, 0
      %v2879 = vsel %vm928, %v2816, 0
      %v2882 = vsel %vm928, %v2817, 0
      %v2885 = vsel %vm928, %v2818, 0
      %v2888 = vsel %vm928, %v2819, 0
      %v2891 = vsel %vm928, %v2820, 0
      %v2894 = vsel %vm928, %v2821, 0
      %v2897 = vsel %vm928, %v2822, 0
      %v2900 = vsel %vm928, %v2823, 0
      %v2903 = vsel %vm928, %v2824, 0
      %v2906 = vsel %vm928, %v2825, 0
      %v2909 = vsel %vm928, %v2826, 0
      %v2912 = vsel %vm928, %v2827, 0
      %v2915 = vsel %vm928, %v2828, 0
      %v2918 = vsel %vm928, %v2829, 0
      %v2921 = vsel %vm928, %v2830, 0
      %v2924 = vsel %vm928, %v2831, 0
      %v2927 = vsel %vm928, %v2832, 0
      %v2930 = vsel %vm928, %v2833, 0
      %2932 = vmatprep.subr.mxu0 0.0
      %2933 = vmatpush1.msra.mxu0 0.0
      %2934 = vmatprep.subr.mxu0 0.0
      %2935 = vmatpush1.msra.mxu0 0.0
      %2936 = vmatprep.subr.mxu0 0.0
      %2937 = vmatpush1.msra.mxu0 0.0
      %2938 = vmatprep.subr.mxu0 0.0
      %2939 = vmatpush1.msra.mxu0 0.0
      %2940 = vmatprep.subr.mxu0 0.0
      %2941 = vmatpush1.msra.mxu0 0.0
      %2942 = vmatprep.subr.mxu0 0.0
      %2943 = vmatpush1.msra.mxu0 0.0
      %2944 = vmatprep.subr.mxu0 0.0
      %2945 = vmatpush1.msra.mxu0 0.0
      %2946 = vmatprep.subr.mxu0 0.0
      %2947 = vmatpush1.msra.mxu0 0.0
      %2948 = vmatprep.subr.mxu0 0.0
      %2949 = vmatpush1.msra.mxu0 0.0
      %2950 = vmatprep.subr.mxu0 0.0
      %2951 = vmatpush1.msra.mxu0 0.0
      %2952 = vmatprep.subr.mxu0 0.0
      %2953 = vmatpush1.msra.mxu0 0.0
      %2954 = vmatprep.subr.mxu0 0.0
      %2955 = vmatpush1.msra.mxu0 0.0
      %2956 = vmatprep.subr.mxu0 0.0
      %2957 = vmatpush1.msra.mxu0 0.0
      %2958 = vmatprep.subr.mxu0 0.0
      %2959 = vmatpush1.msra.mxu0 0.0
      %2960 = vmatprep.subr.mxu0 0.0
      %2961 = vmatpush1.msra.mxu0 0.0
      %2962 = vmatprep.subr.mxu0 0.0
      %2963 = vmatpush1.msra.mxu0 %v2859
      %2964 = vmatprep.subr.mxu0 0.0
      %2965 = vmatpush2.msra.mxu0 0.0
      %2966 = vmatprep.subr.mxu0 0.0
      %2967 = vmatpush2.msra.mxu0 0.0
      %2968 = vmatprep.subr.mxu0 0.0
      %2969 = vmatpush2.msra.mxu0 0.0
      %2970 = vmatprep.subr.mxu0 0.0
      %2971 = vmatpush2.msra.mxu0 0.0
      %2972 = vmatprep.subr.mxu0 0.0
      %2973 = vmatpush2.msra.mxu0 0.0
      %2974 = vmatprep.subr.mxu0 0.0
      %2975 = vmatpush2.msra.mxu0 0.0
      %2976 = vmatprep.subr.mxu0 0.0
      %2977 = vmatpush2.msra.mxu0 0.0
      %2978 = vmatprep.subr.mxu0 0.0
      %2979 = vmatpush2.msra.mxu0 0.0
      %2980 = vmatprep.subr.mxu0 0.0
      %2981 = vmatpush2.msra.mxu0 0.0
      %2982 = vmatprep.subr.mxu0 0.0
      %2983 = vmatpush2.msra.mxu0 0.0
      %2984 = vmatprep.subr.mxu0 0.0
      %2985 = vmatpush2.msra.mxu0 0.0
      %2986 = vmatprep.subr.mxu0 0.0
      %2987 = vmatpush2.msra.mxu0 0.0
      %2988 = vmatprep.subr.mxu0 0.0
      %2989 = vmatpush2.msra.mxu0 0.0
      %2990 = vmatprep.subr.mxu0 0.0
      %2991 = vmatpush2.msra.mxu0 0.0
      %2992 = vmatprep.subr.mxu0 0.0
      %2993 = vmatpush2.msra.mxu0 0.0
      %2994 = vmatprep.subr.mxu0 0.0
      %2995 = vmatpush2.msra.mxu0 0.0
      %2996 = vmatprep.mubr.f32.mxu0 0.0
      %2997 = vmatmul.mubr.f32.gmra.mxu0 %v2861
      %v2998 = vpop.f32.mrf.mxu0
      %v2999 = vadd.f32 0.0, %v2998
      %v3000 = vpop.f32.mrf.mxu0
      %3001 = vmatprep.mubr.f32.mxu0 0.0
      %3002 = vmatmul.mubr.f32.gmra.mxu0 %v2864
      %v3003 = vpop.f32.mrf.mxu0
      %v3004 = vadd.f32 0.0, %v3003
      %v3005 = vpop.f32.mrf.mxu0
      %3006 = vmatprep.mubr.f32.mxu0 0.0
      %3007 = vmatmul.mubr.f32.gmra.mxu0 %v2867
      %v3008 = vpop.f32.mrf.mxu0
      %v3009 = vadd.f32 0.0, %v3008
      %v3010 = vpop.f32.mrf.mxu0
      %3011 = vmatprep.mubr.f32.mxu0 0.0
      %3012 = vmatmul.mubr.f32.gmra.mxu0 %v2870
      %v3013 = vpop.f32.mrf.mxu0
      %v3014 = vadd.f32 0.0, %v3013
      %v3015 = vpop.f32.mrf.mxu0
      %3016 = vmatprep.mubr.f32.mxu0 0.0
      %3017 = vmatmul.mubr.f32.gmra.mxu0 %v2873
      %v3018 = vpop.f32.mrf.mxu0
      %v3019 = vadd.f32 0.0, %v3018
      %v3020 = vpop.f32.mrf.mxu0
      %3021 = vmatprep.mubr.f32.mxu0 0.0
      %3022 = vmatmul.mubr.f32.gmra.mxu0 %v2876
      %v3023 = vpop.f32.mrf.mxu0
      %v3024 = vadd.f32 0.0, %v3023
      %v3025 = vpop.f32.mrf.mxu0
      %3026 = vmatprep.mubr.f32.mxu0 0.0
      %3027 = vmatmul.mubr.f32.gmra.mxu0 %v2879
      %v3028 = vpop.f32.mrf.mxu0
      %v3029 = vadd.f32 0.0, %v3028
      %v3030 = vpop.f32.mrf.mxu0
      %3031 = vmatprep.mubr.f32.mxu0 0.0
      %3032 = vmatmul.mubr.f32.gmra.mxu0 %v2882
      %v3033 = vpop.f32.mrf.mxu0
      %v3034 = vadd.f32 0.0, %v3033
      %v3035 = vpop.f32.mrf.mxu0
      %3036 = vmatprep.mubr.f32.mxu0 0.0
      %3037 = vmatmul.mubr.f32.gmra.mxu0 %v2885
      %v3038 = vpop.f32.mrf.mxu0
      %v3039 = vadd.f32 0.0, %v3038
      %v3040 = vpop.f32.mrf.mxu0
      %3041 = vmatprep.mubr.f32.mxu0 0.0
      %3042 = vmatmul.mubr.f32.gmra.mxu0 %v2888
      %v3043 = vpop.f32.mrf.mxu0
      %v3044 = vadd.f32 0.0, %v3043
      %v3045 = vpop.f32.mrf.mxu0
      %3046 = vmatprep.mubr.f32.mxu0 0.0
      %3047 = vmatmul.mubr.f32.gmra.mxu0 %v2891
      %v3048 = vpop.f32.mrf.mxu0
      %v3049 = vadd.f32 0.0, %v3048
      %v3050 = vpop.f32.mrf.mxu0
      %3051 = vmatprep.mubr.f32.mxu0 0.0
      %3052 = vmatmul.mubr.f32.gmra.mxu0 %v2894
      %v3053 = vpop.f32.mrf.mxu0
      %v3054 = vadd.f32 0.0, %v3053
      %v3055 = vpop.f32.mrf.mxu0
      %3056 = vmatprep.mubr.f32.mxu0 0.0
      %3057 = vmatmul.mubr.f32.gmra.mxu0 %v2897
      %v3058 = vpop.f32.mrf.mxu0
      %v3059 = vadd.f32 0.0, %v3058
      %v3060 = vpop.f32.mrf.mxu0
      %3061 = vmatprep.mubr.f32.mxu0 0.0
      %3062 = vmatmul.mubr.f32.gmra.mxu0 %v2900
      %v3063 = vpop.f32.mrf.mxu0
      %v3064 = vadd.f32 0.0, %v3063
      %v3065 = vpop.f32.mrf.mxu0
      %3066 = vmatprep.mubr.f32.mxu0 0.0
      %3067 = vmatmul.mubr.f32.gmra.mxu0 %v2903
      %v3068 = vpop.f32.mrf.mxu0
      %v3069 = vadd.f32 0.0, %v3068
      %v3070 = vpop.f32.mrf.mxu0
      %3071 = vmatprep.mubr.f32.mxu0 0.0
      %3072 = vmatmul.mubr.f32.gmra.mxu0 %v2906
      %v3073 = vpop.f32.mrf.mxu0
      %v3074 = vadd.f32 0.0, %v3073
      %v3075 = vpop.f32.mrf.mxu0
      %3076 = vmatprep.mubr.f32.mxu0 0.0
      %3077 = vmatmul.mubr.f32.gmra.mxu0 %v2909
      %v3078 = vpop.f32.mrf.mxu0
      %v3079 = vadd.f32 0.0, %v3078
      %v3080 = vpop.f32.mrf.mxu0
      %3081 = vmatprep.mubr.f32.mxu0 0.0
      %3082 = vmatmul.mubr.f32.gmra.mxu0 %v2912
      %v3083 = vpop.f32.mrf.mxu0
      %v3084 = vadd.f32 0.0, %v3083
      %v3085 = vpop.f32.mrf.mxu0
      %3086 = vmatprep.mubr.f32.mxu0 0.0
      %3087 = vmatmul.mubr.f32.gmra.mxu0 %v2915
      %v3088 = vpop.f32.mrf.mxu0
      %v3089 = vadd.f32 0.0, %v3088
      %v3090 = vpop.f32.mrf.mxu0
      %3091 = vmatprep.mubr.f32.mxu0 0.0
      %3092 = vmatmul.mubr.f32.gmra.mxu0 %v2918
      %v3093 = vpop.f32.mrf.mxu0
      %v3094 = vadd.f32 0.0, %v3093
      %v3095 = vpop.f32.mrf.mxu0
      %3096 = vmatprep.mubr.f32.mxu0 0.0
      %3097 = vmatmul.mubr.f32.gmra.mxu0 %v2921
      %v3098 = vpop.f32.mrf.mxu0
      %v3099 = vadd.f32 0.0, %v3098
      %v3100 = vpop.f32.mrf.mxu0
      %3101 = vmatprep.mubr.f32.mxu0 0.0
      %3102 = vmatmul.mubr.f32.gmra.mxu0 %v2924
      %v3103 = vpop.f32.mrf.mxu0
      %v3104 = vadd.f32 0.0, %v3103
      %v3105 = vpop.f32.mrf.mxu0
      %3106 = vmatprep.mubr.f32.mxu0 0.0
      %3107 = vmatmul.mubr.f32.gmra.mxu0 %v2927
      %v3108 = vpop.f32.mrf.mxu0
      %v3109 = vadd.f32 0.0, %v3108
      %v3110 = vpop.f32.mrf.mxu0
      %3111 = vmatprep.mubr.f32.mxu0 0.0
      %3112 = vmatmul.mubr.f32.gmra.mxu0 %v2930
      %v3113 = vpop.f32.mrf.mxu0
      %v3114 = vadd.f32 0.0, %v3113
      %v3115 = vpop.f32.mrf.mxu0
      %3116 = vdwg.mxu0
      %v3117 = vadd.f32 %v2834, %v2999
      %v3118 = vadd.f32 %v2835, %v3004
      %v3119 = vadd.f32 %v2836, %v3009
      %v3120 = vadd.f32 %v2837, %v3014
      %v3121 = vadd.f32 %v2838, %v3019
      %v3122 = vadd.f32 %v2839, %v3024
      %v3123 = vadd.f32 %v2840, %v3029
      %v3124 = vadd.f32 %v2841, %v3034
      %v3125 = vadd.f32 %v2842, %v3039
      %v3126 = vadd.f32 %v2843, %v3044
      %v3127 = vadd.f32 %v2844, %v3049
      %v3128 = vadd.f32 %v2845, %v3054
      %v3129 = vadd.f32 %v2846, %v3059
      %v3130 = vadd.f32 %v2847, %v3064
      %v3131 = vadd.f32 %v2848, %v3069
      %v3132 = vadd.f32 %v2849, %v3074
      %v3133 = vadd.f32 %v2850, %v3079
      %v3134 = vadd.f32 %v2851, %v3084
      %v3135 = vadd.f32 %v2852, %v3089
      %v3136 = vadd.f32 %v2853, %v3094
      %v3137 = vadd.f32 %v2854, %v3099
      %v3138 = vadd.f32 %v2855, %v3104
      %v3139 = vadd.f32 %v2856, %v3109
      %v3140 = vadd.f32 %v2857, %v3114
      %3141 = vst.msk [vmem:[#allocation4] sm:$0xff] %vm1010, %v3117
      %3142 = vst.msk [vmem:[#allocation4 + $0x8] sm:$0xff] %vm1010, %v3118
      %3143 = vst.msk [vmem:[#allocation4 + $0x10] sm:$0xff] %vm1010, %v3119
      %3144 = vst.msk [vmem:[#allocation4 + $0x18] sm:$0xff] %vm1010, %v3120
      %3145 = vst.msk [vmem:[#allocation4 + $0x20] sm:$0xff] %vm1010, %v3121
      %3146 = vst.msk [vmem:[#allocation4 + $0x28] sm:$0xff] %vm1010, %v3122
      %3147 = vst.msk [vmem:[#allocation4 + $0x30] sm:$0xff] %vm1010, %v3123
      %3148 = vst.msk [vmem:[#allocation4 + $0x38] sm:$0xff] %vm1010, %v3124
      %3149 = vst.msk [vmem:[#allocation4 + $0x40] sm:$0xff] %vm1010, %v3125
      %3150 = vst.msk [vmem:[#allocation4 + $0x48] sm:$0xff] %vm1010, %v3126
      %3151 = vst.msk [vmem:[#allocation4 + $0x50] sm:$0xff] %vm1010, %v3127
      %3152 = vst.msk [vmem:[#allocation4 + $0x58] sm:$0xff] %vm1010, %v3128
      %3153 = vst.msk [vmem:[#allocation4 + $0x60] sm:$0xff] %vm1010, %v3129
      %3154 = vst.msk [vmem:[#allocation4 + $0x68] sm:$0xff] %vm1010, %v3130
      %3155 = vst.msk [vmem:[#allocation4 + $0x70] sm:$0xff] %vm1010, %v3131
      %3156 = vst.msk [vmem:[#allocation4 + $0x78] sm:$0xff] %vm1010, %v3132
      %3157 = vst.msk [vmem:[#allocation4 + $0x80] sm:$0xff] %vm1010, %v3133
      %3158 = vst.msk [vmem:[#allocation4 + $0x88] sm:$0xff] %vm1010, %v3134
      %3159 = vst.msk [vmem:[#allocation4 + $0x90] sm:$0xff] %vm1010, %v3135
      %3160 = vst.msk [vmem:[#allocation4 + $0x98] sm:$0xff] %vm1010, %v3136
      %3161 = vst.msk [vmem:[#allocation4 + $0xa0] sm:$0xff] %vm1010, %v3137
      %3162 = vst.msk [vmem:[#allocation4 + $0xa8] sm:$0xff] %vm1010, %v3138
      %3163 = vst.msk [vmem:[#allocation4 + $0xb0] sm:$0xff] %vm1010, %v3139
      %3164 = vst.msk [vmem:[#allocation4 + $0xb8] sm:$0xff] %vm1010, %v3140
      %s3165 = scalar_lea.vmem [#allocation2], 48
      %v3166 = vld [vmem:[%s3165] sm:$0xff]
      %v3167 = vld [vmem:[%s3165 + $0x8] sm:$0xff]
      %v3168 = vld [vmem:[%s3165 + $0x18] sm:$0xff]
      %v3169 = vld [vmem:[%s3165 + $0x20] sm:$0xff]
      %v3170 = vld [vmem:[%s3165 + $0x30] sm:$0xff]
      %v3171 = vld [vmem:[%s3165 + $0x38] sm:$0xff]
      %v3172 = vld [vmem:[%s3165 + $0x48] sm:$0xff]
      %v3173 = vld [vmem:[%s3165 + $0x50] sm:$0xff]
      %v3174 = vld [vmem:[%s3165 + $0x60] sm:$0xff]
      %v3175 = vld [vmem:[%s3165 + $0x68] sm:$0xff]
      %v3176 = vld [vmem:[%s3165 + $0x78] sm:$0xff]
      %v3177 = vld [vmem:[%s3165 + $0x80] sm:$0xff]
      %v3178 = vld [vmem:[%s3165 + $0x90] sm:$0xff]
      %v3179 = vld [vmem:[%s3165 + $0x98] sm:$0xff]
      %v3180 = vld [vmem:[%s3165 + $0xa8] sm:$0xff]
      %v3181 = vld [vmem:[%s3165 + $0xb0] sm:$0xff]
      %v3182 = vld [vmem:[%s3165 + $0xc0] sm:$0xff]
      %v3183 = vld [vmem:[%s3165 + $0xc8] sm:$0xff]
      %v3184 = vld [vmem:[%s3165 + $0xd8] sm:$0xff]
      %v3185 = vld [vmem:[%s3165 + $0xe0] sm:$0xff]
      %v3186 = vld [vmem:[%s3165 + $0xf0] sm:$0xff]
      %v3187 = vld [vmem:[%s3165 + $0xf8] sm:$0xff]
      %v3188 = vld [vmem:[%s3165 + $0x108] sm:$0xff]
      %v3189 = vld [vmem:[%s3165 + $0x110] sm:$0xff]
      %v3190 = vld [vmem:[#allocation4] sm:$0xff]
      %v3191 = vld [vmem:[#allocation4 + $0x8] sm:$0xff]
      %v3192 = vld [vmem:[#allocation4 + $0x10] sm:$0xff]
      %v3193 = vld [vmem:[#allocation4 + $0x18] sm:$0xff]
      %v3194 = vld [vmem:[#allocation4 + $0x20] sm:$0xff]
      %v3195 = vld [vmem:[#allocation4 + $0x28] sm:$0xff]
      %v3196 = vld [vmem:[#allocation4 + $0x30] sm:$0xff]
      %v3197 = vld [vmem:[#allocation4 + $0x38] sm:$0xff]
      %v3198 = vld [vmem:[#allocation4 + $0x40] sm:$0xff]
      %v3199 = vld [vmem:[#allocation4 + $0x48] sm:$0xff]
      %v3200 = vld [vmem:[#allocation4 + $0x50] sm:$0xff]
      %v3201 = vld [vmem:[#allocation4 + $0x58] sm:$0xff]
      %v3202 = vld [vmem:[#allocation4 + $0x60] sm:$0xff]
      %v3203 = vld [vmem:[#allocation4 + $0x68] sm:$0xff]
      %v3204 = vld [vmem:[#allocation4 + $0x70] sm:$0xff]
      %v3205 = vld [vmem:[#allocation4 + $0x78] sm:$0xff]
      %v3206 = vld [vmem:[#allocation4 + $0x80] sm:$0xff]
      %v3207 = vld [vmem:[#allocation4 + $0x88] sm:$0xff]
      %v3208 = vld [vmem:[#allocation4 + $0x90] sm:$0xff]
      %v3209 = vld [vmem:[#allocation4 + $0x98] sm:$0xff]
      %v3210 = vld [vmem:[#allocation4 + $0xa0] sm:$0xff]
      %v3211 = vld [vmem:[#allocation4 + $0xa8] sm:$0xff]
      %v3212 = vld [vmem:[#allocation4 + $0xb0] sm:$0xff]
      %v3213 = vld [vmem:[#allocation4 + $0xb8] sm:$0xff]
      %s3214 = scalar_lea.vmem %s7, 48
      %v3215 = vld [vmem:[%s3214] sm:$0xff]
      %v3217 = vsel %vm928, %v3166, 0
      %v3220 = vsel %vm928, %v3167, 0
      %v3223 = vsel %vm928, %v3168, 0
      %v3226 = vsel %vm928, %v3169, 0
      %v3229 = vsel %vm928, %v3170, 0
      %v3232 = vsel %vm928, %v3171, 0
      %v3235 = vsel %vm928, %v3172, 0
      %v3238 = vsel %vm928, %v3173, 0
      %v3241 = vsel %vm928, %v3174, 0
      %v3244 = vsel %vm928, %v3175, 0
      %v3247 = vsel %vm928, %v3176, 0
      %v3250 = vsel %vm928, %v3177, 0
      %v3253 = vsel %vm928, %v3178, 0
      %v3256 = vsel %vm928, %v3179, 0
      %v3259 = vsel %vm928, %v3180, 0
      %v3262 = vsel %vm928, %v3181, 0
      %v3265 = vsel %vm928, %v3182, 0
      %v3268 = vsel %vm928, %v3183, 0
      %v3271 = vsel %vm928, %v3184, 0
      %v3274 = vsel %vm928, %v3185, 0
      %v3277 = vsel %vm928, %v3186, 0
      %v3280 = vsel %vm928, %v3187, 0
      %v3283 = vsel %vm928, %v3188, 0
      %v3286 = vsel %vm928, %v3189, 0
      %3288 = vmatprep.subr.mxu0 0.0
      %3289 = vmatpush1.msra.mxu0 0.0
      %3290 = vmatprep.subr.mxu0 0.0
      %3291 = vmatpush1.msra.mxu0 0.0
      %3292 = vmatprep.subr.mxu0 0.0
      %3293 = vmatpush1.msra.mxu0 0.0
      %3294 = vmatprep.subr.mxu0 0.0
      %3295 = vmatpush1.msra.mxu0 0.0
      %3296 = vmatprep.subr.mxu0 0.0
      %3297 = vmatpush1.msra.mxu0 0.0
      %3298 = vmatprep.subr.mxu0 0.0
      %3299 = vmatpush1.msra.mxu0 0.0
      %3300 = vmatprep.subr.mxu0 0.0
      %3301 = vmatpush1.msra.mxu0 0.0
      %3302 = vmatprep.subr.mxu0 0.0
      %3303 = vmatpush1.msra.mxu0 0.0
      %3304 = vmatprep.subr.mxu0 0.0
      %3305 = vmatpush1.msra.mxu0 0.0
      %3306 = vmatprep.subr.mxu0 0.0
      %3307 = vmatpush1.msra.mxu0 0.0
      %3308 = vmatprep.subr.mxu0 0.0
      %3309 = vmatpush1.msra.mxu0 0.0
      %3310 = vmatprep.subr.mxu0 0.0
      %3311 = vmatpush1.msra.mxu0 0.0
      %3312 = vmatprep.subr.mxu0 0.0
      %3313 = vmatpush1.msra.mxu0 0.0
      %3314 = vmatprep.subr.mxu0 0.0
      %3315 = vmatpush1.msra.mxu0 0.0
      %3316 = vmatprep.subr.mxu0 0.0
      %3317 = vmatpush1.msra.mxu0 0.0
      %3318 = vmatprep.subr.mxu0 0.0
      %3319 = vmatpush1.msra.mxu0 %v3215
      %3320 = vmatprep.subr.mxu0 0.0
      %3321 = vmatpush2.msra.mxu0 0.0
      %3322 = vmatprep.subr.mxu0 0.0
      %3323 = vmatpush2.msra.mxu0 0.0
      %3324 = vmatprep.subr.mxu0 0.0
      %3325 = vmatpush2.msra.mxu0 0.0
      %3326 = vmatprep.subr.mxu0 0.0
      %3327 = vmatpush2.msra.mxu0 0.0
      %3328 = vmatprep.subr.mxu0 0.0
      %3329 = vmatpush2.msra.mxu0 0.0
      %3330 = vmatprep.subr.mxu0 0.0
      %3331 = vmatpush2.msra.mxu0 0.0
      %3332 = vmatprep.subr.mxu0 0.0
      %3333 = vmatpush2.msra.mxu0 0.0
      %3334 = vmatprep.subr.mxu0 0.0
      %3335 = vmatpush2.msra.mxu0 0.0
      %3336 = vmatprep.subr.mxu0 0.0
      %3337 = vmatpush2.msra.mxu0 0.0
      %3338 = vmatprep.subr.mxu0 0.0
      %3339 = vmatpush2.msra.mxu0 0.0
      %3340 = vmatprep.subr.mxu0 0.0
      %3341 = vmatpush2.msra.mxu0 0.0
      %3342 = vmatprep.subr.mxu0 0.0
      %3343 = vmatpush2.msra.mxu0 0.0
      %3344 = vmatprep.subr.mxu0 0.0
      %3345 = vmatpush2.msra.mxu0 0.0
      %3346 = vmatprep.subr.mxu0 0.0
      %3347 = vmatpush2.msra.mxu0 0.0
      %3348 = vmatprep.subr.mxu0 0.0
      %3349 = vmatpush2.msra.mxu0 0.0
      %3350 = vmatprep.subr.mxu0 0.0
      %3351 = vmatpush2.msra.mxu0 0.0
      %3352 = vmatprep.mubr.f32.mxu0 0.0
      %3353 = vmatmul.mubr.f32.gmra.mxu0 %v3217
      %v3354 = vpop.f32.mrf.mxu0
      %v3355 = vadd.f32 0.0, %v3354
      %v3356 = vpop.f32.mrf.mxu0
      %3357 = vmatprep.mubr.f32.mxu0 0.0
      %3358 = vmatmul.mubr.f32.gmra.mxu0 %v3220
      %v3359 = vpop.f32.mrf.mxu0
      %v3360 = vadd.f32 0.0, %v3359
      %v3361 = vpop.f32.mrf.mxu0
      %3362 = vmatprep.mubr.f32.mxu0 0.0
      %3363 = vmatmul.mubr.f32.gmra.mxu0 %v3223
      %v3364 = vpop.f32.mrf.mxu0
      %v3365 = vadd.f32 0.0, %v3364
      %v3366 = vpop.f32.mrf.mxu0
      %3367 = vmatprep.mubr.f32.mxu0 0.0
      %3368 = vmatmul.mubr.f32.gmra.mxu0 %v3226
      %v3369 = vpop.f32.mrf.mxu0
      %v3370 = vadd.f32 0.0, %v3369
      %v3371 = vpop.f32.mrf.mxu0
      %3372 = vmatprep.mubr.f32.mxu0 0.0
      %3373 = vmatmul.mubr.f32.gmra.mxu0 %v3229
      %v3374 = vpop.f32.mrf.mxu0
      %v3375 = vadd.f32 0.0, %v3374
      %v3376 = vpop.f32.mrf.mxu0
      %3377 = vmatprep.mubr.f32.mxu0 0.0
      %3378 = vmatmul.mubr.f32.gmra.mxu0 %v3232
      %v3379 = vpop.f32.mrf.mxu0
      %v3380 = vadd.f32 0.0, %v3379
      %v3381 = vpop.f32.mrf.mxu0
      %3382 = vmatprep.mubr.f32.mxu0 0.0
      %3383 = vmatmul.mubr.f32.gmra.mxu0 %v3235
      %v3384 = vpop.f32.mrf.mxu0
      %v3385 = vadd.f32 0.0, %v3384
      %v3386 = vpop.f32.mrf.mxu0
      %3387 = vmatprep.mubr.f32.mxu0 0.0
      %3388 = vmatmul.mubr.f32.gmra.mxu0 %v3238
      %v3389 = vpop.f32.mrf.mxu0
      %v3390 = vadd.f32 0.0, %v3389
      %v3391 = vpop.f32.mrf.mxu0
      %3392 = vmatprep.mubr.f32.mxu0 0.0
      %3393 = vmatmul.mubr.f32.gmra.mxu0 %v3241
      %v3394 = vpop.f32.mrf.mxu0
      %v3395 = vadd.f32 0.0, %v3394
      %v3396 = vpop.f32.mrf.mxu0
      %3397 = vmatprep.mubr.f32.mxu0 0.0
      %3398 = vmatmul.mubr.f32.gmra.mxu0 %v3244
      %v3399 = vpop.f32.mrf.mxu0
      %v3400 = vadd.f32 0.0, %v3399
      %v3401 = vpop.f32.mrf.mxu0
      %3402 = vmatprep.mubr.f32.mxu0 0.0
      %3403 = vmatmul.mubr.f32.gmra.mxu0 %v3247
      %v3404 = vpop.f32.mrf.mxu0
      %v3405 = vadd.f32 0.0, %v3404
      %v3406 = vpop.f32.mrf.mxu0
      %3407 = vmatprep.mubr.f32.mxu0 0.0
      %3408 = vmatmul.mubr.f32.gmra.mxu0 %v3250
      %v3409 = vpop.f32.mrf.mxu0
      %v3410 = vadd.f32 0.0, %v3409
      %v3411 = vpop.f32.mrf.mxu0
      %3412 = vmatprep.mubr.f32.mxu0 0.0
      %3413 = vmatmul.mubr.f32.gmra.mxu0 %v3253
      %v3414 = vpop.f32.mrf.mxu0
      %v3415 = vadd.f32 0.0, %v3414
      %v3416 = vpop.f32.mrf.mxu0
      %3417 = vmatprep.mubr.f32.mxu0 0.0
      %3418 = vmatmul.mubr.f32.gmra.mxu0 %v3256
      %v3419 = vpop.f32.mrf.mxu0
      %v3420 = vadd.f32 0.0, %v3419
      %v3421 = vpop.f32.mrf.mxu0
      %3422 = vmatprep.mubr.f32.mxu0 0.0
      %3423 = vmatmul.mubr.f32.gmra.mxu0 %v3259
      %v3424 = vpop.f32.mrf.mxu0
      %v3425 = vadd.f32 0.0, %v3424
      %v3426 = vpop.f32.mrf.mxu0
      %3427 = vmatprep.mubr.f32.mxu0 0.0
      %3428 = vmatmul.mubr.f32.gmra.mxu0 %v3262
      %v3429 = vpop.f32.mrf.mxu0
      %v3430 = vadd.f32 0.0, %v3429
      %v3431 = vpop.f32.mrf.mxu0
      %3432 = vmatprep.mubr.f32.mxu0 0.0
      %3433 = vmatmul.mubr.f32.gmra.mxu0 %v3265
      %v3434 = vpop.f32.mrf.mxu0
      %v3435 = vadd.f32 0.0, %v3434
      %v3436 = vpop.f32.mrf.mxu0
      %3437 = vmatprep.mubr.f32.mxu0 0.0
      %3438 = vmatmul.mubr.f32.gmra.mxu0 %v3268
      %v3439 = vpop.f32.mrf.mxu0
      %v3440 = vadd.f32 0.0, %v3439
      %v3441 = vpop.f32.mrf.mxu0
      %3442 = vmatprep.mubr.f32.mxu0 0.0
      %3443 = vmatmul.mubr.f32.gmra.mxu0 %v3271
      %v3444 = vpop.f32.mrf.mxu0
      %v3445 = vadd.f32 0.0, %v3444
      %v3446 = vpop.f32.mrf.mxu0
      %3447 = vmatprep.mubr.f32.mxu0 0.0
      %3448 = vmatmul.mubr.f32.gmra.mxu0 %v3274
      %v3449 = vpop.f32.mrf.mxu0
      %v3450 = vadd.f32 0.0, %v3449
      %v3451 = vpop.f32.mrf.mxu0
      %3452 = vmatprep.mubr.f32.mxu0 0.0
      %3453 = vmatmul.mubr.f32.gmra.mxu0 %v3277
      %v3454 = vpop.f32.mrf.mxu0
      %v3455 = vadd.f32 0.0, %v3454
      %v3456 = vpop.f32.mrf.mxu0
      %3457 = vmatprep.mubr.f32.mxu0 0.0
      %3458 = vmatmul.mubr.f32.gmra.mxu0 %v3280
      %v3459 = vpop.f32.mrf.mxu0
      %v3460 = vadd.f32 0.0, %v3459
      %v3461 = vpop.f32.mrf.mxu0
      %3462 = vmatprep.mubr.f32.mxu0 0.0
      %3463 = vmatmul.mubr.f32.gmra.mxu0 %v3283
      %v3464 = vpop.f32.mrf.mxu0
      %v3465 = vadd.f32 0.0, %v3464
      %v3466 = vpop.f32.mrf.mxu0
      %3467 = vmatprep.mubr.f32.mxu0 0.0
      %3468 = vmatmul.mubr.f32.gmra.mxu0 %v3286
      %v3469 = vpop.f32.mrf.mxu0
      %v3470 = vadd.f32 0.0, %v3469
      %v3471 = vpop.f32.mrf.mxu0
      %3472 = vdwg.mxu0
      %v3473 = vadd.f32 %v3190, %v3355
      %v3474 = vadd.f32 %v3191, %v3360
      %v3475 = vadd.f32 %v3192, %v3365
      %v3476 = vadd.f32 %v3193, %v3370
      %v3477 = vadd.f32 %v3194, %v3375
      %v3478 = vadd.f32 %v3195, %v3380
      %v3479 = vadd.f32 %v3196, %v3385
      %v3480 = vadd.f32 %v3197, %v3390
      %v3481 = vadd.f32 %v3198, %v3395
      %v3482 = vadd.f32 %v3199, %v3400
      %v3483 = vadd.f32 %v3200, %v3405
      %v3484 = vadd.f32 %v3201, %v3410
      %v3485 = vadd.f32 %v3202, %v3415
      %v3486 = vadd.f32 %v3203, %v3420
      %v3487 = vadd.f32 %v3204, %v3425
      %v3488 = vadd.f32 %v3205, %v3430
      %v3489 = vadd.f32 %v3206, %v3435
      %v3490 = vadd.f32 %v3207, %v3440
      %v3491 = vadd.f32 %v3208, %v3445
      %v3492 = vadd.f32 %v3209, %v3450
      %v3493 = vadd.f32 %v3210, %v3455
      %v3494 = vadd.f32 %v3211, %v3460
      %v3495 = vadd.f32 %v3212, %v3465
      %v3496 = vadd.f32 %v3213, %v3470
      %3497 = vst.msk [vmem:[#allocation4] sm:$0xff] %vm1010, %v3473
      %3498 = vst.msk [vmem:[#allocation4 + $0x8] sm:$0xff] %vm1010, %v3474
      %3499 = vst.msk [vmem:[#allocation4 + $0x10] sm:$0xff] %vm1010, %v3475
      %3500 = vst.msk [vmem:[#allocation4 + $0x18] sm:$0xff] %vm1010, %v3476
      %3501 = vst.msk [vmem:[#allocation4 + $0x20] sm:$0xff] %vm1010, %v3477
      %3502 = vst.msk [vmem:[#allocation4 + $0x28] sm:$0xff] %vm1010, %v3478
      %3503 = vst.msk [vmem:[#allocation4 + $0x30] sm:$0xff] %vm1010, %v3479
      %3504 = vst.msk [vmem:[#allocation4 + $0x38] sm:$0xff] %vm1010, %v3480
      %3505 = vst.msk [vmem:[#allocation4 + $0x40] sm:$0xff] %vm1010, %v3481
      %3506 = vst.msk [vmem:[#allocation4 + $0x48] sm:$0xff] %vm1010, %v3482
      %3507 = vst.msk [vmem:[#allocation4 + $0x50] sm:$0xff] %vm1010, %v3483
      %3508 = vst.msk [vmem:[#allocation4 + $0x58] sm:$0xff] %vm1010, %v3484
      %3509 = vst.msk [vmem:[#allocation4 + $0x60] sm:$0xff] %vm1010, %v3485
      %3510 = vst.msk [vmem:[#allocation4 + $0x68] sm:$0xff] %vm1010, %v3486
      %3511 = vst.msk [vmem:[#allocation4 + $0x70] sm:$0xff] %vm1010, %v3487
      %3512 = vst.msk [vmem:[#allocation4 + $0x78] sm:$0xff] %vm1010, %v3488
      %3513 = vst.msk [vmem:[#allocation4 + $0x80] sm:$0xff] %vm1010, %v3489
      %3514 = vst.msk [vmem:[#allocation4 + $0x88] sm:$0xff] %vm1010, %v3490
      %3515 = vst.msk [vmem:[#allocation4 + $0x90] sm:$0xff] %vm1010, %v3491
      %3516 = vst.msk [vmem:[#allocation4 + $0x98] sm:$0xff] %vm1010, %v3492
      %3517 = vst.msk [vmem:[#allocation4 + $0xa0] sm:$0xff] %vm1010, %v3493
      %3518 = vst.msk [vmem:[#allocation4 + $0xa8] sm:$0xff] %vm1010, %v3494
      %3519 = vst.msk [vmem:[#allocation4 + $0xb0] sm:$0xff] %vm1010, %v3495
      %3520 = vst.msk [vmem:[#allocation4 + $0xb8] sm:$0xff] %vm1010, %v3496
      %v3521 = vld [vmem:[%s3165 + $0x1] sm:$0xff]
      %v3522 = vld [vmem:[%s3165 + $0x9] sm:$0xff]
      %v3523 = vld [vmem:[%s3165 + $0x19] sm:$0xff]
      %v3524 = vld [vmem:[%s3165 + $0x21] sm:$0xff]
      %v3525 = vld [vmem:[%s3165 + $0x31] sm:$0xff]
      %v3526 = vld [vmem:[%s3165 + $0x39] sm:$0xff]
      %v3527 = vld [vmem:[%s3165 + $0x49] sm:$0xff]
      %v3528 = vld [vmem:[%s3165 + $0x51] sm:$0xff]
      %v3529 = vld [vmem:[%s3165 + $0x61] sm:$0xff]
      %v3530 = vld [vmem:[%s3165 + $0x69] sm:$0xff]
      %v3531 = vld [vmem:[%s3165 + $0x79] sm:$0xff]
      %v3532 = vld [vmem:[%s3165 + $0x81] sm:$0xff]
      %v3533 = vld [vmem:[%s3165 + $0x91] sm:$0xff]
      %v3534 = vld [vmem:[%s3165 + $0x99] sm:$0xff]
      %v3535 = vld [vmem:[%s3165 + $0xa9] sm:$0xff]
      %v3536 = vld [vmem:[%s3165 + $0xb1] sm:$0xff]
      %v3537 = vld [vmem:[%s3165 + $0xc1] sm:$0xff]
      %v3538 = vld [vmem:[%s3165 + $0xc9] sm:$0xff]
      %v3539 = vld [vmem:[%s3165 + $0xd9] sm:$0xff]
      %v3540 = vld [vmem:[%s3165 + $0xe1] sm:$0xff]
      %v3541 = vld [vmem:[%s3165 + $0xf1] sm:$0xff]
      %v3542 = vld [vmem:[%s3165 + $0xf9] sm:$0xff]
      %v3543 = vld [vmem:[%s3165 + $0x109] sm:$0xff]
      %v3544 = vld [vmem:[%s3165 + $0x111] sm:$0xff]
      %v3545 = vld [vmem:[#allocation4] sm:$0xff]
      %v3546 = vld [vmem:[#allocation4 + $0x8] sm:$0xff]
      %v3547 = vld [vmem:[#allocation4 + $0x10] sm:$0xff]
      %v3548 = vld [vmem:[#allocation4 + $0x18] sm:$0xff]
      %v3549 = vld [vmem:[#allocation4 + $0x20] sm:$0xff]
      %v3550 = vld [vmem:[#allocation4 + $0x28] sm:$0xff]
      %v3551 = vld [vmem:[#allocation4 + $0x30] sm:$0xff]
      %v3552 = vld [vmem:[#allocation4 + $0x38] sm:$0xff]
      %v3553 = vld [vmem:[#allocation4 + $0x40] sm:$0xff]
      %v3554 = vld [vmem:[#allocation4 + $0x48] sm:$0xff]
      %v3555 = vld [vmem:[#allocation4 + $0x50] sm:$0xff]
      %v3556 = vld [vmem:[#allocation4 + $0x58] sm:$0xff]
      %v3557 = vld [vmem:[#allocation4 + $0x60] sm:$0xff]
      %v3558 = vld [vmem:[#allocation4 + $0x68] sm:$0xff]
      %v3559 = vld [vmem:[#allocation4 + $0x70] sm:$0xff]
      %v3560 = vld [vmem:[#allocation4 + $0x78] sm:$0xff]
      %v3561 = vld [vmem:[#allocation4 + $0x80] sm:$0xff]
      %v3562 = vld [vmem:[#allocation4 + $0x88] sm:$0xff]
      %v3563 = vld [vmem:[#allocation4 + $0x90] sm:$0xff]
      %v3564 = vld [vmem:[#allocation4 + $0x98] sm:$0xff]
      %v3565 = vld [vmem:[#allocation4 + $0xa0] sm:$0xff]
      %v3566 = vld [vmem:[#allocation4 + $0xa8] sm:$0xff]
      %v3567 = vld [vmem:[#allocation4 + $0xb0] sm:$0xff]
      %v3568 = vld [vmem:[#allocation4 + $0xb8] sm:$0xff]
      %s3569 = scalar_lea.vmem %s7, 56
      %v3570 = vld [vmem:[%s3569] sm:$0xff]
      %v3572 = vsel %vm928, %v3521, 0
      %v3575 = vsel %vm928, %v3522, 0
      %v3578 = vsel %vm928, %v3523, 0
      %v3581 = vsel %vm928, %v3524, 0
      %v3584 = vsel %vm928, %v3525, 0
      %v3587 = vsel %vm928, %v3526, 0
      %v3590 = vsel %vm928, %v3527, 0
      %v3593 = vsel %vm928, %v3528, 0
      %v3596 = vsel %vm928, %v3529, 0
      %v3599 = vsel %vm928, %v3530, 0
      %v3602 = vsel %vm928, %v3531, 0
      %v3605 = vsel %vm928, %v3532, 0
      %v3608 = vsel %vm928, %v3533, 0
      %v3611 = vsel %vm928, %v3534, 0
      %v3614 = vsel %vm928, %v3535, 0
      %v3617 = vsel %vm928, %v3536, 0
      %v3620 = vsel %vm928, %v3537, 0
      %v3623 = vsel %vm928, %v3538, 0
      %v3626 = vsel %vm928, %v3539, 0
      %v3629 = vsel %vm928, %v3540, 0
      %v3632 = vsel %vm928, %v3541, 0
      %v3635 = vsel %vm928, %v3542, 0
      %v3638 = vsel %vm928, %v3543, 0
      %v3641 = vsel %vm928, %v3544, 0
      %3643 = vmatprep.subr.mxu0 0.0
      %3644 = vmatpush1.msra.mxu0 0.0
      %3645 = vmatprep.subr.mxu0 0.0
      %3646 = vmatpush1.msra.mxu0 0.0
      %3647 = vmatprep.subr.mxu0 0.0
      %3648 = vmatpush1.msra.mxu0 0.0
      %3649 = vmatprep.subr.mxu0 0.0
      %3650 = vmatpush1.msra.mxu0 0.0
      %3651 = vmatprep.subr.mxu0 0.0
      %3652 = vmatpush1.msra.mxu0 0.0
      %3653 = vmatprep.subr.mxu0 0.0
      %3654 = vmatpush1.msra.mxu0 0.0
      %3655 = vmatprep.subr.mxu0 0.0
      %3656 = vmatpush1.msra.mxu0 0.0
      %3657 = vmatprep.subr.mxu0 0.0
      %3658 = vmatpush1.msra.mxu0 0.0
      %3659 = vmatprep.subr.mxu0 0.0
      %3660 = vmatpush1.msra.mxu0 0.0
      %3661 = vmatprep.subr.mxu0 0.0
      %3662 = vmatpush1.msra.mxu0 0.0
      %3663 = vmatprep.subr.mxu0 0.0
      %3664 = vmatpush1.msra.mxu0 0.0
      %3665 = vmatprep.subr.mxu0 0.0
      %3666 = vmatpush1.msra.mxu0 0.0
      %3667 = vmatprep.subr.mxu0 0.0
      %3668 = vmatpush1.msra.mxu0 0.0
      %3669 = vmatprep.subr.mxu0 0.0
      %3670 = vmatpush1.msra.mxu0 0.0
      %3671 = vmatprep.subr.mxu0 0.0
      %3672 = vmatpush1.msra.mxu0 0.0
      %3673 = vmatprep.subr.mxu0 0.0
      %3674 = vmatpush1.msra.mxu0 %v3570
      %3675 = vmatprep.subr.mxu0 0.0
      %3676 = vmatpush2.msra.mxu0 0.0
      %3677 = vmatprep.subr.mxu0 0.0
      %3678 = vmatpush2.msra.mxu0 0.0
      %3679 = vmatprep.subr.mxu0 0.0
      %3680 = vmatpush2.msra.mxu0 0.0
      %3681 = vmatprep.subr.mxu0 0.0
      %3682 = vmatpush2.msra.mxu0 0.0
      %3683 = vmatprep.subr.mxu0 0.0
      %3684 = vmatpush2.msra.mxu0 0.0
      %3685 = vmatprep.subr.mxu0 0.0
      %3686 = vmatpush2.msra.mxu0 0.0
      %3687 = vmatprep.subr.mxu0 0.0
      %3688 = vmatpush2.msra.mxu0 0.0
      %3689 = vmatprep.subr.mxu0 0.0
      %3690 = vmatpush2.msra.mxu0 0.0
      %3691 = vmatprep.subr.mxu0 0.0
      %3692 = vmatpush2.msra.mxu0 0.0
      %3693 = vmatprep.subr.mxu0 0.0
      %3694 = vmatpush2.msra.mxu0 0.0
      %3695 = vmatprep.subr.mxu0 0.0
      %3696 = vmatpush2.msra.mxu0 0.0
      %3697 = vmatprep.subr.mxu0 0.0
      %3698 = vmatpush2.msra.mxu0 0.0
      %3699 = vmatprep.subr.mxu0 0.0
      %3700 = vmatpush2.msra.mxu0 0.0
      %3701 = vmatprep.subr.mxu0 0.0
      %3702 = vmatpush2.msra.mxu0 0.0
      %3703 = vmatprep.subr.mxu0 0.0
      %3704 = vmatpush2.msra.mxu0 0.0
      %3705 = vmatprep.subr.mxu0 0.0
      %3706 = vmatpush2.msra.mxu0 0.0
      %3707 = vmatprep.mubr.f32.mxu0 0.0
      %3708 = vmatmul.mubr.f32.gmra.mxu0 %v3572
      %v3709 = vpop.f32.mrf.mxu0
      %v3710 = vadd.f32 0.0, %v3709
      %v3711 = vpop.f32.mrf.mxu0
      %3712 = vmatprep.mubr.f32.mxu0 0.0
      %3713 = vmatmul.mubr.f32.gmra.mxu0 %v3575
      %v3714 = vpop.f32.mrf.mxu0
      %v3715 = vadd.f32 0.0, %v3714
      %v3716 = vpop.f32.mrf.mxu0
      %3717 = vmatprep.mubr.f32.mxu0 0.0
      %3718 = vmatmul.mubr.f32.gmra.mxu0 %v3578
      %v3719 = vpop.f32.mrf.mxu0
      %v3720 = vadd.f32 0.0, %v3719
      %v3721 = vpop.f32.mrf.mxu0
      %3722 = vmatprep.mubr.f32.mxu0 0.0
      %3723 = vmatmul.mubr.f32.gmra.mxu0 %v3581
      %v3724 = vpop.f32.mrf.mxu0
      %v3725 = vadd.f32 0.0, %v3724
      %v3726 = vpop.f32.mrf.mxu0
      %3727 = vmatprep.mubr.f32.mxu0 0.0
      %3728 = vmatmul.mubr.f32.gmra.mxu0 %v3584
      %v3729 = vpop.f32.mrf.mxu0
      %v3730 = vadd.f32 0.0, %v3729
      %v3731 = vpop.f32.mrf.mxu0
      %3732 = vmatprep.mubr.f32.mxu0 0.0
      %3733 = vmatmul.mubr.f32.gmra.mxu0 %v3587
      %v3734 = vpop.f32.mrf.mxu0
      %v3735 = vadd.f32 0.0, %v3734
      %v3736 = vpop.f32.mrf.mxu0
      %3737 = vmatprep.mubr.f32.mxu0 0.0
      %3738 = vmatmul.mubr.f32.gmra.mxu0 %v3590
      %v3739 = vpop.f32.mrf.mxu0
      %v3740 = vadd.f32 0.0, %v3739
      %v3741 = vpop.f32.mrf.mxu0
      %3742 = vmatprep.mubr.f32.mxu0 0.0
      %3743 = vmatmul.mubr.f32.gmra.mxu0 %v3593
      %v3744 = vpop.f32.mrf.mxu0
      %v3745 = vadd.f32 0.0, %v3744
      %v3746 = vpop.f32.mrf.mxu0
      %3747 = vmatprep.mubr.f32.mxu0 0.0
      %3748 = vmatmul.mubr.f32.gmra.mxu0 %v3596
      %v3749 = vpop.f32.mrf.mxu0
      %v3750 = vadd.f32 0.0, %v3749
      %v3751 = vpop.f32.mrf.mxu0
      %3752 = vmatprep.mubr.f32.mxu0 0.0
      %3753 = vmatmul.mubr.f32.gmra.mxu0 %v3599
      %v3754 = vpop.f32.mrf.mxu0
      %v3755 = vadd.f32 0.0, %v3754
      %v3756 = vpop.f32.mrf.mxu0
      %3757 = vmatprep.mubr.f32.mxu0 0.0
      %3758 = vmatmul.mubr.f32.gmra.mxu0 %v3602
      %v3759 = vpop.f32.mrf.mxu0
      %v3760 = vadd.f32 0.0, %v3759
      %v3761 = vpop.f32.mrf.mxu0
      %3762 = vmatprep.mubr.f32.mxu0 0.0
      %3763 = vmatmul.mubr.f32.gmra.mxu0 %v3605
      %v3764 = vpop.f32.mrf.mxu0
      %v3765 = vadd.f32 0.0, %v3764
      %v3766 = vpop.f32.mrf.mxu0
      %3767 = vmatprep.mubr.f32.mxu0 0.0
      %3768 = vmatmul.mubr.f32.gmra.mxu0 %v3608
      %v3769 = vpop.f32.mrf.mxu0
      %v3770 = vadd.f32 0.0, %v3769
      %v3771 = vpop.f32.mrf.mxu0
      %3772 = vmatprep.mubr.f32.mxu0 0.0
      %3773 = vmatmul.mubr.f32.gmra.mxu0 %v3611
      %v3774 = vpop.f32.mrf.mxu0
      %v3775 = vadd.f32 0.0, %v3774
      %v3776 = vpop.f32.mrf.mxu0
      %3777 = vmatprep.mubr.f32.mxu0 0.0
      %3778 = vmatmul.mubr.f32.gmra.mxu0 %v3614
      %v3779 = vpop.f32.mrf.mxu0
      %v3780 = vadd.f32 0.0, %v3779
      %v3781 = vpop.f32.mrf.mxu0
      %3782 = vmatprep.mubr.f32.mxu0 0.0
      %3783 = vmatmul.mubr.f32.gmra.mxu0 %v3617
      %v3784 = vpop.f32.mrf.mxu0
      %v3785 = vadd.f32 0.0, %v3784
      %v3786 = vpop.f32.mrf.mxu0
      %3787 = vmatprep.mubr.f32.mxu0 0.0
      %3788 = vmatmul.mubr.f32.gmra.mxu0 %v3620
      %v3789 = vpop.f32.mrf.mxu0
      %v3790 = vadd.f32 0.0, %v3789
      %v3791 = vpop.f32.mrf.mxu0
      %3792 = vmatprep.mubr.f32.mxu0 0.0
      %3793 = vmatmul.mubr.f32.gmra.mxu0 %v3623
      %v3794 = vpop.f32.mrf.mxu0
      %v3795 = vadd.f32 0.0, %v3794
      %v3796 = vpop.f32.mrf.mxu0
      %3797 = vmatprep.mubr.f32.mxu0 0.0
      %3798 = vmatmul.mubr.f32.gmra.mxu0 %v3626
      %v3799 = vpop.f32.mrf.mxu0
      %v3800 = vadd.f32 0.0, %v3799
      %v3801 = vpop.f32.mrf.mxu0
      %3802 = vmatprep.mubr.f32.mxu0 0.0
      %3803 = vmatmul.mubr.f32.gmra.mxu0 %v3629
      %v3804 = vpop.f32.mrf.mxu0
      %v3805 = vadd.f32 0.0, %v3804
      %v3806 = vpop.f32.mrf.mxu0
      %3807 = vmatprep.mubr.f32.mxu0 0.0
      %3808 = vmatmul.mubr.f32.gmra.mxu0 %v3632
      %v3809 = vpop.f32.mrf.mxu0
      %v3810 = vadd.f32 0.0, %v3809
      %v3811 = vpop.f32.mrf.mxu0
      %3812 = vmatprep.mubr.f32.mxu0 0.0
      %3813 = vmatmul.mubr.f32.gmra.mxu0 %v3635
      %v3814 = vpop.f32.mrf.mxu0
      %v3815 = vadd.f32 0.0, %v3814
      %v3816 = vpop.f32.mrf.mxu0
      %3817 = vmatprep.mubr.f32.mxu0 0.0
      %3818 = vmatmul.mubr.f32.gmra.mxu0 %v3638
      %v3819 = vpop.f32.mrf.mxu0
      %v3820 = vadd.f32 0.0, %v3819
      %v3821 = vpop.f32.mrf.mxu0
      %3822 = vmatprep.mubr.f32.mxu0 0.0
      %3823 = vmatmul.mubr.f32.gmra.mxu0 %v3641
      %v3824 = vpop.f32.mrf.mxu0
      %v3825 = vadd.f32 0.0, %v3824
      %v3826 = vpop.f32.mrf.mxu0
      %3827 = vdwg.mxu0
      %v3828 = vadd.f32 %v3545, %v3710
      %v3829 = vadd.f32 %v3546, %v3715
      %v3830 = vadd.f32 %v3547, %v3720
      %v3831 = vadd.f32 %v3548, %v3725
      %v3832 = vadd.f32 %v3549, %v3730
      %v3833 = vadd.f32 %v3550, %v3735
      %v3834 = vadd.f32 %v3551, %v3740
      %v3835 = vadd.f32 %v3552, %v3745
      %v3836 = vadd.f32 %v3553, %v3750
      %v3837 = vadd.f32 %v3554, %v3755
      %v3838 = vadd.f32 %v3555, %v3760
      %v3839 = vadd.f32 %v3556, %v3765
      %v3840 = vadd.f32 %v3557, %v3770
      %v3841 = vadd.f32 %v3558, %v3775
      %v3842 = vadd.f32 %v3559, %v3780
      %v3843 = vadd.f32 %v3560, %v3785
      %v3844 = vadd.f32 %v3561, %v3790
      %v3845 = vadd.f32 %v3562, %v3795
      %v3846 = vadd.f32 %v3563, %v3800
      %v3847 = vadd.f32 %v3564, %v3805
      %v3848 = vadd.f32 %v3565, %v3810
      %v3849 = vadd.f32 %v3566, %v3815
      %v3850 = vadd.f32 %v3567, %v3820
      %v3851 = vadd.f32 %v3568, %v3825
      %3852 = vst.msk [vmem:[#allocation4] sm:$0xff] %vm1010, %v3828
      %3853 = vst.msk [vmem:[#allocation4 + $0x8] sm:$0xff] %vm1010, %v3829
      %3854 = vst.msk [vmem:[#allocation4 + $0x10] sm:$0xff] %vm1010, %v3830
      %3855 = vst.msk [vmem:[#allocation4 + $0x18] sm:$0xff] %vm1010, %v3831
      %3856 = vst.msk [vmem:[#allocation4 + $0x20] sm:$0xff] %vm1010, %v3832
      %3857 = vst.msk [vmem:[#allocation4 + $0x28] sm:$0xff] %vm1010, %v3833
      %3858 = vst.msk [vmem:[#allocation4 + $0x30] sm:$0xff] %vm1010, %v3834
      %3859 = vst.msk [vmem:[#allocation4 + $0x38] sm:$0xff] %vm1010, %v3835
      %3860 = vst.msk [vmem:[#allocation4 + $0x40] sm:$0xff] %vm1010, %v3836
      %3861 = vst.msk [vmem:[#allocation4 + $0x48] sm:$0xff] %vm1010, %v3837
      %3862 = vst.msk [vmem:[#allocation4 + $0x50] sm:$0xff] %vm1010, %v3838
      %3863 = vst.msk [vmem:[#allocation4 + $0x58] sm:$0xff] %vm1010, %v3839
      %3864 = vst.msk [vmem:[#allocation4 + $0x60] sm:$0xff] %vm1010, %v3840
      %3865 = vst.msk [vmem:[#allocation4 + $0x68] sm:$0xff] %vm1010, %v3841
      %3866 = vst.msk [vmem:[#allocation4 + $0x70] sm:$0xff] %vm1010, %v3842
      %3867 = vst.msk [vmem:[#allocation4 + $0x78] sm:$0xff] %vm1010, %v3843
      %3868 = vst.msk [vmem:[#allocation4 + $0x80] sm:$0xff] %vm1010, %v3844
      %3869 = vst.msk [vmem:[#allocation4 + $0x88] sm:$0xff] %vm1010, %v3845
      %3870 = vst.msk [vmem:[#allocation4 + $0x90] sm:$0xff] %vm1010, %v3846
      %3871 = vst.msk [vmem:[#allocation4 + $0x98] sm:$0xff] %vm1010, %v3847
      %3872 = vst.msk [vmem:[#allocation4 + $0xa0] sm:$0xff] %vm1010, %v3848
      %3873 = vst.msk [vmem:[#allocation4 + $0xa8] sm:$0xff] %vm1010, %v3849
      %3874 = vst.msk [vmem:[#allocation4 + $0xb0] sm:$0xff] %vm1010, %v3850
      %3875 = vst.msk [vmem:[#allocation4 + $0xb8] sm:$0xff] %vm1010, %v3851
      %v3876 = vld [vmem:[%s3165 + $0x2] sm:$0xff]
      %v3877 = vld [vmem:[%s3165 + $0xa] sm:$0xff]
      %v3878 = vld [vmem:[%s3165 + $0x1a] sm:$0xff]
      %v3879 = vld [vmem:[%s3165 + $0x22] sm:$0xff]
      %v3880 = vld [vmem:[%s3165 + $0x32] sm:$0xff]
      %v3881 = vld [vmem:[%s3165 + $0x3a] sm:$0xff]
      %v3882 = vld [vmem:[%s3165 + $0x4a] sm:$0xff]
      %v3883 = vld [vmem:[%s3165 + $0x52] sm:$0xff]
      %v3884 = vld [vmem:[%s3165 + $0x62] sm:$0xff]
      %v3885 = vld [vmem:[%s3165 + $0x6a] sm:$0xff]
      %v3886 = vld [vmem:[%s3165 + $0x7a] sm:$0xff]
      %v3887 = vld [vmem:[%s3165 + $0x82] sm:$0xff]
      %v3888 = vld [vmem:[%s3165 + $0x92] sm:$0xff]
      %v3889 = vld [vmem:[%s3165 + $0x9a] sm:$0xff]
      %v3890 = vld [vmem:[%s3165 + $0xaa] sm:$0xff]
      %v3891 = vld [vmem:[%s3165 + $0xb2] sm:$0xff]
      %v3892 = vld [vmem:[%s3165 + $0xc2] sm:$0xff]
      %v3893 = vld [vmem:[%s3165 + $0xca] sm:$0xff]
      %v3894 = vld [vmem:[%s3165 + $0xda] sm:$0xff]
      %v3895 = vld [vmem:[%s3165 + $0xe2] sm:$0xff]
      %v3896 = vld [vmem:[%s3165 + $0xf2] sm:$0xff]
      %v3897 = vld [vmem:[%s3165 + $0xfa] sm:$0xff]
      %v3898 = vld [vmem:[%s3165 + $0x10a] sm:$0xff]
      %v3899 = vld [vmem:[%s3165 + $0x112] sm:$0xff]
      %v3900 = vld [vmem:[#allocation4] sm:$0xff]
      %v3901 = vld [vmem:[#allocation4 + $0x8] sm:$0xff]
      %v3902 = vld [vmem:[#allocation4 + $0x10] sm:$0xff]
      %v3903 = vld [vmem:[#allocation4 + $0x18] sm:$0xff]
      %v3904 = vld [vmem:[#allocation4 + $0x20] sm:$0xff]
      %v3905 = vld [vmem:[#allocation4 + $0x28] sm:$0xff]
      %v3906 = vld [vmem:[#allocation4 + $0x30] sm:$0xff]
      %v3907 = vld [vmem:[#allocation4 + $0x38] sm:$0xff]
      %v3908 = vld [vmem:[#allocation4 + $0x40] sm:$0xff]
      %v3909 = vld [vmem:[#allocation4 + $0x48] sm:$0xff]
      %v3910 = vld [vmem:[#allocation4 + $0x50] sm:$0xff]
      %v3911 = vld [vmem:[#allocation4 + $0x58] sm:$0xff]
      %v3912 = vld [vmem:[#allocation4 + $0x60] sm:$0xff]
      %v3913 = vld [vmem:[#allocation4 + $0x68] sm:$0xff]
      %v3914 = vld [vmem:[#allocation4 + $0x70] sm:$0xff]
      %v3915 = vld [vmem:[#allocation4 + $0x78] sm:$0xff]
      %v3916 = vld [vmem:[#allocation4 + $0x80] sm:$0xff]
      %v3917 = vld [vmem:[#allocation4 + $0x88] sm:$0xff]
      %v3918 = vld [vmem:[#allocation4 + $0x90] sm:$0xff]
      %v3919 = vld [vmem:[#allocation4 + $0x98] sm:$0xff]
      %v3920 = vld [vmem:[#allocation4 + $0xa0] sm:$0xff]
      %v3921 = vld [vmem:[#allocation4 + $0xa8] sm:$0xff]
      %v3922 = vld [vmem:[#allocation4 + $0xb0] sm:$0xff]
      %v3923 = vld [vmem:[#allocation4 + $0xb8] sm:$0xff]
      %s3924 = scalar_lea.vmem %s7, 64
      %v3925 = vld [vmem:[%s3924] sm:$0xff]
      %v3927 = vsel %vm928, %v3876, 0
      %v3930 = vsel %vm928, %v3877, 0
      %v3933 = vsel %vm928, %v3878, 0
      %v3936 = vsel %vm928, %v3879, 0
      %v3939 = vsel %vm928, %v3880, 0
      %v3942 = vsel %vm928, %v3881, 0
      %v3945 = vsel %vm928, %v3882, 0
      %v3948 = vsel %vm928, %v3883, 0
      %v3951 = vsel %vm928, %v3884, 0
      %v3954 = vsel %vm928, %v3885, 0
      %v3957 = vsel %vm928, %v3886, 0
      %v3960 = vsel %vm928, %v3887, 0
      %v3963 = vsel %vm928, %v3888, 0
      %v3966 = vsel %vm928, %v3889, 0
      %v3969 = vsel %vm928, %v3890, 0
      %v3972 = vsel %vm928, %v3891, 0
      %v3975 = vsel %vm928, %v3892, 0
      %v3978 = vsel %vm928, %v3893, 0
      %v3981 = vsel %vm928, %v3894, 0
      %v3984 = vsel %vm928, %v3895, 0
      %v3987 = vsel %vm928, %v3896, 0
      %v3990 = vsel %vm928, %v3897, 0
      %v3993 = vsel %vm928, %v3898, 0
      %v3996 = vsel %vm928, %v3899, 0
      %3998 = vmatprep.subr.mxu0 0.0
      %3999 = vmatpush1.msra.mxu0 0.0
      %4000 = vmatprep.subr.mxu0 0.0
      %4001 = vmatpush1.msra.mxu0 0.0
      %4002 = vmatprep.subr.mxu0 0.0
      %4003 = vmatpush1.msra.mxu0 0.0
      %4004 = vmatprep.subr.mxu0 0.0
      %4005 = vmatpush1.msra.mxu0 0.0
      %4006 = vmatprep.subr.mxu0 0.0
      %4007 = vmatpush1.msra.mxu0 0.0
      %4008 = vmatprep.subr.mxu0 0.0
      %4009 = vmatpush1.msra.mxu0 0.0
      %4010 = vmatprep.subr.mxu0 0.0
      %4011 = vmatpush1.msra.mxu0 0.0
      %4012 = vmatprep.subr.mxu0 0.0
      %4013 = vmatpush1.msra.mxu0 0.0
      %4014 = vmatprep.subr.mxu0 0.0
      %4015 = vmatpush1.msra.mxu0 0.0
      %4016 = vmatprep.subr.mxu0 0.0
      %4017 = vmatpush1.msra.mxu0 0.0
      %4018 = vmatprep.subr.mxu0 0.0
      %4019 = vmatpush1.msra.mxu0 0.0
      %4020 = vmatprep.subr.mxu0 0.0
      %4021 = vmatpush1.msra.mxu0 0.0
      %4022 = vmatprep.subr.mxu0 0.0
      %4023 = vmatpush1.msra.mxu0 0.0
      %4024 = vmatprep.subr.mxu0 0.0
      %4025 = vmatpush1.msra.mxu0 0.0
      %4026 = vmatprep.subr.mxu0 0.0
      %4027 = vmatpush1.msra.mxu0 0.0
      %4028 = vmatprep.subr.mxu0 0.0
      %4029 = vmatpush1.msra.mxu0 %v3925
      %4030 = vmatprep.subr.mxu0 0.0
      %4031 = vmatpush2.msra.mxu0 0.0
      %4032 = vmatprep.subr.mxu0 0.0
      %4033 = vmatpush2.msra.mxu0 0.0
      %4034 = vmatprep.subr.mxu0 0.0
      %4035 = vmatpush2.msra.mxu0 0.0
      %4036 = vmatprep.subr.mxu0 0.0
      %4037 = vmatpush2.msra.mxu0 0.0
      %4038 = vmatprep.subr.mxu0 0.0
      %4039 = vmatpush2.msra.mxu0 0.0
      %4040 = vmatprep.subr.mxu0 0.0
      %4041 = vmatpush2.msra.mxu0 0.0
      %4042 = vmatprep.subr.mxu0 0.0
      %4043 = vmatpush2.msra.mxu0 0.0
      %4044 = vmatprep.subr.mxu0 0.0
      %4045 = vmatpush2.msra.mxu0 0.0
      %4046 = vmatprep.subr.mxu0 0.0
      %4047 = vmatpush2.msra.mxu0 0.0
      %4048 = vmatprep.subr.mxu0 0.0
      %4049 = vmatpush2.msra.mxu0 0.0
      %4050 = vmatprep.subr.mxu0 0.0
      %4051 = vmatpush2.msra.mxu0 0.0
      %4052 = vmatprep.subr.mxu0 0.0
      %4053 = vmatpush2.msra.mxu0 0.0
      %4054 = vmatprep.subr.mxu0 0.0
      %4055 = vmatpush2.msra.mxu0 0.0
      %4056 = vmatprep.subr.mxu0 0.0
      %4057 = vmatpush2.msra.mxu0 0.0
      %4058 = vmatprep.subr.mxu0 0.0
      %4059 = vmatpush2.msra.mxu0 0.0
      %4060 = vmatprep.subr.mxu0 0.0
      %4061 = vmatpush2.msra.mxu0 0.0
      %4062 = vmatprep.mubr.f32.mxu0 0.0
      %4063 = vmatmul.mubr.f32.gmra.mxu0 %v3927
      %v4064 = vpop.f32.mrf.mxu0
      %v4065 = vadd.f32 0.0, %v4064
      %v4066 = vpop.f32.mrf.mxu0
      %4067 = vmatprep.mubr.f32.mxu0 0.0
      %4068 = vmatmul.mubr.f32.gmra.mxu0 %v3930
      %v4069 = vpop.f32.mrf.mxu0
      %v4070 = vadd.f32 0.0, %v4069
      %v4071 = vpop.f32.mrf.mxu0
      %4072 = vmatprep.mubr.f32.mxu0 0.0
      %4073 = vmatmul.mubr.f32.gmra.mxu0 %v3933
      %v4074 = vpop.f32.mrf.mxu0
      %v4075 = vadd.f32 0.0, %v4074
      %v4076 = vpop.f32.mrf.mxu0
      %4077 = vmatprep.mubr.f32.mxu0 0.0
      %4078 = vmatmul.mubr.f32.gmra.mxu0 %v3936
      %v4079 = vpop.f32.mrf.mxu0
      %v4080 = vadd.f32 0.0, %v4079
      %v4081 = vpop.f32.mrf.mxu0
      %4082 = vmatprep.mubr.f32.mxu0 0.0
      %4083 = vmatmul.mubr.f32.gmra.mxu0 %v3939
      %v4084 = vpop.f32.mrf.mxu0
      %v4085 = vadd.f32 0.0, %v4084
      %v4086 = vpop.f32.mrf.mxu0
      %4087 = vmatprep.mubr.f32.mxu0 0.0
      %4088 = vmatmul.mubr.f32.gmra.mxu0 %v3942
      %v4089 = vpop.f32.mrf.mxu0
      %v4090 = vadd.f32 0.0, %v4089
      %v4091 = vpop.f32.mrf.mxu0
      %4092 = vmatprep.mubr.f32.mxu0 0.0
      %4093 = vmatmul.mubr.f32.gmra.mxu0 %v3945
      %v4094 = vpop.f32.mrf.mxu0
      %v4095 = vadd.f32 0.0, %v4094
      %v4096 = vpop.f32.mrf.mxu0
      %4097 = vmatprep.mubr.f32.mxu0 0.0
      %4098 = vmatmul.mubr.f32.gmra.mxu0 %v3948
      %v4099 = vpop.f32.mrf.mxu0
      %v4100 = vadd.f32 0.0, %v4099
      %v4101 = vpop.f32.mrf.mxu0
      %4102 = vmatprep.mubr.f32.mxu0 0.0
      %4103 = vmatmul.mubr.f32.gmra.mxu0 %v3951
      %v4104 = vpop.f32.mrf.mxu0
      %v4105 = vadd.f32 0.0, %v4104
      %v4106 = vpop.f32.mrf.mxu0
      %4107 = vmatprep.mubr.f32.mxu0 0.0
      %4108 = vmatmul.mubr.f32.gmra.mxu0 %v3954
      %v4109 = vpop.f32.mrf.mxu0
      %v4110 = vadd.f32 0.0, %v4109
      %v4111 = vpop.f32.mrf.mxu0
      %4112 = vmatprep.mubr.f32.mxu0 0.0
      %4113 = vmatmul.mubr.f32.gmra.mxu0 %v3957
      %v4114 = vpop.f32.mrf.mxu0
      %v4115 = vadd.f32 0.0, %v4114
      %v4116 = vpop.f32.mrf.mxu0
      %4117 = vmatprep.mubr.f32.mxu0 0.0
      %4118 = vmatmul.mubr.f32.gmra.mxu0 %v3960
      %v4119 = vpop.f32.mrf.mxu0
      %v4120 = vadd.f32 0.0, %v4119
      %v4121 = vpop.f32.mrf.mxu0
      %4122 = vmatprep.mubr.f32.mxu0 0.0
      %4123 = vmatmul.mubr.f32.gmra.mxu0 %v3963
      %v4124 = vpop.f32.mrf.mxu0
      %v4125 = vadd.f32 0.0, %v4124
      %v4126 = vpop.f32.mrf.mxu0
      %4127 = vmatprep.mubr.f32.mxu0 0.0
      %4128 = vmatmul.mubr.f32.gmra.mxu0 %v3966
      %v4129 = vpop.f32.mrf.mxu0
      %v4130 = vadd.f32 0.0, %v4129
      %v4131 = vpop.f32.mrf.mxu0
      %4132 = vmatprep.mubr.f32.mxu0 0.0
      %4133 = vmatmul.mubr.f32.gmra.mxu0 %v3969
      %v4134 = vpop.f32.mrf.mxu0
      %v4135 = vadd.f32 0.0, %v4134
      %v4136 = vpop.f32.mrf.mxu0
      %4137 = vmatprep.mubr.f32.mxu0 0.0
      %4138 = vmatmul.mubr.f32.gmra.mxu0 %v3972
      %v4139 = vpop.f32.mrf.mxu0
      %v4140 = vadd.f32 0.0, %v4139
      %v4141 = vpop.f32.mrf.mxu0
      %4142 = vmatprep.mubr.f32.mxu0 0.0
      %4143 = vmatmul.mubr.f32.gmra.mxu0 %v3975
      %v4144 = vpop.f32.mrf.mxu0
      %v4145 = vadd.f32 0.0, %v4144
      %v4146 = vpop.f32.mrf.mxu0
      %4147 = vmatprep.mubr.f32.mxu0 0.0
      %4148 = vmatmul.mubr.f32.gmra.mxu0 %v3978
      %v4149 = vpop.f32.mrf.mxu0
      %v4150 = vadd.f32 0.0, %v4149
      %v4151 = vpop.f32.mrf.mxu0
      %4152 = vmatprep.mubr.f32.mxu0 0.0
      %4153 = vmatmul.mubr.f32.gmra.mxu0 %v3981
      %v4154 = vpop.f32.mrf.mxu0
      %v4155 = vadd.f32 0.0, %v4154
      %v4156 = vpop.f32.mrf.mxu0
      %4157 = vmatprep.mubr.f32.mxu0 0.0
      %4158 = vmatmul.mubr.f32.gmra.mxu0 %v3984
      %v4159 = vpop.f32.mrf.mxu0
      %v4160 = vadd.f32 0.0, %v4159
      %v4161 = vpop.f32.mrf.mxu0
      %4162 = vmatprep.mubr.f32.mxu0 0.0
      %4163 = vmatmul.mubr.f32.gmra.mxu0 %v3987
      %v4164 = vpop.f32.mrf.mxu0
      %v4165 = vadd.f32 0.0, %v4164
      %v4166 = vpop.f32.mrf.mxu0
      %4167 = vmatprep.mubr.f32.mxu0 0.0
      %4168 = vmatmul.mubr.f32.gmra.mxu0 %v3990
      %v4169 = vpop.f32.mrf.mxu0
      %v4170 = vadd.f32 0.0, %v4169
      %v4171 = vpop.f32.mrf.mxu0
      %4172 = vmatprep.mubr.f32.mxu0 0.0
      %4173 = vmatmul.mubr.f32.gmra.mxu0 %v3993
      %v4174 = vpop.f32.mrf.mxu0
      %v4175 = vadd.f32 0.0, %v4174
      %v4176 = vpop.f32.mrf.mxu0
      %4177 = vmatprep.mubr.f32.mxu0 0.0
      %4178 = vmatmul.mubr.f32.gmra.mxu0 %v3996
      %v4179 = vpop.f32.mrf.mxu0
      %v4180 = vadd.f32 0.0, %v4179
      %v4181 = vpop.f32.mrf.mxu0
      %4182 = vdwg.mxu0
      %v4183 = vadd.f32 %v3900, %v4065
      %v4184 = vadd.f32 %v3901, %v4070
      %v4185 = vadd.f32 %v3902, %v4075
      %v4186 = vadd.f32 %v3903, %v4080
      %v4187 = vadd.f32 %v3904, %v4085
      %v4188 = vadd.f32 %v3905, %v4090
      %v4189 = vadd.f32 %v3906, %v4095
      %v4190 = vadd.f32 %v3907, %v4100
      %v4191 = vadd.f32 %v3908, %v4105
      %v4192 = vadd.f32 %v3909, %v4110
      %v4193 = vadd.f32 %v3910, %v4115
      %v4194 = vadd.f32 %v3911, %v4120
      %v4195 = vadd.f32 %v3912, %v4125
      %v4196 = vadd.f32 %v3913, %v4130
      %v4197 = vadd.f32 %v3914, %v4135
      %v4198 = vadd.f32 %v3915, %v4140
      %v4199 = vadd.f32 %v3916, %v4145
      %v4200 = vadd.f32 %v3917, %v4150
      %v4201 = vadd.f32 %v3918, %v4155
      %v4202 = vadd.f32 %v3919, %v4160
      %v4203 = vadd.f32 %v3920, %v4165
      %v4204 = vadd.f32 %v3921, %v4170
      %v4205 = vadd.f32 %v3922, %v4175
      %v4206 = vadd.f32 %v3923, %v4180
      %4207 = vst.msk [vmem:[#allocation4] sm:$0xff] %vm1010, %v4183
      %4208 = vst.msk [vmem:[#allocation4 + $0x8] sm:$0xff] %vm1010, %v4184
      %4209 = vst.msk [vmem:[#allocation4 + $0x10] sm:$0xff] %vm1010, %v4185
      %4210 = vst.msk [vmem:[#allocation4 + $0x18] sm:$0xff] %vm1010, %v4186
      %4211 = vst.msk [vmem:[#allocation4 + $0x20] sm:$0xff] %vm1010, %v4187
      %4212 = vst.msk [vmem:[#allocation4 + $0x28] sm:$0xff] %vm1010, %v4188
      %4213 = vst.msk [vmem:[#allocation4 + $0x30] sm:$0xff] %vm1010, %v4189
      %4214 = vst.msk [vmem:[#allocation4 + $0x38] sm:$0xff] %vm1010, %v4190
      %4215 = vst.msk [vmem:[#allocation4 + $0x40] sm:$0xff] %vm1010, %v4191
      %4216 = vst.msk [vmem:[#allocation4 + $0x48] sm:$0xff] %vm1010, %v4192
      %4217 = vst.msk [vmem:[#allocation4 + $0x50] sm:$0xff] %vm1010, %v4193
      %4218 = vst.msk [vmem:[#allocation4 + $0x58] sm:$0xff] %vm1010, %v4194
      %4219 = vst.msk [vmem:[#allocation4 + $0x60] sm:$0xff] %vm1010, %v4195
      %4220 = vst.msk [vmem:[#allocation4 + $0x68] sm:$0xff] %vm1010, %v4196
      %4221 = vst.msk [vmem:[#allocation4 + $0x70] sm:$0xff] %vm1010, %v4197
      %4222 = vst.msk [vmem:[#allocation4 + $0x78] sm:$0xff] %vm1010, %v4198
      %4223 = vst.msk [vmem:[#allocation4 + $0x80] sm:$0xff] %vm1010, %v4199
      %4224 = vst.msk [vmem:[#allocation4 + $0x88] sm:$0xff] %vm1010, %v4200
      %4225 = vst.msk [vmem:[#allocation4 + $0x90] sm:$0xff] %vm1010, %v4201
      %4226 = vst.msk [vmem:[#allocation4 + $0x98] sm:$0xff] %vm1010, %v4202
      %4227 = vst.msk [vmem:[#allocation4 + $0xa0] sm:$0xff] %vm1010, %v4203
      %4228 = vst.msk [vmem:[#allocation4 + $0xa8] sm:$0xff] %vm1010, %v4204
      %4229 = vst.msk [vmem:[#allocation4 + $0xb0] sm:$0xff] %vm1010, %v4205
      %4230 = vst.msk [vmem:[#allocation4 + $0xb8] sm:$0xff] %vm1010, %v4206
      %v4231 = vld [vmem:[#allocation4] sm:$0xff]
      %v4232 = vld [vmem:[#allocation4 + $0x8] sm:$0xff]
      %v4233 = vld [vmem:[#allocation4 + $0x10] sm:$0xff]
      %v4234 = vld [vmem:[#allocation4 + $0x18] sm:$0xff]
      %v4235 = vld [vmem:[#allocation4 + $0x20] sm:$0xff]
      %v4236 = vld [vmem:[#allocation4 + $0x28] sm:$0xff]
      %v4237 = vld [vmem:[#allocation4 + $0x30] sm:$0xff]
      %v4238 = vld [vmem:[#allocation4 + $0x38] sm:$0xff]
      %v4239 = vld [vmem:[#allocation4 + $0x40] sm:$0xff]
      %v4240 = vld [vmem:[#allocation4 + $0x48] sm:$0xff]
      %v4241 = vld [vmem:[#allocation4 + $0x50] sm:$0xff]
      %v4242 = vld [vmem:[#allocation4 + $0x58] sm:$0xff]
      %v4243 = vld [vmem:[#allocation4 + $0x60] sm:$0xff]
      %v4244 = vld [vmem:[#allocation4 + $0x68] sm:$0xff]
      %v4245 = vld [vmem:[#allocation4 + $0x70] sm:$0xff]
      %v4246 = vld [vmem:[#allocation4 + $0x78] sm:$0xff]
      %v4247 = vld [vmem:[#allocation4 + $0x80] sm:$0xff]
      %v4248 = vld [vmem:[#allocation4 + $0x88] sm:$0xff]
      %v4249 = vld [vmem:[#allocation4 + $0x90] sm:$0xff]
      %v4250 = vld [vmem:[#allocation4 + $0x98] sm:$0xff]
      %v4251 = vld [vmem:[#allocation4 + $0xa0] sm:$0xff]
      %v4252 = vld [vmem:[#allocation4 + $0xa8] sm:$0xff]
      %v4253 = vld [vmem:[#allocation4 + $0xb0] sm:$0xff]
      %v4254 = vld [vmem:[#allocation4 + $0xb8] sm:$0xff]
      %v4255 = vmax.f32 %v4231, 0.0
      %v4256 = vmax.f32 %v4232, 0.0
      %v4257 = vmax.f32 %v4233, 0.0
      %v4258 = vmax.f32 %v4234, 0.0
      %v4259 = vmax.f32 %v4235, 0.0
      %v4260 = vmax.f32 %v4236, 0.0
      %v4261 = vmax.f32 %v4237, 0.0
      %v4262 = vmax.f32 %v4238, 0.0
      %v4263 = vmax.f32 %v4239, 0.0
      %v4264 = vmax.f32 %v4240, 0.0
      %v4265 = vmax.f32 %v4241, 0.0
      %v4266 = vmax.f32 %v4242, 0.0
      %v4267 = vmax.f32 %v4243, 0.0
      %v4268 = vmax.f32 %v4244, 0.0
      %v4269 = vmax.f32 %v4245, 0.0
      %v4270 = vmax.f32 %v4246, 0.0
      %v4271 = vmax.f32 %v4247, 0.0
      %v4272 = vmax.f32 %v4248, 0.0
      %v4273 = vmax.f32 %v4249, 0.0
      %v4274 = vmax.f32 %v4250, 0.0
      %v4275 = vmax.f32 %v4251, 0.0
      %v4276 = vmax.f32 %v4252, 0.0
      %v4277 = vmax.f32 %v4253, 0.0
      %v4278 = vmax.f32 %v4254, 0.0
      %4303 = vrot.lane.b32.xlu0 %v4255, 124
      %v4304 = vpop.permute.xlu0 %4303
      %4305 = vrot.lane.b32.xlu0 %v4256, 124
      %v4306 = vpop.permute.xlu0 %4305
      %4307 = vrot.lane.b32.xlu0 %v4257, 124
      %v4308 = vpop.permute.xlu0 %4307
      %4309 = vrot.lane.b32.xlu0 %v4258, 124
      %v4310 = vpop.permute.xlu0 %4309
      %4311 = vrot.lane.b32.xlu0 %v4259, 124
      %v4312 = vpop.permute.xlu0 %4311
      %4313 = vrot.lane.b32.xlu0 %v4260, 124
      %v4314 = vpop.permute.xlu0 %4313
      %4315 = vrot.lane.b32.xlu0 %v4261, 124
      %v4316 = vpop.permute.xlu0 %4315
      %4317 = vrot.lane.b32.xlu0 %v4262, 124
      %v4318 = vpop.permute.xlu0 %4317
      %4319 = vrot.lane.b32.xlu0 %v4263, 124
      %v4320 = vpop.permute.xlu0 %4319
      %4321 = vrot.lane.b32.xlu0 %v4264, 124
      %v4322 = vpop.permute.xlu0 %4321
      %4323 = vrot.lane.b32.xlu0 %v4265, 124
      %v4324 = vpop.permute.xlu0 %4323
      %4325 = vrot.lane.b32.xlu0 %v4266, 124
      %v4326 = vpop.permute.xlu0 %4325
      %4327 = vrot.lane.b32.xlu0 %v4267, 124
      %v4328 = vpop.permute.xlu0 %4327
      %4329 = vrot.lane.b32.xlu0 %v4268, 124
      %v4330 = vpop.permute.xlu0 %4329
      %4331 = vrot.lane.b32.xlu0 %v4269, 124
      %v4332 = vpop.permute.xlu0 %4331
      %4333 = vrot.lane.b32.xlu0 %v4270, 124
      %v4334 = vpop.permute.xlu0 %4333
      %4335 = vrot.lane.b32.xlu0 %v4271, 124
      %v4336 = vpop.permute.xlu0 %4335
      %4337 = vrot.lane.b32.xlu0 %v4272, 124
      %v4338 = vpop.permute.xlu0 %4337
      %4339 = vrot.lane.b32.xlu0 %v4273, 124
      %v4340 = vpop.permute.xlu0 %4339
      %4341 = vrot.lane.b32.xlu0 %v4274, 124
      %v4342 = vpop.permute.xlu0 %4341
      %4343 = vrot.lane.b32.xlu0 %v4275, 124
      %v4344 = vpop.permute.xlu0 %4343
      %4345 = vrot.lane.b32.xlu0 %v4276, 124
      %v4346 = vpop.permute.xlu0 %4345
      %4347 = vrot.lane.b32.xlu0 %v4277, 124
      %v4348 = vpop.permute.xlu0 %4347
      %4349 = vrot.lane.b32.xlu0 %v4278, 124
      %v4350 = vpop.permute.xlu0 %4349
      %vm4375 = vcmask 15360
      %4376 = vst.msk [vmem:[#allocation3 + $0x1] sm:$0xff] %vm4375, %v4304
      %4377 = vst.msk [vmem:[#allocation3 + $0x9] sm:$0xff] %vm4375, %v4306
      %4378 = vst.msk [vmem:[#allocation3 + $0x19] sm:$0xff] %vm4375, %v4308
      %4379 = vst.msk [vmem:[#allocation3 + $0x21] sm:$0xff] %vm4375, %v4310
      %4380 = vst.msk [vmem:[#allocation3 + $0x31] sm:$0xff] %vm4375, %v4312
      %4381 = vst.msk [vmem:[#allocation3 + $0x39] sm:$0xff] %vm4375, %v4314
      %4382 = vst.msk [vmem:[#allocation3 + $0x49] sm:$0xff] %vm4375, %v4316
      %4383 = vst.msk [vmem:[#allocation3 + $0x51] sm:$0xff] %vm4375, %v4318
      %4384 = vst.msk [vmem:[#allocation3 + $0x61] sm:$0xff] %vm4375, %v4320
      %4385 = vst.msk [vmem:[#allocation3 + $0x69] sm:$0xff] %vm4375, %v4322
      %4386 = vst.msk [vmem:[#allocation3 + $0x79] sm:$0xff] %vm4375, %v4324
      %4387 = vst.msk [vmem:[#allocation3 + $0x81] sm:$0xff] %vm4375, %v4326
      %4388 = vst.msk [vmem:[#allocation3 + $0x91] sm:$0xff] %vm4375, %v4328
      %4389 = vst.msk [vmem:[#allocation3 + $0x99] sm:$0xff] %vm4375, %v4330
      %4390 = vst.msk [vmem:[#allocation3 + $0xa9] sm:$0xff] %vm4375, %v4332
      %4391 = vst.msk [vmem:[#allocation3 + $0xb1] sm:$0xff] %vm4375, %v4334
      %4392 = vst.msk [vmem:[#allocation3 + $0xc1] sm:$0xff] %vm4375, %v4336
      %4393 = vst.msk [vmem:[#allocation3 + $0xc9] sm:$0xff] %vm4375, %v4338
      %4394 = vst.msk [vmem:[#allocation3 + $0xd9] sm:$0xff] %vm4375, %v4340
      %4395 = vst.msk [vmem:[#allocation3 + $0xe1] sm:$0xff] %vm4375, %v4342
      %4396 = vst.msk [vmem:[#allocation3 + $0xf1] sm:$0xff] %vm4375, %v4344
      %4397 = vst.msk [vmem:[#allocation3 + $0xf9] sm:$0xff] %vm4375, %v4346
      %4398 = vst.msk [vmem:[#allocation3 + $0x109] sm:$0xff] %vm4375, %v4348
      %4399 = vst.msk [vmem:[#allocation3 + $0x111] sm:$0xff] %vm4375, %v4350
      // Predicated region
      $region89: #{detect_module_forward.1} parent=71 // pred_check
        %p4400 = pneg %p963
      $region90: #{detect_module_forward.1} parent=71 // pred_check_branch
        %4402 = sbr.rel (%p4400) target = $region92
      $region91: #{detect_module_forward.1} parent=71 // pred_region
        %4403 = vst.msk [vmem:[#allocation3 + $0x1] sm:$0xff] %vm4375, 0.0
        %4404 = vst.msk [vmem:[#allocation3 + $0x9] sm:$0xff] %vm4375, 0.0
        %4405 = vst.msk [vmem:[#allocation3 + $0x19] sm:$0xff] %vm4375, 0.0
        %4406 = vst.msk [vmem:[#allocation3 + $0x21] sm:$0xff] %vm4375, 0.0
      $region92: #{detect_module_forward.1} parent=71 // pred_fallthru
        _
      // Predicated region
      $region93: #{detect_module_forward.1} parent=71 // pred_check
        %p4407 = pneg %p992
      $region94: #{detect_module_forward.1} parent=71 // pred_check_branch
        %4409 = sbr.rel (%p4407) target = $region96
      $region95: #{detect_module_forward.1} parent=71 // pred_region
        %s4410 = scalar_lea.vmem [#allocation3], 240
        %4411 = vst.msk [vmem:[%s4410 + $0x1] sm:$0xff] %vm4375, 0.0
        %4412 = vst.msk [vmem:[%s4410 + $0x9] sm:$0xff] %vm4375, 0.0
        %4413 = vst.msk [vmem:[%s4410 + $0x19] sm:$0xff] %vm4375, 0.0
        %4414 = vst.msk [vmem:[%s4410 + $0x21] sm:$0xff] %vm4375, 0.0
      $region96: #{detect_module_forward.1} parent=71 // pred_fallthru
        _
      %v4415 = vld [vmem:[%s10] sm:$0x1]
      %v4417 = vlaneseq
      %v4418 = vshrl.u32 %v4417, 7
      %v4419 = vsub.s32 0, %v4418
      %v4420 = vrot.slane %v4415, %v4419
      %vm4422 = vcmask 31744
      %4423 = vst.msk [vmem:[#allocation5] sm:$0xff] %vm4422, %v4420
      %4424 = vst.msk [vmem:[#allocation5 + $0x8] sm:$0xff] %vm4422, %v4420
      %4425 = vst.msk [vmem:[#allocation5 + $0x10] sm:$0xff] %vm4422, %v4420
      %4426 = vst.msk [vmem:[#allocation5 + $0x18] sm:$0xff] %vm4422, %v4420
      %4427 = vst.msk [vmem:[#allocation5 + $0x20] sm:$0xff] %vm4422, %v4420
      %4428 = vst.msk [vmem:[#allocation5 + $0x28] sm:$0xff] %vm4422, %v4420
      %4429 = vst.msk [vmem:[#allocation5 + $0x30] sm:$0xff] %vm4422, %v4420
      %4430 = vst.msk [vmem:[#allocation5 + $0x38] sm:$0xff] %vm4422, %v4420
      %4431 = vst.msk [vmem:[#allocation5 + $0x40] sm:$0xff] %vm4422, %v4420
      %4432 = vst.msk [vmem:[#allocation5 + $0x48] sm:$0xff] %vm4422, %v4420
      %4433 = vst.msk [vmem:[#allocation5 + $0x50] sm:$0xff] %vm4422, %v4420
      %4434 = vst.msk [vmem:[#allocation5 + $0x58] sm:$0xff] %vm4422, %v4420
      %4435 = vst.msk [vmem:[#allocation5 + $0x60] sm:$0xff] %vm4422, %v4420
      %4436 = vst.msk [vmem:[#allocation5 + $0x68] sm:$0xff] %vm4422, %v4420
      %4437 = vst.msk [vmem:[#allocation5 + $0x70] sm:$0xff] %vm4422, %v4420
      %4438 = vst.msk [vmem:[#allocation5 + $0x78] sm:$0xff] %vm4422, %v4420
      %4439 = vst.msk [vmem:[#allocation5 + $0x80] sm:$0xff] %vm4422, %v4420
      %4440 = vst.msk [vmem:[#allocation5 + $0x88] sm:$0xff] %vm4422, %v4420
      %4441 = vst.msk [vmem:[#allocation5 + $0x90] sm:$0xff] %vm4422, %v4420
      %4442 = vst.msk [vmem:[#allocation5 + $0x98] sm:$0xff] %vm4422, %v4420
      %v4443 = vld [vmem:[#allocation3] sm:$0xff]
      %v4444 = vld [vmem:[#allocation3 + $0x8] sm:$0xff]
      %v4445 = vld [vmem:[#allocation3 + $0x18] sm:$0xff]
      %v4446 = vld [vmem:[#allocation3 + $0x20] sm:$0xff]
      %v4447 = vld [vmem:[#allocation3 + $0x30] sm:$0xff]
      %v4448 = vld [vmem:[#allocation3 + $0x38] sm:$0xff]
      %v4449 = vld [vmem:[#allocation3 + $0x48] sm:$0xff]
      %v4450 = vld [vmem:[#allocation3 + $0x50] sm:$0xff]
      %v4451 = vld [vmem:[#allocation3 + $0x60] sm:$0xff]
      %v4452 = vld [vmem:[#allocation3 + $0x68] sm:$0xff]
      %v4453 = vld [vmem:[#allocation3 + $0x78] sm:$0xff]
      %v4454 = vld [vmem:[#allocation3 + $0x80] sm:$0xff]
      %v4455 = vld [vmem:[#allocation3 + $0x90] sm:$0xff]
      %v4456 = vld [vmem:[#allocation3 + $0x98] sm:$0xff]
      %v4457 = vld [vmem:[#allocation3 + $0xa8] sm:$0xff]
      %v4458 = vld [vmem:[#allocation3 + $0xb0] sm:$0xff]
      %v4459 = vld [vmem:[#allocation3 + $0xc0] sm:$0xff]
      %v4460 = vld [vmem:[#allocation3 + $0xc8] sm:$0xff]
      %v4461 = vld [vmem:[#allocation3 + $0xd8] sm:$0xff]
      %v4462 = vld [vmem:[#allocation3 + $0xe0] sm:$0xff]
      %v4463 = vld [vmem:[#allocation5] sm:$0xff]
      %v4464 = vld [vmem:[#allocation5 + $0x8] sm:$0xff]
      %v4465 = vld [vmem:[#allocation5 + $0x10] sm:$0xff]
      %v4466 = vld [vmem:[#allocation5 + $0x18] sm:$0xff]
      %v4467 = vld [vmem:[#allocation5 + $0x20] sm:$0xff]
      %v4468 = vld [vmem:[#allocation5 + $0x28] sm:$0xff]
      %v4469 = vld [vmem:[#allocation5 + $0x30] sm:$0xff]
      %v4470 = vld [vmem:[#allocation5 + $0x38] sm:$0xff]
      %v4471 = vld [vmem:[#allocation5 + $0x40] sm:$0xff]
      %v4472 = vld [vmem:[#allocation5 + $0x48] sm:$0xff]
      %v4473 = vld [vmem:[#allocation5 + $0x50] sm:$0xff]
      %v4474 = vld [vmem:[#allocation5 + $0x58] sm:$0xff]
      %v4475 = vld [vmem:[#allocation5 + $0x60] sm:$0xff]
      %v4476 = vld [vmem:[#allocation5 + $0x68] sm:$0xff]
      %v4477 = vld [vmem:[#allocation5 + $0x70] sm:$0xff]
      %v4478 = vld [vmem:[#allocation5 + $0x78] sm:$0xff]
      %v4479 = vld [vmem:[#allocation5 + $0x80] sm:$0xff]
      %v4480 = vld [vmem:[#allocation5 + $0x88] sm:$0xff]
      %v4481 = vld [vmem:[#allocation5 + $0x90] sm:$0xff]
      %v4482 = vld [vmem:[#allocation5 + $0x98] sm:$0xff]
      %v4483 = vld [vmem:[%s9] sm:$0x3]
      %v4485 = vsel %vm4375, %v4443, 0
      %v4488 = vsel %vm4375, %v4444, 0
      %v4491 = vsel %vm4375, %v4445, 0
      %v4494 = vsel %vm4375, %v4446, 0
      %v4497 = vsel %vm4375, %v4447, 0
      %v4500 = vsel %vm4375, %v4448, 0
      %v4503 = vsel %vm4375, %v4449, 0
      %v4506 = vsel %vm4375, %v4450, 0
      %v4509 = vsel %vm4375, %v4451, 0
      %v4512 = vsel %vm4375, %v4452, 0
      %v4515 = vsel %vm4375, %v4453, 0
      %v4518 = vsel %vm4375, %v4454, 0
      %v4521 = vsel %vm4375, %v4455, 0
      %v4524 = vsel %vm4375, %v4456, 0
      %v4527 = vsel %vm4375, %v4457, 0
      %v4530 = vsel %vm4375, %v4458, 0
      %v4533 = vsel %vm4375, %v4459, 0
      %v4536 = vsel %vm4375, %v4460, 0
      %v4539 = vsel %vm4375, %v4461, 0
      %v4542 = vsel %vm4375, %v4462, 0
      %vm4544 = vcmask 1041408
      %v4546 = vsel %vm4544, %v4483, 0
      %4548 = vmatprep.subr.mxu0 0.0
      %4549 = vmatpush1.msra.mxu0 0.0
      %4550 = vmatprep.subr.mxu0 0.0
      %4551 = vmatpush1.msra.mxu0 0.0
      %4552 = vmatprep.subr.mxu0 0.0
      %4553 = vmatpush1.msra.mxu0 0.0
      %4554 = vmatprep.subr.mxu0 0.0
      %4555 = vmatpush1.msra.mxu0 0.0
      %4556 = vmatprep.subr.mxu0 0.0
      %4557 = vmatpush1.msra.mxu0 0.0
      %4558 = vmatprep.subr.mxu0 0.0
      %4559 = vmatpush1.msra.mxu0 0.0
      %4560 = vmatprep.subr.mxu0 0.0
      %4561 = vmatpush1.msra.mxu0 0.0
      %4562 = vmatprep.subr.mxu0 0.0
      %4563 = vmatpush1.msra.mxu0 0.0
      %4564 = vmatprep.subr.mxu0 0.0
      %4565 = vmatpush1.msra.mxu0 0.0
      %4566 = vmatprep.subr.mxu0 0.0
      %4567 = vmatpush1.msra.mxu0 0.0
      %4568 = vmatprep.subr.mxu0 0.0
      %4569 = vmatpush1.msra.mxu0 0.0
      %4570 = vmatprep.subr.mxu0 0.0
      %4571 = vmatpush1.msra.mxu0 0.0
      %4572 = vmatprep.subr.mxu0 0.0
      %4573 = vmatpush1.msra.mxu0 0.0
      %4574 = vmatprep.subr.mxu0 0.0
      %4575 = vmatpush1.msra.mxu0 0.0
      %4576 = vmatprep.subr.mxu0 0.0
      %4577 = vmatpush1.msra.mxu0 0.0
      %4578 = vmatprep.subr.mxu0 0.0
      %4579 = vmatpush1.msra.mxu0 %v4546
      %4580 = vmatprep.subr.mxu0 0.0
      %4581 = vmatpush2.msra.mxu0 0.0
      %4582 = vmatprep.subr.mxu0 0.0
      %4583 = vmatpush2.msra.mxu0 0.0
      %4584 = vmatprep.subr.mxu0 0.0
      %4585 = vmatpush2.msra.mxu0 0.0
      %4586 = vmatprep.subr.mxu0 0.0
      %4587 = vmatpush2.msra.mxu0 0.0
      %4588 = vmatprep.subr.mxu0 0.0
      %4589 = vmatpush2.msra.mxu0 0.0
      %4590 = vmatprep.subr.mxu0 0.0
      %4591 = vmatpush2.msra.mxu0 0.0
      %4592 = vmatprep.subr.mxu0 0.0
      %4593 = vmatpush2.msra.mxu0 0.0
      %4594 = vmatprep.subr.mxu0 0.0
      %4595 = vmatpush2.msra.mxu0 0.0
      %4596 = vmatprep.subr.mxu0 0.0
      %4597 = vmatpush2.msra.mxu0 0.0
      %4598 = vmatprep.subr.mxu0 0.0
      %4599 = vmatpush2.msra.mxu0 0.0
      %4600 = vmatprep.subr.mxu0 0.0
      %4601 = vmatpush2.msra.mxu0 0.0
      %4602 = vmatprep.subr.mxu0 0.0
      %4603 = vmatpush2.msra.mxu0 0.0
      %4604 = vmatprep.subr.mxu0 0.0
      %4605 = vmatpush2.msra.mxu0 0.0
      %4606 = vmatprep.subr.mxu0 0.0
      %4607 = vmatpush2.msra.mxu0 0.0
      %4608 = vmatprep.subr.mxu0 0.0
      %4609 = vmatpush2.msra.mxu0 0.0
      %4610 = vmatprep.subr.mxu0 0.0
      %4611 = vmatpush2.msra.mxu0 0.0
      %4612 = vmatprep.mubr.f32.mxu0 0.0
      %4613 = vmatmul.mubr.f32.gmra.mxu0 %v4485
      %v4614 = vpop.f32.mrf.mxu0
      %v4615 = vadd.f32 0.0, %v4614
      %v4616 = vpop.f32.mrf.mxu0
      %4617 = vmatprep.mubr.f32.mxu0 0.0
      %4618 = vmatmul.mubr.f32.gmra.mxu0 %v4488
      %v4619 = vpop.f32.mrf.mxu0
      %v4620 = vadd.f32 0.0, %v4619
      %v4621 = vpop.f32.mrf.mxu0
      %4622 = vmatprep.mubr.f32.mxu0 0.0
      %4623 = vmatmul.mubr.f32.gmra.mxu0 %v4491
      %v4624 = vpop.f32.mrf.mxu0
      %v4625 = vadd.f32 0.0, %v4624
      %v4626 = vpop.f32.mrf.mxu0
      %4627 = vmatprep.mubr.f32.mxu0 0.0
      %4628 = vmatmul.mubr.f32.gmra.mxu0 %v4494
      %v4629 = vpop.f32.mrf.mxu0
      %v4630 = vadd.f32 0.0, %v4629
      %v4631 = vpop.f32.mrf.mxu0
      %4632 = vmatprep.mubr.f32.mxu0 0.0
      %4633 = vmatmul.mubr.f32.gmra.mxu0 %v4497
      %v4634 = vpop.f32.mrf.mxu0
      %v4635 = vadd.f32 0.0, %v4634
      %v4636 = vpop.f32.mrf.mxu0
      %4637 = vmatprep.mubr.f32.mxu0 0.0
      %4638 = vmatmul.mubr.f32.gmra.mxu0 %v4500
      %v4639 = vpop.f32.mrf.mxu0
      %v4640 = vadd.f32 0.0, %v4639
      %v4641 = vpop.f32.mrf.mxu0
      %4642 = vmatprep.mubr.f32.mxu0 0.0
      %4643 = vmatmul.mubr.f32.gmra.mxu0 %v4503
      %v4644 = vpop.f32.mrf.mxu0
      %v4645 = vadd.f32 0.0, %v4644
      %v4646 = vpop.f32.mrf.mxu0
      %4647 = vmatprep.mubr.f32.mxu0 0.0
      %4648 = vmatmul.mubr.f32.gmra.mxu0 %v4506
      %v4649 = vpop.f32.mrf.mxu0
      %v4650 = vadd.f32 0.0, %v4649
      %v4651 = vpop.f32.mrf.mxu0
      %4652 = vmatprep.mubr.f32.mxu0 0.0
      %4653 = vmatmul.mubr.f32.gmra.mxu0 %v4509
      %v4654 = vpop.f32.mrf.mxu0
      %v4655 = vadd.f32 0.0, %v4654
      %v4656 = vpop.f32.mrf.mxu0
      %4657 = vmatprep.mubr.f32.mxu0 0.0
      %4658 = vmatmul.mubr.f32.gmra.mxu0 %v4512
      %v4659 = vpop.f32.mrf.mxu0
      %v4660 = vadd.f32 0.0, %v4659
      %v4661 = vpop.f32.mrf.mxu0
      %4662 = vmatprep.mubr.f32.mxu0 0.0
      %4663 = vmatmul.mubr.f32.gmra.mxu0 %v4515
      %v4664 = vpop.f32.mrf.mxu0
      %v4665 = vadd.f32 0.0, %v4664
      %v4666 = vpop.f32.mrf.mxu0
      %4667 = vmatprep.mubr.f32.mxu0 0.0
      %4668 = vmatmul.mubr.f32.gmra.mxu0 %v4518
      %v4669 = vpop.f32.mrf.mxu0
      %v4670 = vadd.f32 0.0, %v4669
      %v4671 = vpop.f32.mrf.mxu0
      %4672 = vmatprep.mubr.f32.mxu0 0.0
      %4673 = vmatmul.mubr.f32.gmra.mxu0 %v4521
      %v4674 = vpop.f32.mrf.mxu0
      %v4675 = vadd.f32 0.0, %v4674
      %v4676 = vpop.f32.mrf.mxu0
      %4677 = vmatprep.mubr.f32.mxu0 0.0
      %4678 = vmatmul.mubr.f32.gmra.mxu0 %v4524
      %v4679 = vpop.f32.mrf.mxu0
      %v4680 = vadd.f32 0.0, %v4679
      %v4681 = vpop.f32.mrf.mxu0
      %4682 = vmatprep.mubr.f32.mxu0 0.0
      %4683 = vmatmul.mubr.f32.gmra.mxu0 %v4527
      %v4684 = vpop.f32.mrf.mxu0
      %v4685 = vadd.f32 0.0, %v4684
      %v4686 = vpop.f32.mrf.mxu0
      %4687 = vmatprep.mubr.f32.mxu0 0.0
      %4688 = vmatmul.mubr.f32.gmra.mxu0 %v4530
      %v4689 = vpop.f32.mrf.mxu0
      %v4690 = vadd.f32 0.0, %v4689
      %v4691 = vpop.f32.mrf.mxu0
      %4692 = vmatprep.mubr.f32.mxu0 0.0
      %4693 = vmatmul.mubr.f32.gmra.mxu0 %v4533
      %v4694 = vpop.f32.mrf.mxu0
      %v4695 = vadd.f32 0.0, %v4694
      %v4696 = vpop.f32.mrf.mxu0
      %4697 = vmatprep.mubr.f32.mxu0 0.0
      %4698 = vmatmul.mubr.f32.gmra.mxu0 %v4536
      %v4699 = vpop.f32.mrf.mxu0
      %v4700 = vadd.f32 0.0, %v4699
      %v4701 = vpop.f32.mrf.mxu0
      %4702 = vmatprep.mubr.f32.mxu0 0.0
      %4703 = vmatmul.mubr.f32.gmra.mxu0 %v4539
      %v4704 = vpop.f32.mrf.mxu0
      %v4705 = vadd.f32 0.0, %v4704
      %v4706 = vpop.f32.mrf.mxu0
      %4707 = vmatprep.mubr.f32.mxu0 0.0
      %4708 = vmatmul.mubr.f32.gmra.mxu0 %v4542
      %v4709 = vpop.f32.mrf.mxu0
      %v4710 = vadd.f32 0.0, %v4709
      %v4711 = vpop.f32.mrf.mxu0
      %4712 = vdwg.mxu0
      %v4713 = vadd.f32 %v4463, %v4615
      %v4714 = vadd.f32 %v4464, %v4620
      %v4715 = vadd.f32 %v4465, %v4625
      %v4716 = vadd.f32 %v4466, %v4630
      %v4717 = vadd.f32 %v4467, %v4635
      %v4718 = vadd.f32 %v4468, %v4640
      %v4719 = vadd.f32 %v4469, %v4645
      %v4720 = vadd.f32 %v4470, %v4650
      %v4721 = vadd.f32 %v4471, %v4655
      %v4722 = vadd.f32 %v4472, %v4660
      %v4723 = vadd.f32 %v4473, %v4665
      %v4724 = vadd.f32 %v4474, %v4670
      %v4725 = vadd.f32 %v4475, %v4675
      %v4726 = vadd.f32 %v4476, %v4680
      %v4727 = vadd.f32 %v4477, %v4685
      %v4728 = vadd.f32 %v4478, %v4690
      %v4729 = vadd.f32 %v4479, %v4695
      %v4730 = vadd.f32 %v4480, %v4700
      %v4731 = vadd.f32 %v4481, %v4705
      %v4732 = vadd.f32 %v4482, %v4710
      %4733 = vst.msk [vmem:[#allocation5] sm:$0xff] %vm4422, %v4713
      %4734 = vst.msk [vmem:[#allocation5 + $0x8] sm:$0xff] %vm4422, %v4714
      %4735 = vst.msk [vmem:[#allocation5 + $0x10] sm:$0xff] %vm4422, %v4715
      %4736 = vst.msk [vmem:[#allocation5 + $0x18] sm:$0xff] %vm4422, %v4716
      %4737 = vst.msk [vmem:[#allocation5 + $0x20] sm:$0xff] %vm4422, %v4717
      %4738 = vst.msk [vmem:[#allocation5 + $0x28] sm:$0xff] %vm4422, %v4718
      %4739 = vst.msk [vmem:[#allocation5 + $0x30] sm:$0xff] %vm4422, %v4719
      %4740 = vst.msk [vmem:[#allocation5 + $0x38] sm:$0xff] %vm4422, %v4720
      %4741 = vst.msk [vmem:[#allocation5 + $0x40] sm:$0xff] %vm4422, %v4721
      %4742 = vst.msk [vmem:[#allocation5 + $0x48] sm:$0xff] %vm4422, %v4722
      %4743 = vst.msk [vmem:[#allocation5 + $0x50] sm:$0xff] %vm4422, %v4723
      %4744 = vst.msk [vmem:[#allocation5 + $0x58] sm:$0xff] %vm4422, %v4724
      %4745 = vst.msk [vmem:[#allocation5 + $0x60] sm:$0xff] %vm4422, %v4725
      %4746 = vst.msk [vmem:[#allocation5 + $0x68] sm:$0xff] %vm4422, %v4726
      %4747 = vst.msk [vmem:[#allocation5 + $0x70] sm:$0xff] %vm4422, %v4727
      %4748 = vst.msk [vmem:[#allocation5 + $0x78] sm:$0xff] %vm4422, %v4728
      %4749 = vst.msk [vmem:[#allocation5 + $0x80] sm:$0xff] %vm4422, %v4729
      %4750 = vst.msk [vmem:[#allocation5 + $0x88] sm:$0xff] %vm4422, %v4730
      %4751 = vst.msk [vmem:[#allocation5 + $0x90] sm:$0xff] %vm4422, %v4731
      %4752 = vst.msk [vmem:[#allocation5 + $0x98] sm:$0xff] %vm4422, %v4732
      %v4753 = vld [vmem:[#allocation3 + $0x1] sm:$0xff]
      %v4754 = vld [vmem:[#allocation3 + $0x9] sm:$0xff]
      %v4755 = vld [vmem:[#allocation3 + $0x19] sm:$0xff]
      %v4756 = vld [vmem:[#allocation3 + $0x21] sm:$0xff]
      %v4757 = vld [vmem:[#allocation3 + $0x31] sm:$0xff]
      %v4758 = vld [vmem:[#allocation3 + $0x39] sm:$0xff]
      %v4759 = vld [vmem:[#allocation3 + $0x49] sm:$0xff]
      %v4760 = vld [vmem:[#allocation3 + $0x51] sm:$0xff]
      %v4761 = vld [vmem:[#allocation3 + $0x61] sm:$0xff]
      %v4762 = vld [vmem:[#allocation3 + $0x69] sm:$0xff]
      %v4763 = vld [vmem:[#allocation3 + $0x79] sm:$0xff]
      %v4764 = vld [vmem:[#allocation3 + $0x81] sm:$0xff]
      %v4765 = vld [vmem:[#allocation3 + $0x91] sm:$0xff]
      %v4766 = vld [vmem:[#allocation3 + $0x99] sm:$0xff]
      %v4767 = vld [vmem:[#allocation3 + $0xa9] sm:$0xff]
      %v4768 = vld [vmem:[#allocation3 + $0xb1] sm:$0xff]
      %v4769 = vld [vmem:[#allocation3 + $0xc1] sm:$0xff]
      %v4770 = vld [vmem:[#allocation3 + $0xc9] sm:$0xff]
      %v4771 = vld [vmem:[#allocation3 + $0xd9] sm:$0xff]
      %v4772 = vld [vmem:[#allocation3 + $0xe1] sm:$0xff]
      %v4773 = vld [vmem:[#allocation5] sm:$0xff]
      %v4774 = vld [vmem:[#allocation5 + $0x8] sm:$0xff]
      %v4775 = vld [vmem:[#allocation5 + $0x10] sm:$0xff]
      %v4776 = vld [vmem:[#allocation5 + $0x18] sm:$0xff]
      %v4777 = vld [vmem:[#allocation5 + $0x20] sm:$0xff]
      %v4778 = vld [vmem:[#allocation5 + $0x28] sm:$0xff]
      %v4779 = vld [vmem:[#allocation5 + $0x30] sm:$0xff]
      %v4780 = vld [vmem:[#allocation5 + $0x38] sm:$0xff]
      %v4781 = vld [vmem:[#allocation5 + $0x40] sm:$0xff]
      %v4782 = vld [vmem:[#allocation5 + $0x48] sm:$0xff]
      %v4783 = vld [vmem:[#allocation5 + $0x50] sm:$0xff]
      %v4784 = vld [vmem:[#allocation5 + $0x58] sm:$0xff]
      %v4785 = vld [vmem:[#allocation5 + $0x60] sm:$0xff]
      %v4786 = vld [vmem:[#allocation5 + $0x68] sm:$0xff]
      %v4787 = vld [vmem:[#allocation5 + $0x70] sm:$0xff]
      %v4788 = vld [vmem:[#allocation5 + $0x78] sm:$0xff]
      %v4789 = vld [vmem:[#allocation5 + $0x80] sm:$0xff]
      %v4790 = vld [vmem:[#allocation5 + $0x88] sm:$0xff]
      %v4791 = vld [vmem:[#allocation5 + $0x90] sm:$0xff]
      %v4792 = vld [vmem:[#allocation5 + $0x98] sm:$0xff]
      %s4793 = scalar_lea.vmem %s9, 2
      %v4794 = vld [vmem:[%s4793] sm:$0x3]
      %v4796 = vsel %vm4375, %v4753, 0
      %v4799 = vsel %vm4375, %v4754, 0
      %v4802 = vsel %vm4375, %v4755, 0
      %v4805 = vsel %vm4375, %v4756, 0
      %v4808 = vsel %vm4375, %v4757, 0
      %v4811 = vsel %vm4375, %v4758, 0
      %v4814 = vsel %vm4375, %v4759, 0
      %v4817 = vsel %vm4375, %v4760, 0
      %v4820 = vsel %vm4375, %v4761, 0
      %v4823 = vsel %vm4375, %v4762, 0
      %v4826 = vsel %vm4375, %v4763, 0
      %v4829 = vsel %vm4375, %v4764, 0
      %v4832 = vsel %vm4375, %v4765, 0
      %v4835 = vsel %vm4375, %v4766, 0
      %v4838 = vsel %vm4375, %v4767, 0
      %v4841 = vsel %vm4375, %v4768, 0
      %v4844 = vsel %vm4375, %v4769, 0
      %v4847 = vsel %vm4375, %v4770, 0
      %v4850 = vsel %vm4375, %v4771, 0
      %v4853 = vsel %vm4375, %v4772, 0
      %v4856 = vsel %vm4544, %v4794, 0
      %4858 = vmatprep.subr.mxu0 0.0
      %4859 = vmatpush1.msra.mxu0 0.0
      %4860 = vmatprep.subr.mxu0 0.0
      %4861 = vmatpush1.msra.mxu0 0.0
      %4862 = vmatprep.subr.mxu0 0.0
      %4863 = vmatpush1.msra.mxu0 0.0
      %4864 = vmatprep.subr.mxu0 0.0
      %4865 = vmatpush1.msra.mxu0 0.0
      %4866 = vmatprep.subr.mxu0 0.0
      %4867 = vmatpush1.msra.mxu0 0.0
      %4868 = vmatprep.subr.mxu0 0.0
      %4869 = vmatpush1.msra.mxu0 0.0
      %4870 = vmatprep.subr.mxu0 0.0
      %4871 = vmatpush1.msra.mxu0 0.0
      %4872 = vmatprep.subr.mxu0 0.0
      %4873 = vmatpush1.msra.mxu0 0.0
      %4874 = vmatprep.subr.mxu0 0.0
      %4875 = vmatpush1.msra.mxu0 0.0
      %4876 = vmatprep.subr.mxu0 0.0
      %4877 = vmatpush1.msra.mxu0 0.0
      %4878 = vmatprep.subr.mxu0 0.0
      %4879 = vmatpush1.msra.mxu0 0.0
      %4880 = vmatprep.subr.mxu0 0.0
      %4881 = vmatpush1.msra.mxu0 0.0
      %4882 = vmatprep.subr.mxu0 0.0
      %4883 = vmatpush1.msra.mxu0 0.0
      %4884 = vmatprep.subr.mxu0 0.0
      %4885 = vmatpush1.msra.mxu0 0.0
      %4886 = vmatprep.subr.mxu0 0.0
      %4887 = vmatpush1.msra.mxu0 0.0
      %4888 = vmatprep.subr.mxu0 0.0
      %4889 = vmatpush1.msra.mxu0 %v4856
      %4890 = vmatprep.subr.mxu0 0.0
      %4891 = vmatpush2.msra.mxu0 0.0
      %4892 = vmatprep.subr.mxu0 0.0
      %4893 = vmatpush2.msra.mxu0 0.0
      %4894 = vmatprep.subr.mxu0 0.0
      %4895 = vmatpush2.msra.mxu0 0.0
      %4896 = vmatprep.subr.mxu0 0.0
      %4897 = vmatpush2.msra.mxu0 0.0
      %4898 = vmatprep.subr.mxu0 0.0
      %4899 = vmatpush2.msra.mxu0 0.0
      %4900 = vmatprep.subr.mxu0 0.0
      %4901 = vmatpush2.msra.mxu0 0.0
      %4902 = vmatprep.subr.mxu0 0.0
      %4903 = vmatpush2.msra.mxu0 0.0
      %4904 = vmatprep.subr.mxu0 0.0
      %4905 = vmatpush2.msra.mxu0 0.0
      %4906 = vmatprep.subr.mxu0 0.0
      %4907 = vmatpush2.msra.mxu0 0.0
      %4908 = vmatprep.subr.mxu0 0.0
      %4909 = vmatpush2.msra.mxu0 0.0
      %4910 = vmatprep.subr.mxu0 0.0
      %4911 = vmatpush2.msra.mxu0 0.0
      %4912 = vmatprep.subr.mxu0 0.0
      %4913 = vmatpush2.msra.mxu0 0.0
      %4914 = vmatprep.subr.mxu0 0.0
      %4915 = vmatpush2.msra.mxu0 0.0
      %4916 = vmatprep.subr.mxu0 0.0
      %4917 = vmatpush2.msra.mxu0 0.0
      %4918 = vmatprep.subr.mxu0 0.0
      %4919 = vmatpush2.msra.mxu0 0.0
      %4920 = vmatprep.subr.mxu0 0.0
      %4921 = vmatpush2.msra.mxu0 0.0
      %4922 = vmatprep.mubr.f32.mxu0 0.0
      %4923 = vmatmul.mubr.f32.gmra.mxu0 %v4796
      %v4924 = vpop.f32.mrf.mxu0
      %v4925 = vadd.f32 0.0, %v4924
      %v4926 = vpop.f32.mrf.mxu0
      %4927 = vmatprep.mubr.f32.mxu0 0.0
      %4928 = vmatmul.mubr.f32.gmra.mxu0 %v4799
      %v4929 = vpop.f32.mrf.mxu0
      %v4930 = vadd.f32 0.0, %v4929
      %v4931 = vpop.f32.mrf.mxu0
      %4932 = vmatprep.mubr.f32.mxu0 0.0
      %4933 = vmatmul.mubr.f32.gmra.mxu0 %v4802
      %v4934 = vpop.f32.mrf.mxu0
      %v4935 = vadd.f32 0.0, %v4934
      %v4936 = vpop.f32.mrf.mxu0
      %4937 = vmatprep.mubr.f32.mxu0 0.0
      %4938 = vmatmul.mubr.f32.gmra.mxu0 %v4805
      %v4939 = vpop.f32.mrf.mxu0
      %v4940 = vadd.f32 0.0, %v4939
      %v4941 = vpop.f32.mrf.mxu0
      %4942 = vmatprep.mubr.f32.mxu0 0.0
      %4943 = vmatmul.mubr.f32.gmra.mxu0 %v4808
      %v4944 = vpop.f32.mrf.mxu0
      %v4945 = vadd.f32 0.0, %v4944
      %v4946 = vpop.f32.mrf.mxu0
      %4947 = vmatprep.mubr.f32.mxu0 0.0
      %4948 = vmatmul.mubr.f32.gmra.mxu0 %v4811
      %v4949 = vpop.f32.mrf.mxu0
      %v4950 = vadd.f32 0.0, %v4949
      %v4951 = vpop.f32.mrf.mxu0
      %4952 = vmatprep.mubr.f32.mxu0 0.0
      %4953 = vmatmul.mubr.f32.gmra.mxu0 %v4814
      %v4954 = vpop.f32.mrf.mxu0
      %v4955 = vadd.f32 0.0, %v4954
      %v4956 = vpop.f32.mrf.mxu0
      %4957 = vmatprep.mubr.f32.mxu0 0.0
      %4958 = vmatmul.mubr.f32.gmra.mxu0 %v4817
      %v4959 = vpop.f32.mrf.mxu0
      %v4960 = vadd.f32 0.0, %v4959
      %v4961 = vpop.f32.mrf.mxu0
      %4962 = vmatprep.mubr.f32.mxu0 0.0
      %4963 = vmatmul.mubr.f32.gmra.mxu0 %v4820
      %v4964 = vpop.f32.mrf.mxu0
      %v4965 = vadd.f32 0.0, %v4964
      %v4966 = vpop.f32.mrf.mxu0
      %4967 = vmatprep.mubr.f32.mxu0 0.0
      %4968 = vmatmul.mubr.f32.gmra.mxu0 %v4823
      %v4969 = vpop.f32.mrf.mxu0
      %v4970 = vadd.f32 0.0, %v4969
      %v4971 = vpop.f32.mrf.mxu0
      %4972 = vmatprep.mubr.f32.mxu0 0.0
      %4973 = vmatmul.mubr.f32.gmra.mxu0 %v4826
      %v4974 = vpop.f32.mrf.mxu0
      %v4975 = vadd.f32 0.0, %v4974
      %v4976 = vpop.f32.mrf.mxu0
      %4977 = vmatprep.mubr.f32.mxu0 0.0
      %4978 = vmatmul.mubr.f32.gmra.mxu0 %v4829
      %v4979 = vpop.f32.mrf.mxu0
      %v4980 = vadd.f32 0.0, %v4979
      %v4981 = vpop.f32.mrf.mxu0
      %4982 = vmatprep.mubr.f32.mxu0 0.0
      %4983 = vmatmul.mubr.f32.gmra.mxu0 %v4832
      %v4984 = vpop.f32.mrf.mxu0
      %v4985 = vadd.f32 0.0, %v4984
      %v4986 = vpop.f32.mrf.mxu0
      %4987 = vmatprep.mubr.f32.mxu0 0.0
      %4988 = vmatmul.mubr.f32.gmra.mxu0 %v4835
      %v4989 = vpop.f32.mrf.mxu0
      %v4990 = vadd.f32 0.0, %v4989
      %v4991 = vpop.f32.mrf.mxu0
      %4992 = vmatprep.mubr.f32.mxu0 0.0
      %4993 = vmatmul.mubr.f32.gmra.mxu0 %v4838
      %v4994 = vpop.f32.mrf.mxu0
      %v4995 = vadd.f32 0.0, %v4994
      %v4996 = vpop.f32.mrf.mxu0
      %4997 = vmatprep.mubr.f32.mxu0 0.0
      %4998 = vmatmul.mubr.f32.gmra.mxu0 %v4841
      %v4999 = vpop.f32.mrf.mxu0
      %v5000 = vadd.f32 0.0, %v4999
      %v5001 = vpop.f32.mrf.mxu0
      %5002 = vmatprep.mubr.f32.mxu0 0.0
      %5003 = vmatmul.mubr.f32.gmra.mxu0 %v4844
      %v5004 = vpop.f32.mrf.mxu0
      %v5005 = vadd.f32 0.0, %v5004
      %v5006 = vpop.f32.mrf.mxu0
      %5007 = vmatprep.mubr.f32.mxu0 0.0
      %5008 = vmatmul.mubr.f32.gmra.mxu0 %v4847
      %v5009 = vpop.f32.mrf.mxu0
      %v5010 = vadd.f32 0.0, %v5009
      %v5011 = vpop.f32.mrf.mxu0
      %5012 = vmatprep.mubr.f32.mxu0 0.0
      %5013 = vmatmul.mubr.f32.gmra.mxu0 %v4850
      %v5014 = vpop.f32.mrf.mxu0
      %v5015 = vadd.f32 0.0, %v5014
      %v5016 = vpop.f32.mrf.mxu0
      %5017 = vmatprep.mubr.f32.mxu0 0.0
      %5018 = vmatmul.mubr.f32.gmra.mxu0 %v4853
      %v5019 = vpop.f32.mrf.mxu0
      %v5020 = vadd.f32 0.0, %v5019
      %v5021 = vpop.f32.mrf.mxu0
      %5022 = vdwg.mxu0
      %v5023 = vadd.f32 %v4773, %v4925
      %v5024 = vadd.f32 %v4774, %v4930
      %v5025 = vadd.f32 %v4775, %v4935
      %v5026 = vadd.f32 %v4776, %v4940
      %v5027 = vadd.f32 %v4777, %v4945
      %v5028 = vadd.f32 %v4778, %v4950
      %v5029 = vadd.f32 %v4779, %v4955
      %v5030 = vadd.f32 %v4780, %v4960
      %v5031 = vadd.f32 %v4781, %v4965
      %v5032 = vadd.f32 %v4782, %v4970
      %v5033 = vadd.f32 %v4783, %v4975
      %v5034 = vadd.f32 %v4784, %v4980
      %v5035 = vadd.f32 %v4785, %v4985
      %v5036 = vadd.f32 %v4786, %v4990
      %v5037 = vadd.f32 %v4787, %v4995
      %v5038 = vadd.f32 %v4788, %v5000
      %v5039 = vadd.f32 %v4789, %v5005
      %v5040 = vadd.f32 %v4790, %v5010
      %v5041 = vadd.f32 %v4791, %v5015
      %v5042 = vadd.f32 %v4792, %v5020
      %5043 = vst.msk [vmem:[#allocation5] sm:$0xff] %vm4422, %v5023
      %5044 = vst.msk [vmem:[#allocation5 + $0x8] sm:$0xff] %vm4422, %v5024
      %5045 = vst.msk [vmem:[#allocation5 + $0x10] sm:$0xff] %vm4422, %v5025
      %5046 = vst.msk [vmem:[#allocation5 + $0x18] sm:$0xff] %vm4422, %v5026
      %5047 = vst.msk [vmem:[#allocation5 + $0x20] sm:$0xff] %vm4422, %v5027
      %5048 = vst.msk [vmem:[#allocation5 + $0x28] sm:$0xff] %vm4422, %v5028
      %5049 = vst.msk [vmem:[#allocation5 + $0x30] sm:$0xff] %vm4422, %v5029
      %5050 = vst.msk [vmem:[#allocation5 + $0x38] sm:$0xff] %vm4422, %v5030
      %5051 = vst.msk [vmem:[#allocation5 + $0x40] sm:$0xff] %vm4422, %v5031
      %5052 = vst.msk [vmem:[#allocation5 + $0x48] sm:$0xff] %vm4422, %v5032
      %5053 = vst.msk [vmem:[#allocation5 + $0x50] sm:$0xff] %vm4422, %v5033
      %5054 = vst.msk [vmem:[#allocation5 + $0x58] sm:$0xff] %vm4422, %v5034
      %5055 = vst.msk [vmem:[#allocation5 + $0x60] sm:$0xff] %vm4422, %v5035
      %5056 = vst.msk [vmem:[#allocation5 + $0x68] sm:$0xff] %vm4422, %v5036
      %5057 = vst.msk [vmem:[#allocation5 + $0x70] sm:$0xff] %vm4422, %v5037
      %5058 = vst.msk [vmem:[#allocation5 + $0x78] sm:$0xff] %vm4422, %v5038
      %5059 = vst.msk [vmem:[#allocation5 + $0x80] sm:$0xff] %vm4422, %v5039
      %5060 = vst.msk [vmem:[#allocation5 + $0x88] sm:$0xff] %vm4422, %v5040
      %5061 = vst.msk [vmem:[#allocation5 + $0x90] sm:$0xff] %vm4422, %v5041
      %5062 = vst.msk [vmem:[#allocation5 + $0x98] sm:$0xff] %vm4422, %v5042
      %v5063 = vld [vmem:[#allocation3 + $0x2] sm:$0xff]
      %v5064 = vld [vmem:[#allocation3 + $0xa] sm:$0xff]
      %v5065 = vld [vmem:[#allocation3 + $0x1a] sm:$0xff]
      %v5066 = vld [vmem:[#allocation3 + $0x22] sm:$0xff]
      %v5067 = vld [vmem:[#allocation3 + $0x32] sm:$0xff]
      %v5068 = vld [vmem:[#allocation3 + $0x3a] sm:$0xff]
      %v5069 = vld [vmem:[#allocation3 + $0x4a] sm:$0xff]
      %v5070 = vld [vmem:[#allocation3 + $0x52] sm:$0xff]
      %v5071 = vld [vmem:[#allocation3 + $0x62] sm:$0xff]
      %v5072 = vld [vmem:[#allocation3 + $0x6a] sm:$0xff]
      %v5073 = vld [vmem:[#allocation3 + $0x7a] sm:$0xff]
      %v5074 = vld [vmem:[#allocation3 + $0x82] sm:$0xff]
      %v5075 = vld [vmem:[#allocation3 + $0x92] sm:$0xff]
      %v5076 = vld [vmem:[#allocation3 + $0x9a] sm:$0xff]
      %v5077 = vld [vmem:[#allocation3 + $0xaa] sm:$0xff]
      %v5078 = vld [vmem:[#allocation3 + $0xb2] sm:$0xff]
      %v5079 = vld [vmem:[#allocation3 + $0xc2] sm:$0xff]
      %v5080 = vld [vmem:[#allocation3 + $0xca] sm:$0xff]
      %v5081 = vld [vmem:[#allocation3 + $0xda] sm:$0xff]
      %v5082 = vld [vmem:[#allocation3 + $0xe2] sm:$0xff]
      %v5083 = vld [vmem:[#allocation5] sm:$0xff]
      %v5084 = vld [vmem:[#allocation5 + $0x8] sm:$0xff]
      %v5085 = vld [vmem:[#allocation5 + $0x10] sm:$0xff]
      %v5086 = vld [vmem:[#allocation5 + $0x18] sm:$0xff]
      %v5087 = vld [vmem:[#allocation5 + $0x20] sm:$0xff]
      %v5088 = vld [vmem:[#allocation5 + $0x28] sm:$0xff]
      %v5089 = vld [vmem:[#allocation5 + $0x30] sm:$0xff]
      %v5090 = vld [vmem:[#allocation5 + $0x38] sm:$0xff]
      %v5091 = vld [vmem:[#allocation5 + $0x40] sm:$0xff]
      %v5092 = vld [vmem:[#allocation5 + $0x48] sm:$0xff]
      %v5093 = vld [vmem:[#allocation5 + $0x50] sm:$0xff]
      %v5094 = vld [vmem:[#allocation5 + $0x58] sm:$0xff]
      %v5095 = vld [vmem:[#allocation5 + $0x60] sm:$0xff]
      %v5096 = vld [vmem:[#allocation5 + $0x68] sm:$0xff]
      %v5097 = vld [vmem:[#allocation5 + $0x70] sm:$0xff]
      %v5098 = vld [vmem:[#allocation5 + $0x78] sm:$0xff]
      %v5099 = vld [vmem:[#allocation5 + $0x80] sm:$0xff]
      %v5100 = vld [vmem:[#allocation5 + $0x88] sm:$0xff]
      %v5101 = vld [vmem:[#allocation5 + $0x90] sm:$0xff]
      %v5102 = vld [vmem:[#allocation5 + $0x98] sm:$0xff]
      %s5103 = scalar_lea.vmem %s9, 4
      %v5104 = vld [vmem:[%s5103] sm:$0x3]
      %v5106 = vsel %vm4375, %v5063, 0
      %v5109 = vsel %vm4375, %v5064, 0
      %v5112 = vsel %vm4375, %v5065, 0
      %v5115 = vsel %vm4375, %v5066, 0
      %v5118 = vsel %vm4375, %v5067, 0
      %v5121 = vsel %vm4375, %v5068, 0
      %v5124 = vsel %vm4375, %v5069, 0
      %v5127 = vsel %vm4375, %v5070, 0
      %v5130 = vsel %vm4375, %v5071, 0
      %v5133 = vsel %vm4375, %v5072, 0
      %v5136 = vsel %vm4375, %v5073, 0
      %v5139 = vsel %vm4375, %v5074, 0
      %v5142 = vsel %vm4375, %v5075, 0
      %v5145 = vsel %vm4375, %v5076, 0
      %v5148 = vsel %vm4375, %v5077, 0
      %v5151 = vsel %vm4375, %v5078, 0
      %v5154 = vsel %vm4375, %v5079, 0
      %v5157 = vsel %vm4375, %v5080, 0
      %v5160 = vsel %vm4375, %v5081, 0
      %v5163 = vsel %vm4375, %v5082, 0
      %v5166 = vsel %vm4544, %v5104, 0
      %5168 = vmatprep.subr.mxu0 0.0
      %5169 = vmatpush1.msra.mxu0 0.0
      %5170 = vmatprep.subr.mxu0 0.0
      %5171 = vmatpush1.msra.mxu0 0.0
      %5172 = vmatprep.subr.mxu0 0.0
      %5173 = vmatpush1.msra.mxu0 0.0
      %5174 = vmatprep.subr.mxu0 0.0
      %5175 = vmatpush1.msra.mxu0 0.0
      %5176 = vmatprep.subr.mxu0 0.0
      %5177 = vmatpush1.msra.mxu0 0.0
      %5178 = vmatprep.subr.mxu0 0.0
      %5179 = vmatpush1.msra.mxu0 0.0
      %5180 = vmatprep.subr.mxu0 0.0
      %5181 = vmatpush1.msra.mxu0 0.0
      %5182 = vmatprep.subr.mxu0 0.0
      %5183 = vmatpush1.msra.mxu0 0.0
      %5184 = vmatprep.subr.mxu0 0.0
      %5185 = vmatpush1.msra.mxu0 0.0
      %5186 = vmatprep.subr.mxu0 0.0
      %5187 = vmatpush1.msra.mxu0 0.0
      %5188 = vmatprep.subr.mxu0 0.0
      %5189 = vmatpush1.msra.mxu0 0.0
      %5190 = vmatprep.subr.mxu0 0.0
      %5191 = vmatpush1.msra.mxu0 0.0
      %5192 = vmatprep.subr.mxu0 0.0
      %5193 = vmatpush1.msra.mxu0 0.0
      %5194 = vmatprep.subr.mxu0 0.0
      %5195 = vmatpush1.msra.mxu0 0.0
      %5196 = vmatprep.subr.mxu0 0.0
      %5197 = vmatpush1.msra.mxu0 0.0
      %5198 = vmatprep.subr.mxu0 0.0
      %5199 = vmatpush1.msra.mxu0 %v5166
      %5200 = vmatprep.subr.mxu0 0.0
      %5201 = vmatpush2.msra.mxu0 0.0
      %5202 = vmatprep.subr.mxu0 0.0
      %5203 = vmatpush2.msra.mxu0 0.0
      %5204 = vmatprep.subr.mxu0 0.0
      %5205 = vmatpush2.msra.mxu0 0.0
      %5206 = vmatprep.subr.mxu0 0.0
      %5207 = vmatpush2.msra.mxu0 0.0
      %5208 = vmatprep.subr.mxu0 0.0
      %5209 = vmatpush2.msra.mxu0 0.0
      %5210 = vmatprep.subr.mxu0 0.0
      %5211 = vmatpush2.msra.mxu0 0.0
      %5212 = vmatprep.subr.mxu0 0.0
      %5213 = vmatpush2.msra.mxu0 0.0
      %5214 = vmatprep.subr.mxu0 0.0
      %5215 = vmatpush2.msra.mxu0 0.0
      %5216 = vmatprep.subr.mxu0 0.0
      %5217 = vmatpush2.msra.mxu0 0.0
      %5218 = vmatprep.subr.mxu0 0.0
      %5219 = vmatpush2.msra.mxu0 0.0
      %5220 = vmatprep.subr.mxu0 0.0
      %5221 = vmatpush2.msra.mxu0 0.0
      %5222 = vmatprep.subr.mxu0 0.0
      %5223 = vmatpush2.msra.mxu0 0.0
      %5224 = vmatprep.subr.mxu0 0.0
      %5225 = vmatpush2.msra.mxu0 0.0
      %5226 = vmatprep.subr.mxu0 0.0
      %5227 = vmatpush2.msra.mxu0 0.0
      %5228 = vmatprep.subr.mxu0 0.0
      %5229 = vmatpush2.msra.mxu0 0.0
      %5230 = vmatprep.subr.mxu0 0.0
      %5231 = vmatpush2.msra.mxu0 0.0
      %5232 = vmatprep.mubr.f32.mxu0 0.0
      %5233 = vmatmul.mubr.f32.gmra.mxu0 %v5106
      %v5234 = vpop.f32.mrf.mxu0
      %v5235 = vadd.f32 0.0, %v5234
      %v5236 = vpop.f32.mrf.mxu0
      %5237 = vmatprep.mubr.f32.mxu0 0.0
      %5238 = vmatmul.mubr.f32.gmra.mxu0 %v5109
      %v5239 = vpop.f32.mrf.mxu0
      %v5240 = vadd.f32 0.0, %v5239
      %v5241 = vpop.f32.mrf.mxu0
      %5242 = vmatprep.mubr.f32.mxu0 0.0
      %5243 = vmatmul.mubr.f32.gmra.mxu0 %v5112
      %v5244 = vpop.f32.mrf.mxu0
      %v5245 = vadd.f32 0.0, %v5244
      %v5246 = vpop.f32.mrf.mxu0
      %5247 = vmatprep.mubr.f32.mxu0 0.0
      %5248 = vmatmul.mubr.f32.gmra.mxu0 %v5115
      %v5249 = vpop.f32.mrf.mxu0
      %v5250 = vadd.f32 0.0, %v5249
      %v5251 = vpop.f32.mrf.mxu0
      %5252 = vmatprep.mubr.f32.mxu0 0.0
      %5253 = vmatmul.mubr.f32.gmra.mxu0 %v5118
      %v5254 = vpop.f32.mrf.mxu0
      %v5255 = vadd.f32 0.0, %v5254
      %v5256 = vpop.f32.mrf.mxu0
      %5257 = vmatprep.mubr.f32.mxu0 0.0
      %5258 = vmatmul.mubr.f32.gmra.mxu0 %v5121
      %v5259 = vpop.f32.mrf.mxu0
      %v5260 = vadd.f32 0.0, %v5259
      %v5261 = vpop.f32.mrf.mxu0
      %5262 = vmatprep.mubr.f32.mxu0 0.0
      %5263 = vmatmul.mubr.f32.gmra.mxu0 %v5124
      %v5264 = vpop.f32.mrf.mxu0
      %v5265 = vadd.f32 0.0, %v5264
      %v5266 = vpop.f32.mrf.mxu0
      %5267 = vmatprep.mubr.f32.mxu0 0.0
      %5268 = vmatmul.mubr.f32.gmra.mxu0 %v5127
      %v5269 = vpop.f32.mrf.mxu0
      %v5270 = vadd.f32 0.0, %v5269
      %v5271 = vpop.f32.mrf.mxu0
      %5272 = vmatprep.mubr.f32.mxu0 0.0
      %5273 = vmatmul.mubr.f32.gmra.mxu0 %v5130
      %v5274 = vpop.f32.mrf.mxu0
      %v5275 = vadd.f32 0.0, %v5274
      %v5276 = vpop.f32.mrf.mxu0
      %5277 = vmatprep.mubr.f32.mxu0 0.0
      %5278 = vmatmul.mubr.f32.gmra.mxu0 %v5133
      %v5279 = vpop.f32.mrf.mxu0
      %v5280 = vadd.f32 0.0, %v5279
      %v5281 = vpop.f32.mrf.mxu0
      %5282 = vmatprep.mubr.f32.mxu0 0.0
      %5283 = vmatmul.mubr.f32.gmra.mxu0 %v5136
      %v5284 = vpop.f32.mrf.mxu0
      %v5285 = vadd.f32 0.0, %v5284
      %v5286 = vpop.f32.mrf.mxu0
      %5287 = vmatprep.mubr.f32.mxu0 0.0
      %5288 = vmatmul.mubr.f32.gmra.mxu0 %v5139
      %v5289 = vpop.f32.mrf.mxu0
      %v5290 = vadd.f32 0.0, %v5289
      %v5291 = vpop.f32.mrf.mxu0
      %5292 = vmatprep.mubr.f32.mxu0 0.0
      %5293 = vmatmul.mubr.f32.gmra.mxu0 %v5142
      %v5294 = vpop.f32.mrf.mxu0
      %v5295 = vadd.f32 0.0, %v5294
      %v5296 = vpop.f32.mrf.mxu0
      %5297 = vmatprep.mubr.f32.mxu0 0.0
      %5298 = vmatmul.mubr.f32.gmra.mxu0 %v5145
      %v5299 = vpop.f32.mrf.mxu0
      %v5300 = vadd.f32 0.0, %v5299
      %v5301 = vpop.f32.mrf.mxu0
      %5302 = vmatprep.mubr.f32.mxu0 0.0
      %5303 = vmatmul.mubr.f32.gmra.mxu0 %v5148
      %v5304 = vpop.f32.mrf.mxu0
      %v5305 = vadd.f32 0.0, %v5304
      %v5306 = vpop.f32.mrf.mxu0
      %5307 = vmatprep.mubr.f32.mxu0 0.0
      %5308 = vmatmul.mubr.f32.gmra.mxu0 %v5151
      %v5309 = vpop.f32.mrf.mxu0
      %v5310 = vadd.f32 0.0, %v5309
      %v5311 = vpop.f32.mrf.mxu0
      %5312 = vmatprep.mubr.f32.mxu0 0.0
      %5313 = vmatmul.mubr.f32.gmra.mxu0 %v5154
      %v5314 = vpop.f32.mrf.mxu0
      %v5315 = vadd.f32 0.0, %v5314
      %v5316 = vpop.f32.mrf.mxu0
      %5317 = vmatprep.mubr.f32.mxu0 0.0
      %5318 = vmatmul.mubr.f32.gmra.mxu0 %v5157
      %v5319 = vpop.f32.mrf.mxu0
      %v5320 = vadd.f32 0.0, %v5319
      %v5321 = vpop.f32.mrf.mxu0
      %5322 = vmatprep.mubr.f32.mxu0 0.0
      %5323 = vmatmul.mubr.f32.gmra.mxu0 %v5160
      %v5324 = vpop.f32.mrf.mxu0
      %v5325 = vadd.f32 0.0, %v5324
      %v5326 = vpop.f32.mrf.mxu0
      %5327 = vmatprep.mubr.f32.mxu0 0.0
      %5328 = vmatmul.mubr.f32.gmra.mxu0 %v5163
      %v5329 = vpop.f32.mrf.mxu0
      %v5330 = vadd.f32 0.0, %v5329
      %v5331 = vpop.f32.mrf.mxu0
      %5332 = vdwg.mxu0
      %v5333 = vadd.f32 %v5083, %v5235
      %v5334 = vadd.f32 %v5084, %v5240
      %v5335 = vadd.f32 %v5085, %v5245
      %v5336 = vadd.f32 %v5086, %v5250
      %v5337 = vadd.f32 %v5087, %v5255
      %v5338 = vadd.f32 %v5088, %v5260
      %v5339 = vadd.f32 %v5089, %v5265
      %v5340 = vadd.f32 %v5090, %v5270
      %v5341 = vadd.f32 %v5091, %v5275
      %v5342 = vadd.f32 %v5092, %v5280
      %v5343 = vadd.f32 %v5093, %v5285
      %v5344 = vadd.f32 %v5094, %v5290
      %v5345 = vadd.f32 %v5095, %v5295
      %v5346 = vadd.f32 %v5096, %v5300
      %v5347 = vadd.f32 %v5097, %v5305
      %v5348 = vadd.f32 %v5098, %v5310
      %v5349 = vadd.f32 %v5099, %v5315
      %v5350 = vadd.f32 %v5100, %v5320
      %v5351 = vadd.f32 %v5101, %v5325
      %v5352 = vadd.f32 %v5102, %v5330
      %5353 = vst.msk [vmem:[#allocation5] sm:$0xff] %vm4422, %v5333
      %5354 = vst.msk [vmem:[#allocation5 + $0x8] sm:$0xff] %vm4422, %v5334
      %5355 = vst.msk [vmem:[#allocation5 + $0x10] sm:$0xff] %vm4422, %v5335
      %5356 = vst.msk [vmem:[#allocation5 + $0x18] sm:$0xff] %vm4422, %v5336
      %5357 = vst.msk [vmem:[#allocation5 + $0x20] sm:$0xff] %vm4422, %v5337
      %5358 = vst.msk [vmem:[#allocation5 + $0x28] sm:$0xff] %vm4422, %v5338
      %5359 = vst.msk [vmem:[#allocation5 + $0x30] sm:$0xff] %vm4422, %v5339
      %5360 = vst.msk [vmem:[#allocation5 + $0x38] sm:$0xff] %vm4422, %v5340
      %5361 = vst.msk [vmem:[#allocation5 + $0x40] sm:$0xff] %vm4422, %v5341
      %5362 = vst.msk [vmem:[#allocation5 + $0x48] sm:$0xff] %vm4422, %v5342
      %5363 = vst.msk [vmem:[#allocation5 + $0x50] sm:$0xff] %vm4422, %v5343
      %5364 = vst.msk [vmem:[#allocation5 + $0x58] sm:$0xff] %vm4422, %v5344
      %5365 = vst.msk [vmem:[#allocation5 + $0x60] sm:$0xff] %vm4422, %v5345
      %5366 = vst.msk [vmem:[#allocation5 + $0x68] sm:$0xff] %vm4422, %v5346
      %5367 = vst.msk [vmem:[#allocation5 + $0x70] sm:$0xff] %vm4422, %v5347
      %5368 = vst.msk [vmem:[#allocation5 + $0x78] sm:$0xff] %vm4422, %v5348
      %5369 = vst.msk [vmem:[#allocation5 + $0x80] sm:$0xff] %vm4422, %v5349
      %5370 = vst.msk [vmem:[#allocation5 + $0x88] sm:$0xff] %vm4422, %v5350
      %5371 = vst.msk [vmem:[#allocation5 + $0x90] sm:$0xff] %vm4422, %v5351
      %5372 = vst.msk [vmem:[#allocation5 + $0x98] sm:$0xff] %vm4422, %v5352
      %s5373 = scalar_lea.vmem [#allocation3], 24
      %v5374 = vld [vmem:[%s5373] sm:$0xff]
      %v5375 = vld [vmem:[%s5373 + $0x8] sm:$0xff]
      %v5376 = vld [vmem:[%s5373 + $0x18] sm:$0xff]
      %v5377 = vld [vmem:[%s5373 + $0x20] sm:$0xff]
      %v5378 = vld [vmem:[%s5373 + $0x30] sm:$0xff]
      %v5379 = vld [vmem:[%s5373 + $0x38] sm:$0xff]
      %v5380 = vld [vmem:[%s5373 + $0x48] sm:$0xff]
      %v5381 = vld [vmem:[%s5373 + $0x50] sm:$0xff]
      %v5382 = vld [vmem:[%s5373 + $0x60] sm:$0xff]
      %v5383 = vld [vmem:[%s5373 + $0x68] sm:$0xff]
      %v5384 = vld [vmem:[%s5373 + $0x78] sm:$0xff]
      %v5385 = vld [vmem:[%s5373 + $0x80] sm:$0xff]
      %v5386 = vld [vmem:[%s5373 + $0x90] sm:$0xff]
      %v5387 = vld [vmem:[%s5373 + $0x98] sm:$0xff]
      %v5388 = vld [vmem:[%s5373 + $0xa8] sm:$0xff]
      %v5389 = vld [vmem:[%s5373 + $0xb0] sm:$0xff]
      %v5390 = vld [vmem:[%s5373 + $0xc0] sm:$0xff]
      %v5391 = vld [vmem:[%s5373 + $0xc8] sm:$0xff]
      %v5392 = vld [vmem:[%s5373 + $0xd8] sm:$0xff]
      %v5393 = vld [vmem:[%s5373 + $0xe0] sm:$0xff]
      %v5394 = vld [vmem:[#allocation5] sm:$0xff]
      %v5395 = vld [vmem:[#allocation5 + $0x8] sm:$0xff]
      %v5396 = vld [vmem:[#allocation5 + $0x10] sm:$0xff]
      %v5397 = vld [vmem:[#allocation5 + $0x18] sm:$0xff]
      %v5398 = vld [vmem:[#allocation5 + $0x20] sm:$0xff]
      %v5399 = vld [vmem:[#allocation5 + $0x28] sm:$0xff]
      %v5400 = vld [vmem:[#allocation5 + $0x30] sm:$0xff]
      %v5401 = vld [vmem:[#allocation5 + $0x38] sm:$0xff]
      %v5402 = vld [vmem:[#allocation5 + $0x40] sm:$0xff]
      %v5403 = vld [vmem:[#allocation5 + $0x48] sm:$0xff]
      %v5404 = vld [vmem:[#allocation5 + $0x50] sm:$0xff]
      %v5405 = vld [vmem:[#allocation5 + $0x58] sm:$0xff]
      %v5406 = vld [vmem:[#allocation5 + $0x60] sm:$0xff]
      %v5407 = vld [vmem:[#allocation5 + $0x68] sm:$0xff]
      %v5408 = vld [vmem:[#allocation5 + $0x70] sm:$0xff]
      %v5409 = vld [vmem:[#allocation5 + $0x78] sm:$0xff]
      %v5410 = vld [vmem:[#allocation5 + $0x80] sm:$0xff]
      %v5411 = vld [vmem:[#allocation5 + $0x88] sm:$0xff]
      %v5412 = vld [vmem:[#allocation5 + $0x90] sm:$0xff]
      %v5413 = vld [vmem:[#allocation5 + $0x98] sm:$0xff]
      %s5414 = scalar_lea.vmem %s9, 6
      %v5415 = vld [vmem:[%s5414] sm:$0x3]
      %v5417 = vsel %vm4375, %v5374, 0
      %v5420 = vsel %vm4375, %v5375, 0
      %v5423 = vsel %vm4375, %v5376, 0
      %v5426 = vsel %vm4375, %v5377, 0
      %v5429 = vsel %vm4375, %v5378, 0
      %v5432 = vsel %vm4375, %v5379, 0
      %v5435 = vsel %vm4375, %v5380, 0
      %v5438 = vsel %vm4375, %v5381, 0
      %v5441 = vsel %vm4375, %v5382, 0
      %v5444 = vsel %vm4375, %v5383, 0
      %v5447 = vsel %vm4375, %v5384, 0
      %v5450 = vsel %vm4375, %v5385, 0
      %v5453 = vsel %vm4375, %v5386, 0
      %v5456 = vsel %vm4375, %v5387, 0
      %v5459 = vsel %vm4375, %v5388, 0
      %v5462 = vsel %vm4375, %v5389, 0
      %v5465 = vsel %vm4375, %v5390, 0
      %v5468 = vsel %vm4375, %v5391, 0
      %v5471 = vsel %vm4375, %v5392, 0
      %v5474 = vsel %vm4375, %v5393, 0
      %v5477 = vsel %vm4544, %v5415, 0
      %5479 = vmatprep.subr.mxu0 0.0
      %5480 = vmatpush1.msra.mxu0 0.0
      %5481 = vmatprep.subr.mxu0 0.0
      %5482 = vmatpush1.msra.mxu0 0.0
      %5483 = vmatprep.subr.mxu0 0.0
      %5484 = vmatpush1.msra.mxu0 0.0
      %5485 = vmatprep.subr.mxu0 0.0
      %5486 = vmatpush1.msra.mxu0 0.0
      %5487 = vmatprep.subr.mxu0 0.0
      %5488 = vmatpush1.msra.mxu0 0.0
      %5489 = vmatprep.subr.mxu0 0.0
      %5490 = vmatpush1.msra.mxu0 0.0
      %5491 = vmatprep.subr.mxu0 0.0
      %5492 = vmatpush1.msra.mxu0 0.0
      %5493 = vmatprep.subr.mxu0 0.0
      %5494 = vmatpush1.msra.mxu0 0.0
      %5495 = vmatprep.subr.mxu0 0.0
      %5496 = vmatpush1.msra.mxu0 0.0
      %5497 = vmatprep.subr.mxu0 0.0
      %5498 = vmatpush1.msra.mxu0 0.0
      %5499 = vmatprep.subr.mxu0 0.0
      %5500 = vmatpush1.msra.mxu0 0.0
      %5501 = vmatprep.subr.mxu0 0.0
      %5502 = vmatpush1.msra.mxu0 0.0
      %5503 = vmatprep.subr.mxu0 0.0
      %5504 = vmatpush1.msra.mxu0 0.0
      %5505 = vmatprep.subr.mxu0 0.0
      %5506 = vmatpush1.msra.mxu0 0.0
      %5507 = vmatprep.subr.mxu0 0.0
      %5508 = vmatpush1.msra.mxu0 0.0
      %5509 = vmatprep.subr.mxu0 0.0
      %5510 = vmatpush1.msra.mxu0 %v5477
      %5511 = vmatprep.subr.mxu0 0.0
      %5512 = vmatpush2.msra.mxu0 0.0
      %5513 = vmatprep.subr.mxu0 0.0
      %5514 = vmatpush2.msra.mxu0 0.0
      %5515 = vmatprep.subr.mxu0 0.0
      %5516 = vmatpush2.msra.mxu0 0.0
      %5517 = vmatprep.subr.mxu0 0.0
      %5518 = vmatpush2.msra.mxu0 0.0
      %5519 = vmatprep.subr.mxu0 0.0
      %5520 = vmatpush2.msra.mxu0 0.0
      %5521 = vmatprep.subr.mxu0 0.0
      %5522 = vmatpush2.msra.mxu0 0.0
      %5523 = vmatprep.subr.mxu0 0.0
      %5524 = vmatpush2.msra.mxu0 0.0
      %5525 = vmatprep.subr.mxu0 0.0
      %5526 = vmatpush2.msra.mxu0 0.0
      %5527 = vmatprep.subr.mxu0 0.0
      %5528 = vmatpush2.msra.mxu0 0.0
      %5529 = vmatprep.subr.mxu0 0.0
      %5530 = vmatpush2.msra.mxu0 0.0
      %5531 = vmatprep.subr.mxu0 0.0
      %5532 = vmatpush2.msra.mxu0 0.0
      %5533 = vmatprep.subr.mxu0 0.0
      %5534 = vmatpush2.msra.mxu0 0.0
      %5535 = vmatprep.subr.mxu0 0.0
      %5536 = vmatpush2.msra.mxu0 0.0
      %5537 = vmatprep.subr.mxu0 0.0
      %5538 = vmatpush2.msra.mxu0 0.0
      %5539 = vmatprep.subr.mxu0 0.0
      %5540 = vmatpush2.msra.mxu0 0.0
      %5541 = vmatprep.subr.mxu0 0.0
      %5542 = vmatpush2.msra.mxu0 0.0
      %5543 = vmatprep.mubr.f32.mxu0 0.0
      %5544 = vmatmul.mubr.f32.gmra.mxu0 %v5417
      %v5545 = vpop.f32.mrf.mxu0
      %v5546 = vadd.f32 0.0, %v5545
      %v5547 = vpop.f32.mrf.mxu0
      %5548 = vmatprep.mubr.f32.mxu0 0.0
      %5549 = vmatmul.mubr.f32.gmra.mxu0 %v5420
      %v5550 = vpop.f32.mrf.mxu0
      %v5551 = vadd.f32 0.0, %v5550
      %v5552 = vpop.f32.mrf.mxu0
      %5553 = vmatprep.mubr.f32.mxu0 0.0
      %5554 = vmatmul.mubr.f32.gmra.mxu0 %v5423
      %v5555 = vpop.f32.mrf.mxu0
      %v5556 = vadd.f32 0.0, %v5555
      %v5557 = vpop.f32.mrf.mxu0
      %5558 = vmatprep.mubr.f32.mxu0 0.0
      %5559 = vmatmul.mubr.f32.gmra.mxu0 %v5426
      %v5560 = vpop.f32.mrf.mxu0
      %v5561 = vadd.f32 0.0, %v5560
      %v5562 = vpop.f32.mrf.mxu0
      %5563 = vmatprep.mubr.f32.mxu0 0.0
      %5564 = vmatmul.mubr.f32.gmra.mxu0 %v5429
      %v5565 = vpop.f32.mrf.mxu0
      %v5566 = vadd.f32 0.0, %v5565
      %v5567 = vpop.f32.mrf.mxu0
      %5568 = vmatprep.mubr.f32.mxu0 0.0
      %5569 = vmatmul.mubr.f32.gmra.mxu0 %v5432
      %v5570 = vpop.f32.mrf.mxu0
      %v5571 = vadd.f32 0.0, %v5570
      %v5572 = vpop.f32.mrf.mxu0
      %5573 = vmatprep.mubr.f32.mxu0 0.0
      %5574 = vmatmul.mubr.f32.gmra.mxu0 %v5435
      %v5575 = vpop.f32.mrf.mxu0
      %v5576 = vadd.f32 0.0, %v5575
      %v5577 = vpop.f32.mrf.mxu0
      %5578 = vmatprep.mubr.f32.mxu0 0.0
      %5579 = vmatmul.mubr.f32.gmra.mxu0 %v5438
      %v5580 = vpop.f32.mrf.mxu0
      %v5581 = vadd.f32 0.0, %v5580
      %v5582 = vpop.f32.mrf.mxu0
      %5583 = vmatprep.mubr.f32.mxu0 0.0
      %5584 = vmatmul.mubr.f32.gmra.mxu0 %v5441
      %v5585 = vpop.f32.mrf.mxu0
      %v5586 = vadd.f32 0.0, %v5585
      %v5587 = vpop.f32.mrf.mxu0
      %5588 = vmatprep.mubr.f32.mxu0 0.0
      %5589 = vmatmul.mubr.f32.gmra.mxu0 %v5444
      %v5590 = vpop.f32.mrf.mxu0
      %v5591 = vadd.f32 0.0, %v5590
      %v5592 = vpop.f32.mrf.mxu0
      %5593 = vmatprep.mubr.f32.mxu0 0.0
      %5594 = vmatmul.mubr.f32.gmra.mxu0 %v5447
      %v5595 = vpop.f32.mrf.mxu0
      %v5596 = vadd.f32 0.0, %v5595
      %v5597 = vpop.f32.mrf.mxu0
      %5598 = vmatprep.mubr.f32.mxu0 0.0
      %5599 = vmatmul.mubr.f32.gmra.mxu0 %v5450
      %v5600 = vpop.f32.mrf.mxu0
      %v5601 = vadd.f32 0.0, %v5600
      %v5602 = vpop.f32.mrf.mxu0
      %5603 = vmatprep.mubr.f32.mxu0 0.0
      %5604 = vmatmul.mubr.f32.gmra.mxu0 %v5453
      %v5605 = vpop.f32.mrf.mxu0
      %v5606 = vadd.f32 0.0, %v5605
      %v5607 = vpop.f32.mrf.mxu0
      %5608 = vmatprep.mubr.f32.mxu0 0.0
      %5609 = vmatmul.mubr.f32.gmra.mxu0 %v5456
      %v5610 = vpop.f32.mrf.mxu0
      %v5611 = vadd.f32 0.0, %v5610
      %v5612 = vpop.f32.mrf.mxu0
      %5613 = vmatprep.mubr.f32.mxu0 0.0
      %5614 = vmatmul.mubr.f32.gmra.mxu0 %v5459
      %v5615 = vpop.f32.mrf.mxu0
      %v5616 = vadd.f32 0.0, %v5615
      %v5617 = vpop.f32.mrf.mxu0
      %5618 = vmatprep.mubr.f32.mxu0 0.0
      %5619 = vmatmul.mubr.f32.gmra.mxu0 %v5462
      %v5620 = vpop.f32.mrf.mxu0
      %v5621 = vadd.f32 0.0, %v5620
      %v5622 = vpop.f32.mrf.mxu0
      %5623 = vmatprep.mubr.f32.mxu0 0.0
      %5624 = vmatmul.mubr.f32.gmra.mxu0 %v5465
      %v5625 = vpop.f32.mrf.mxu0
      %v5626 = vadd.f32 0.0, %v5625
      %v5627 = vpop.f32.mrf.mxu0
      %5628 = vmatprep.mubr.f32.mxu0 0.0
      %5629 = vmatmul.mubr.f32.gmra.mxu0 %v5468
      %v5630 = vpop.f32.mrf.mxu0
      %v5631 = vadd.f32 0.0, %v5630
      %v5632 = vpop.f32.mrf.mxu0
      %5633 = vmatprep.mubr.f32.mxu0 0.0
      %5634 = vmatmul.mubr.f32.gmra.mxu0 %v5471
      %v5635 = vpop.f32.mrf.mxu0
      %v5636 = vadd.f32 0.0, %v5635
      %v5637 = vpop.f32.mrf.mxu0
      %5638 = vmatprep.mubr.f32.mxu0 0.0
      %5639 = vmatmul.mubr.f32.gmra.mxu0 %v5474
      %v5640 = vpop.f32.mrf.mxu0
      %v5641 = vadd.f32 0.0, %v5640
      %v5642 = vpop.f32.mrf.mxu0
      %5643 = vdwg.mxu0
      %v5644 = vadd.f32 %v5394, %v5546
      %v5645 = vadd.f32 %v5395, %v5551
      %v5646 = vadd.f32 %v5396, %v5556
      %v5647 = vadd.f32 %v5397, %v5561
      %v5648 = vadd.f32 %v5398, %v5566
      %v5649 = vadd.f32 %v5399, %v5571
      %v5650 = vadd.f32 %v5400, %v5576
      %v5651 = vadd.f32 %v5401, %v5581
      %v5652 = vadd.f32 %v5402, %v5586
      %v5653 = vadd.f32 %v5403, %v5591
      %v5654 = vadd.f32 %v5404, %v5596
      %v5655 = vadd.f32 %v5405, %v5601
      %v5656 = vadd.f32 %v5406, %v5606
      %v5657 = vadd.f32 %v5407, %v5611
      %v5658 = vadd.f32 %v5408, %v5616
      %v5659 = vadd.f32 %v5409, %v5621
      %v5660 = vadd.f32 %v5410, %v5626
      %v5661 = vadd.f32 %v5411, %v5631
      %v5662 = vadd.f32 %v5412, %v5636
      %v5663 = vadd.f32 %v5413, %v5641
      %5664 = vst.msk [vmem:[#allocation5] sm:$0xff] %vm4422, %v5644
      %5665 = vst.msk [vmem:[#allocation5 + $0x8] sm:$0xff] %vm4422, %v5645
      %5666 = vst.msk [vmem:[#allocation5 + $0x10] sm:$0xff] %vm4422, %v5646
      %5667 = vst.msk [vmem:[#allocation5 + $0x18] sm:$0xff] %vm4422, %v5647
      %5668 = vst.msk [vmem:[#allocation5 + $0x20] sm:$0xff] %vm4422, %v5648
      %5669 = vst.msk [vmem:[#allocation5 + $0x28] sm:$0xff] %vm4422, %v5649
      %5670 = vst.msk [vmem:[#allocation5 + $0x30] sm:$0xff] %vm4422, %v5650
      %5671 = vst.msk [vmem:[#allocation5 + $0x38] sm:$0xff] %vm4422, %v5651
      %5672 = vst.msk [vmem:[#allocation5 + $0x40] sm:$0xff] %vm4422, %v5652
      %5673 = vst.msk [vmem:[#allocation5 + $0x48] sm:$0xff] %vm4422, %v5653
      %5674 = vst.msk [vmem:[#allocation5 + $0x50] sm:$0xff] %vm4422, %v5654
      %5675 = vst.msk [vmem:[#allocation5 + $0x58] sm:$0xff] %vm4422, %v5655
      %5676 = vst.msk [vmem:[#allocation5 + $0x60] sm:$0xff] %vm4422, %v5656
      %5677 = vst.msk [vmem:[#allocation5 + $0x68] sm:$0xff] %vm4422, %v5657
      %5678 = vst.msk [vmem:[#allocation5 + $0x70] sm:$0xff] %vm4422, %v5658
      %5679 = vst.msk [vmem:[#allocation5 + $0x78] sm:$0xff] %vm4422, %v5659
      %5680 = vst.msk [vmem:[#allocation5 + $0x80] sm:$0xff] %vm4422, %v5660
      %5681 = vst.msk [vmem:[#allocation5 + $0x88] sm:$0xff] %vm4422, %v5661
      %5682 = vst.msk [vmem:[#allocation5 + $0x90] sm:$0xff] %vm4422, %v5662
      %5683 = vst.msk [vmem:[#allocation5 + $0x98] sm:$0xff] %vm4422, %v5663
      %v5684 = vld [vmem:[%s5373 + $0x1] sm:$0xff]
      %v5685 = vld [vmem:[%s5373 + $0x9] sm:$0xff]
      %v5686 = vld [vmem:[%s5373 + $0x19] sm:$0xff]
      %v5687 = vld [vmem:[%s5373 + $0x21] sm:$0xff]
      %v5688 = vld [vmem:[%s5373 + $0x31] sm:$0xff]
      %v5689 = vld [vmem:[%s5373 + $0x39] sm:$0xff]
      %v5690 = vld [vmem:[%s5373 + $0x49] sm:$0xff]
      %v5691 = vld [vmem:[%s5373 + $0x51] sm:$0xff]
      %v5692 = vld [vmem:[%s5373 + $0x61] sm:$0xff]
      %v5693 = vld [vmem:[%s5373 + $0x69] sm:$0xff]
      %v5694 = vld [vmem:[%s5373 + $0x79] sm:$0xff]
      %v5695 = vld [vmem:[%s5373 + $0x81] sm:$0xff]
      %v5696 = vld [vmem:[%s5373 + $0x91] sm:$0xff]
      %v5697 = vld [vmem:[%s5373 + $0x99] sm:$0xff]
      %v5698 = vld [vmem:[%s5373 + $0xa9] sm:$0xff]
      %v5699 = vld [vmem:[%s5373 + $0xb1] sm:$0xff]
      %v5700 = vld [vmem:[%s5373 + $0xc1] sm:$0xff]
      %v5701 = vld [vmem:[%s5373 + $0xc9] sm:$0xff]
      %v5702 = vld [vmem:[%s5373 + $0xd9] sm:$0xff]
      %v5703 = vld [vmem:[%s5373 + $0xe1] sm:$0xff]
      %v5704 = vld [vmem:[#allocation5] sm:$0xff]
      %v5705 = vld [vmem:[#allocation5 + $0x8] sm:$0xff]
      %v5706 = vld [vmem:[#allocation5 + $0x10] sm:$0xff]
      %v5707 = vld [vmem:[#allocation5 + $0x18] sm:$0xff]
      %v5708 = vld [vmem:[#allocation5 + $0x20] sm:$0xff]
      %v5709 = vld [vmem:[#allocation5 + $0x28] sm:$0xff]
      %v5710 = vld [vmem:[#allocation5 + $0x30] sm:$0xff]
      %v5711 = vld [vmem:[#allocation5 + $0x38] sm:$0xff]
      %v5712 = vld [vmem:[#allocation5 + $0x40] sm:$0xff]
      %v5713 = vld [vmem:[#allocation5 + $0x48] sm:$0xff]
      %v5714 = vld [vmem:[#allocation5 + $0x50] sm:$0xff]
      %v5715 = vld [vmem:[#allocation5 + $0x58] sm:$0xff]
      %v5716 = vld [vmem:[#allocation5 + $0x60] sm:$0xff]
      %v5717 = vld [vmem:[#allocation5 + $0x68] sm:$0xff]
      %v5718 = vld [vmem:[#allocation5 + $0x70] sm:$0xff]
      %v5719 = vld [vmem:[#allocation5 + $0x78] sm:$0xff]
      %v5720 = vld [vmem:[#allocation5 + $0x80] sm:$0xff]
      %v5721 = vld [vmem:[#allocation5 + $0x88] sm:$0xff]
      %v5722 = vld [vmem:[#allocation5 + $0x90] sm:$0xff]
      %v5723 = vld [vmem:[#allocation5 + $0x98] sm:$0xff]
      %s5724 = scalar_lea.vmem %s9, 8
      %v5725 = vld [vmem:[%s5724] sm:$0x3]
      %v5727 = vsel %vm4375, %v5684, 0
      %v5730 = vsel %vm4375, %v5685, 0
      %v5733 = vsel %vm4375, %v5686, 0
      %v5736 = vsel %vm4375, %v5687, 0
      %v5739 = vsel %vm4375, %v5688, 0
      %v5742 = vsel %vm4375, %v5689, 0
      %v5745 = vsel %vm4375, %v5690, 0
      %v5748 = vsel %vm4375, %v5691, 0
      %v5751 = vsel %vm4375, %v5692, 0
      %v5754 = vsel %vm4375, %v5693, 0
      %v5757 = vsel %vm4375, %v5694, 0
      %v5760 = vsel %vm4375, %v5695, 0
      %v5763 = vsel %vm4375, %v5696, 0
      %v5766 = vsel %vm4375, %v5697, 0
      %v5769 = vsel %vm4375, %v5698, 0
      %v5772 = vsel %vm4375, %v5699, 0
      %v5775 = vsel %vm4375, %v5700, 0
      %v5778 = vsel %vm4375, %v5701, 0
      %v5781 = vsel %vm4375, %v5702, 0
      %v5784 = vsel %vm4375, %v5703, 0
      %v5787 = vsel %vm4544, %v5725, 0
      %5789 = vmatprep.subr.mxu0 0.0
      %5790 = vmatpush1.msra.mxu0 0.0
      %5791 = vmatprep.subr.mxu0 0.0
      %5792 = vmatpush1.msra.mxu0 0.0
      %5793 = vmatprep.subr.mxu0 0.0
      %5794 = vmatpush1.msra.mxu0 0.0
      %5795 = vmatprep.subr.mxu0 0.0
      %5796 = vmatpush1.msra.mxu0 0.0
      %5797 = vmatprep.subr.mxu0 0.0
      %5798 = vmatpush1.msra.mxu0 0.0
      %5799 = vmatprep.subr.mxu0 0.0
      %5800 = vmatpush1.msra.mxu0 0.0
      %5801 = vmatprep.subr.mxu0 0.0
      %5802 = vmatpush1.msra.mxu0 0.0
      %5803 = vmatprep.subr.mxu0 0.0
      %5804 = vmatpush1.msra.mxu0 0.0
      %5805 = vmatprep.subr.mxu0 0.0
      %5806 = vmatpush1.msra.mxu0 0.0
      %5807 = vmatprep.subr.mxu0 0.0
      %5808 = vmatpush1.msra.mxu0 0.0
      %5809 = vmatprep.subr.mxu0 0.0
      %5810 = vmatpush1.msra.mxu0 0.0
      %5811 = vmatprep.subr.mxu0 0.0
      %5812 = vmatpush1.msra.mxu0 0.0
      %5813 = vmatprep.subr.mxu0 0.0
      %5814 = vmatpush1.msra.mxu0 0.0
      %5815 = vmatprep.subr.mxu0 0.0
      %5816 = vmatpush1.msra.mxu0 0.0
      %5817 = vmatprep.subr.mxu0 0.0
      %5818 = vmatpush1.msra.mxu0 0.0
      %5819 = vmatprep.subr.mxu0 0.0
      %5820 = vmatpush1.msra.mxu0 %v5787
      %5821 = vmatprep.subr.mxu0 0.0
      %5822 = vmatpush2.msra.mxu0 0.0
      %5823 = vmatprep.subr.mxu0 0.0
      %5824 = vmatpush2.msra.mxu0 0.0
      %5825 = vmatprep.subr.mxu0 0.0
      %5826 = vmatpush2.msra.mxu0 0.0
      %5827 = vmatprep.subr.mxu0 0.0
      %5828 = vmatpush2.msra.mxu0 0.0
      %5829 = vmatprep.subr.mxu0 0.0
      %5830 = vmatpush2.msra.mxu0 0.0
      %5831 = vmatprep.subr.mxu0 0.0
      %5832 = vmatpush2.msra.mxu0 0.0
      %5833 = vmatprep.subr.mxu0 0.0
      %5834 = vmatpush2.msra.mxu0 0.0
      %5835 = vmatprep.subr.mxu0 0.0
      %5836 = vmatpush2.msra.mxu0 0.0
      %5837 = vmatprep.subr.mxu0 0.0
      %5838 = vmatpush2.msra.mxu0 0.0
      %5839 = vmatprep.subr.mxu0 0.0
      %5840 = vmatpush2.msra.mxu0 0.0
      %5841 = vmatprep.subr.mxu0 0.0
      %5842 = vmatpush2.msra.mxu0 0.0
      %5843 = vmatprep.subr.mxu0 0.0
      %5844 = vmatpush2.msra.mxu0 0.0
      %5845 = vmatprep.subr.mxu0 0.0
      %5846 = vmatpush2.msra.mxu0 0.0
      %5847 = vmatprep.subr.mxu0 0.0
      %5848 = vmatpush2.msra.mxu0 0.0
      %5849 = vmatprep.subr.mxu0 0.0
      %5850 = vmatpush2.msra.mxu0 0.0
      %5851 = vmatprep.subr.mxu0 0.0
      %5852 = vmatpush2.msra.mxu0 0.0
      %5853 = vmatprep.mubr.f32.mxu0 0.0
      %5854 = vmatmul.mubr.f32.gmra.mxu0 %v5727
      %v5855 = vpop.f32.mrf.mxu0
      %v5856 = vadd.f32 0.0, %v5855
      %v5857 = vpop.f32.mrf.mxu0
      %5858 = vmatprep.mubr.f32.mxu0 0.0
      %5859 = vmatmul.mubr.f32.gmra.mxu0 %v5730
      %v5860 = vpop.f32.mrf.mxu0
      %v5861 = vadd.f32 0.0, %v5860
      %v5862 = vpop.f32.mrf.mxu0
      %5863 = vmatprep.mubr.f32.mxu0 0.0
      %5864 = vmatmul.mubr.f32.gmra.mxu0 %v5733
      %v5865 = vpop.f32.mrf.mxu0
      %v5866 = vadd.f32 0.0, %v5865
      %v5867 = vpop.f32.mrf.mxu0
      %5868 = vmatprep.mubr.f32.mxu0 0.0
      %5869 = vmatmul.mubr.f32.gmra.mxu0 %v5736
      %v5870 = vpop.f32.mrf.mxu0
      %v5871 = vadd.f32 0.0, %v5870
      %v5872 = vpop.f32.mrf.mxu0
      %5873 = vmatprep.mubr.f32.mxu0 0.0
      %5874 = vmatmul.mubr.f32.gmra.mxu0 %v5739
      %v5875 = vpop.f32.mrf.mxu0
      %v5876 = vadd.f32 0.0, %v5875
      %v5877 = vpop.f32.mrf.mxu0
      %5878 = vmatprep.mubr.f32.mxu0 0.0
      %5879 = vmatmul.mubr.f32.gmra.mxu0 %v5742
      %v5880 = vpop.f32.mrf.mxu0
      %v5881 = vadd.f32 0.0, %v5880
      %v5882 = vpop.f32.mrf.mxu0
      %5883 = vmatprep.mubr.f32.mxu0 0.0
      %5884 = vmatmul.mubr.f32.gmra.mxu0 %v5745
      %v5885 = vpop.f32.mrf.mxu0
      %v5886 = vadd.f32 0.0, %v5885
      %v5887 = vpop.f32.mrf.mxu0
      %5888 = vmatprep.mubr.f32.mxu0 0.0
      %5889 = vmatmul.mubr.f32.gmra.mxu0 %v5748
      %v5890 = vpop.f32.mrf.mxu0
      %v5891 = vadd.f32 0.0, %v5890
      %v5892 = vpop.f32.mrf.mxu0
      %5893 = vmatprep.mubr.f32.mxu0 0.0
      %5894 = vmatmul.mubr.f32.gmra.mxu0 %v5751
      %v5895 = vpop.f32.mrf.mxu0
      %v5896 = vadd.f32 0.0, %v5895
      %v5897 = vpop.f32.mrf.mxu0
      %5898 = vmatprep.mubr.f32.mxu0 0.0
      %5899 = vmatmul.mubr.f32.gmra.mxu0 %v5754
      %v5900 = vpop.f32.mrf.mxu0
      %v5901 = vadd.f32 0.0, %v5900
      %v5902 = vpop.f32.mrf.mxu0
      %5903 = vmatprep.mubr.f32.mxu0 0.0
      %5904 = vmatmul.mubr.f32.gmra.mxu0 %v5757
      %v5905 = vpop.f32.mrf.mxu0
      %v5906 = vadd.f32 0.0, %v5905
      %v5907 = vpop.f32.mrf.mxu0
      %5908 = vmatprep.mubr.f32.mxu0 0.0
      %5909 = vmatmul.mubr.f32.gmra.mxu0 %v5760
      %v5910 = vpop.f32.mrf.mxu0
      %v5911 = vadd.f32 0.0, %v5910
      %v5912 = vpop.f32.mrf.mxu0
      %5913 = vmatprep.mubr.f32.mxu0 0.0
      %5914 = vmatmul.mubr.f32.gmra.mxu0 %v5763
      %v5915 = vpop.f32.mrf.mxu0
      %v5916 = vadd.f32 0.0, %v5915
      %v5917 = vpop.f32.mrf.mxu0
      %5918 = vmatprep.mubr.f32.mxu0 0.0
      %5919 = vmatmul.mubr.f32.gmra.mxu0 %v5766
      %v5920 = vpop.f32.mrf.mxu0
      %v5921 = vadd.f32 0.0, %v5920
      %v5922 = vpop.f32.mrf.mxu0
      %5923 = vmatprep.mubr.f32.mxu0 0.0
      %5924 = vmatmul.mubr.f32.gmra.mxu0 %v5769
      %v5925 = vpop.f32.mrf.mxu0
      %v5926 = vadd.f32 0.0, %v5925
      %v5927 = vpop.f32.mrf.mxu0
      %5928 = vmatprep.mubr.f32.mxu0 0.0
      %5929 = vmatmul.mubr.f32.gmra.mxu0 %v5772
      %v5930 = vpop.f32.mrf.mxu0
      %v5931 = vadd.f32 0.0, %v5930
      %v5932 = vpop.f32.mrf.mxu0
      %5933 = vmatprep.mubr.f32.mxu0 0.0
      %5934 = vmatmul.mubr.f32.gmra.mxu0 %v5775
      %v5935 = vpop.f32.mrf.mxu0
      %v5936 = vadd.f32 0.0, %v5935
      %v5937 = vpop.f32.mrf.mxu0
      %5938 = vmatprep.mubr.f32.mxu0 0.0
      %5939 = vmatmul.mubr.f32.gmra.mxu0 %v5778
      %v5940 = vpop.f32.mrf.mxu0
      %v5941 = vadd.f32 0.0, %v5940
      %v5942 = vpop.f32.mrf.mxu0
      %5943 = vmatprep.mubr.f32.mxu0 0.0
      %5944 = vmatmul.mubr.f32.gmra.mxu0 %v5781
      %v5945 = vpop.f32.mrf.mxu0
      %v5946 = vadd.f32 0.0, %v5945
      %v5947 = vpop.f32.mrf.mxu0
      %5948 = vmatprep.mubr.f32.mxu0 0.0
      %5949 = vmatmul.mubr.f32.gmra.mxu0 %v5784
      %v5950 = vpop.f32.mrf.mxu0
      %v5951 = vadd.f32 0.0, %v5950
      %v5952 = vpop.f32.mrf.mxu0
      %5953 = vdwg.mxu0
      %v5954 = vadd.f32 %v5704, %v5856
      %v5955 = vadd.f32 %v5705, %v5861
      %v5956 = vadd.f32 %v5706, %v5866
      %v5957 = vadd.f32 %v5707, %v5871
      %v5958 = vadd.f32 %v5708, %v5876
      %v5959 = vadd.f32 %v5709, %v5881
      %v5960 = vadd.f32 %v5710, %v5886
      %v5961 = vadd.f32 %v5711, %v5891
      %v5962 = vadd.f32 %v5712, %v5896
      %v5963 = vadd.f32 %v5713, %v5901
      %v5964 = vadd.f32 %v5714, %v5906
      %v5965 = vadd.f32 %v5715, %v5911
      %v5966 = vadd.f32 %v5716, %v5916
      %v5967 = vadd.f32 %v5717, %v5921
      %v5968 = vadd.f32 %v5718, %v5926
      %v5969 = vadd.f32 %v5719, %v5931
      %v5970 = vadd.f32 %v5720, %v5936
      %v5971 = vadd.f32 %v5721, %v5941
      %v5972 = vadd.f32 %v5722, %v5946
      %v5973 = vadd.f32 %v5723, %v5951
      %5974 = vst.msk [vmem:[#allocation5] sm:$0xff] %vm4422, %v5954
      %5975 = vst.msk [vmem:[#allocation5 + $0x8] sm:$0xff] %vm4422, %v5955
      %5976 = vst.msk [vmem:[#allocation5 + $0x10] sm:$0xff] %vm4422, %v5956
      %5977 = vst.msk [vmem:[#allocation5 + $0x18] sm:$0xff] %vm4422, %v5957
      %5978 = vst.msk [vmem:[#allocation5 + $0x20] sm:$0xff] %vm4422, %v5958
      %5979 = vst.msk [vmem:[#allocation5 + $0x28] sm:$0xff] %vm4422, %v5959
      %5980 = vst.msk [vmem:[#allocation5 + $0x30] sm:$0xff] %vm4422, %v5960
      %5981 = vst.msk [vmem:[#allocation5 + $0x38] sm:$0xff] %vm4422, %v5961
      %5982 = vst.msk [vmem:[#allocation5 + $0x40] sm:$0xff] %vm4422, %v5962
      %5983 = vst.msk [vmem:[#allocation5 + $0x48] sm:$0xff] %vm4422, %v5963
      %5984 = vst.msk [vmem:[#allocation5 + $0x50] sm:$0xff] %vm4422, %v5964
      %5985 = vst.msk [vmem:[#allocation5 + $0x58] sm:$0xff] %vm4422, %v5965
      %5986 = vst.msk [vmem:[#allocation5 + $0x60] sm:$0xff] %vm4422, %v5966
      %5987 = vst.msk [vmem:[#allocation5 + $0x68] sm:$0xff] %vm4422, %v5967
      %5988 = vst.msk [vmem:[#allocation5 + $0x70] sm:$0xff] %vm4422, %v5968
      %5989 = vst.msk [vmem:[#allocation5 + $0x78] sm:$0xff] %vm4422, %v5969
      %5990 = vst.msk [vmem:[#allocation5 + $0x80] sm:$0xff] %vm4422, %v5970
      %5991 = vst.msk [vmem:[#allocation5 + $0x88] sm:$0xff] %vm4422, %v5971
      %5992 = vst.msk [vmem:[#allocation5 + $0x90] sm:$0xff] %vm4422, %v5972
      %5993 = vst.msk [vmem:[#allocation5 + $0x98] sm:$0xff] %vm4422, %v5973
      %v5994 = vld [vmem:[%s5373 + $0x2] sm:$0xff]
      %v5995 = vld [vmem:[%s5373 + $0xa] sm:$0xff]
      %v5996 = vld [vmem:[%s5373 + $0x1a] sm:$0xff]
      %v5997 = vld [vmem:[%s5373 + $0x22] sm:$0xff]
      %v5998 = vld [vmem:[%s5373 + $0x32] sm:$0xff]
      %v5999 = vld [vmem:[%s5373 + $0x3a] sm:$0xff]
      %v6000 = vld [vmem:[%s5373 + $0x4a] sm:$0xff]
      %v6001 = vld [vmem:[%s5373 + $0x52] sm:$0xff]
      %v6002 = vld [vmem:[%s5373 + $0x62] sm:$0xff]
      %v6003 = vld [vmem:[%s5373 + $0x6a] sm:$0xff]
      %v6004 = vld [vmem:[%s5373 + $0x7a] sm:$0xff]
      %v6005 = vld [vmem:[%s5373 + $0x82] sm:$0xff]
      %v6006 = vld [vmem:[%s5373 + $0x92] sm:$0xff]
      %v6007 = vld [vmem:[%s5373 + $0x9a] sm:$0xff]
      %v6008 = vld [vmem:[%s5373 + $0xaa] sm:$0xff]
      %v6009 = vld [vmem:[%s5373 + $0xb2] sm:$0xff]
      %v6010 = vld [vmem:[%s5373 + $0xc2] sm:$0xff]
      %v6011 = vld [vmem:[%s5373 + $0xca] sm:$0xff]
      %v6012 = vld [vmem:[%s5373 + $0xda] sm:$0xff]
      %v6013 = vld [vmem:[%s5373 + $0xe2] sm:$0xff]
      %v6014 = vld [vmem:[#allocation5] sm:$0xff]
      %v6015 = vld [vmem:[#allocation5 + $0x8] sm:$0xff]
      %v6016 = vld [vmem:[#allocation5 + $0x10] sm:$0xff]
      %v6017 = vld [vmem:[#allocation5 + $0x18] sm:$0xff]
      %v6018 = vld [vmem:[#allocation5 + $0x20] sm:$0xff]
      %v6019 = vld [vmem:[#allocation5 + $0x28] sm:$0xff]
      %v6020 = vld [vmem:[#allocation5 + $0x30] sm:$0xff]
      %v6021 = vld [vmem:[#allocation5 + $0x38] sm:$0xff]
      %v6022 = vld [vmem:[#allocation5 + $0x40] sm:$0xff]
      %v6023 = vld [vmem:[#allocation5 + $0x48] sm:$0xff]
      %v6024 = vld [vmem:[#allocation5 + $0x50] sm:$0xff]
      %v6025 = vld [vmem:[#allocation5 + $0x58] sm:$0xff]
      %v6026 = vld [vmem:[#allocation5 + $0x60] sm:$0xff]
      %v6027 = vld [vmem:[#allocation5 + $0x68] sm:$0xff]
      %v6028 = vld [vmem:[#allocation5 + $0x70] sm:$0xff]
      %v6029 = vld [vmem:[#allocation5 + $0x78] sm:$0xff]
      %v6030 = vld [vmem:[#allocation5 + $0x80] sm:$0xff]
      %v6031 = vld [vmem:[#allocation5 + $0x88] sm:$0xff]
      %v6032 = vld [vmem:[#allocation5 + $0x90] sm:$0xff]
      %v6033 = vld [vmem:[#allocation5 + $0x98] sm:$0xff]
      %s6034 = scalar_lea.vmem %s9, 10
      %v6035 = vld [vmem:[%s6034] sm:$0x3]
      %v6037 = vsel %vm4375, %v5994, 0
      %v6040 = vsel %vm4375, %v5995, 0
      %v6043 = vsel %vm4375, %v5996, 0
      %v6046 = vsel %vm4375, %v5997, 0
      %v6049 = vsel %vm4375, %v5998, 0
      %v6052 = vsel %vm4375, %v5999, 0
      %v6055 = vsel %vm4375, %v6000, 0
      %v6058 = vsel %vm4375, %v6001, 0
      %v6061 = vsel %vm4375, %v6002, 0
      %v6064 = vsel %vm4375, %v6003, 0
      %v6067 = vsel %vm4375, %v6004, 0
      %v6070 = vsel %vm4375, %v6005, 0
      %v6073 = vsel %vm4375, %v6006, 0
      %v6076 = vsel %vm4375, %v6007, 0
      %v6079 = vsel %vm4375, %v6008, 0
      %v6082 = vsel %vm4375, %v6009, 0
      %v6085 = vsel %vm4375, %v6010, 0
      %v6088 = vsel %vm4375, %v6011, 0
      %v6091 = vsel %vm4375, %v6012, 0
      %v6094 = vsel %vm4375, %v6013, 0
      %v6097 = vsel %vm4544, %v6035, 0
      %6099 = vmatprep.subr.mxu0 0.0
      %6100 = vmatpush1.msra.mxu0 0.0
      %6101 = vmatprep.subr.mxu0 0.0
      %6102 = vmatpush1.msra.mxu0 0.0
      %6103 = vmatprep.subr.mxu0 0.0
      %6104 = vmatpush1.msra.mxu0 0.0
      %6105 = vmatprep.subr.mxu0 0.0
      %6106 = vmatpush1.msra.mxu0 0.0
      %6107 = vmatprep.subr.mxu0 0.0
      %6108 = vmatpush1.msra.mxu0 0.0
      %6109 = vmatprep.subr.mxu0 0.0
      %6110 = vmatpush1.msra.mxu0 0.0
      %6111 = vmatprep.subr.mxu0 0.0
      %6112 = vmatpush1.msra.mxu0 0.0
      %6113 = vmatprep.subr.mxu0 0.0
      %6114 = vmatpush1.msra.mxu0 0.0
      %6115 = vmatprep.subr.mxu0 0.0
      %6116 = vmatpush1.msra.mxu0 0.0
      %6117 = vmatprep.subr.mxu0 0.0
      %6118 = vmatpush1.msra.mxu0 0.0
      %6119 = vmatprep.subr.mxu0 0.0
      %6120 = vmatpush1.msra.mxu0 0.0
      %6121 = vmatprep.subr.mxu0 0.0
      %6122 = vmatpush1.msra.mxu0 0.0
      %6123 = vmatprep.subr.mxu0 0.0
      %6124 = vmatpush1.msra.mxu0 0.0
      %6125 = vmatprep.subr.mxu0 0.0
      %6126 = vmatpush1.msra.mxu0 0.0
      %6127 = vmatprep.subr.mxu0 0.0
      %6128 = vmatpush1.msra.mxu0 0.0
      %6129 = vmatprep.subr.mxu0 0.0
      %6130 = vmatpush1.msra.mxu0 %v6097
      %6131 = vmatprep.subr.mxu0 0.0
      %6132 = vmatpush2.msra.mxu0 0.0
      %6133 = vmatprep.subr.mxu0 0.0
      %6134 = vmatpush2.msra.mxu0 0.0
      %6135 = vmatprep.subr.mxu0 0.0
      %6136 = vmatpush2.msra.mxu0 0.0
      %6137 = vmatprep.subr.mxu0 0.0
      %6138 = vmatpush2.msra.mxu0 0.0
      %6139 = vmatprep.subr.mxu0 0.0
      %6140 = vmatpush2.msra.mxu0 0.0
      %6141 = vmatprep.subr.mxu0 0.0
      %6142 = vmatpush2.msra.mxu0 0.0
      %6143 = vmatprep.subr.mxu0 0.0
      %6144 = vmatpush2.msra.mxu0 0.0
      %6145 = vmatprep.subr.mxu0 0.0
      %6146 = vmatpush2.msra.mxu0 0.0
      %6147 = vmatprep.subr.mxu0 0.0
      %6148 = vmatpush2.msra.mxu0 0.0
      %6149 = vmatprep.subr.mxu0 0.0
      %6150 = vmatpush2.msra.mxu0 0.0
      %6151 = vmatprep.subr.mxu0 0.0
      %6152 = vmatpush2.msra.mxu0 0.0
      %6153 = vmatprep.subr.mxu0 0.0
      %6154 = vmatpush2.msra.mxu0 0.0
      %6155 = vmatprep.subr.mxu0 0.0
      %6156 = vmatpush2.msra.mxu0 0.0
      %6157 = vmatprep.subr.mxu0 0.0
      %6158 = vmatpush2.msra.mxu0 0.0
      %6159 = vmatprep.subr.mxu0 0.0
      %6160 = vmatpush2.msra.mxu0 0.0
      %6161 = vmatprep.subr.mxu0 0.0
      %6162 = vmatpush2.msra.mxu0 0.0
      %6163 = vmatprep.mubr.f32.mxu0 0.0
      %6164 = vmatmul.mubr.f32.gmra.mxu0 %v6037
      %v6165 = vpop.f32.mrf.mxu0
      %v6166 = vadd.f32 0.0, %v6165
      %v6167 = vpop.f32.mrf.mxu0
      %6168 = vmatprep.mubr.f32.mxu0 0.0
      %6169 = vmatmul.mubr.f32.gmra.mxu0 %v6040
      %v6170 = vpop.f32.mrf.mxu0
      %v6171 = vadd.f32 0.0, %v6170
      %v6172 = vpop.f32.mrf.mxu0
      %6173 = vmatprep.mubr.f32.mxu0 0.0
      %6174 = vmatmul.mubr.f32.gmra.mxu0 %v6043
      %v6175 = vpop.f32.mrf.mxu0
      %v6176 = vadd.f32 0.0, %v6175
      %v6177 = vpop.f32.mrf.mxu0
      %6178 = vmatprep.mubr.f32.mxu0 0.0
      %6179 = vmatmul.mubr.f32.gmra.mxu0 %v6046
      %v6180 = vpop.f32.mrf.mxu0
      %v6181 = vadd.f32 0.0, %v6180
      %v6182 = vpop.f32.mrf.mxu0
      %6183 = vmatprep.mubr.f32.mxu0 0.0
      %6184 = vmatmul.mubr.f32.gmra.mxu0 %v6049
      %v6185 = vpop.f32.mrf.mxu0
      %v6186 = vadd.f32 0.0, %v6185
      %v6187 = vpop.f32.mrf.mxu0
      %6188 = vmatprep.mubr.f32.mxu0 0.0
      %6189 = vmatmul.mubr.f32.gmra.mxu0 %v6052
      %v6190 = vpop.f32.mrf.mxu0
      %v6191 = vadd.f32 0.0, %v6190
      %v6192 = vpop.f32.mrf.mxu0
      %6193 = vmatprep.mubr.f32.mxu0 0.0
      %6194 = vmatmul.mubr.f32.gmra.mxu0 %v6055
      %v6195 = vpop.f32.mrf.mxu0
      %v6196 = vadd.f32 0.0, %v6195
      %v6197 = vpop.f32.mrf.mxu0
      %6198 = vmatprep.mubr.f32.mxu0 0.0
      %6199 = vmatmul.mubr.f32.gmra.mxu0 %v6058
      %v6200 = vpop.f32.mrf.mxu0
      %v6201 = vadd.f32 0.0, %v6200
      %v6202 = vpop.f32.mrf.mxu0
      %6203 = vmatprep.mubr.f32.mxu0 0.0
      %6204 = vmatmul.mubr.f32.gmra.mxu0 %v6061
      %v6205 = vpop.f32.mrf.mxu0
      %v6206 = vadd.f32 0.0, %v6205
      %v6207 = vpop.f32.mrf.mxu0
      %6208 = vmatprep.mubr.f32.mxu0 0.0
      %6209 = vmatmul.mubr.f32.gmra.mxu0 %v6064
      %v6210 = vpop.f32.mrf.mxu0
      %v6211 = vadd.f32 0.0, %v6210
      %v6212 = vpop.f32.mrf.mxu0
      %6213 = vmatprep.mubr.f32.mxu0 0.0
      %6214 = vmatmul.mubr.f32.gmra.mxu0 %v6067
      %v6215 = vpop.f32.mrf.mxu0
      %v6216 = vadd.f32 0.0, %v6215
      %v6217 = vpop.f32.mrf.mxu0
      %6218 = vmatprep.mubr.f32.mxu0 0.0
      %6219 = vmatmul.mubr.f32.gmra.mxu0 %v6070
      %v6220 = vpop.f32.mrf.mxu0
      %v6221 = vadd.f32 0.0, %v6220
      %v6222 = vpop.f32.mrf.mxu0
      %6223 = vmatprep.mubr.f32.mxu0 0.0
      %6224 = vmatmul.mubr.f32.gmra.mxu0 %v6073
      %v6225 = vpop.f32.mrf.mxu0
      %v6226 = vadd.f32 0.0, %v6225
      %v6227 = vpop.f32.mrf.mxu0
      %6228 = vmatprep.mubr.f32.mxu0 0.0
      %6229 = vmatmul.mubr.f32.gmra.mxu0 %v6076
      %v6230 = vpop.f32.mrf.mxu0
      %v6231 = vadd.f32 0.0, %v6230
      %v6232 = vpop.f32.mrf.mxu0
      %6233 = vmatprep.mubr.f32.mxu0 0.0
      %6234 = vmatmul.mubr.f32.gmra.mxu0 %v6079
      %v6235 = vpop.f32.mrf.mxu0
      %v6236 = vadd.f32 0.0, %v6235
      %v6237 = vpop.f32.mrf.mxu0
      %6238 = vmatprep.mubr.f32.mxu0 0.0
      %6239 = vmatmul.mubr.f32.gmra.mxu0 %v6082
      %v6240 = vpop.f32.mrf.mxu0
      %v6241 = vadd.f32 0.0, %v6240
      %v6242 = vpop.f32.mrf.mxu0
      %6243 = vmatprep.mubr.f32.mxu0 0.0
      %6244 = vmatmul.mubr.f32.gmra.mxu0 %v6085
      %v6245 = vpop.f32.mrf.mxu0
      %v6246 = vadd.f32 0.0, %v6245
      %v6247 = vpop.f32.mrf.mxu0
      %6248 = vmatprep.mubr.f32.mxu0 0.0
      %6249 = vmatmul.mubr.f32.gmra.mxu0 %v6088
      %v6250 = vpop.f32.mrf.mxu0
      %v6251 = vadd.f32 0.0, %v6250
      %v6252 = vpop.f32.mrf.mxu0
      %6253 = vmatprep.mubr.f32.mxu0 0.0
      %6254 = vmatmul.mubr.f32.gmra.mxu0 %v6091
      %v6255 = vpop.f32.mrf.mxu0
      %v6256 = vadd.f32 0.0, %v6255
      %v6257 = vpop.f32.mrf.mxu0
      %6258 = vmatprep.mubr.f32.mxu0 0.0
      %6259 = vmatmul.mubr.f32.gmra.mxu0 %v6094
      %v6260 = vpop.f32.mrf.mxu0
      %v6261 = vadd.f32 0.0, %v6260
      %v6262 = vpop.f32.mrf.mxu0
      %6263 = vdwg.mxu0
      %v6264 = vadd.f32 %v6014, %v6166
      %v6265 = vadd.f32 %v6015, %v6171
      %v6266 = vadd.f32 %v6016, %v6176
      %v6267 = vadd.f32 %v6017, %v6181
      %v6268 = vadd.f32 %v6018, %v6186
      %v6269 = vadd.f32 %v6019, %v6191
      %v6270 = vadd.f32 %v6020, %v6196
      %v6271 = vadd.f32 %v6021, %v6201
      %v6272 = vadd.f32 %v6022, %v6206
      %v6273 = vadd.f32 %v6023, %v6211
      %v6274 = vadd.f32 %v6024, %v6216
      %v6275 = vadd.f32 %v6025, %v6221
      %v6276 = vadd.f32 %v6026, %v6226
      %v6277 = vadd.f32 %v6027, %v6231
      %v6278 = vadd.f32 %v6028, %v6236
      %v6279 = vadd.f32 %v6029, %v6241
      %v6280 = vadd.f32 %v6030, %v6246
      %v6281 = vadd.f32 %v6031, %v6251
      %v6282 = vadd.f32 %v6032, %v6256
      %v6283 = vadd.f32 %v6033, %v6261
      %6284 = vst.msk [vmem:[#allocation5] sm:$0xff] %vm4422, %v6264
      %6285 = vst.msk [vmem:[#allocation5 + $0x8] sm:$0xff] %vm4422, %v6265
      %6286 = vst.msk [vmem:[#allocation5 + $0x10] sm:$0xff] %vm4422, %v6266
      %6287 = vst.msk [vmem:[#allocation5 + $0x18] sm:$0xff] %vm4422, %v6267
      %6288 = vst.msk [vmem:[#allocation5 + $0x20] sm:$0xff] %vm4422, %v6268
      %6289 = vst.msk [vmem:[#allocation5 + $0x28] sm:$0xff] %vm4422, %v6269
      %6290 = vst.msk [vmem:[#allocation5 + $0x30] sm:$0xff] %vm4422, %v6270
      %6291 = vst.msk [vmem:[#allocation5 + $0x38] sm:$0xff] %vm4422, %v6271
      %6292 = vst.msk [vmem:[#allocation5 + $0x40] sm:$0xff] %vm4422, %v6272
      %6293 = vst.msk [vmem:[#allocation5 + $0x48] sm:$0xff] %vm4422, %v6273
      %6294 = vst.msk [vmem:[#allocation5 + $0x50] sm:$0xff] %vm4422, %v6274
      %6295 = vst.msk [vmem:[#allocation5 + $0x58] sm:$0xff] %vm4422, %v6275
      %6296 = vst.msk [vmem:[#allocation5 + $0x60] sm:$0xff] %vm4422, %v6276
      %6297 = vst.msk [vmem:[#allocation5 + $0x68] sm:$0xff] %vm4422, %v6277
      %6298 = vst.msk [vmem:[#allocation5 + $0x70] sm:$0xff] %vm4422, %v6278
      %6299 = vst.msk [vmem:[#allocation5 + $0x78] sm:$0xff] %vm4422, %v6279
      %6300 = vst.msk [vmem:[#allocation5 + $0x80] sm:$0xff] %vm4422, %v6280
      %6301 = vst.msk [vmem:[#allocation5 + $0x88] sm:$0xff] %vm4422, %v6281
      %6302 = vst.msk [vmem:[#allocation5 + $0x90] sm:$0xff] %vm4422, %v6282
      %6303 = vst.msk [vmem:[#allocation5 + $0x98] sm:$0xff] %vm4422, %v6283
      %s6304 = scalar_lea.vmem [#allocation3], 48
      %v6305 = vld [vmem:[%s6304] sm:$0xff]
      %v6306 = vld [vmem:[%s6304 + $0x8] sm:$0xff]
      %v6307 = vld [vmem:[%s6304 + $0x18] sm:$0xff]
      %v6308 = vld [vmem:[%s6304 + $0x20] sm:$0xff]
      %v6309 = vld [vmem:[%s6304 + $0x30] sm:$0xff]
      %v6310 = vld [vmem:[%s6304 + $0x38] sm:$0xff]
      %v6311 = vld [vmem:[%s6304 + $0x48] sm:$0xff]
      %v6312 = vld [vmem:[%s6304 + $0x50] sm:$0xff]
      %v6313 = vld [vmem:[%s6304 + $0x60] sm:$0xff]
      %v6314 = vld [vmem:[%s6304 + $0x68] sm:$0xff]
      %v6315 = vld [vmem:[%s6304 + $0x78] sm:$0xff]
      %v6316 = vld [vmem:[%s6304 + $0x80] sm:$0xff]
      %v6317 = vld [vmem:[%s6304 + $0x90] sm:$0xff]
      %v6318 = vld [vmem:[%s6304 + $0x98] sm:$0xff]
      %v6319 = vld [vmem:[%s6304 + $0xa8] sm:$0xff]
      %v6320 = vld [vmem:[%s6304 + $0xb0] sm:$0xff]
      %v6321 = vld [vmem:[%s6304 + $0xc0] sm:$0xff]
      %v6322 = vld [vmem:[%s6304 + $0xc8] sm:$0xff]
      %v6323 = vld [vmem:[%s6304 + $0xd8] sm:$0xff]
      %v6324 = vld [vmem:[%s6304 + $0xe0] sm:$0xff]
      %v6325 = vld [vmem:[#allocation5] sm:$0xff]
      %v6326 = vld [vmem:[#allocation5 + $0x8] sm:$0xff]
      %v6327 = vld [vmem:[#allocation5 + $0x10] sm:$0xff]
      %v6328 = vld [vmem:[#allocation5 + $0x18] sm:$0xff]
      %v6329 = vld [vmem:[#allocation5 + $0x20] sm:$0xff]
      %v6330 = vld [vmem:[#allocation5 + $0x28] sm:$0xff]
      %v6331 = vld [vmem:[#allocation5 + $0x30] sm:$0xff]
      %v6332 = vld [vmem:[#allocation5 + $0x38] sm:$0xff]
      %v6333 = vld [vmem:[#allocation5 + $0x40] sm:$0xff]
      %v6334 = vld [vmem:[#allocation5 + $0x48] sm:$0xff]
      %v6335 = vld [vmem:[#allocation5 + $0x50] sm:$0xff]
      %v6336 = vld [vmem:[#allocation5 + $0x58] sm:$0xff]
      %v6337 = vld [vmem:[#allocation5 + $0x60] sm:$0xff]
      %v6338 = vld [vmem:[#allocation5 + $0x68] sm:$0xff]
      %v6339 = vld [vmem:[#allocation5 + $0x70] sm:$0xff]
      %v6340 = vld [vmem:[#allocation5 + $0x78] sm:$0xff]
      %v6341 = vld [vmem:[#allocation5 + $0x80] sm:$0xff]
      %v6342 = vld [vmem:[#allocation5 + $0x88] sm:$0xff]
      %v6343 = vld [vmem:[#allocation5 + $0x90] sm:$0xff]
      %v6344 = vld [vmem:[#allocation5 + $0x98] sm:$0xff]
      %s6345 = scalar_lea.vmem %s9, 12
      %v6346 = vld [vmem:[%s6345] sm:$0x3]
      %v6348 = vsel %vm4375, %v6305, 0
      %v6351 = vsel %vm4375, %v6306, 0
      %v6354 = vsel %vm4375, %v6307, 0
      %v6357 = vsel %vm4375, %v6308, 0
      %v6360 = vsel %vm4375, %v6309, 0
      %v6363 = vsel %vm4375, %v6310, 0
      %v6366 = vsel %vm4375, %v6311, 0
      %v6369 = vsel %vm4375, %v6312, 0
      %v6372 = vsel %vm4375, %v6313, 0
      %v6375 = vsel %vm4375, %v6314, 0
      %v6378 = vsel %vm4375, %v6315, 0
      %v6381 = vsel %vm4375, %v6316, 0
      %v6384 = vsel %vm4375, %v6317, 0
      %v6387 = vsel %vm4375, %v6318, 0
      %v6390 = vsel %vm4375, %v6319, 0
      %v6393 = vsel %vm4375, %v6320, 0
      %v6396 = vsel %vm4375, %v6321, 0
      %v6399 = vsel %vm4375, %v6322, 0
      %v6402 = vsel %vm4375, %v6323, 0
      %v6405 = vsel %vm4375, %v6324, 0
      %v6408 = vsel %vm4544, %v6346, 0
      %6410 = vmatprep.subr.mxu0 0.0
      %6411 = vmatpush1.msra.mxu0 0.0
      %6412 = vmatprep.subr.mxu0 0.0
      %6413 = vmatpush1.msra.mxu0 0.0
      %6414 = vmatprep.subr.mxu0 0.0
      %6415 = vmatpush1.msra.mxu0 0.0
      %6416 = vmatprep.subr.mxu0 0.0
      %6417 = vmatpush1.msra.mxu0 0.0
      %6418 = vmatprep.subr.mxu0 0.0
      %6419 = vmatpush1.msra.mxu0 0.0
      %6420 = vmatprep.subr.mxu0 0.0
      %6421 = vmatpush1.msra.mxu0 0.0
      %6422 = vmatprep.subr.mxu0 0.0
      %6423 = vmatpush1.msra.mxu0 0.0
      %6424 = vmatprep.subr.mxu0 0.0
      %6425 = vmatpush1.msra.mxu0 0.0
      %6426 = vmatprep.subr.mxu0 0.0
      %6427 = vmatpush1.msra.mxu0 0.0
      %6428 = vmatprep.subr.mxu0 0.0
      %6429 = vmatpush1.msra.mxu0 0.0
      %6430 = vmatprep.subr.mxu0 0.0
      %6431 = vmatpush1.msra.mxu0 0.0
      %6432 = vmatprep.subr.mxu0 0.0
      %6433 = vmatpush1.msra.mxu0 0.0
      %6434 = vmatprep.subr.mxu0 0.0
      %6435 = vmatpush1.msra.mxu0 0.0
      %6436 = vmatprep.subr.mxu0 0.0
      %6437 = vmatpush1.msra.mxu0 0.0
      %6438 = vmatprep.subr.mxu0 0.0
      %6439 = vmatpush1.msra.mxu0 0.0
      %6440 = vmatprep.subr.mxu0 0.0
      %6441 = vmatpush1.msra.mxu0 %v6408
      %6442 = vmatprep.subr.mxu0 0.0
      %6443 = vmatpush2.msra.mxu0 0.0
      %6444 = vmatprep.subr.mxu0 0.0
      %6445 = vmatpush2.msra.mxu0 0.0
      %6446 = vmatprep.subr.mxu0 0.0
      %6447 = vmatpush2.msra.mxu0 0.0
      %6448 = vmatprep.subr.mxu0 0.0
      %6449 = vmatpush2.msra.mxu0 0.0
      %6450 = vmatprep.subr.mxu0 0.0
      %6451 = vmatpush2.msra.mxu0 0.0
      %6452 = vmatprep.subr.mxu0 0.0
      %6453 = vmatpush2.msra.mxu0 0.0
      %6454 = vmatprep.subr.mxu0 0.0
      %6455 = vmatpush2.msra.mxu0 0.0
      %6456 = vmatprep.subr.mxu0 0.0
      %6457 = vmatpush2.msra.mxu0 0.0
      %6458 = vmatprep.subr.mxu0 0.0
      %6459 = vmatpush2.msra.mxu0 0.0
      %6460 = vmatprep.subr.mxu0 0.0
      %6461 = vmatpush2.msra.mxu0 0.0
      %6462 = vmatprep.subr.mxu0 0.0
      %6463 = vmatpush2.msra.mxu0 0.0
      %6464 = vmatprep.subr.mxu0 0.0
      %6465 = vmatpush2.msra.mxu0 0.0
      %6466 = vmatprep.subr.mxu0 0.0
      %6467 = vmatpush2.msra.mxu0 0.0
      %6468 = vmatprep.subr.mxu0 0.0
      %6469 = vmatpush2.msra.mxu0 0.0
      %6470 = vmatprep.subr.mxu0 0.0
      %6471 = vmatpush2.msra.mxu0 0.0
      %6472 = vmatprep.subr.mxu0 0.0
      %6473 = vmatpush2.msra.mxu0 0.0
      %6474 = vmatprep.mubr.f32.mxu0 0.0
      %6475 = vmatmul.mubr.f32.gmra.mxu0 %v6348
      %v6476 = vpop.f32.mrf.mxu0
      %v6477 = vadd.f32 0.0, %v6476
      %v6478 = vpop.f32.mrf.mxu0
      %6479 = vmatprep.mubr.f32.mxu0 0.0
      %6480 = vmatmul.mubr.f32.gmra.mxu0 %v6351
      %v6481 = vpop.f32.mrf.mxu0
      %v6482 = vadd.f32 0.0, %v6481
      %v6483 = vpop.f32.mrf.mxu0
      %6484 = vmatprep.mubr.f32.mxu0 0.0
      %6485 = vmatmul.mubr.f32.gmra.mxu0 %v6354
      %v6486 = vpop.f32.mrf.mxu0
      %v6487 = vadd.f32 0.0, %v6486
      %v6488 = vpop.f32.mrf.mxu0
      %6489 = vmatprep.mubr.f32.mxu0 0.0
      %6490 = vmatmul.mubr.f32.gmra.mxu0 %v6357
      %v6491 = vpop.f32.mrf.mxu0
      %v6492 = vadd.f32 0.0, %v6491
      %v6493 = vpop.f32.mrf.mxu0
      %6494 = vmatprep.mubr.f32.mxu0 0.0
      %6495 = vmatmul.mubr.f32.gmra.mxu0 %v6360
      %v6496 = vpop.f32.mrf.mxu0
      %v6497 = vadd.f32 0.0, %v6496
      %v6498 = vpop.f32.mrf.mxu0
      %6499 = vmatprep.mubr.f32.mxu0 0.0
      %6500 = vmatmul.mubr.f32.gmra.mxu0 %v6363
      %v6501 = vpop.f32.mrf.mxu0
      %v6502 = vadd.f32 0.0, %v6501
      %v6503 = vpop.f32.mrf.mxu0
      %6504 = vmatprep.mubr.f32.mxu0 0.0
      %6505 = vmatmul.mubr.f32.gmra.mxu0 %v6366
      %v6506 = vpop.f32.mrf.mxu0
      %v6507 = vadd.f32 0.0, %v6506
      %v6508 = vpop.f32.mrf.mxu0
      %6509 = vmatprep.mubr.f32.mxu0 0.0
      %6510 = vmatmul.mubr.f32.gmra.mxu0 %v6369
      %v6511 = vpop.f32.mrf.mxu0
      %v6512 = vadd.f32 0.0, %v6511
      %v6513 = vpop.f32.mrf.mxu0
      %6514 = vmatprep.mubr.f32.mxu0 0.0
      %6515 = vmatmul.mubr.f32.gmra.mxu0 %v6372
      %v6516 = vpop.f32.mrf.mxu0
      %v6517 = vadd.f32 0.0, %v6516
      %v6518 = vpop.f32.mrf.mxu0
      %6519 = vmatprep.mubr.f32.mxu0 0.0
      %6520 = vmatmul.mubr.f32.gmra.mxu0 %v6375
      %v6521 = vpop.f32.mrf.mxu0
      %v6522 = vadd.f32 0.0, %v6521
      %v6523 = vpop.f32.mrf.mxu0
      %6524 = vmatprep.mubr.f32.mxu0 0.0
      %6525 = vmatmul.mubr.f32.gmra.mxu0 %v6378
      %v6526 = vpop.f32.mrf.mxu0
      %v6527 = vadd.f32 0.0, %v6526
      %v6528 = vpop.f32.mrf.mxu0
      %6529 = vmatprep.mubr.f32.mxu0 0.0
      %6530 = vmatmul.mubr.f32.gmra.mxu0 %v6381
      %v6531 = vpop.f32.mrf.mxu0
      %v6532 = vadd.f32 0.0, %v6531
      %v6533 = vpop.f32.mrf.mxu0
      %6534 = vmatprep.mubr.f32.mxu0 0.0
      %6535 = vmatmul.mubr.f32.gmra.mxu0 %v6384
      %v6536 = vpop.f32.mrf.mxu0
      %v6537 = vadd.f32 0.0, %v6536
      %v6538 = vpop.f32.mrf.mxu0
      %6539 = vmatprep.mubr.f32.mxu0 0.0
      %6540 = vmatmul.mubr.f32.gmra.mxu0 %v6387
      %v6541 = vpop.f32.mrf.mxu0
      %v6542 = vadd.f32 0.0, %v6541
      %v6543 = vpop.f32.mrf.mxu0
      %6544 = vmatprep.mubr.f32.mxu0 0.0
      %6545 = vmatmul.mubr.f32.gmra.mxu0 %v6390
      %v6546 = vpop.f32.mrf.mxu0
      %v6547 = vadd.f32 0.0, %v6546
      %v6548 = vpop.f32.mrf.mxu0
      %6549 = vmatprep.mubr.f32.mxu0 0.0
      %6550 = vmatmul.mubr.f32.gmra.mxu0 %v6393
      %v6551 = vpop.f32.mrf.mxu0
      %v6552 = vadd.f32 0.0, %v6551
      %v6553 = vpop.f32.mrf.mxu0
      %6554 = vmatprep.mubr.f32.mxu0 0.0
      %6555 = vmatmul.mubr.f32.gmra.mxu0 %v6396
      %v6556 = vpop.f32.mrf.mxu0
      %v6557 = vadd.f32 0.0, %v6556
      %v6558 = vpop.f32.mrf.mxu0
      %6559 = vmatprep.mubr.f32.mxu0 0.0
      %6560 = vmatmul.mubr.f32.gmra.mxu0 %v6399
      %v6561 = vpop.f32.mrf.mxu0
      %v6562 = vadd.f32 0.0, %v6561
      %v6563 = vpop.f32.mrf.mxu0
      %6564 = vmatprep.mubr.f32.mxu0 0.0
      %6565 = vmatmul.mubr.f32.gmra.mxu0 %v6402
      %v6566 = vpop.f32.mrf.mxu0
      %v6567 = vadd.f32 0.0, %v6566
      %v6568 = vpop.f32.mrf.mxu0
      %6569 = vmatprep.mubr.f32.mxu0 0.0
      %6570 = vmatmul.mubr.f32.gmra.mxu0 %v6405
      %v6571 = vpop.f32.mrf.mxu0
      %v6572 = vadd.f32 0.0, %v6571
      %v6573 = vpop.f32.mrf.mxu0
      %6574 = vdwg.mxu0
      %v6575 = vadd.f32 %v6325, %v6477
      %v6576 = vadd.f32 %v6326, %v6482
      %v6577 = vadd.f32 %v6327, %v6487
      %v6578 = vadd.f32 %v6328, %v6492
      %v6579 = vadd.f32 %v6329, %v6497
      %v6580 = vadd.f32 %v6330, %v6502
      %v6581 = vadd.f32 %v6331, %v6507
      %v6582 = vadd.f32 %v6332, %v6512
      %v6583 = vadd.f32 %v6333, %v6517
      %v6584 = vadd.f32 %v6334, %v6522
      %v6585 = vadd.f32 %v6335, %v6527
      %v6586 = vadd.f32 %v6336, %v6532
      %v6587 = vadd.f32 %v6337, %v6537
      %v6588 = vadd.f32 %v6338, %v6542
      %v6589 = vadd.f32 %v6339, %v6547
      %v6590 = vadd.f32 %v6340, %v6552
      %v6591 = vadd.f32 %v6341, %v6557
      %v6592 = vadd.f32 %v6342, %v6562
      %v6593 = vadd.f32 %v6343, %v6567
      %v6594 = vadd.f32 %v6344, %v6572
      %6595 = vst.msk [vmem:[#allocation5] sm:$0xff] %vm4422, %v6575
      %6596 = vst.msk [vmem:[#allocation5 + $0x8] sm:$0xff] %vm4422, %v6576
      %6597 = vst.msk [vmem:[#allocation5 + $0x10] sm:$0xff] %vm4422, %v6577
      %6598 = vst.msk [vmem:[#allocation5 + $0x18] sm:$0xff] %vm4422, %v6578
      %6599 = vst.msk [vmem:[#allocation5 + $0x20] sm:$0xff] %vm4422, %v6579
      %6600 = vst.msk [vmem:[#allocation5 + $0x28] sm:$0xff] %vm4422, %v6580
      %6601 = vst.msk [vmem:[#allocation5 + $0x30] sm:$0xff] %vm4422, %v6581
      %6602 = vst.msk [vmem:[#allocation5 + $0x38] sm:$0xff] %vm4422, %v6582
      %6603 = vst.msk [vmem:[#allocation5 + $0x40] sm:$0xff] %vm4422, %v6583
      %6604 = vst.msk [vmem:[#allocation5 + $0x48] sm:$0xff] %vm4422, %v6584
      %6605 = vst.msk [vmem:[#allocation5 + $0x50] sm:$0xff] %vm4422, %v6585
      %6606 = vst.msk [vmem:[#allocation5 + $0x58] sm:$0xff] %vm4422, %v6586
      %6607 = vst.msk [vmem:[#allocation5 + $0x60] sm:$0xff] %vm4422, %v6587
      %6608 = vst.msk [vmem:[#allocation5 + $0x68] sm:$0xff] %vm4422, %v6588
      %6609 = vst.msk [vmem:[#allocation5 + $0x70] sm:$0xff] %vm4422, %v6589
      %6610 = vst.msk [vmem:[#allocation5 + $0x78] sm:$0xff] %vm4422, %v6590
      %6611 = vst.msk [vmem:[#allocation5 + $0x80] sm:$0xff] %vm4422, %v6591
      %6612 = vst.msk [vmem:[#allocation5 + $0x88] sm:$0xff] %vm4422, %v6592
      %6613 = vst.msk [vmem:[#allocation5 + $0x90] sm:$0xff] %vm4422, %v6593
      %6614 = vst.msk [vmem:[#allocation5 + $0x98] sm:$0xff] %vm4422, %v6594
      %v6615 = vld [vmem:[%s6304 + $0x1] sm:$0xff]
      %v6616 = vld [vmem:[%s6304 + $0x9] sm:$0xff]
      %v6617 = vld [vmem:[%s6304 + $0x19] sm:$0xff]
      %v6618 = vld [vmem:[%s6304 + $0x21] sm:$0xff]
      %v6619 = vld [vmem:[%s6304 + $0x31] sm:$0xff]
      %v6620 = vld [vmem:[%s6304 + $0x39] sm:$0xff]
      %v6621 = vld [vmem:[%s6304 + $0x49] sm:$0xff]
      %v6622 = vld [vmem:[%s6304 + $0x51] sm:$0xff]
      %v6623 = vld [vmem:[%s6304 + $0x61] sm:$0xff]
      %v6624 = vld [vmem:[%s6304 + $0x69] sm:$0xff]
      %v6625 = vld [vmem:[%s6304 + $0x79] sm:$0xff]
      %v6626 = vld [vmem:[%s6304 + $0x81] sm:$0xff]
      %v6627 = vld [vmem:[%s6304 + $0x91] sm:$0xff]
      %v6628 = vld [vmem:[%s6304 + $0x99] sm:$0xff]
      %v6629 = vld [vmem:[%s6304 + $0xa9] sm:$0xff]
      %v6630 = vld [vmem:[%s6304 + $0xb1] sm:$0xff]
      %v6631 = vld [vmem:[%s6304 + $0xc1] sm:$0xff]
      %v6632 = vld [vmem:[%s6304 + $0xc9] sm:$0xff]
      %v6633 = vld [vmem:[%s6304 + $0xd9] sm:$0xff]
      %v6634 = vld [vmem:[%s6304 + $0xe1] sm:$0xff]
      %v6635 = vld [vmem:[#allocation5] sm:$0xff]
      %v6636 = vld [vmem:[#allocation5 + $0x8] sm:$0xff]
      %v6637 = vld [vmem:[#allocation5 + $0x10] sm:$0xff]
      %v6638 = vld [vmem:[#allocation5 + $0x18] sm:$0xff]
      %v6639 = vld [vmem:[#allocation5 + $0x20] sm:$0xff]
      %v6640 = vld [vmem:[#allocation5 + $0x28] sm:$0xff]
      %v6641 = vld [vmem:[#allocation5 + $0x30] sm:$0xff]
      %v6642 = vld [vmem:[#allocation5 + $0x38] sm:$0xff]
      %v6643 = vld [vmem:[#allocation5 + $0x40] sm:$0xff]
      %v6644 = vld [vmem:[#allocation5 + $0x48] sm:$0xff]
      %v6645 = vld [vmem:[#allocation5 + $0x50] sm:$0xff]
      %v6646 = vld [vmem:[#allocation5 + $0x58] sm:$0xff]
      %v6647 = vld [vmem:[#allocation5 + $0x60] sm:$0xff]
      %v6648 = vld [vmem:[#allocation5 + $0x68] sm:$0xff]
      %v6649 = vld [vmem:[#allocation5 + $0x70] sm:$0xff]
      %v6650 = vld [vmem:[#allocation5 + $0x78] sm:$0xff]
      %v6651 = vld [vmem:[#allocation5 + $0x80] sm:$0xff]
      %v6652 = vld [vmem:[#allocation5 + $0x88] sm:$0xff]
      %v6653 = vld [vmem:[#allocation5 + $0x90] sm:$0xff]
      %v6654 = vld [vmem:[#allocation5 + $0x98] sm:$0xff]
      %s6655 = scalar_lea.vmem %s9, 14
      %v6656 = vld [vmem:[%s6655] sm:$0x3]
      %v6658 = vsel %vm4375, %v6615, 0
      %v6661 = vsel %vm4375, %v6616, 0
      %v6664 = vsel %vm4375, %v6617, 0
      %v6667 = vsel %vm4375, %v6618, 0
      %v6670 = vsel %vm4375, %v6619, 0
      %v6673 = vsel %vm4375, %v6620, 0
      %v6676 = vsel %vm4375, %v6621, 0
      %v6679 = vsel %vm4375, %v6622, 0
      %v6682 = vsel %vm4375, %v6623, 0
      %v6685 = vsel %vm4375, %v6624, 0
      %v6688 = vsel %vm4375, %v6625, 0
      %v6691 = vsel %vm4375, %v6626, 0
      %v6694 = vsel %vm4375, %v6627, 0
      %v6697 = vsel %vm4375, %v6628, 0
      %v6700 = vsel %vm4375, %v6629, 0
      %v6703 = vsel %vm4375, %v6630, 0
      %v6706 = vsel %vm4375, %v6631, 0
      %v6709 = vsel %vm4375, %v6632, 0
      %v6712 = vsel %vm4375, %v6633, 0
      %v6715 = vsel %vm4375, %v6634, 0
      %v6718 = vsel %vm4544, %v6656, 0
      %6720 = vmatprep.subr.mxu0 0.0
      %6721 = vmatpush1.msra.mxu0 0.0
      %6722 = vmatprep.subr.mxu0 0.0
      %6723 = vmatpush1.msra.mxu0 0.0
      %6724 = vmatprep.subr.mxu0 0.0
      %6725 = vmatpush1.msra.mxu0 0.0
      %6726 = vmatprep.subr.mxu0 0.0
      %6727 = vmatpush1.msra.mxu0 0.0
      %6728 = vmatprep.subr.mxu0 0.0
      %6729 = vmatpush1.msra.mxu0 0.0
      %6730 = vmatprep.subr.mxu0 0.0
      %6731 = vmatpush1.msra.mxu0 0.0
      %6732 = vmatprep.subr.mxu0 0.0
      %6733 = vmatpush1.msra.mxu0 0.0
      %6734 = vmatprep.subr.mxu0 0.0
      %6735 = vmatpush1.msra.mxu0 0.0
      %6736 = vmatprep.subr.mxu0 0.0
      %6737 = vmatpush1.msra.mxu0 0.0
      %6738 = vmatprep.subr.mxu0 0.0
      %6739 = vmatpush1.msra.mxu0 0.0
      %6740 = vmatprep.subr.mxu0 0.0
      %6741 = vmatpush1.msra.mxu0 0.0
      %6742 = vmatprep.subr.mxu0 0.0
      %6743 = vmatpush1.msra.mxu0 0.0
      %6744 = vmatprep.subr.mxu0 0.0
      %6745 = vmatpush1.msra.mxu0 0.0
      %6746 = vmatprep.subr.mxu0 0.0
      %6747 = vmatpush1.msra.mxu0 0.0
      %6748 = vmatprep.subr.mxu0 0.0
      %6749 = vmatpush1.msra.mxu0 0.0
      %6750 = vmatprep.subr.mxu0 0.0
      %6751 = vmatpush1.msra.mxu0 %v6718
      %6752 = vmatprep.subr.mxu0 0.0
      %6753 = vmatpush2.msra.mxu0 0.0
      %6754 = vmatprep.subr.mxu0 0.0
      %6755 = vmatpush2.msra.mxu0 0.0
      %6756 = vmatprep.subr.mxu0 0.0
      %6757 = vmatpush2.msra.mxu0 0.0
      %6758 = vmatprep.subr.mxu0 0.0
      %6759 = vmatpush2.msra.mxu0 0.0
      %6760 = vmatprep.subr.mxu0 0.0
      %6761 = vmatpush2.msra.mxu0 0.0
      %6762 = vmatprep.subr.mxu0 0.0
      %6763 = vmatpush2.msra.mxu0 0.0
      %6764 = vmatprep.subr.mxu0 0.0
      %6765 = vmatpush2.msra.mxu0 0.0
      %6766 = vmatprep.subr.mxu0 0.0
      %6767 = vmatpush2.msra.mxu0 0.0
      %6768 = vmatprep.subr.mxu0 0.0
      %6769 = vmatpush2.msra.mxu0 0.0
      %6770 = vmatprep.subr.mxu0 0.0
      %6771 = vmatpush2.msra.mxu0 0.0
      %6772 = vmatprep.subr.mxu0 0.0
      %6773 = vmatpush2.msra.mxu0 0.0
      %6774 = vmatprep.subr.mxu0 0.0
      %6775 = vmatpush2.msra.mxu0 0.0
      %6776 = vmatprep.subr.mxu0 0.0
      %6777 = vmatpush2.msra.mxu0 0.0
      %6778 = vmatprep.subr.mxu0 0.0
      %6779 = vmatpush2.msra.mxu0 0.0
      %6780 = vmatprep.subr.mxu0 0.0
      %6781 = vmatpush2.msra.mxu0 0.0
      %6782 = vmatprep.subr.mxu0 0.0
      %6783 = vmatpush2.msra.mxu0 0.0
      %6784 = vmatprep.mubr.f32.mxu0 0.0
      %6785 = vmatmul.mubr.f32.gmra.mxu0 %v6658
      %v6786 = vpop.f32.mrf.mxu0
      %v6787 = vadd.f32 0.0, %v6786
      %v6788 = vpop.f32.mrf.mxu0
      %6789 = vmatprep.mubr.f32.mxu0 0.0
      %6790 = vmatmul.mubr.f32.gmra.mxu0 %v6661
      %v6791 = vpop.f32.mrf.mxu0
      %v6792 = vadd.f32 0.0, %v6791
      %v6793 = vpop.f32.mrf.mxu0
      %6794 = vmatprep.mubr.f32.mxu0 0.0
      %6795 = vmatmul.mubr.f32.gmra.mxu0 %v6664
      %v6796 = vpop.f32.mrf.mxu0
      %v6797 = vadd.f32 0.0, %v6796
      %v6798 = vpop.f32.mrf.mxu0
      %6799 = vmatprep.mubr.f32.mxu0 0.0
      %6800 = vmatmul.mubr.f32.gmra.mxu0 %v6667
      %v6801 = vpop.f32.mrf.mxu0
      %v6802 = vadd.f32 0.0, %v6801
      %v6803 = vpop.f32.mrf.mxu0
      %6804 = vmatprep.mubr.f32.mxu0 0.0
      %6805 = vmatmul.mubr.f32.gmra.mxu0 %v6670
      %v6806 = vpop.f32.mrf.mxu0
      %v6807 = vadd.f32 0.0, %v6806
      %v6808 = vpop.f32.mrf.mxu0
      %6809 = vmatprep.mubr.f32.mxu0 0.0
      %6810 = vmatmul.mubr.f32.gmra.mxu0 %v6673
      %v6811 = vpop.f32.mrf.mxu0
      %v6812 = vadd.f32 0.0, %v6811
      %v6813 = vpop.f32.mrf.mxu0
      %6814 = vmatprep.mubr.f32.mxu0 0.0
      %6815 = vmatmul.mubr.f32.gmra.mxu0 %v6676
      %v6816 = vpop.f32.mrf.mxu0
      %v6817 = vadd.f32 0.0, %v6816
      %v6818 = vpop.f32.mrf.mxu0
      %6819 = vmatprep.mubr.f32.mxu0 0.0
      %6820 = vmatmul.mubr.f32.gmra.mxu0 %v6679
      %v6821 = vpop.f32.mrf.mxu0
      %v6822 = vadd.f32 0.0, %v6821
      %v6823 = vpop.f32.mrf.mxu0
      %6824 = vmatprep.mubr.f32.mxu0 0.0
      %6825 = vmatmul.mubr.f32.gmra.mxu0 %v6682
      %v6826 = vpop.f32.mrf.mxu0
      %v6827 = vadd.f32 0.0, %v6826
      %v6828 = vpop.f32.mrf.mxu0
      %6829 = vmatprep.mubr.f32.mxu0 0.0
      %6830 = vmatmul.mubr.f32.gmra.mxu0 %v6685
      %v6831 = vpop.f32.mrf.mxu0
      %v6832 = vadd.f32 0.0, %v6831
      %v6833 = vpop.f32.mrf.mxu0
      %6834 = vmatprep.mubr.f32.mxu0 0.0
      %6835 = vmatmul.mubr.f32.gmra.mxu0 %v6688
      %v6836 = vpop.f32.mrf.mxu0
      %v6837 = vadd.f32 0.0, %v6836
      %v6838 = vpop.f32.mrf.mxu0
      %6839 = vmatprep.mubr.f32.mxu0 0.0
      %6840 = vmatmul.mubr.f32.gmra.mxu0 %v6691
      %v6841 = vpop.f32.mrf.mxu0
      %v6842 = vadd.f32 0.0, %v6841
      %v6843 = vpop.f32.mrf.mxu0
      %6844 = vmatprep.mubr.f32.mxu0 0.0
      %6845 = vmatmul.mubr.f32.gmra.mxu0 %v6694
      %v6846 = vpop.f32.mrf.mxu0
      %v6847 = vadd.f32 0.0, %v6846
      %v6848 = vpop.f32.mrf.mxu0
      %6849 = vmatprep.mubr.f32.mxu0 0.0
      %6850 = vmatmul.mubr.f32.gmra.mxu0 %v6697
      %v6851 = vpop.f32.mrf.mxu0
      %v6852 = vadd.f32 0.0, %v6851
      %v6853 = vpop.f32.mrf.mxu0
      %6854 = vmatprep.mubr.f32.mxu0 0.0
      %6855 = vmatmul.mubr.f32.gmra.mxu0 %v6700
      %v6856 = vpop.f32.mrf.mxu0
      %v6857 = vadd.f32 0.0, %v6856
      %v6858 = vpop.f32.mrf.mxu0
      %6859 = vmatprep.mubr.f32.mxu0 0.0
      %6860 = vmatmul.mubr.f32.gmra.mxu0 %v6703
      %v6861 = vpop.f32.mrf.mxu0
      %v6862 = vadd.f32 0.0, %v6861
      %v6863 = vpop.f32.mrf.mxu0
      %6864 = vmatprep.mubr.f32.mxu0 0.0
      %6865 = vmatmul.mubr.f32.gmra.mxu0 %v6706
      %v6866 = vpop.f32.mrf.mxu0
      %v6867 = vadd.f32 0.0, %v6866
      %v6868 = vpop.f32.mrf.mxu0
      %6869 = vmatprep.mubr.f32.mxu0 0.0
      %6870 = vmatmul.mubr.f32.gmra.mxu0 %v6709
      %v6871 = vpop.f32.mrf.mxu0
      %v6872 = vadd.f32 0.0, %v6871
      %v6873 = vpop.f32.mrf.mxu0
      %6874 = vmatprep.mubr.f32.mxu0 0.0
      %6875 = vmatmul.mubr.f32.gmra.mxu0 %v6712
      %v6876 = vpop.f32.mrf.mxu0
      %v6877 = vadd.f32 0.0, %v6876
      %v6878 = vpop.f32.mrf.mxu0
      %6879 = vmatprep.mubr.f32.mxu0 0.0
      %6880 = vmatmul.mubr.f32.gmra.mxu0 %v6715
      %v6881 = vpop.f32.mrf.mxu0
      %v6882 = vadd.f32 0.0, %v6881
      %v6883 = vpop.f32.mrf.mxu0
      %6884 = vdwg.mxu0
      %v6885 = vadd.f32 %v6635, %v6787
      %v6886 = vadd.f32 %v6636, %v6792
      %v6887 = vadd.f32 %v6637, %v6797
      %v6888 = vadd.f32 %v6638, %v6802
      %v6889 = vadd.f32 %v6639, %v6807
      %v6890 = vadd.f32 %v6640, %v6812
      %v6891 = vadd.f32 %v6641, %v6817
      %v6892 = vadd.f32 %v6642, %v6822
      %v6893 = vadd.f32 %v6643, %v6827
      %v6894 = vadd.f32 %v6644, %v6832
      %v6895 = vadd.f32 %v6645, %v6837
      %v6896 = vadd.f32 %v6646, %v6842
      %v6897 = vadd.f32 %v6647, %v6847
      %v6898 = vadd.f32 %v6648, %v6852
      %v6899 = vadd.f32 %v6649, %v6857
      %v6900 = vadd.f32 %v6650, %v6862
      %v6901 = vadd.f32 %v6651, %v6867
      %v6902 = vadd.f32 %v6652, %v6872
      %v6903 = vadd.f32 %v6653, %v6877
      %v6904 = vadd.f32 %v6654, %v6882
      %6905 = vst.msk [vmem:[#allocation5] sm:$0xff] %vm4422, %v6885
      %6906 = vst.msk [vmem:[#allocation5 + $0x8] sm:$0xff] %vm4422, %v6886
      %6907 = vst.msk [vmem:[#allocation5 + $0x10] sm:$0xff] %vm4422, %v6887
      %6908 = vst.msk [vmem:[#allocation5 + $0x18] sm:$0xff] %vm4422, %v6888
      %6909 = vst.msk [vmem:[#allocation5 + $0x20] sm:$0xff] %vm4422, %v6889
      %6910 = vst.msk [vmem:[#allocation5 + $0x28] sm:$0xff] %vm4422, %v6890
      %6911 = vst.msk [vmem:[#allocation5 + $0x30] sm:$0xff] %vm4422, %v6891
      %6912 = vst.msk [vmem:[#allocation5 + $0x38] sm:$0xff] %vm4422, %v6892
      %6913 = vst.msk [vmem:[#allocation5 + $0x40] sm:$0xff] %vm4422, %v6893
      %6914 = vst.msk [vmem:[#allocation5 + $0x48] sm:$0xff] %vm4422, %v6894
      %6915 = vst.msk [vmem:[#allocation5 + $0x50] sm:$0xff] %vm4422, %v6895
      %6916 = vst.msk [vmem:[#allocation5 + $0x58] sm:$0xff] %vm4422, %v6896
      %6917 = vst.msk [vmem:[#allocation5 + $0x60] sm:$0xff] %vm4422, %v6897
      %6918 = vst.msk [vmem:[#allocation5 + $0x68] sm:$0xff] %vm4422, %v6898
      %6919 = vst.msk [vmem:[#allocation5 + $0x70] sm:$0xff] %vm4422, %v6899
      %6920 = vst.msk [vmem:[#allocation5 + $0x78] sm:$0xff] %vm4422, %v6900
      %6921 = vst.msk [vmem:[#allocation5 + $0x80] sm:$0xff] %vm4422, %v6901
      %6922 = vst.msk [vmem:[#allocation5 + $0x88] sm:$0xff] %vm4422, %v6902
      %6923 = vst.msk [vmem:[#allocation5 + $0x90] sm:$0xff] %vm4422, %v6903
      %6924 = vst.msk [vmem:[#allocation5 + $0x98] sm:$0xff] %vm4422, %v6904
      %v6925 = vld [vmem:[%s6304 + $0x2] sm:$0xff]
      %v6926 = vld [vmem:[%s6304 + $0xa] sm:$0xff]
      %v6927 = vld [vmem:[%s6304 + $0x1a] sm:$0xff]
      %v6928 = vld [vmem:[%s6304 + $0x22] sm:$0xff]
      %v6929 = vld [vmem:[%s6304 + $0x32] sm:$0xff]
      %v6930 = vld [vmem:[%s6304 + $0x3a] sm:$0xff]
      %v6931 = vld [vmem:[%s6304 + $0x4a] sm:$0xff]
      %v6932 = vld [vmem:[%s6304 + $0x52] sm:$0xff]
      %v6933 = vld [vmem:[%s6304 + $0x62] sm:$0xff]
      %v6934 = vld [vmem:[%s6304 + $0x6a] sm:$0xff]
      %v6935 = vld [vmem:[%s6304 + $0x7a] sm:$0xff]
      %v6936 = vld [vmem:[%s6304 + $0x82] sm:$0xff]
      %v6937 = vld [vmem:[%s6304 + $0x92] sm:$0xff]
      %v6938 = vld [vmem:[%s6304 + $0x9a] sm:$0xff]
      %v6939 = vld [vmem:[%s6304 + $0xaa] sm:$0xff]
      %v6940 = vld [vmem:[%s6304 + $0xb2] sm:$0xff]
      %v6941 = vld [vmem:[%s6304 + $0xc2] sm:$0xff]
      %v6942 = vld [vmem:[%s6304 + $0xca] sm:$0xff]
      %v6943 = vld [vmem:[%s6304 + $0xda] sm:$0xff]
      %v6944 = vld [vmem:[%s6304 + $0xe2] sm:$0xff]
      %v6945 = vld [vmem:[#allocation5] sm:$0xff]
      %v6946 = vld [vmem:[#allocation5 + $0x8] sm:$0xff]
      %v6947 = vld [vmem:[#allocation5 + $0x10] sm:$0xff]
      %v6948 = vld [vmem:[#allocation5 + $0x18] sm:$0xff]
      %v6949 = vld [vmem:[#allocation5 + $0x20] sm:$0xff]
      %v6950 = vld [vmem:[#allocation5 + $0x28] sm:$0xff]
      %v6951 = vld [vmem:[#allocation5 + $0x30] sm:$0xff]
      %v6952 = vld [vmem:[#allocation5 + $0x38] sm:$0xff]
      %v6953 = vld [vmem:[#allocation5 + $0x40] sm:$0xff]
      %v6954 = vld [vmem:[#allocation5 + $0x48] sm:$0xff]
      %v6955 = vld [vmem:[#allocation5 + $0x50] sm:$0xff]
      %v6956 = vld [vmem:[#allocation5 + $0x58] sm:$0xff]
      %v6957 = vld [vmem:[#allocation5 + $0x60] sm:$0xff]
      %v6958 = vld [vmem:[#allocation5 + $0x68] sm:$0xff]
      %v6959 = vld [vmem:[#allocation5 + $0x70] sm:$0xff]
      %v6960 = vld [vmem:[#allocation5 + $0x78] sm:$0xff]
      %v6961 = vld [vmem:[#allocation5 + $0x80] sm:$0xff]
      %v6962 = vld [vmem:[#allocation5 + $0x88] sm:$0xff]
      %v6963 = vld [vmem:[#allocation5 + $0x90] sm:$0xff]
      %v6964 = vld [vmem:[#allocation5 + $0x98] sm:$0xff]
      %s6965 = scalar_lea.vmem %s9, 16
      %v6966 = vld [vmem:[%s6965] sm:$0x3]
      %v6968 = vsel %vm4375, %v6925, 0
      %v6971 = vsel %vm4375, %v6926, 0
      %v6974 = vsel %vm4375, %v6927, 0
      %v6977 = vsel %vm4375, %v6928, 0
      %v6980 = vsel %vm4375, %v6929, 0
      %v6983 = vsel %vm4375, %v6930, 0
      %v6986 = vsel %vm4375, %v6931, 0
      %v6989 = vsel %vm4375, %v6932, 0
      %v6992 = vsel %vm4375, %v6933, 0
      %v6995 = vsel %vm4375, %v6934, 0
      %v6998 = vsel %vm4375, %v6935, 0
      %v7001 = vsel %vm4375, %v6936, 0
      %v7004 = vsel %vm4375, %v6937, 0
      %v7007 = vsel %vm4375, %v6938, 0
      %v7010 = vsel %vm4375, %v6939, 0
      %v7013 = vsel %vm4375, %v6940, 0
      %v7016 = vsel %vm4375, %v6941, 0
      %v7019 = vsel %vm4375, %v6942, 0
      %v7022 = vsel %vm4375, %v6943, 0
      %v7025 = vsel %vm4375, %v6944, 0
      %v7028 = vsel %vm4544, %v6966, 0
      %7030 = vmatprep.subr.mxu0 0.0
      %7031 = vmatpush1.msra.mxu0 0.0
      %7032 = vmatprep.subr.mxu0 0.0
      %7033 = vmatpush1.msra.mxu0 0.0
      %7034 = vmatprep.subr.mxu0 0.0
      %7035 = vmatpush1.msra.mxu0 0.0
      %7036 = vmatprep.subr.mxu0 0.0
      %7037 = vmatpush1.msra.mxu0 0.0
      %7038 = vmatprep.subr.mxu0 0.0
      %7039 = vmatpush1.msra.mxu0 0.0
      %7040 = vmatprep.subr.mxu0 0.0
      %7041 = vmatpush1.msra.mxu0 0.0
      %7042 = vmatprep.subr.mxu0 0.0
      %7043 = vmatpush1.msra.mxu0 0.0
      %7044 = vmatprep.subr.mxu0 0.0
      %7045 = vmatpush1.msra.mxu0 0.0
      %7046 = vmatprep.subr.mxu0 0.0
      %7047 = vmatpush1.msra.mxu0 0.0
      %7048 = vmatprep.subr.mxu0 0.0
      %7049 = vmatpush1.msra.mxu0 0.0
      %7050 = vmatprep.subr.mxu0 0.0
      %7051 = vmatpush1.msra.mxu0 0.0
      %7052 = vmatprep.subr.mxu0 0.0
      %7053 = vmatpush1.msra.mxu0 0.0
      %7054 = vmatprep.subr.mxu0 0.0
      %7055 = vmatpush1.msra.mxu0 0.0
      %7056 = vmatprep.subr.mxu0 0.0
      %7057 = vmatpush1.msra.mxu0 0.0
      %7058 = vmatprep.subr.mxu0 0.0
      %7059 = vmatpush1.msra.mxu0 0.0
      %7060 = vmatprep.subr.mxu0 0.0
      %7061 = vmatpush1.msra.mxu0 %v7028
      %7062 = vmatprep.subr.mxu0 0.0
      %7063 = vmatpush2.msra.mxu0 0.0
      %7064 = vmatprep.subr.mxu0 0.0
      %7065 = vmatpush2.msra.mxu0 0.0
      %7066 = vmatprep.subr.mxu0 0.0
      %7067 = vmatpush2.msra.mxu0 0.0
      %7068 = vmatprep.subr.mxu0 0.0
      %7069 = vmatpush2.msra.mxu0 0.0
      %7070 = vmatprep.subr.mxu0 0.0
      %7071 = vmatpush2.msra.mxu0 0.0
      %7072 = vmatprep.subr.mxu0 0.0
      %7073 = vmatpush2.msra.mxu0 0.0
      %7074 = vmatprep.subr.mxu0 0.0
      %7075 = vmatpush2.msra.mxu0 0.0
      %7076 = vmatprep.subr.mxu0 0.0
      %7077 = vmatpush2.msra.mxu0 0.0
      %7078 = vmatprep.subr.mxu0 0.0
      %7079 = vmatpush2.msra.mxu0 0.0
      %7080 = vmatprep.subr.mxu0 0.0
      %7081 = vmatpush2.msra.mxu0 0.0
      %7082 = vmatprep.subr.mxu0 0.0
      %7083 = vmatpush2.msra.mxu0 0.0
      %7084 = vmatprep.subr.mxu0 0.0
      %7085 = vmatpush2.msra.mxu0 0.0
      %7086 = vmatprep.subr.mxu0 0.0
      %7087 = vmatpush2.msra.mxu0 0.0
      %7088 = vmatprep.subr.mxu0 0.0
      %7089 = vmatpush2.msra.mxu0 0.0
      %7090 = vmatprep.subr.mxu0 0.0
      %7091 = vmatpush2.msra.mxu0 0.0
      %7092 = vmatprep.subr.mxu0 0.0
      %7093 = vmatpush2.msra.mxu0 0.0
      %7094 = vmatprep.mubr.f32.mxu0 0.0
      %7095 = vmatmul.mubr.f32.gmra.mxu0 %v6968
      %v7096 = vpop.f32.mrf.mxu0
      %v7097 = vadd.f32 0.0, %v7096
      %v7098 = vpop.f32.mrf.mxu0
      %7099 = vmatprep.mubr.f32.mxu0 0.0
      %7100 = vmatmul.mubr.f32.gmra.mxu0 %v6971
      %v7101 = vpop.f32.mrf.mxu0
      %v7102 = vadd.f32 0.0, %v7101
      %v7103 = vpop.f32.mrf.mxu0
      %7104 = vmatprep.mubr.f32.mxu0 0.0
      %7105 = vmatmul.mubr.f32.gmra.mxu0 %v6974
      %v7106 = vpop.f32.mrf.mxu0
      %v7107 = vadd.f32 0.0, %v7106
      %v7108 = vpop.f32.mrf.mxu0
      %7109 = vmatprep.mubr.f32.mxu0 0.0
      %7110 = vmatmul.mubr.f32.gmra.mxu0 %v6977
      %v7111 = vpop.f32.mrf.mxu0
      %v7112 = vadd.f32 0.0, %v7111
      %v7113 = vpop.f32.mrf.mxu0
      %7114 = vmatprep.mubr.f32.mxu0 0.0
      %7115 = vmatmul.mubr.f32.gmra.mxu0 %v6980
      %v7116 = vpop.f32.mrf.mxu0
      %v7117 = vadd.f32 0.0, %v7116
      %v7118 = vpop.f32.mrf.mxu0
      %7119 = vmatprep.mubr.f32.mxu0 0.0
      %7120 = vmatmul.mubr.f32.gmra.mxu0 %v6983
      %v7121 = vpop.f32.mrf.mxu0
      %v7122 = vadd.f32 0.0, %v7121
      %v7123 = vpop.f32.mrf.mxu0
      %7124 = vmatprep.mubr.f32.mxu0 0.0
      %7125 = vmatmul.mubr.f32.gmra.mxu0 %v6986
      %v7126 = vpop.f32.mrf.mxu0
      %v7127 = vadd.f32 0.0, %v7126
      %v7128 = vpop.f32.mrf.mxu0
      %7129 = vmatprep.mubr.f32.mxu0 0.0
      %7130 = vmatmul.mubr.f32.gmra.mxu0 %v6989
      %v7131 = vpop.f32.mrf.mxu0
      %v7132 = vadd.f32 0.0, %v7131
      %v7133 = vpop.f32.mrf.mxu0
      %7134 = vmatprep.mubr.f32.mxu0 0.0
      %7135 = vmatmul.mubr.f32.gmra.mxu0 %v6992
      %v7136 = vpop.f32.mrf.mxu0
      %v7137 = vadd.f32 0.0, %v7136
      %v7138 = vpop.f32.mrf.mxu0
      %7139 = vmatprep.mubr.f32.mxu0 0.0
      %7140 = vmatmul.mubr.f32.gmra.mxu0 %v6995
      %v7141 = vpop.f32.mrf.mxu0
      %v7142 = vadd.f32 0.0, %v7141
      %v7143 = vpop.f32.mrf.mxu0
      %7144 = vmatprep.mubr.f32.mxu0 0.0
      %7145 = vmatmul.mubr.f32.gmra.mxu0 %v6998
      %v7146 = vpop.f32.mrf.mxu0
      %v7147 = vadd.f32 0.0, %v7146
      %v7148 = vpop.f32.mrf.mxu0
      %7149 = vmatprep.mubr.f32.mxu0 0.0
      %7150 = vmatmul.mubr.f32.gmra.mxu0 %v7001
      %v7151 = vpop.f32.mrf.mxu0
      %v7152 = vadd.f32 0.0, %v7151
      %v7153 = vpop.f32.mrf.mxu0
      %7154 = vmatprep.mubr.f32.mxu0 0.0
      %7155 = vmatmul.mubr.f32.gmra.mxu0 %v7004
      %v7156 = vpop.f32.mrf.mxu0
      %v7157 = vadd.f32 0.0, %v7156
      %v7158 = vpop.f32.mrf.mxu0
      %7159 = vmatprep.mubr.f32.mxu0 0.0
      %7160 = vmatmul.mubr.f32.gmra.mxu0 %v7007
      %v7161 = vpop.f32.mrf.mxu0
      %v7162 = vadd.f32 0.0, %v7161
      %v7163 = vpop.f32.mrf.mxu0
      %7164 = vmatprep.mubr.f32.mxu0 0.0
      %7165 = vmatmul.mubr.f32.gmra.mxu0 %v7010
      %v7166 = vpop.f32.mrf.mxu0
      %v7167 = vadd.f32 0.0, %v7166
      %v7168 = vpop.f32.mrf.mxu0
      %7169 = vmatprep.mubr.f32.mxu0 0.0
      %7170 = vmatmul.mubr.f32.gmra.mxu0 %v7013
      %v7171 = vpop.f32.mrf.mxu0
      %v7172 = vadd.f32 0.0, %v7171
      %v7173 = vpop.f32.mrf.mxu0
      %7174 = vmatprep.mubr.f32.mxu0 0.0
      %7175 = vmatmul.mubr.f32.gmra.mxu0 %v7016
      %v7176 = vpop.f32.mrf.mxu0
      %v7177 = vadd.f32 0.0, %v7176
      %v7178 = vpop.f32.mrf.mxu0
      %7179 = vmatprep.mubr.f32.mxu0 0.0
      %7180 = vmatmul.mubr.f32.gmra.mxu0 %v7019
      %v7181 = vpop.f32.mrf.mxu0
      %v7182 = vadd.f32 0.0, %v7181
      %v7183 = vpop.f32.mrf.mxu0
      %7184 = vmatprep.mubr.f32.mxu0 0.0
      %7185 = vmatmul.mubr.f32.gmra.mxu0 %v7022
      %v7186 = vpop.f32.mrf.mxu0
      %v7187 = vadd.f32 0.0, %v7186
      %v7188 = vpop.f32.mrf.mxu0
      %7189 = vmatprep.mubr.f32.mxu0 0.0
      %7190 = vmatmul.mubr.f32.gmra.mxu0 %v7025
      %v7191 = vpop.f32.mrf.mxu0
      %v7192 = vadd.f32 0.0, %v7191
      %v7193 = vpop.f32.mrf.mxu0
      %7194 = vdwg.mxu0
      %v7195 = vadd.f32 %v6945, %v7097
      %v7196 = vadd.f32 %v6946, %v7102
      %v7197 = vadd.f32 %v6947, %v7107
      %v7198 = vadd.f32 %v6948, %v7112
      %v7199 = vadd.f32 %v6949, %v7117
      %v7200 = vadd.f32 %v6950, %v7122
      %v7201 = vadd.f32 %v6951, %v7127
      %v7202 = vadd.f32 %v6952, %v7132
      %v7203 = vadd.f32 %v6953, %v7137
      %v7204 = vadd.f32 %v6954, %v7142
      %v7205 = vadd.f32 %v6955, %v7147
      %v7206 = vadd.f32 %v6956, %v7152
      %v7207 = vadd.f32 %v6957, %v7157
      %v7208 = vadd.f32 %v6958, %v7162
      %v7209 = vadd.f32 %v6959, %v7167
      %v7210 = vadd.f32 %v6960, %v7172
      %v7211 = vadd.f32 %v6961, %v7177
      %v7212 = vadd.f32 %v6962, %v7182
      %v7213 = vadd.f32 %v6963, %v7187
      %v7214 = vadd.f32 %v6964, %v7192
      %7215 = vst.msk [vmem:[#allocation5] sm:$0xff] %vm4422, %v7195
      %7216 = vst.msk [vmem:[#allocation5 + $0x8] sm:$0xff] %vm4422, %v7196
      %7217 = vst.msk [vmem:[#allocation5 + $0x10] sm:$0xff] %vm4422, %v7197
      %7218 = vst.msk [vmem:[#allocation5 + $0x18] sm:$0xff] %vm4422, %v7198
      %7219 = vst.msk [vmem:[#allocation5 + $0x20] sm:$0xff] %vm4422, %v7199
      %7220 = vst.msk [vmem:[#allocation5 + $0x28] sm:$0xff] %vm4422, %v7200
      %7221 = vst.msk [vmem:[#allocation5 + $0x30] sm:$0xff] %vm4422, %v7201
      %7222 = vst.msk [vmem:[#allocation5 + $0x38] sm:$0xff] %vm4422, %v7202
      %7223 = vst.msk [vmem:[#allocation5 + $0x40] sm:$0xff] %vm4422, %v7203
      %7224 = vst.msk [vmem:[#allocation5 + $0x48] sm:$0xff] %vm4422, %v7204
      %7225 = vst.msk [vmem:[#allocation5 + $0x50] sm:$0xff] %vm4422, %v7205
      %7226 = vst.msk [vmem:[#allocation5 + $0x58] sm:$0xff] %vm4422, %v7206
      %7227 = vst.msk [vmem:[#allocation5 + $0x60] sm:$0xff] %vm4422, %v7207
      %7228 = vst.msk [vmem:[#allocation5 + $0x68] sm:$0xff] %vm4422, %v7208
      %7229 = vst.msk [vmem:[#allocation5 + $0x70] sm:$0xff] %vm4422, %v7209
      %7230 = vst.msk [vmem:[#allocation5 + $0x78] sm:$0xff] %vm4422, %v7210
      %7231 = vst.msk [vmem:[#allocation5 + $0x80] sm:$0xff] %vm4422, %v7211
      %7232 = vst.msk [vmem:[#allocation5 + $0x88] sm:$0xff] %vm4422, %v7212
      %7233 = vst.msk [vmem:[#allocation5 + $0x90] sm:$0xff] %vm4422, %v7213
      %7234 = vst.msk [vmem:[#allocation5 + $0x98] sm:$0xff] %vm4422, %v7214
      %v7235 = vld [vmem:[#allocation5] sm:$0xff]
      %v7236 = vld [vmem:[#allocation5 + $0x8] sm:$0xff]
      %v7237 = vld [vmem:[#allocation5 + $0x10] sm:$0xff]
      %v7238 = vld [vmem:[#allocation5 + $0x18] sm:$0xff]
      %v7239 = vld [vmem:[#allocation5 + $0x20] sm:$0xff]
      %v7240 = vld [vmem:[#allocation5 + $0x28] sm:$0xff]
      %v7241 = vld [vmem:[#allocation5 + $0x30] sm:$0xff]
      %v7242 = vld [vmem:[#allocation5 + $0x38] sm:$0xff]
      %v7243 = vld [vmem:[#allocation5 + $0x40] sm:$0xff]
      %v7244 = vld [vmem:[#allocation5 + $0x48] sm:$0xff]
      %v7245 = vld [vmem:[#allocation5 + $0x50] sm:$0xff]
      %v7246 = vld [vmem:[#allocation5 + $0x58] sm:$0xff]
      %v7247 = vld [vmem:[#allocation5 + $0x60] sm:$0xff]
      %v7248 = vld [vmem:[#allocation5 + $0x68] sm:$0xff]
      %v7249 = vld [vmem:[#allocation5 + $0x70] sm:$0xff]
      %v7250 = vld [vmem:[#allocation5 + $0x78] sm:$0xff]
      %v7251 = vld [vmem:[#allocation5 + $0x80] sm:$0xff]
      %v7252 = vld [vmem:[#allocation5 + $0x88] sm:$0xff]
      %v7253 = vld [vmem:[#allocation5 + $0x90] sm:$0xff]
      %v7254 = vld [vmem:[#allocation5 + $0x98] sm:$0xff]
      %v7255 = vmax.f32 %v7235, 0.0
      %v7256 = vmax.f32 %v7236, 0.0
      %v7257 = vmax.f32 %v7237, 0.0
      %v7258 = vmax.f32 %v7238, 0.0
      %v7259 = vmax.f32 %v7239, 0.0
      %v7260 = vmax.f32 %v7240, 0.0
      %v7261 = vmax.f32 %v7241, 0.0
      %v7262 = vmax.f32 %v7242, 0.0
      %v7263 = vmax.f32 %v7243, 0.0
      %v7264 = vmax.f32 %v7244, 0.0
      %v7265 = vmax.f32 %v7245, 0.0
      %v7266 = vmax.f32 %v7246, 0.0
      %v7267 = vmax.f32 %v7247, 0.0
      %v7268 = vmax.f32 %v7248, 0.0
      %v7269 = vmax.f32 %v7249, 0.0
      %v7270 = vmax.f32 %v7250, 0.0
      %v7271 = vmax.f32 %v7251, 0.0
      %v7272 = vmax.f32 %v7252, 0.0
      %v7273 = vmax.f32 %v7253, 0.0
      %v7274 = vmax.f32 %v7254, 0.0
      %7295 = vrot.lane.b32.xlu0 %v7255, 126
      %v7296 = vpop.permute.xlu0 %7295
      %7297 = vrot.lane.b32.xlu0 %v7256, 126
      %v7298 = vpop.permute.xlu0 %7297
      %7299 = vrot.lane.b32.xlu0 %v7257, 126
      %v7300 = vpop.permute.xlu0 %7299
      %7301 = vrot.lane.b32.xlu0 %v7258, 126
      %v7302 = vpop.permute.xlu0 %7301
      %7303 = vrot.lane.b32.xlu0 %v7259, 126
      %v7304 = vpop.permute.xlu0 %7303
      %7305 = vrot.lane.b32.xlu0 %v7260, 126
      %v7306 = vpop.permute.xlu0 %7305
      %7307 = vrot.lane.b32.xlu0 %v7261, 126
      %v7308 = vpop.permute.xlu0 %7307
      %7309 = vrot.lane.b32.xlu0 %v7262, 126
      %v7310 = vpop.permute.xlu0 %7309
      %7311 = vrot.lane.b32.xlu0 %v7263, 126
      %v7312 = vpop.permute.xlu0 %7311
      %7313 = vrot.lane.b32.xlu0 %v7264, 126
      %v7314 = vpop.permute.xlu0 %7313
      %7315 = vrot.lane.b32.xlu0 %v7265, 126
      %v7316 = vpop.permute.xlu0 %7315
      %7317 = vrot.lane.b32.xlu0 %v7266, 126
      %v7318 = vpop.permute.xlu0 %7317
      %7319 = vrot.lane.b32.xlu0 %v7267, 126
      %v7320 = vpop.permute.xlu0 %7319
      %7321 = vrot.lane.b32.xlu0 %v7268, 126
      %v7322 = vpop.permute.xlu0 %7321
      %7323 = vrot.lane.b32.xlu0 %v7269, 126
      %v7324 = vpop.permute.xlu0 %7323
      %7325 = vrot.lane.b32.xlu0 %v7270, 126
      %v7326 = vpop.permute.xlu0 %7325
      %7327 = vrot.lane.b32.xlu0 %v7271, 126
      %v7328 = vpop.permute.xlu0 %7327
      %7329 = vrot.lane.b32.xlu0 %v7272, 126
      %v7330 = vpop.permute.xlu0 %7329
      %7331 = vrot.lane.b32.xlu0 %v7273, 126
      %v7332 = vpop.permute.xlu0 %7331
      %7333 = vrot.lane.b32.xlu0 %v7274, 126
      %v7334 = vpop.permute.xlu0 %7333
      %7355 = vst.msk [vmem:[#allocation3 + $0x1] sm:$0xff] %vm4375, %v7296
      %7356 = vst.msk [vmem:[#allocation3 + $0x9] sm:$0xff] %vm4375, %v7298
      %7357 = vst.msk [vmem:[#allocation3 + $0x19] sm:$0xff] %vm4375, %v7300
      %7358 = vst.msk [vmem:[#allocation3 + $0x21] sm:$0xff] %vm4375, %v7302
      %7359 = vst.msk [vmem:[#allocation3 + $0x31] sm:$0xff] %vm4375, %v7304
      %7360 = vst.msk [vmem:[#allocation3 + $0x39] sm:$0xff] %vm4375, %v7306
      %7361 = vst.msk [vmem:[#allocation3 + $0x49] sm:$0xff] %vm4375, %v7308
      %7362 = vst.msk [vmem:[#allocation3 + $0x51] sm:$0xff] %vm4375, %v7310
      %7363 = vst.msk [vmem:[#allocation3 + $0x61] sm:$0xff] %vm4375, %v7312
      %7364 = vst.msk [vmem:[#allocation3 + $0x69] sm:$0xff] %vm4375, %v7314
      %7365 = vst.msk [vmem:[#allocation3 + $0x79] sm:$0xff] %vm4375, %v7316
      %7366 = vst.msk [vmem:[#allocation3 + $0x81] sm:$0xff] %vm4375, %v7318
      %7367 = vst.msk [vmem:[#allocation3 + $0x91] sm:$0xff] %vm4375, %v7320
      %7368 = vst.msk [vmem:[#allocation3 + $0x99] sm:$0xff] %vm4375, %v7322
      %7369 = vst.msk [vmem:[#allocation3 + $0xa9] sm:$0xff] %vm4375, %v7324
      %7370 = vst.msk [vmem:[#allocation3 + $0xb1] sm:$0xff] %vm4375, %v7326
      %7371 = vst.msk [vmem:[#allocation3 + $0xc1] sm:$0xff] %vm4375, %v7328
      %7372 = vst.msk [vmem:[#allocation3 + $0xc9] sm:$0xff] %vm4375, %v7330
      %7373 = vst.msk [vmem:[#allocation3 + $0xd9] sm:$0xff] %vm4375, %v7332
      %7374 = vst.msk [vmem:[#allocation3 + $0xe1] sm:$0xff] %vm4375, %v7334
      // Predicated region
      $region97: #{detect_module_forward.1} parent=71 // pred_check
        %p7375 = pneg %p963
      $region98: #{detect_module_forward.1} parent=71 // pred_check_branch
        %7377 = sbr.rel (%p7375) target = $region100
      $region99: #{detect_module_forward.1} parent=71 // pred_region
        %7378 = vst.msk [vmem:[#allocation3 + $0x1] sm:$0xff] %vm4375, 0.0
        %7379 = vst.msk [vmem:[#allocation3 + $0x9] sm:$0xff] %vm4375, 0.0
      $region100: #{detect_module_forward.1} parent=71 // pred_fallthru
        _
      // Predicated region
      $region101: #{detect_module_forward.1} parent=71 // pred_check
        %p7380 = pneg %p992
      $region102: #{detect_module_forward.1} parent=71 // pred_check_branch
        %7382 = sbr.rel (%p7380) target = $region104
      $region103: #{detect_module_forward.1} parent=71 // pred_region
        %s7383 = scalar_lea.vmem [#allocation3], 216
        %7384 = vst.msk [vmem:[%s7383 + $0x1] sm:$0xff] %vm4375, 0.0
        %7385 = vst.msk [vmem:[%s7383 + $0x9] sm:$0xff] %vm4375, 0.0
      $region104: #{detect_module_forward.1} parent=71 // pred_fallthru
        _
      %v7386 = vld [vmem:[%s12] sm:$0x1]
      %v7388 = vlaneseq
      %v7389 = vshrl.u32 %v7388, 7
      %v7390 = vsub.s32 0, %v7389
      %v7391 = vrot.slane %v7386, %v7390
      %7393 = vst.msk [vmem:[#allocation6] sm:$0xff] %vm4375, %v7391
      %7394 = vst.msk [vmem:[#allocation6 + $0x8] sm:$0xff] %vm4375, %v7391
      %7395 = vst.msk [vmem:[#allocation6 + $0x10] sm:$0xff] %vm4375, %v7391
      %7396 = vst.msk [vmem:[#allocation6 + $0x18] sm:$0xff] %vm4375, %v7391
      %7397 = vst.msk [vmem:[#allocation6 + $0x20] sm:$0xff] %vm4375, %v7391
      %7398 = vst.msk [vmem:[#allocation6 + $0x28] sm:$0xff] %vm4375, %v7391
      %7399 = vst.msk [vmem:[#allocation6 + $0x30] sm:$0xff] %vm4375, %v7391
      %7400 = vst.msk [vmem:[#allocation6 + $0x38] sm:$0xff] %vm4375, %v7391
      %7401 = vst.msk [vmem:[#allocation6 + $0x40] sm:$0xff] %vm4375, %v7391
      %7402 = vst.msk [vmem:[#allocation6 + $0x48] sm:$0xff] %vm4375, %v7391
      %7403 = vst.msk [vmem:[#allocation6 + $0x50] sm:$0xff] %vm4375, %v7391
      %7404 = vst.msk [vmem:[#allocation6 + $0x58] sm:$0xff] %vm4375, %v7391
      %7405 = vst.msk [vmem:[#allocation6 + $0x60] sm:$0xff] %vm4375, %v7391
      %7406 = vst.msk [vmem:[#allocation6 + $0x68] sm:$0xff] %vm4375, %v7391
      %7407 = vst.msk [vmem:[#allocation6 + $0x70] sm:$0xff] %vm4375, %v7391
      %7408 = vst.msk [vmem:[#allocation6 + $0x78] sm:$0xff] %vm4375, %v7391
      %v7409 = vld [vmem:[#allocation3] sm:$0xff]
      %v7410 = vld [vmem:[#allocation3 + $0x8] sm:$0xff]
      %v7411 = vld [vmem:[#allocation3 + $0x18] sm:$0xff]
      %v7412 = vld [vmem:[#allocation3 + $0x20] sm:$0xff]
      %v7413 = vld [vmem:[#allocation3 + $0x30] sm:$0xff]
      %v7414 = vld [vmem:[#allocation3 + $0x38] sm:$0xff]
      %v7415 = vld [vmem:[#allocation3 + $0x48] sm:$0xff]
      %v7416 = vld [vmem:[#allocation3 + $0x50] sm:$0xff]
      %v7417 = vld [vmem:[#allocation3 + $0x60] sm:$0xff]
      %v7418 = vld [vmem:[#allocation3 + $0x68] sm:$0xff]
      %v7419 = vld [vmem:[#allocation3 + $0x78] sm:$0xff]
      %v7420 = vld [vmem:[#allocation3 + $0x80] sm:$0xff]
      %v7421 = vld [vmem:[#allocation3 + $0x90] sm:$0xff]
      %v7422 = vld [vmem:[#allocation3 + $0x98] sm:$0xff]
      %v7423 = vld [vmem:[#allocation3 + $0xa8] sm:$0xff]
      %v7424 = vld [vmem:[#allocation3 + $0xb0] sm:$0xff]
      %v7425 = vld [vmem:[#allocation6] sm:$0xff]
      %v7426 = vld [vmem:[#allocation6 + $0x8] sm:$0xff]
      %v7427 = vld [vmem:[#allocation6 + $0x10] sm:$0xff]
      %v7428 = vld [vmem:[#allocation6 + $0x18] sm:$0xff]
      %v7429 = vld [vmem:[#allocation6 + $0x20] sm:$0xff]
      %v7430 = vld [vmem:[#allocation6 + $0x28] sm:$0xff]
      %v7431 = vld [vmem:[#allocation6 + $0x30] sm:$0xff]
      %v7432 = vld [vmem:[#allocation6 + $0x38] sm:$0xff]
      %v7433 = vld [vmem:[#allocation6 + $0x40] sm:$0xff]
      %v7434 = vld [vmem:[#allocation6 + $0x48] sm:$0xff]
      %v7435 = vld [vmem:[#allocation6 + $0x50] sm:$0xff]
      %v7436 = vld [vmem:[#allocation6 + $0x58] sm:$0xff]
      %v7437 = vld [vmem:[#allocation6 + $0x60] sm:$0xff]
      %v7438 = vld [vmem:[#allocation6 + $0x68] sm:$0xff]
      %v7439 = vld [vmem:[#allocation6 + $0x70] sm:$0xff]
      %v7440 = vld [vmem:[#allocation6 + $0x78] sm:$0xff]
      %v7441 = vld [vmem:[%s11] sm:$0x3]
      %v7443 = vsel %vm4375, %v7409, 0
      %v7446 = vsel %vm4375, %v7410, 0
      %v7449 = vsel %vm4375, %v7411, 0
      %v7452 = vsel %vm4375, %v7412, 0
      %v7455 = vsel %vm4375, %v7413, 0
      %v7458 = vsel %vm4375, %v7414, 0
      %v7461 = vsel %vm4375, %v7415, 0
      %v7464 = vsel %vm4375, %v7416, 0
      %v7467 = vsel %vm4375, %v7417, 0
      %v7470 = vsel %vm4375, %v7418, 0
      %v7473 = vsel %vm4375, %v7419, 0
      %v7476 = vsel %vm4375, %v7420, 0
      %v7479 = vsel %vm4375, %v7421, 0
      %v7482 = vsel %vm4375, %v7422, 0
      %v7485 = vsel %vm4375, %v7423, 0
      %v7488 = vsel %vm4375, %v7424, 0
      %v7491 = vsel %vm4544, %v7441, 0
      %7493 = vmatprep.subr.mxu0 0.0
      %7494 = vmatpush1.msra.mxu0 0.0
      %7495 = vmatprep.subr.mxu0 0.0
      %7496 = vmatpush1.msra.mxu0 0.0
      %7497 = vmatprep.subr.mxu0 0.0
      %7498 = vmatpush1.msra.mxu0 0.0
      %7499 = vmatprep.subr.mxu0 0.0
      %7500 = vmatpush1.msra.mxu0 0.0
      %7501 = vmatprep.subr.mxu0 0.0
      %7502 = vmatpush1.msra.mxu0 0.0
      %7503 = vmatprep.subr.mxu0 0.0
      %7504 = vmatpush1.msra.mxu0 0.0
      %7505 = vmatprep.subr.mxu0 0.0
      %7506 = vmatpush1.msra.mxu0 0.0
      %7507 = vmatprep.subr.mxu0 0.0
      %7508 = vmatpush1.msra.mxu0 0.0
      %7509 = vmatprep.subr.mxu0 0.0
      %7510 = vmatpush1.msra.mxu0 0.0
      %7511 = vmatprep.subr.mxu0 0.0
      %7512 = vmatpush1.msra.mxu0 0.0
      %7513 = vmatprep.subr.mxu0 0.0
      %7514 = vmatpush1.msra.mxu0 0.0
      %7515 = vmatprep.subr.mxu0 0.0
      %7516 = vmatpush1.msra.mxu0 0.0
      %7517 = vmatprep.subr.mxu0 0.0
      %7518 = vmatpush1.msra.mxu0 0.0
      %7519 = vmatprep.subr.mxu0 0.0
      %7520 = vmatpush1.msra.mxu0 0.0
      %7521 = vmatprep.subr.mxu0 0.0
      %7522 = vmatpush1.msra.mxu0 0.0
      %7523 = vmatprep.subr.mxu0 0.0
      %7524 = vmatpush1.msra.mxu0 %v7491
      %7525 = vmatprep.subr.mxu0 0.0
      %7526 = vmatpush2.msra.mxu0 0.0
      %7527 = vmatprep.subr.mxu0 0.0
      %7528 = vmatpush2.msra.mxu0 0.0
      %7529 = vmatprep.subr.mxu0 0.0
      %7530 = vmatpush2.msra.mxu0 0.0
      %7531 = vmatprep.subr.mxu0 0.0
      %7532 = vmatpush2.msra.mxu0 0.0
      %7533 = vmatprep.subr.mxu0 0.0
      %7534 = vmatpush2.msra.mxu0 0.0
      %7535 = vmatprep.subr.mxu0 0.0
      %7536 = vmatpush2.msra.mxu0 0.0
      %7537 = vmatprep.subr.mxu0 0.0
      %7538 = vmatpush2.msra.mxu0 0.0
      %7539 = vmatprep.subr.mxu0 0.0
      %7540 = vmatpush2.msra.mxu0 0.0
      %7541 = vmatprep.subr.mxu0 0.0
      %7542 = vmatpush2.msra.mxu0 0.0
      %7543 = vmatprep.subr.mxu0 0.0
      %7544 = vmatpush2.msra.mxu0 0.0
      %7545 = vmatprep.subr.mxu0 0.0
      %7546 = vmatpush2.msra.mxu0 0.0
      %7547 = vmatprep.subr.mxu0 0.0
      %7548 = vmatpush2.msra.mxu0 0.0
      %7549 = vmatprep.subr.mxu0 0.0
      %7550 = vmatpush2.msra.mxu0 0.0
      %7551 = vmatprep.subr.mxu0 0.0
      %7552 = vmatpush2.msra.mxu0 0.0
      %7553 = vmatprep.subr.mxu0 0.0
      %7554 = vmatpush2.msra.mxu0 0.0
      %7555 = vmatprep.subr.mxu0 0.0
      %7556 = vmatpush2.msra.mxu0 0.0
      %7557 = vmatprep.mubr.f32.mxu0 0.0
      %7558 = vmatmul.mubr.f32.gmra.mxu0 %v7443
      %v7559 = vpop.f32.mrf.mxu0
      %v7560 = vadd.f32 0.0, %v7559
      %v7561 = vpop.f32.mrf.mxu0
      %7562 = vmatprep.mubr.f32.mxu0 0.0
      %7563 = vmatmul.mubr.f32.gmra.mxu0 %v7446
      %v7564 = vpop.f32.mrf.mxu0
      %v7565 = vadd.f32 0.0, %v7564
      %v7566 = vpop.f32.mrf.mxu0
      %7567 = vmatprep.mubr.f32.mxu0 0.0
      %7568 = vmatmul.mubr.f32.gmra.mxu0 %v7449
      %v7569 = vpop.f32.mrf.mxu0
      %v7570 = vadd.f32 0.0, %v7569
      %v7571 = vpop.f32.mrf.mxu0
      %7572 = vmatprep.mubr.f32.mxu0 0.0
      %7573 = vmatmul.mubr.f32.gmra.mxu0 %v7452
      %v7574 = vpop.f32.mrf.mxu0
      %v7575 = vadd.f32 0.0, %v7574
      %v7576 = vpop.f32.mrf.mxu0
      %7577 = vmatprep.mubr.f32.mxu0 0.0
      %7578 = vmatmul.mubr.f32.gmra.mxu0 %v7455
      %v7579 = vpop.f32.mrf.mxu0
      %v7580 = vadd.f32 0.0, %v7579
      %v7581 = vpop.f32.mrf.mxu0
      %7582 = vmatprep.mubr.f32.mxu0 0.0
      %7583 = vmatmul.mubr.f32.gmra.mxu0 %v7458
      %v7584 = vpop.f32.mrf.mxu0
      %v7585 = vadd.f32 0.0, %v7584
      %v7586 = vpop.f32.mrf.mxu0
      %7587 = vmatprep.mubr.f32.mxu0 0.0
      %7588 = vmatmul.mubr.f32.gmra.mxu0 %v7461
      %v7589 = vpop.f32.mrf.mxu0
      %v7590 = vadd.f32 0.0, %v7589
      %v7591 = vpop.f32.mrf.mxu0
      %7592 = vmatprep.mubr.f32.mxu0 0.0
      %7593 = vmatmul.mubr.f32.gmra.mxu0 %v7464
      %v7594 = vpop.f32.mrf.mxu0
      %v7595 = vadd.f32 0.0, %v7594
      %v7596 = vpop.f32.mrf.mxu0
      %7597 = vmatprep.mubr.f32.mxu0 0.0
      %7598 = vmatmul.mubr.f32.gmra.mxu0 %v7467
      %v7599 = vpop.f32.mrf.mxu0
      %v7600 = vadd.f32 0.0, %v7599
      %v7601 = vpop.f32.mrf.mxu0
      %7602 = vmatprep.mubr.f32.mxu0 0.0
      %7603 = vmatmul.mubr.f32.gmra.mxu0 %v7470
      %v7604 = vpop.f32.mrf.mxu0
      %v7605 = vadd.f32 0.0, %v7604
      %v7606 = vpop.f32.mrf.mxu0
      %7607 = vmatprep.mubr.f32.mxu0 0.0
      %7608 = vmatmul.mubr.f32.gmra.mxu0 %v7473
      %v7609 = vpop.f32.mrf.mxu0
      %v7610 = vadd.f32 0.0, %v7609
      %v7611 = vpop.f32.mrf.mxu0
      %7612 = vmatprep.mubr.f32.mxu0 0.0
      %7613 = vmatmul.mubr.f32.gmra.mxu0 %v7476
      %v7614 = vpop.f32.mrf.mxu0
      %v7615 = vadd.f32 0.0, %v7614
      %v7616 = vpop.f32.mrf.mxu0
      %7617 = vmatprep.mubr.f32.mxu0 0.0
      %7618 = vmatmul.mubr.f32.gmra.mxu0 %v7479
      %v7619 = vpop.f32.mrf.mxu0
      %v7620 = vadd.f32 0.0, %v7619
      %v7621 = vpop.f32.mrf.mxu0
      %7622 = vmatprep.mubr.f32.mxu0 0.0
      %7623 = vmatmul.mubr.f32.gmra.mxu0 %v7482
      %v7624 = vpop.f32.mrf.mxu0
      %v7625 = vadd.f32 0.0, %v7624
      %v7626 = vpop.f32.mrf.mxu0
      %7627 = vmatprep.mubr.f32.mxu0 0.0
      %7628 = vmatmul.mubr.f32.gmra.mxu0 %v7485
      %v7629 = vpop.f32.mrf.mxu0
      %v7630 = vadd.f32 0.0, %v7629
      %v7631 = vpop.f32.mrf.mxu0
      %7632 = vmatprep.mubr.f32.mxu0 0.0
      %7633 = vmatmul.mubr.f32.gmra.mxu0 %v7488
      %v7634 = vpop.f32.mrf.mxu0
      %v7635 = vadd.f32 0.0, %v7634
      %v7636 = vpop.f32.mrf.mxu0
      %7637 = vdwg.mxu0
      %v7638 = vadd.f32 %v7425, %v7560
      %v7639 = vadd.f32 %v7426, %v7565
      %v7640 = vadd.f32 %v7427, %v7570
      %v7641 = vadd.f32 %v7428, %v7575
      %v7642 = vadd.f32 %v7429, %v7580
      %v7643 = vadd.f32 %v7430, %v7585
      %v7644 = vadd.f32 %v7431, %v7590
      %v7645 = vadd.f32 %v7432, %v7595
      %v7646 = vadd.f32 %v7433, %v7600
      %v7647 = vadd.f32 %v7434, %v7605
      %v7648 = vadd.f32 %v7435, %v7610
      %v7649 = vadd.f32 %v7436, %v7615
      %v7650 = vadd.f32 %v7437, %v7620
      %v7651 = vadd.f32 %v7438, %v7625
      %v7652 = vadd.f32 %v7439, %v7630
      %v7653 = vadd.f32 %v7440, %v7635
      %7654 = vst.msk [vmem:[#allocation6] sm:$0xff] %vm4375, %v7638
      %7655 = vst.msk [vmem:[#allocation6 + $0x8] sm:$0xff] %vm4375, %v7639
      %7656 = vst.msk [vmem:[#allocation6 + $0x10] sm:$0xff] %vm4375, %v7640
      %7657 = vst.msk [vmem:[#allocation6 + $0x18] sm:$0xff] %vm4375, %v7641
      %7658 = vst.msk [vmem:[#allocation6 + $0x20] sm:$0xff] %vm4375, %v7642
      %7659 = vst.msk [vmem:[#allocation6 + $0x28] sm:$0xff] %vm4375, %v7643
      %7660 = vst.msk [vmem:[#allocation6 + $0x30] sm:$0xff] %vm4375, %v7644
      %7661 = vst.msk [vmem:[#allocation6 + $0x38] sm:$0xff] %vm4375, %v7645
      %7662 = vst.msk [vmem:[#allocation6 + $0x40] sm:$0xff] %vm4375, %v7646
      %7663 = vst.msk [vmem:[#allocation6 + $0x48] sm:$0xff] %vm4375, %v7647
      %7664 = vst.msk [vmem:[#allocation6 + $0x50] sm:$0xff] %vm4375, %v7648
      %7665 = vst.msk [vmem:[#allocation6 + $0x58] sm:$0xff] %vm4375, %v7649
      %7666 = vst.msk [vmem:[#allocation6 + $0x60] sm:$0xff] %vm4375, %v7650
      %7667 = vst.msk [vmem:[#allocation6 + $0x68] sm:$0xff] %vm4375, %v7651
      %7668 = vst.msk [vmem:[#allocation6 + $0x70] sm:$0xff] %vm4375, %v7652
      %7669 = vst.msk [vmem:[#allocation6 + $0x78] sm:$0xff] %vm4375, %v7653
      %v7670 = vld [vmem:[#allocation3 + $0x1] sm:$0xff]
      %v7671 = vld [vmem:[#allocation3 + $0x9] sm:$0xff]
      %v7672 = vld [vmem:[#allocation3 + $0x19] sm:$0xff]
      %v7673 = vld [vmem:[#allocation3 + $0x21] sm:$0xff]
      %v7674 = vld [vmem:[#allocation3 + $0x31] sm:$0xff]
      %v7675 = vld [vmem:[#allocation3 + $0x39] sm:$0xff]
      %v7676 = vld [vmem:[#allocation3 + $0x49] sm:$0xff]
      %v7677 = vld [vmem:[#allocation3 + $0x51] sm:$0xff]
      %v7678 = vld [vmem:[#allocation3 + $0x61] sm:$0xff]
      %v7679 = vld [vmem:[#allocation3 + $0x69] sm:$0xff]
      %v7680 = vld [vmem:[#allocation3 + $0x79] sm:$0xff]
      %v7681 = vld [vmem:[#allocation3 + $0x81] sm:$0xff]
      %v7682 = vld [vmem:[#allocation3 + $0x91] sm:$0xff]
      %v7683 = vld [vmem:[#allocation3 + $0x99] sm:$0xff]
      %v7684 = vld [vmem:[#allocation3 + $0xa9] sm:$0xff]
      %v7685 = vld [vmem:[#allocation3 + $0xb1] sm:$0xff]
      %v7686 = vld [vmem:[#allocation6] sm:$0xff]
      %v7687 = vld [vmem:[#allocation6 + $0x8] sm:$0xff]
      %v7688 = vld [vmem:[#allocation6 + $0x10] sm:$0xff]
      %v7689 = vld [vmem:[#allocation6 + $0x18] sm:$0xff]
      %v7690 = vld [vmem:[#allocation6 + $0x20] sm:$0xff]
      %v7691 = vld [vmem:[#allocation6 + $0x28] sm:$0xff]
      %v7692 = vld [vmem:[#allocation6 + $0x30] sm:$0xff]
      %v7693 = vld [vmem:[#allocation6 + $0x38] sm:$0xff]
      %v7694 = vld [vmem:[#allocation6 + $0x40] sm:$0xff]
      %v7695 = vld [vmem:[#allocation6 + $0x48] sm:$0xff]
      %v7696 = vld [vmem:[#allocation6 + $0x50] sm:$0xff]
      %v7697 = vld [vmem:[#allocation6 + $0x58] sm:$0xff]
      %v7698 = vld [vmem:[#allocation6 + $0x60] sm:$0xff]
      %v7699 = vld [vmem:[#allocation6 + $0x68] sm:$0xff]
      %v7700 = vld [vmem:[#allocation6 + $0x70] sm:$0xff]
      %v7701 = vld [vmem:[#allocation6 + $0x78] sm:$0xff]
      %s7702 = scalar_lea.vmem %s11, 2
      %v7703 = vld [vmem:[%s7702] sm:$0x3]
      %v7705 = vsel %vm4375, %v7670, 0
      %v7708 = vsel %vm4375, %v7671, 0
      %v7711 = vsel %vm4375, %v7672, 0
      %v7714 = vsel %vm4375, %v7673, 0
      %v7717 = vsel %vm4375, %v7674, 0
      %v7720 = vsel %vm4375, %v7675, 0
      %v7723 = vsel %vm4375, %v7676, 0
      %v7726 = vsel %vm4375, %v7677, 0
      %v7729 = vsel %vm4375, %v7678, 0
      %v7732 = vsel %vm4375, %v7679, 0
      %v7735 = vsel %vm4375, %v7680, 0
      %v7738 = vsel %vm4375, %v7681, 0
      %v7741 = vsel %vm4375, %v7682, 0
      %v7744 = vsel %vm4375, %v7683, 0
      %v7747 = vsel %vm4375, %v7684, 0
      %v7750 = vsel %vm4375, %v7685, 0
      %v7753 = vsel %vm4544, %v7703, 0
      %7755 = vmatprep.subr.mxu0 0.0
      %7756 = vmatpush1.msra.mxu0 0.0
      %7757 = vmatprep.subr.mxu0 0.0
      %7758 = vmatpush1.msra.mxu0 0.0
      %7759 = vmatprep.subr.mxu0 0.0
      %7760 = vmatpush1.msra.mxu0 0.0
      %7761 = vmatprep.subr.mxu0 0.0
      %7762 = vmatpush1.msra.mxu0 0.0
      %7763 = vmatprep.subr.mxu0 0.0
      %7764 = vmatpush1.msra.mxu0 0.0
      %7765 = vmatprep.subr.mxu0 0.0
      %7766 = vmatpush1.msra.mxu0 0.0
      %7767 = vmatprep.subr.mxu0 0.0
      %7768 = vmatpush1.msra.mxu0 0.0
      %7769 = vmatprep.subr.mxu0 0.0
      %7770 = vmatpush1.msra.mxu0 0.0
      %7771 = vmatprep.subr.mxu0 0.0
      %7772 = vmatpush1.msra.mxu0 0.0
      %7773 = vmatprep.subr.mxu0 0.0
      %7774 = vmatpush1.msra.mxu0 0.0
      %7775 = vmatprep.subr.mxu0 0.0
      %7776 = vmatpush1.msra.mxu0 0.0
      %7777 = vmatprep.subr.mxu0 0.0
      %7778 = vmatpush1.msra.mxu0 0.0
      %7779 = vmatprep.subr.mxu0 0.0
      %7780 = vmatpush1.msra.mxu0 0.0
      %7781 = vmatprep.subr.mxu0 0.0
      %7782 = vmatpush1.msra.mxu0 0.0
      %7783 = vmatprep.subr.mxu0 0.0
      %7784 = vmatpush1.msra.mxu0 0.0
      %7785 = vmatprep.subr.mxu0 0.0
      %7786 = vmatpush1.msra.mxu0 %v7753
      %7787 = vmatprep.subr.mxu0 0.0
      %7788 = vmatpush2.msra.mxu0 0.0
      %7789 = vmatprep.subr.mxu0 0.0
      %7790 = vmatpush2.msra.mxu0 0.0
      %7791 = vmatprep.subr.mxu0 0.0
      %7792 = vmatpush2.msra.mxu0 0.0
      %7793 = vmatprep.subr.mxu0 0.0
      %7794 = vmatpush2.msra.mxu0 0.0
      %7795 = vmatprep.subr.mxu0 0.0
      %7796 = vmatpush2.msra.mxu0 0.0
      %7797 = vmatprep.subr.mxu0 0.0
      %7798 = vmatpush2.msra.mxu0 0.0
      %7799 = vmatprep.subr.mxu0 0.0
      %7800 = vmatpush2.msra.mxu0 0.0
      %7801 = vmatprep.subr.mxu0 0.0
      %7802 = vmatpush2.msra.mxu0 0.0
      %7803 = vmatprep.subr.mxu0 0.0
      %7804 = vmatpush2.msra.mxu0 0.0
      %7805 = vmatprep.subr.mxu0 0.0
      %7806 = vmatpush2.msra.mxu0 0.0
      %7807 = vmatprep.subr.mxu0 0.0
      %7808 = vmatpush2.msra.mxu0 0.0
      %7809 = vmatprep.subr.mxu0 0.0
      %7810 = vmatpush2.msra.mxu0 0.0
      %7811 = vmatprep.subr.mxu0 0.0
      %7812 = vmatpush2.msra.mxu0 0.0
      %7813 = vmatprep.subr.mxu0 0.0
      %7814 = vmatpush2.msra.mxu0 0.0
      %7815 = vmatprep.subr.mxu0 0.0
      %7816 = vmatpush2.msra.mxu0 0.0
      %7817 = vmatprep.subr.mxu0 0.0
      %7818 = vmatpush2.msra.mxu0 0.0
      %7819 = vmatprep.mubr.f32.mxu0 0.0
      %7820 = vmatmul.mubr.f32.gmra.mxu0 %v7705
      %v7821 = vpop.f32.mrf.mxu0
      %v7822 = vadd.f32 0.0, %v7821
      %v7823 = vpop.f32.mrf.mxu0
      %7824 = vmatprep.mubr.f32.mxu0 0.0
      %7825 = vmatmul.mubr.f32.gmra.mxu0 %v7708
      %v7826 = vpop.f32.mrf.mxu0
      %v7827 = vadd.f32 0.0, %v7826
      %v7828 = vpop.f32.mrf.mxu0
      %7829 = vmatprep.mubr.f32.mxu0 0.0
      %7830 = vmatmul.mubr.f32.gmra.mxu0 %v7711
      %v7831 = vpop.f32.mrf.mxu0
      %v7832 = vadd.f32 0.0, %v7831
      %v7833 = vpop.f32.mrf.mxu0
      %7834 = vmatprep.mubr.f32.mxu0 0.0
      %7835 = vmatmul.mubr.f32.gmra.mxu0 %v7714
      %v7836 = vpop.f32.mrf.mxu0
      %v7837 = vadd.f32 0.0, %v7836
      %v7838 = vpop.f32.mrf.mxu0
      %7839 = vmatprep.mubr.f32.mxu0 0.0
      %7840 = vmatmul.mubr.f32.gmra.mxu0 %v7717
      %v7841 = vpop.f32.mrf.mxu0
      %v7842 = vadd.f32 0.0, %v7841
      %v7843 = vpop.f32.mrf.mxu0
      %7844 = vmatprep.mubr.f32.mxu0 0.0
      %7845 = vmatmul.mubr.f32.gmra.mxu0 %v7720
      %v7846 = vpop.f32.mrf.mxu0
      %v7847 = vadd.f32 0.0, %v7846
      %v7848 = vpop.f32.mrf.mxu0
      %7849 = vmatprep.mubr.f32.mxu0 0.0
      %7850 = vmatmul.mubr.f32.gmra.mxu0 %v7723
      %v7851 = vpop.f32.mrf.mxu0
      %v7852 = vadd.f32 0.0, %v7851
      %v7853 = vpop.f32.mrf.mxu0
      %7854 = vmatprep.mubr.f32.mxu0 0.0
      %7855 = vmatmul.mubr.f32.gmra.mxu0 %v7726
      %v7856 = vpop.f32.mrf.mxu0
      %v7857 = vadd.f32 0.0, %v7856
      %v7858 = vpop.f32.mrf.mxu0
      %7859 = vmatprep.mubr.f32.mxu0 0.0
      %7860 = vmatmul.mubr.f32.gmra.mxu0 %v7729
      %v7861 = vpop.f32.mrf.mxu0
      %v7862 = vadd.f32 0.0, %v7861
      %v7863 = vpop.f32.mrf.mxu0
      %7864 = vmatprep.mubr.f32.mxu0 0.0
      %7865 = vmatmul.mubr.f32.gmra.mxu0 %v7732
      %v7866 = vpop.f32.mrf.mxu0
      %v7867 = vadd.f32 0.0, %v7866
      %v7868 = vpop.f32.mrf.mxu0
      %7869 = vmatprep.mubr.f32.mxu0 0.0
      %7870 = vmatmul.mubr.f32.gmra.mxu0 %v7735
      %v7871 = vpop.f32.mrf.mxu0
      %v7872 = vadd.f32 0.0, %v7871
      %v7873 = vpop.f32.mrf.mxu0
      %7874 = vmatprep.mubr.f32.mxu0 0.0
      %7875 = vmatmul.mubr.f32.gmra.mxu0 %v7738
      %v7876 = vpop.f32.mrf.mxu0
      %v7877 = vadd.f32 0.0, %v7876
      %v7878 = vpop.f32.mrf.mxu0
      %7879 = vmatprep.mubr.f32.mxu0 0.0
      %7880 = vmatmul.mubr.f32.gmra.mxu0 %v7741
      %v7881 = vpop.f32.mrf.mxu0
      %v7882 = vadd.f32 0.0, %v7881
      %v7883 = vpop.f32.mrf.mxu0
      %7884 = vmatprep.mubr.f32.mxu0 0.0
      %7885 = vmatmul.mubr.f32.gmra.mxu0 %v7744
      %v7886 = vpop.f32.mrf.mxu0
      %v7887 = vadd.f32 0.0, %v7886
      %v7888 = vpop.f32.mrf.mxu0
      %7889 = vmatprep.mubr.f32.mxu0 0.0
      %7890 = vmatmul.mubr.f32.gmra.mxu0 %v7747
      %v7891 = vpop.f32.mrf.mxu0
      %v7892 = vadd.f32 0.0, %v7891
      %v7893 = vpop.f32.mrf.mxu0
      %7894 = vmatprep.mubr.f32.mxu0 0.0
      %7895 = vmatmul.mubr.f32.gmra.mxu0 %v7750
      %v7896 = vpop.f32.mrf.mxu0
      %v7897 = vadd.f32 0.0, %v7896
      %v7898 = vpop.f32.mrf.mxu0
      %7899 = vdwg.mxu0
      %v7900 = vadd.f32 %v7686, %v7822
      %v7901 = vadd.f32 %v7687, %v7827
      %v7902 = vadd.f32 %v7688, %v7832
      %v7903 = vadd.f32 %v7689, %v7837
      %v7904 = vadd.f32 %v7690, %v7842
      %v7905 = vadd.f32 %v7691, %v7847
      %v7906 = vadd.f32 %v7692, %v7852
      %v7907 = vadd.f32 %v7693, %v7857
      %v7908 = vadd.f32 %v7694, %v7862
      %v7909 = vadd.f32 %v7695, %v7867
      %v7910 = vadd.f32 %v7696, %v7872
      %v7911 = vadd.f32 %v7697, %v7877
      %v7912 = vadd.f32 %v7698, %v7882
      %v7913 = vadd.f32 %v7699, %v7887
      %v7914 = vadd.f32 %v7700, %v7892
      %v7915 = vadd.f32 %v7701, %v7897
      %7916 = vst.msk [vmem:[#allocation6] sm:$0xff] %vm4375, %v7900
      %7917 = vst.msk [vmem:[#allocation6 + $0x8] sm:$0xff] %vm4375, %v7901
      %7918 = vst.msk [vmem:[#allocation6 + $0x10] sm:$0xff] %vm4375, %v7902
      %7919 = vst.msk [vmem:[#allocation6 + $0x18] sm:$0xff] %vm4375, %v7903
      %7920 = vst.msk [vmem:[#allocation6 + $0x20] sm:$0xff] %vm4375, %v7904
      %7921 = vst.msk [vmem:[#allocation6 + $0x28] sm:$0xff] %vm4375, %v7905
      %7922 = vst.msk [vmem:[#allocation6 + $0x30] sm:$0xff] %vm4375, %v7906
      %7923 = vst.msk [vmem:[#allocation6 + $0x38] sm:$0xff] %vm4375, %v7907
      %7924 = vst.msk [vmem:[#allocation6 + $0x40] sm:$0xff] %vm4375, %v7908
      %7925 = vst.msk [vmem:[#allocation6 + $0x48] sm:$0xff] %vm4375, %v7909
      %7926 = vst.msk [vmem:[#allocation6 + $0x50] sm:$0xff] %vm4375, %v7910
      %7927 = vst.msk [vmem:[#allocation6 + $0x58] sm:$0xff] %vm4375, %v7911
      %7928 = vst.msk [vmem:[#allocation6 + $0x60] sm:$0xff] %vm4375, %v7912
      %7929 = vst.msk [vmem:[#allocation6 + $0x68] sm:$0xff] %vm4375, %v7913
      %7930 = vst.msk [vmem:[#allocation6 + $0x70] sm:$0xff] %vm4375, %v7914
      %7931 = vst.msk [vmem:[#allocation6 + $0x78] sm:$0xff] %vm4375, %v7915
      %v7932 = vld [vmem:[#allocation3 + $0x2] sm:$0xff]
      %v7933 = vld [vmem:[#allocation3 + $0xa] sm:$0xff]
      %v7934 = vld [vmem:[#allocation3 + $0x1a] sm:$0xff]
      %v7935 = vld [vmem:[#allocation3 + $0x22] sm:$0xff]
      %v7936 = vld [vmem:[#allocation3 + $0x32] sm:$0xff]
      %v7937 = vld [vmem:[#allocation3 + $0x3a] sm:$0xff]
      %v7938 = vld [vmem:[#allocation3 + $0x4a] sm:$0xff]
      %v7939 = vld [vmem:[#allocation3 + $0x52] sm:$0xff]
      %v7940 = vld [vmem:[#allocation3 + $0x62] sm:$0xff]
      %v7941 = vld [vmem:[#allocation3 + $0x6a] sm:$0xff]
      %v7942 = vld [vmem:[#allocation3 + $0x7a] sm:$0xff]
      %v7943 = vld [vmem:[#allocation3 + $0x82] sm:$0xff]
      %v7944 = vld [vmem:[#allocation3 + $0x92] sm:$0xff]
      %v7945 = vld [vmem:[#allocation3 + $0x9a] sm:$0xff]
      %v7946 = vld [vmem:[#allocation3 + $0xaa] sm:$0xff]
      %v7947 = vld [vmem:[#allocation3 + $0xb2] sm:$0xff]
      %v7948 = vld [vmem:[#allocation6] sm:$0xff]
      %v7949 = vld [vmem:[#allocation6 + $0x8] sm:$0xff]
      %v7950 = vld [vmem:[#allocation6 + $0x10] sm:$0xff]
      %v7951 = vld [vmem:[#allocation6 + $0x18] sm:$0xff]
      %v7952 = vld [vmem:[#allocation6 + $0x20] sm:$0xff]
      %v7953 = vld [vmem:[#allocation6 + $0x28] sm:$0xff]
      %v7954 = vld [vmem:[#allocation6 + $0x30] sm:$0xff]
      %v7955 = vld [vmem:[#allocation6 + $0x38] sm:$0xff]
      %v7956 = vld [vmem:[#allocation6 + $0x40] sm:$0xff]
      %v7957 = vld [vmem:[#allocation6 + $0x48] sm:$0xff]
      %v7958 = vld [vmem:[#allocation6 + $0x50] sm:$0xff]
      %v7959 = vld [vmem:[#allocation6 + $0x58] sm:$0xff]
      %v7960 = vld [vmem:[#allocation6 + $0x60] sm:$0xff]
      %v7961 = vld [vmem:[#allocation6 + $0x68] sm:$0xff]
      %v7962 = vld [vmem:[#allocation6 + $0x70] sm:$0xff]
      %v7963 = vld [vmem:[#allocation6 + $0x78] sm:$0xff]
      %s7964 = scalar_lea.vmem %s11, 4
      %v7965 = vld [vmem:[%s7964] sm:$0x3]
      %v7967 = vsel %vm4375, %v7932, 0
      %v7970 = vsel %vm4375, %v7933, 0
      %v7973 = vsel %vm4375, %v7934, 0
      %v7976 = vsel %vm4375, %v7935, 0
      %v7979 = vsel %vm4375, %v7936, 0
      %v7982 = vsel %vm4375, %v7937, 0
      %v7985 = vsel %vm4375, %v7938, 0
      %v7988 = vsel %vm4375, %v7939, 0
      %v7991 = vsel %vm4375, %v7940, 0
      %v7994 = vsel %vm4375, %v7941, 0
      %v7997 = vsel %vm4375, %v7942, 0
      %v8000 = vsel %vm4375, %v7943, 0
      %v8003 = vsel %vm4375, %v7944, 0
      %v8006 = vsel %vm4375, %v7945, 0
      %v8009 = vsel %vm4375, %v7946, 0
      %v8012 = vsel %vm4375, %v7947, 0
      %v8015 = vsel %vm4544, %v7965, 0
      %8017 = vmatprep.subr.mxu0 0.0
      %8018 = vmatpush1.msra.mxu0 0.0
      %8019 = vmatprep.subr.mxu0 0.0
      %8020 = vmatpush1.msra.mxu0 0.0
      %8021 = vmatprep.subr.mxu0 0.0
      %8022 = vmatpush1.msra.mxu0 0.0
      %8023 = vmatprep.subr.mxu0 0.0
      %8024 = vmatpush1.msra.mxu0 0.0
      %8025 = vmatprep.subr.mxu0 0.0
      %8026 = vmatpush1.msra.mxu0 0.0
      %8027 = vmatprep.subr.mxu0 0.0
      %8028 = vmatpush1.msra.mxu0 0.0
      %8029 = vmatprep.subr.mxu0 0.0
      %8030 = vmatpush1.msra.mxu0 0.0
      %8031 = vmatprep.subr.mxu0 0.0
      %8032 = vmatpush1.msra.mxu0 0.0
      %8033 = vmatprep.subr.mxu0 0.0
      %8034 = vmatpush1.msra.mxu0 0.0
      %8035 = vmatprep.subr.mxu0 0.0
      %8036 = vmatpush1.msra.mxu0 0.0
      %8037 = vmatprep.subr.mxu0 0.0
      %8038 = vmatpush1.msra.mxu0 0.0
      %8039 = vmatprep.subr.mxu0 0.0
      %8040 = vmatpush1.msra.mxu0 0.0
      %8041 = vmatprep.subr.mxu0 0.0
      %8042 = vmatpush1.msra.mxu0 0.0
      %8043 = vmatprep.subr.mxu0 0.0
      %8044 = vmatpush1.msra.mxu0 0.0
      %8045 = vmatprep.subr.mxu0 0.0
      %8046 = vmatpush1.msra.mxu0 0.0
      %8047 = vmatprep.subr.mxu0 0.0
      %8048 = vmatpush1.msra.mxu0 %v8015
      %8049 = vmatprep.subr.mxu0 0.0
      %8050 = vmatpush2.msra.mxu0 0.0
      %8051 = vmatprep.subr.mxu0 0.0
      %8052 = vmatpush2.msra.mxu0 0.0
      %8053 = vmatprep.subr.mxu0 0.0
      %8054 = vmatpush2.msra.mxu0 0.0
      %8055 = vmatprep.subr.mxu0 0.0
      %8056 = vmatpush2.msra.mxu0 0.0
      %8057 = vmatprep.subr.mxu0 0.0
      %8058 = vmatpush2.msra.mxu0 0.0
      %8059 = vmatprep.subr.mxu0 0.0
      %8060 = vmatpush2.msra.mxu0 0.0
      %8061 = vmatprep.subr.mxu0 0.0
      %8062 = vmatpush2.msra.mxu0 0.0
      %8063 = vmatprep.subr.mxu0 0.0
      %8064 = vmatpush2.msra.mxu0 0.0
      %8065 = vmatprep.subr.mxu0 0.0
      %8066 = vmatpush2.msra.mxu0 0.0
      %8067 = vmatprep.subr.mxu0 0.0
      %8068 = vmatpush2.msra.mxu0 0.0
      %8069 = vmatprep.subr.mxu0 0.0
      %8070 = vmatpush2.msra.mxu0 0.0
      %8071 = vmatprep.subr.mxu0 0.0
      %8072 = vmatpush2.msra.mxu0 0.0
      %8073 = vmatprep.subr.mxu0 0.0
      %8074 = vmatpush2.msra.mxu0 0.0
      %8075 = vmatprep.subr.mxu0 0.0
      %8076 = vmatpush2.msra.mxu0 0.0
      %8077 = vmatprep.subr.mxu0 0.0
      %8078 = vmatpush2.msra.mxu0 0.0
      %8079 = vmatprep.subr.mxu0 0.0
      %8080 = vmatpush2.msra.mxu0 0.0
      %8081 = vmatprep.mubr.f32.mxu0 0.0
      %8082 = vmatmul.mubr.f32.gmra.mxu0 %v7967
      %v8083 = vpop.f32.mrf.mxu0
      %v8084 = vadd.f32 0.0, %v8083
      %v8085 = vpop.f32.mrf.mxu0
      %8086 = vmatprep.mubr.f32.mxu0 0.0
      %8087 = vmatmul.mubr.f32.gmra.mxu0 %v7970
      %v8088 = vpop.f32.mrf.mxu0
      %v8089 = vadd.f32 0.0, %v8088
      %v8090 = vpop.f32.mrf.mxu0
      %8091 = vmatprep.mubr.f32.mxu0 0.0
      %8092 = vmatmul.mubr.f32.gmra.mxu0 %v7973
      %v8093 = vpop.f32.mrf.mxu0
      %v8094 = vadd.f32 0.0, %v8093
      %v8095 = vpop.f32.mrf.mxu0
      %8096 = vmatprep.mubr.f32.mxu0 0.0
      %8097 = vmatmul.mubr.f32.gmra.mxu0 %v7976
      %v8098 = vpop.f32.mrf.mxu0
      %v8099 = vadd.f32 0.0, %v8098
      %v8100 = vpop.f32.mrf.mxu0
      %8101 = vmatprep.mubr.f32.mxu0 0.0
      %8102 = vmatmul.mubr.f32.gmra.mxu0 %v7979
      %v8103 = vpop.f32.mrf.mxu0
      %v8104 = vadd.f32 0.0, %v8103
      %v8105 = vpop.f32.mrf.mxu0
      %8106 = vmatprep.mubr.f32.mxu0 0.0
      %8107 = vmatmul.mubr.f32.gmra.mxu0 %v7982
      %v8108 = vpop.f32.mrf.mxu0
      %v8109 = vadd.f32 0.0, %v8108
      %v8110 = vpop.f32.mrf.mxu0
      %8111 = vmatprep.mubr.f32.mxu0 0.0
      %8112 = vmatmul.mubr.f32.gmra.mxu0 %v7985
      %v8113 = vpop.f32.mrf.mxu0
      %v8114 = vadd.f32 0.0, %v8113
      %v8115 = vpop.f32.mrf.mxu0
      %8116 = vmatprep.mubr.f32.mxu0 0.0
      %8117 = vmatmul.mubr.f32.gmra.mxu0 %v7988
      %v8118 = vpop.f32.mrf.mxu0
      %v8119 = vadd.f32 0.0, %v8118
      %v8120 = vpop.f32.mrf.mxu0
      %8121 = vmatprep.mubr.f32.mxu0 0.0
      %8122 = vmatmul.mubr.f32.gmra.mxu0 %v7991
      %v8123 = vpop.f32.mrf.mxu0
      %v8124 = vadd.f32 0.0, %v8123
      %v8125 = vpop.f32.mrf.mxu0
      %8126 = vmatprep.mubr.f32.mxu0 0.0
      %8127 = vmatmul.mubr.f32.gmra.mxu0 %v7994
      %v8128 = vpop.f32.mrf.mxu0
      %v8129 = vadd.f32 0.0, %v8128
      %v8130 = vpop.f32.mrf.mxu0
      %8131 = vmatprep.mubr.f32.mxu0 0.0
      %8132 = vmatmul.mubr.f32.gmra.mxu0 %v7997
      %v8133 = vpop.f32.mrf.mxu0
      %v8134 = vadd.f32 0.0, %v8133
      %v8135 = vpop.f32.mrf.mxu0
      %8136 = vmatprep.mubr.f32.mxu0 0.0
      %8137 = vmatmul.mubr.f32.gmra.mxu0 %v8000
      %v8138 = vpop.f32.mrf.mxu0
      %v8139 = vadd.f32 0.0, %v8138
      %v8140 = vpop.f32.mrf.mxu0
      %8141 = vmatprep.mubr.f32.mxu0 0.0
      %8142 = vmatmul.mubr.f32.gmra.mxu0 %v8003
      %v8143 = vpop.f32.mrf.mxu0
      %v8144 = vadd.f32 0.0, %v8143
      %v8145 = vpop.f32.mrf.mxu0
      %8146 = vmatprep.mubr.f32.mxu0 0.0
      %8147 = vmatmul.mubr.f32.gmra.mxu0 %v8006
      %v8148 = vpop.f32.mrf.mxu0
      %v8149 = vadd.f32 0.0, %v8148
      %v8150 = vpop.f32.mrf.mxu0
      %8151 = vmatprep.mubr.f32.mxu0 0.0
      %8152 = vmatmul.mubr.f32.gmra.mxu0 %v8009
      %v8153 = vpop.f32.mrf.mxu0
      %v8154 = vadd.f32 0.0, %v8153
      %v8155 = vpop.f32.mrf.mxu0
      %8156 = vmatprep.mubr.f32.mxu0 0.0
      %8157 = vmatmul.mubr.f32.gmra.mxu0 %v8012
      %v8158 = vpop.f32.mrf.mxu0
      %v8159 = vadd.f32 0.0, %v8158
      %v8160 = vpop.f32.mrf.mxu0
      %8161 = vdwg.mxu0
      %v8162 = vadd.f32 %v7948, %v8084
      %v8163 = vadd.f32 %v7949, %v8089
      %v8164 = vadd.f32 %v7950, %v8094
      %v8165 = vadd.f32 %v7951, %v8099
      %v8166 = vadd.f32 %v7952, %v8104
      %v8167 = vadd.f32 %v7953, %v8109
      %v8168 = vadd.f32 %v7954, %v8114
      %v8169 = vadd.f32 %v7955, %v8119
      %v8170 = vadd.f32 %v7956, %v8124
      %v8171 = vadd.f32 %v7957, %v8129
      %v8172 = vadd.f32 %v7958, %v8134
      %v8173 = vadd.f32 %v7959, %v8139
      %v8174 = vadd.f32 %v7960, %v8144
      %v8175 = vadd.f32 %v7961, %v8149
      %v8176 = vadd.f32 %v7962, %v8154
      %v8177 = vadd.f32 %v7963, %v8159
      %8178 = vst.msk [vmem:[#allocation6] sm:$0xff] %vm4375, %v8162
      %8179 = vst.msk [vmem:[#allocation6 + $0x8] sm:$0xff] %vm4375, %v8163
      %8180 = vst.msk [vmem:[#allocation6 + $0x10] sm:$0xff] %vm4375, %v8164
      %8181 = vst.msk [vmem:[#allocation6 + $0x18] sm:$0xff] %vm4375, %v8165
      %8182 = vst.msk [vmem:[#allocation6 + $0x20] sm:$0xff] %vm4375, %v8166
      %8183 = vst.msk [vmem:[#allocation6 + $0x28] sm:$0xff] %vm4375, %v8167
      %8184 = vst.msk [vmem:[#allocation6 + $0x30] sm:$0xff] %vm4375, %v8168
      %8185 = vst.msk [vmem:[#allocation6 + $0x38] sm:$0xff] %vm4375, %v8169
      %8186 = vst.msk [vmem:[#allocation6 + $0x40] sm:$0xff] %vm4375, %v8170
      %8187 = vst.msk [vmem:[#allocation6 + $0x48] sm:$0xff] %vm4375, %v8171
      %8188 = vst.msk [vmem:[#allocation6 + $0x50] sm:$0xff] %vm4375, %v8172
      %8189 = vst.msk [vmem:[#allocation6 + $0x58] sm:$0xff] %vm4375, %v8173
      %8190 = vst.msk [vmem:[#allocation6 + $0x60] sm:$0xff] %vm4375, %v8174
      %8191 = vst.msk [vmem:[#allocation6 + $0x68] sm:$0xff] %vm4375, %v8175
      %8192 = vst.msk [vmem:[#allocation6 + $0x70] sm:$0xff] %vm4375, %v8176
      %8193 = vst.msk [vmem:[#allocation6 + $0x78] sm:$0xff] %vm4375, %v8177
      %v8194 = vld [vmem:[%s5373] sm:$0xff]
      %v8195 = vld [vmem:[%s5373 + $0x8] sm:$0xff]
      %v8196 = vld [vmem:[%s5373 + $0x18] sm:$0xff]
      %v8197 = vld [vmem:[%s5373 + $0x20] sm:$0xff]
      %v8198 = vld [vmem:[%s5373 + $0x30] sm:$0xff]
      %v8199 = vld [vmem:[%s5373 + $0x38] sm:$0xff]
      %v8200 = vld [vmem:[%s5373 + $0x48] sm:$0xff]
      %v8201 = vld [vmem:[%s5373 + $0x50] sm:$0xff]
      %v8202 = vld [vmem:[%s5373 + $0x60] sm:$0xff]
      %v8203 = vld [vmem:[%s5373 + $0x68] sm:$0xff]
      %v8204 = vld [vmem:[%s5373 + $0x78] sm:$0xff]
      %v8205 = vld [vmem:[%s5373 + $0x80] sm:$0xff]
      %v8206 = vld [vmem:[%s5373 + $0x90] sm:$0xff]
      %v8207 = vld [vmem:[%s5373 + $0x98] sm:$0xff]
      %v8208 = vld [vmem:[%s5373 + $0xa8] sm:$0xff]
      %v8209 = vld [vmem:[%s5373 + $0xb0] sm:$0xff]
      %v8210 = vld [vmem:[#allocation6] sm:$0xff]
      %v8211 = vld [vmem:[#allocation6 + $0x8] sm:$0xff]
      %v8212 = vld [vmem:[#allocation6 + $0x10] sm:$0xff]
      %v8213 = vld [vmem:[#allocation6 + $0x18] sm:$0xff]
      %v8214 = vld [vmem:[#allocation6 + $0x20] sm:$0xff]
      %v8215 = vld [vmem:[#allocation6 + $0x28] sm:$0xff]
      %v8216 = vld [vmem:[#allocation6 + $0x30] sm:$0xff]
      %v8217 = vld [vmem:[#allocation6 + $0x38] sm:$0xff]
      %v8218 = vld [vmem:[#allocation6 + $0x40] sm:$0xff]
      %v8219 = vld [vmem:[#allocation6 + $0x48] sm:$0xff]
      %v8220 = vld [vmem:[#allocation6 + $0x50] sm:$0xff]
      %v8221 = vld [vmem:[#allocation6 + $0x58] sm:$0xff]
      %v8222 = vld [vmem:[#allocation6 + $0x60] sm:$0xff]
      %v8223 = vld [vmem:[#allocation6 + $0x68] sm:$0xff]
      %v8224 = vld [vmem:[#allocation6 + $0x70] sm:$0xff]
      %v8225 = vld [vmem:[#allocation6 + $0x78] sm:$0xff]
      %s8226 = scalar_lea.vmem %s11, 6
      %v8227 = vld [vmem:[%s8226] sm:$0x3]
      %v8229 = vsel %vm4375, %v8194, 0
      %v8232 = vsel %vm4375, %v8195, 0
      %v8235 = vsel %vm4375, %v8196, 0
      %v8238 = vsel %vm4375, %v8197, 0
      %v8241 = vsel %vm4375, %v8198, 0
      %v8244 = vsel %vm4375, %v8199, 0
      %v8247 = vsel %vm4375, %v8200, 0
      %v8250 = vsel %vm4375, %v8201, 0
      %v8253 = vsel %vm4375, %v8202, 0
      %v8256 = vsel %vm4375, %v8203, 0
      %v8259 = vsel %vm4375, %v8204, 0
      %v8262 = vsel %vm4375, %v8205, 0
      %v8265 = vsel %vm4375, %v8206, 0
      %v8268 = vsel %vm4375, %v8207, 0
      %v8271 = vsel %vm4375, %v8208, 0
      %v8274 = vsel %vm4375, %v8209, 0
      %v8277 = vsel %vm4544, %v8227, 0
      %8279 = vmatprep.subr.mxu0 0.0
      %8280 = vmatpush1.msra.mxu0 0.0
      %8281 = vmatprep.subr.mxu0 0.0
      %8282 = vmatpush1.msra.mxu0 0.0
      %8283 = vmatprep.subr.mxu0 0.0
      %8284 = vmatpush1.msra.mxu0 0.0
      %8285 = vmatprep.subr.mxu0 0.0
      %8286 = vmatpush1.msra.mxu0 0.0
      %8287 = vmatprep.subr.mxu0 0.0
      %8288 = vmatpush1.msra.mxu0 0.0
      %8289 = vmatprep.subr.mxu0 0.0
      %8290 = vmatpush1.msra.mxu0 0.0
      %8291 = vmatprep.subr.mxu0 0.0
      %8292 = vmatpush1.msra.mxu0 0.0
      %8293 = vmatprep.subr.mxu0 0.0
      %8294 = vmatpush1.msra.mxu0 0.0
      %8295 = vmatprep.subr.mxu0 0.0
      %8296 = vmatpush1.msra.mxu0 0.0
      %8297 = vmatprep.subr.mxu0 0.0
      %8298 = vmatpush1.msra.mxu0 0.0
      %8299 = vmatprep.subr.mxu0 0.0
      %8300 = vmatpush1.msra.mxu0 0.0
      %8301 = vmatprep.subr.mxu0 0.0
      %8302 = vmatpush1.msra.mxu0 0.0
      %8303 = vmatprep.subr.mxu0 0.0
      %8304 = vmatpush1.msra.mxu0 0.0
      %8305 = vmatprep.subr.mxu0 0.0
      %8306 = vmatpush1.msra.mxu0 0.0
      %8307 = vmatprep.subr.mxu0 0.0
      %8308 = vmatpush1.msra.mxu0 0.0
      %8309 = vmatprep.subr.mxu0 0.0
      %8310 = vmatpush1.msra.mxu0 %v8277
      %8311 = vmatprep.subr.mxu0 0.0
      %8312 = vmatpush2.msra.mxu0 0.0
      %8313 = vmatprep.subr.mxu0 0.0
      %8314 = vmatpush2.msra.mxu0 0.0
      %8315 = vmatprep.subr.mxu0 0.0
      %8316 = vmatpush2.msra.mxu0 0.0
      %8317 = vmatprep.subr.mxu0 0.0
      %8318 = vmatpush2.msra.mxu0 0.0
      %8319 = vmatprep.subr.mxu0 0.0
      %8320 = vmatpush2.msra.mxu0 0.0
      %8321 = vmatprep.subr.mxu0 0.0
      %8322 = vmatpush2.msra.mxu0 0.0
      %8323 = vmatprep.subr.mxu0 0.0
      %8324 = vmatpush2.msra.mxu0 0.0
      %8325 = vmatprep.subr.mxu0 0.0
      %8326 = vmatpush2.msra.mxu0 0.0
      %8327 = vmatprep.subr.mxu0 0.0
      %8328 = vmatpush2.msra.mxu0 0.0
      %8329 = vmatprep.subr.mxu0 0.0
      %8330 = vmatpush2.msra.mxu0 0.0
      %8331 = vmatprep.subr.mxu0 0.0
      %8332 = vmatpush2.msra.mxu0 0.0
      %8333 = vmatprep.subr.mxu0 0.0
      %8334 = vmatpush2.msra.mxu0 0.0
      %8335 = vmatprep.subr.mxu0 0.0
      %8336 = vmatpush2.msra.mxu0 0.0
      %8337 = vmatprep.subr.mxu0 0.0
      %8338 = vmatpush2.msra.mxu0 0.0
      %8339 = vmatprep.subr.mxu0 0.0
      %8340 = vmatpush2.msra.mxu0 0.0
      %8341 = vmatprep.subr.mxu0 0.0
      %8342 = vmatpush2.msra.mxu0 0.0
      %8343 = vmatprep.mubr.f32.mxu0 0.0
      %8344 = vmatmul.mubr.f32.gmra.mxu0 %v8229
      %v8345 = vpop.f32.mrf.mxu0
      %v8346 = vadd.f32 0.0, %v8345
      %v8347 = vpop.f32.mrf.mxu0
      %8348 = vmatprep.mubr.f32.mxu0 0.0
      %8349 = vmatmul.mubr.f32.gmra.mxu0 %v8232
      %v8350 = vpop.f32.mrf.mxu0
      %v8351 = vadd.f32 0.0, %v8350
      %v8352 = vpop.f32.mrf.mxu0
      %8353 = vmatprep.mubr.f32.mxu0 0.0
      %8354 = vmatmul.mubr.f32.gmra.mxu0 %v8235
      %v8355 = vpop.f32.mrf.mxu0
      %v8356 = vadd.f32 0.0, %v8355
      %v8357 = vpop.f32.mrf.mxu0
      %8358 = vmatprep.mubr.f32.mxu0 0.0
      %8359 = vmatmul.mubr.f32.gmra.mxu0 %v8238
      %v8360 = vpop.f32.mrf.mxu0
      %v8361 = vadd.f32 0.0, %v8360
      %v8362 = vpop.f32.mrf.mxu0
      %8363 = vmatprep.mubr.f32.mxu0 0.0
      %8364 = vmatmul.mubr.f32.gmra.mxu0 %v8241
      %v8365 = vpop.f32.mrf.mxu0
      %v8366 = vadd.f32 0.0, %v8365
      %v8367 = vpop.f32.mrf.mxu0
      %8368 = vmatprep.mubr.f32.mxu0 0.0
      %8369 = vmatmul.mubr.f32.gmra.mxu0 %v8244
      %v8370 = vpop.f32.mrf.mxu0
      %v8371 = vadd.f32 0.0, %v8370
      %v8372 = vpop.f32.mrf.mxu0
      %8373 = vmatprep.mubr.f32.mxu0 0.0
      %8374 = vmatmul.mubr.f32.gmra.mxu0 %v8247
      %v8375 = vpop.f32.mrf.mxu0
      %v8376 = vadd.f32 0.0, %v8375
      %v8377 = vpop.f32.mrf.mxu0
      %8378 = vmatprep.mubr.f32.mxu0 0.0
      %8379 = vmatmul.mubr.f32.gmra.mxu0 %v8250
      %v8380 = vpop.f32.mrf.mxu0
      %v8381 = vadd.f32 0.0, %v8380
      %v8382 = vpop.f32.mrf.mxu0
      %8383 = vmatprep.mubr.f32.mxu0 0.0
      %8384 = vmatmul.mubr.f32.gmra.mxu0 %v8253
      %v8385 = vpop.f32.mrf.mxu0
      %v8386 = vadd.f32 0.0, %v8385
      %v8387 = vpop.f32.mrf.mxu0
      %8388 = vmatprep.mubr.f32.mxu0 0.0
      %8389 = vmatmul.mubr.f32.gmra.mxu0 %v8256
      %v8390 = vpop.f32.mrf.mxu0
      %v8391 = vadd.f32 0.0, %v8390
      %v8392 = vpop.f32.mrf.mxu0
      %8393 = vmatprep.mubr.f32.mxu0 0.0
      %8394 = vmatmul.mubr.f32.gmra.mxu0 %v8259
      %v8395 = vpop.f32.mrf.mxu0
      %v8396 = vadd.f32 0.0, %v8395
      %v8397 = vpop.f32.mrf.mxu0
      %8398 = vmatprep.mubr.f32.mxu0 0.0
      %8399 = vmatmul.mubr.f32.gmra.mxu0 %v8262
      %v8400 = vpop.f32.mrf.mxu0
      %v8401 = vadd.f32 0.0, %v8400
      %v8402 = vpop.f32.mrf.mxu0
      %8403 = vmatprep.mubr.f32.mxu0 0.0
      %8404 = vmatmul.mubr.f32.gmra.mxu0 %v8265
      %v8405 = vpop.f32.mrf.mxu0
      %v8406 = vadd.f32 0.0, %v8405
      %v8407 = vpop.f32.mrf.mxu0
      %8408 = vmatprep.mubr.f32.mxu0 0.0
      %8409 = vmatmul.mubr.f32.gmra.mxu0 %v8268
      %v8410 = vpop.f32.mrf.mxu0
      %v8411 = vadd.f32 0.0, %v8410
      %v8412 = vpop.f32.mrf.mxu0
      %8413 = vmatprep.mubr.f32.mxu0 0.0
      %8414 = vmatmul.mubr.f32.gmra.mxu0 %v8271
      %v8415 = vpop.f32.mrf.mxu0
      %v8416 = vadd.f32 0.0, %v8415
      %v8417 = vpop.f32.mrf.mxu0
      %8418 = vmatprep.mubr.f32.mxu0 0.0
      %8419 = vmatmul.mubr.f32.gmra.mxu0 %v8274
      %v8420 = vpop.f32.mrf.mxu0
      %v8421 = vadd.f32 0.0, %v8420
      %v8422 = vpop.f32.mrf.mxu0
      %8423 = vdwg.mxu0
      %v8424 = vadd.f32 %v8210, %v8346
      %v8425 = vadd.f32 %v8211, %v8351
      %v8426 = vadd.f32 %v8212, %v8356
      %v8427 = vadd.f32 %v8213, %v8361
      %v8428 = vadd.f32 %v8214, %v8366
      %v8429 = vadd.f32 %v8215, %v8371
      %v8430 = vadd.f32 %v8216, %v8376
      %v8431 = vadd.f32 %v8217, %v8381
      %v8432 = vadd.f32 %v8218, %v8386
      %v8433 = vadd.f32 %v8219, %v8391
      %v8434 = vadd.f32 %v8220, %v8396
      %v8435 = vadd.f32 %v8221, %v8401
      %v8436 = vadd.f32 %v8222, %v8406
      %v8437 = vadd.f32 %v8223, %v8411
      %v8438 = vadd.f32 %v8224, %v8416
      %v8439 = vadd.f32 %v8225, %v8421
      %8440 = vst.msk [vmem:[#allocation6] sm:$0xff] %vm4375, %v8424
      %8441 = vst.msk [vmem:[#allocation6 + $0x8] sm:$0xff] %vm4375, %v8425
      %8442 = vst.msk [vmem:[#allocation6 + $0x10] sm:$0xff] %vm4375, %v8426
      %8443 = vst.msk [vmem:[#allocation6 + $0x18] sm:$0xff] %vm4375, %v8427
      %8444 = vst.msk [vmem:[#allocation6 + $0x20] sm:$0xff] %vm4375, %v8428
      %8445 = vst.msk [vmem:[#allocation6 + $0x28] sm:$0xff] %vm4375, %v8429
      %8446 = vst.msk [vmem:[#allocation6 + $0x30] sm:$0xff] %vm4375, %v8430
      %8447 = vst.msk [vmem:[#allocation6 + $0x38] sm:$0xff] %vm4375, %v8431
      %8448 = vst.msk [vmem:[#allocation6 + $0x40] sm:$0xff] %vm4375, %v8432
      %8449 = vst.msk [vmem:[#allocation6 + $0x48] sm:$0xff] %vm4375, %v8433
      %8450 = vst.msk [vmem:[#allocation6 + $0x50] sm:$0xff] %vm4375, %v8434
      %8451 = vst.msk [vmem:[#allocation6 + $0x58] sm:$0xff] %vm4375, %v8435
      %8452 = vst.msk [vmem:[#allocation6 + $0x60] sm:$0xff] %vm4375, %v8436
      %8453 = vst.msk [vmem:[#allocation6 + $0x68] sm:$0xff] %vm4375, %v8437
      %8454 = vst.msk [vmem:[#allocation6 + $0x70] sm:$0xff] %vm4375, %v8438
      %8455 = vst.msk [vmem:[#allocation6 + $0x78] sm:$0xff] %vm4375, %v8439
      %v8456 = vld [vmem:[%s5373 + $0x1] sm:$0xff]
      %v8457 = vld [vmem:[%s5373 + $0x9] sm:$0xff]
      %v8458 = vld [vmem:[%s5373 + $0x19] sm:$0xff]
      %v8459 = vld [vmem:[%s5373 + $0x21] sm:$0xff]
      %v8460 = vld [vmem:[%s5373 + $0x31] sm:$0xff]
      %v8461 = vld [vmem:[%s5373 + $0x39] sm:$0xff]
      %v8462 = vld [vmem:[%s5373 + $0x49] sm:$0xff]
      %v8463 = vld [vmem:[%s5373 + $0x51] sm:$0xff]
      %v8464 = vld [vmem:[%s5373 + $0x61] sm:$0xff]
      %v8465 = vld [vmem:[%s5373 + $0x69] sm:$0xff]
      %v8466 = vld [vmem:[%s5373 + $0x79] sm:$0xff]
      %v8467 = vld [vmem:[%s5373 + $0x81] sm:$0xff]
      %v8468 = vld [vmem:[%s5373 + $0x91] sm:$0xff]
      %v8469 = vld [vmem:[%s5373 + $0x99] sm:$0xff]
      %v8470 = vld [vmem:[%s5373 + $0xa9] sm:$0xff]
      %v8471 = vld [vmem:[%s5373 + $0xb1] sm:$0xff]
      %v8472 = vld [vmem:[#allocation6] sm:$0xff]
      %v8473 = vld [vmem:[#allocation6 + $0x8] sm:$0xff]
      %v8474 = vld [vmem:[#allocation6 + $0x10] sm:$0xff]
      %v8475 = vld [vmem:[#allocation6 + $0x18] sm:$0xff]
      %v8476 = vld [vmem:[#allocation6 + $0x20] sm:$0xff]
      %v8477 = vld [vmem:[#allocation6 + $0x28] sm:$0xff]
      %v8478 = vld [vmem:[#allocation6 + $0x30] sm:$0xff]
      %v8479 = vld [vmem:[#allocation6 + $0x38] sm:$0xff]
      %v8480 = vld [vmem:[#allocation6 + $0x40] sm:$0xff]
      %v8481 = vld [vmem:[#allocation6 + $0x48] sm:$0xff]
      %v8482 = vld [vmem:[#allocation6 + $0x50] sm:$0xff]
      %v8483 = vld [vmem:[#allocation6 + $0x58] sm:$0xff]
      %v8484 = vld [vmem:[#allocation6 + $0x60] sm:$0xff]
      %v8485 = vld [vmem:[#allocation6 + $0x68] sm:$0xff]
      %v8486 = vld [vmem:[#allocation6 + $0x70] sm:$0xff]
      %v8487 = vld [vmem:[#allocation6 + $0x78] sm:$0xff]
      %s8488 = scalar_lea.vmem %s11, 8
      %v8489 = vld [vmem:[%s8488] sm:$0x3]
      %v8491 = vsel %vm4375, %v8456, 0
      %v8494 = vsel %vm4375, %v8457, 0
      %v8497 = vsel %vm4375, %v8458, 0
      %v8500 = vsel %vm4375, %v8459, 0
      %v8503 = vsel %vm4375, %v8460, 0
      %v8506 = vsel %vm4375, %v8461, 0
      %v8509 = vsel %vm4375, %v8462, 0
      %v8512 = vsel %vm4375, %v8463, 0
      %v8515 = vsel %vm4375, %v8464, 0
      %v8518 = vsel %vm4375, %v8465, 0
      %v8521 = vsel %vm4375, %v8466, 0
      %v8524 = vsel %vm4375, %v8467, 0
      %v8527 = vsel %vm4375, %v8468, 0
      %v8530 = vsel %vm4375, %v8469, 0
      %v8533 = vsel %vm4375, %v8470, 0
      %v8536 = vsel %vm4375, %v8471, 0
      %v8539 = vsel %vm4544, %v8489, 0
      %8541 = vmatprep.subr.mxu0 0.0
      %8542 = vmatpush1.msra.mxu0 0.0
      %8543 = vmatprep.subr.mxu0 0.0
      %8544 = vmatpush1.msra.mxu0 0.0
      %8545 = vmatprep.subr.mxu0 0.0
      %8546 = vmatpush1.msra.mxu0 0.0
      %8547 = vmatprep.subr.mxu0 0.0
      %8548 = vmatpush1.msra.mxu0 0.0
      %8549 = vmatprep.subr.mxu0 0.0
      %8550 = vmatpush1.msra.mxu0 0.0
      %8551 = vmatprep.subr.mxu0 0.0
      %8552 = vmatpush1.msra.mxu0 0.0
      %8553 = vmatprep.subr.mxu0 0.0
      %8554 = vmatpush1.msra.mxu0 0.0
      %8555 = vmatprep.subr.mxu0 0.0
      %8556 = vmatpush1.msra.mxu0 0.0
      %8557 = vmatprep.subr.mxu0 0.0
      %8558 = vmatpush1.msra.mxu0 0.0
      %8559 = vmatprep.subr.mxu0 0.0
      %8560 = vmatpush1.msra.mxu0 0.0
      %8561 = vmatprep.subr.mxu0 0.0
      %8562 = vmatpush1.msra.mxu0 0.0
      %8563 = vmatprep.subr.mxu0 0.0
      %8564 = vmatpush1.msra.mxu0 0.0
      %8565 = vmatprep.subr.mxu0 0.0
      %8566 = vmatpush1.msra.mxu0 0.0
      %8567 = vmatprep.subr.mxu0 0.0
      %8568 = vmatpush1.msra.mxu0 0.0
      %8569 = vmatprep.subr.mxu0 0.0
      %8570 = vmatpush1.msra.mxu0 0.0
      %8571 = vmatprep.subr.mxu0 0.0
      %8572 = vmatpush1.msra.mxu0 %v8539
      %8573 = vmatprep.subr.mxu0 0.0
      %8574 = vmatpush2.msra.mxu0 0.0
      %8575 = vmatprep.subr.mxu0 0.0
      %8576 = vmatpush2.msra.mxu0 0.0
      %8577 = vmatprep.subr.mxu0 0.0
      %8578 = vmatpush2.msra.mxu0 0.0
      %8579 = vmatprep.subr.mxu0 0.0
      %8580 = vmatpush2.msra.mxu0 0.0
      %8581 = vmatprep.subr.mxu0 0.0
      %8582 = vmatpush2.msra.mxu0 0.0
      %8583 = vmatprep.subr.mxu0 0.0
      %8584 = vmatpush2.msra.mxu0 0.0
      %8585 = vmatprep.subr.mxu0 0.0
      %8586 = vmatpush2.msra.mxu0 0.0
      %8587 = vmatprep.subr.mxu0 0.0
      %8588 = vmatpush2.msra.mxu0 0.0
      %8589 = vmatprep.subr.mxu0 0.0
      %8590 = vmatpush2.msra.mxu0 0.0
      %8591 = vmatprep.subr.mxu0 0.0
      %8592 = vmatpush2.msra.mxu0 0.0
      %8593 = vmatprep.subr.mxu0 0.0
      %8594 = vmatpush2.msra.mxu0 0.0
      %8595 = vmatprep.subr.mxu0 0.0
      %8596 = vmatpush2.msra.mxu0 0.0
      %8597 = vmatprep.subr.mxu0 0.0
      %8598 = vmatpush2.msra.mxu0 0.0
      %8599 = vmatprep.subr.mxu0 0.0
      %8600 = vmatpush2.msra.mxu0 0.0
      %8601 = vmatprep.subr.mxu0 0.0
      %8602 = vmatpush2.msra.mxu0 0.0
      %8603 = vmatprep.subr.mxu0 0.0
      %8604 = vmatpush2.msra.mxu0 0.0
      %8605 = vmatprep.mubr.f32.mxu0 0.0
      %8606 = vmatmul.mubr.f32.gmra.mxu0 %v8491
      %v8607 = vpop.f32.mrf.mxu0
      %v8608 = vadd.f32 0.0, %v8607
      %v8609 = vpop.f32.mrf.mxu0
      %8610 = vmatprep.mubr.f32.mxu0 0.0
      %8611 = vmatmul.mubr.f32.gmra.mxu0 %v8494
      %v8612 = vpop.f32.mrf.mxu0
      %v8613 = vadd.f32 0.0, %v8612
      %v8614 = vpop.f32.mrf.mxu0
      %8615 = vmatprep.mubr.f32.mxu0 0.0
      %8616 = vmatmul.mubr.f32.gmra.mxu0 %v8497
      %v8617 = vpop.f32.mrf.mxu0
      %v8618 = vadd.f32 0.0, %v8617
      %v8619 = vpop.f32.mrf.mxu0
      %8620 = vmatprep.mubr.f32.mxu0 0.0
      %8621 = vmatmul.mubr.f32.gmra.mxu0 %v8500
      %v8622 = vpop.f32.mrf.mxu0
      %v8623 = vadd.f32 0.0, %v8622
      %v8624 = vpop.f32.mrf.mxu0
      %8625 = vmatprep.mubr.f32.mxu0 0.0
      %8626 = vmatmul.mubr.f32.gmra.mxu0 %v8503
      %v8627 = vpop.f32.mrf.mxu0
      %v8628 = vadd.f32 0.0, %v8627
      %v8629 = vpop.f32.mrf.mxu0
      %8630 = vmatprep.mubr.f32.mxu0 0.0
      %8631 = vmatmul.mubr.f32.gmra.mxu0 %v8506
      %v8632 = vpop.f32.mrf.mxu0
      %v8633 = vadd.f32 0.0, %v8632
      %v8634 = vpop.f32.mrf.mxu0
      %8635 = vmatprep.mubr.f32.mxu0 0.0
      %8636 = vmatmul.mubr.f32.gmra.mxu0 %v8509
      %v8637 = vpop.f32.mrf.mxu0
      %v8638 = vadd.f32 0.0, %v8637
      %v8639 = vpop.f32.mrf.mxu0
      %8640 = vmatprep.mubr.f32.mxu0 0.0
      %8641 = vmatmul.mubr.f32.gmra.mxu0 %v8512
      %v8642 = vpop.f32.mrf.mxu0
      %v8643 = vadd.f32 0.0, %v8642
      %v8644 = vpop.f32.mrf.mxu0
      %8645 = vmatprep.mubr.f32.mxu0 0.0
      %8646 = vmatmul.mubr.f32.gmra.mxu0 %v8515
      %v8647 = vpop.f32.mrf.mxu0
      %v8648 = vadd.f32 0.0, %v8647
      %v8649 = vpop.f32.mrf.mxu0
      %8650 = vmatprep.mubr.f32.mxu0 0.0
      %8651 = vmatmul.mubr.f32.gmra.mxu0 %v8518
      %v8652 = vpop.f32.mrf.mxu0
      %v8653 = vadd.f32 0.0, %v8652
      %v8654 = vpop.f32.mrf.mxu0
      %8655 = vmatprep.mubr.f32.mxu0 0.0
      %8656 = vmatmul.mubr.f32.gmra.mxu0 %v8521
      %v8657 = vpop.f32.mrf.mxu0
      %v8658 = vadd.f32 0.0, %v8657
      %v8659 = vpop.f32.mrf.mxu0
      %8660 = vmatprep.mubr.f32.mxu0 0.0
      %8661 = vmatmul.mubr.f32.gmra.mxu0 %v8524
      %v8662 = vpop.f32.mrf.mxu0
      %v8663 = vadd.f32 0.0, %v8662
      %v8664 = vpop.f32.mrf.mxu0
      %8665 = vmatprep.mubr.f32.mxu0 0.0
      %8666 = vmatmul.mubr.f32.gmra.mxu0 %v8527
      %v8667 = vpop.f32.mrf.mxu0
      %v8668 = vadd.f32 0.0, %v8667
      %v8669 = vpop.f32.mrf.mxu0
      %8670 = vmatprep.mubr.f32.mxu0 0.0
      %8671 = vmatmul.mubr.f32.gmra.mxu0 %v8530
      %v8672 = vpop.f32.mrf.mxu0
      %v8673 = vadd.f32 0.0, %v8672
      %v8674 = vpop.f32.mrf.mxu0
      %8675 = vmatprep.mubr.f32.mxu0 0.0
      %8676 = vmatmul.mubr.f32.gmra.mxu0 %v8533
      %v8677 = vpop.f32.mrf.mxu0
      %v8678 = vadd.f32 0.0, %v8677
      %v8679 = vpop.f32.mrf.mxu0
      %8680 = vmatprep.mubr.f32.mxu0 0.0
      %8681 = vmatmul.mubr.f32.gmra.mxu0 %v8536
      %v8682 = vpop.f32.mrf.mxu0
      %v8683 = vadd.f32 0.0, %v8682
      %v8684 = vpop.f32.mrf.mxu0
      %8685 = vdwg.mxu0
      %v8686 = vadd.f32 %v8472, %v8608
      %v8687 = vadd.f32 %v8473, %v8613
      %v8688 = vadd.f32 %v8474, %v8618
      %v8689 = vadd.f32 %v8475, %v8623
      %v8690 = vadd.f32 %v8476, %v8628
      %v8691 = vadd.f32 %v8477, %v8633
      %v8692 = vadd.f32 %v8478, %v8638
      %v8693 = vadd.f32 %v8479, %v8643
      %v8694 = vadd.f32 %v8480, %v8648
      %v8695 = vadd.f32 %v8481, %v8653
      %v8696 = vadd.f32 %v8482, %v8658
      %v8697 = vadd.f32 %v8483, %v8663
      %v8698 = vadd.f32 %v8484, %v8668
      %v8699 = vadd.f32 %v8485, %v8673
      %v8700 = vadd.f32 %v8486, %v8678
      %v8701 = vadd.f32 %v8487, %v8683
      %8702 = vst.msk [vmem:[#allocation6] sm:$0xff] %vm4375, %v8686
      %8703 = vst.msk [vmem:[#allocation6 + $0x8] sm:$0xff] %vm4375, %v8687
      %8704 = vst.msk [vmem:[#allocation6 + $0x10] sm:$0xff] %vm4375, %v8688
      %8705 = vst.msk [vmem:[#allocation6 + $0x18] sm:$0xff] %vm4375, %v8689
      %8706 = vst.msk [vmem:[#allocation6 + $0x20] sm:$0xff] %vm4375, %v8690
      %8707 = vst.msk [vmem:[#allocation6 + $0x28] sm:$0xff] %vm4375, %v8691
      %8708 = vst.msk [vmem:[#allocation6 + $0x30] sm:$0xff] %vm4375, %v8692
      %8709 = vst.msk [vmem:[#allocation6 + $0x38] sm:$0xff] %vm4375, %v8693
      %8710 = vst.msk [vmem:[#allocation6 + $0x40] sm:$0xff] %vm4375, %v8694
      %8711 = vst.msk [vmem:[#allocation6 + $0x48] sm:$0xff] %vm4375, %v8695
      %8712 = vst.msk [vmem:[#allocation6 + $0x50] sm:$0xff] %vm4375, %v8696
      %8713 = vst.msk [vmem:[#allocation6 + $0x58] sm:$0xff] %vm4375, %v8697
      %8714 = vst.msk [vmem:[#allocation6 + $0x60] sm:$0xff] %vm4375, %v8698
      %8715 = vst.msk [vmem:[#allocation6 + $0x68] sm:$0xff] %vm4375, %v8699
      %8716 = vst.msk [vmem:[#allocation6 + $0x70] sm:$0xff] %vm4375, %v8700
      %8717 = vst.msk [vmem:[#allocation6 + $0x78] sm:$0xff] %vm4375, %v8701
      %v8718 = vld [vmem:[%s5373 + $0x2] sm:$0xff]
      %v8719 = vld [vmem:[%s5373 + $0xa] sm:$0xff]
      %v8720 = vld [vmem:[%s5373 + $0x1a] sm:$0xff]
      %v8721 = vld [vmem:[%s5373 + $0x22] sm:$0xff]
      %v8722 = vld [vmem:[%s5373 + $0x32] sm:$0xff]
      %v8723 = vld [vmem:[%s5373 + $0x3a] sm:$0xff]
      %v8724 = vld [vmem:[%s5373 + $0x4a] sm:$0xff]
      %v8725 = vld [vmem:[%s5373 + $0x52] sm:$0xff]
      %v8726 = vld [vmem:[%s5373 + $0x62] sm:$0xff]
      %v8727 = vld [vmem:[%s5373 + $0x6a] sm:$0xff]
      %v8728 = vld [vmem:[%s5373 + $0x7a] sm:$0xff]
      %v8729 = vld [vmem:[%s5373 + $0x82] sm:$0xff]
      %v8730 = vld [vmem:[%s5373 + $0x92] sm:$0xff]
      %v8731 = vld [vmem:[%s5373 + $0x9a] sm:$0xff]
      %v8732 = vld [vmem:[%s5373 + $0xaa] sm:$0xff]
      %v8733 = vld [vmem:[%s5373 + $0xb2] sm:$0xff]
      %v8734 = vld [vmem:[#allocation6] sm:$0xff]
      %v8735 = vld [vmem:[#allocation6 + $0x8] sm:$0xff]
      %v8736 = vld [vmem:[#allocation6 + $0x10] sm:$0xff]
      %v8737 = vld [vmem:[#allocation6 + $0x18] sm:$0xff]
      %v8738 = vld [vmem:[#allocation6 + $0x20] sm:$0xff]
      %v8739 = vld [vmem:[#allocation6 + $0x28] sm:$0xff]
      %v8740 = vld [vmem:[#allocation6 + $0x30] sm:$0xff]
      %v8741 = vld [vmem:[#allocation6 + $0x38] sm:$0xff]
      %v8742 = vld [vmem:[#allocation6 + $0x40] sm:$0xff]
      %v8743 = vld [vmem:[#allocation6 + $0x48] sm:$0xff]
      %v8744 = vld [vmem:[#allocation6 + $0x50] sm:$0xff]
      %v8745 = vld [vmem:[#allocation6 + $0x58] sm:$0xff]
      %v8746 = vld [vmem:[#allocation6 + $0x60] sm:$0xff]
      %v8747 = vld [vmem:[#allocation6 + $0x68] sm:$0xff]
      %v8748 = vld [vmem:[#allocation6 + $0x70] sm:$0xff]
      %v8749 = vld [vmem:[#allocation6 + $0x78] sm:$0xff]
      %s8750 = scalar_lea.vmem %s11, 10
      %v8751 = vld [vmem:[%s8750] sm:$0x3]
      %v8753 = vsel %vm4375, %v8718, 0
      %v8756 = vsel %vm4375, %v8719, 0
      %v8759 = vsel %vm4375, %v8720, 0
      %v8762 = vsel %vm4375, %v8721, 0
      %v8765 = vsel %vm4375, %v8722, 0
      %v8768 = vsel %vm4375, %v8723, 0
      %v8771 = vsel %vm4375, %v8724, 0
      %v8774 = vsel %vm4375, %v8725, 0
      %v8777 = vsel %vm4375, %v8726, 0
      %v8780 = vsel %vm4375, %v8727, 0
      %v8783 = vsel %vm4375, %v8728, 0
      %v8786 = vsel %vm4375, %v8729, 0
      %v8789 = vsel %vm4375, %v8730, 0
      %v8792 = vsel %vm4375, %v8731, 0
      %v8795 = vsel %vm4375, %v8732, 0
      %v8798 = vsel %vm4375, %v8733, 0
      %v8801 = vsel %vm4544, %v8751, 0
      %8803 = vmatprep.subr.mxu0 0.0
      %8804 = vmatpush1.msra.mxu0 0.0
      %8805 = vmatprep.subr.mxu0 0.0
      %8806 = vmatpush1.msra.mxu0 0.0
      %8807 = vmatprep.subr.mxu0 0.0
      %8808 = vmatpush1.msra.mxu0 0.0
      %8809 = vmatprep.subr.mxu0 0.0
      %8810 = vmatpush1.msra.mxu0 0.0
      %8811 = vmatprep.subr.mxu0 0.0
      %8812 = vmatpush1.msra.mxu0 0.0
      %8813 = vmatprep.subr.mxu0 0.0
      %8814 = vmatpush1.msra.mxu0 0.0
      %8815 = vmatprep.subr.mxu0 0.0
      %8816 = vmatpush1.msra.mxu0 0.0
      %8817 = vmatprep.subr.mxu0 0.0
      %8818 = vmatpush1.msra.mxu0 0.0
      %8819 = vmatprep.subr.mxu0 0.0
      %8820 = vmatpush1.msra.mxu0 0.0
      %8821 = vmatprep.subr.mxu0 0.0
      %8822 = vmatpush1.msra.mxu0 0.0
      %8823 = vmatprep.subr.mxu0 0.0
      %8824 = vmatpush1.msra.mxu0 0.0
      %8825 = vmatprep.subr.mxu0 0.0
      %8826 = vmatpush1.msra.mxu0 0.0
      %8827 = vmatprep.subr.mxu0 0.0
      %8828 = vmatpush1.msra.mxu0 0.0
      %8829 = vmatprep.subr.mxu0 0.0
      %8830 = vmatpush1.msra.mxu0 0.0
      %8831 = vmatprep.subr.mxu0 0.0
      %8832 = vmatpush1.msra.mxu0 0.0
      %8833 = vmatprep.subr.mxu0 0.0
      %8834 = vmatpush1.msra.mxu0 %v8801
      %8835 = vmatprep.subr.mxu0 0.0
      %8836 = vmatpush2.msra.mxu0 0.0
      %8837 = vmatprep.subr.mxu0 0.0
      %8838 = vmatpush2.msra.mxu0 0.0
      %8839 = vmatprep.subr.mxu0 0.0
      %8840 = vmatpush2.msra.mxu0 0.0
      %8841 = vmatprep.subr.mxu0 0.0
      %8842 = vmatpush2.msra.mxu0 0.0
      %8843 = vmatprep.subr.mxu0 0.0
      %8844 = vmatpush2.msra.mxu0 0.0
      %8845 = vmatprep.subr.mxu0 0.0
      %8846 = vmatpush2.msra.mxu0 0.0
      %8847 = vmatprep.subr.mxu0 0.0
      %8848 = vmatpush2.msra.mxu0 0.0
      %8849 = vmatprep.subr.mxu0 0.0
      %8850 = vmatpush2.msra.mxu0 0.0
      %8851 = vmatprep.subr.mxu0 0.0
      %8852 = vmatpush2.msra.mxu0 0.0
      %8853 = vmatprep.subr.mxu0 0.0
      %8854 = vmatpush2.msra.mxu0 0.0
      %8855 = vmatprep.subr.mxu0 0.0
      %8856 = vmatpush2.msra.mxu0 0.0
      %8857 = vmatprep.subr.mxu0 0.0
      %8858 = vmatpush2.msra.mxu0 0.0
      %8859 = vmatprep.subr.mxu0 0.0
      %8860 = vmatpush2.msra.mxu0 0.0
      %8861 = vmatprep.subr.mxu0 0.0
      %8862 = vmatpush2.msra.mxu0 0.0
      %8863 = vmatprep.subr.mxu0 0.0
      %8864 = vmatpush2.msra.mxu0 0.0
      %8865 = vmatprep.subr.mxu0 0.0
      %8866 = vmatpush2.msra.mxu0 0.0
      %8867 = vmatprep.mubr.f32.mxu0 0.0
      %8868 = vmatmul.mubr.f32.gmra.mxu0 %v8753
      %v8869 = vpop.f32.mrf.mxu0
      %v8870 = vadd.f32 0.0, %v8869
      %v8871 = vpop.f32.mrf.mxu0
      %8872 = vmatprep.mubr.f32.mxu0 0.0
      %8873 = vmatmul.mubr.f32.gmra.mxu0 %v8756
      %v8874 = vpop.f32.mrf.mxu0
      %v8875 = vadd.f32 0.0, %v8874
      %v8876 = vpop.f32.mrf.mxu0
      %8877 = vmatprep.mubr.f32.mxu0 0.0
      %8878 = vmatmul.mubr.f32.gmra.mxu0 %v8759
      %v8879 = vpop.f32.mrf.mxu0
      %v8880 = vadd.f32 0.0, %v8879
      %v8881 = vpop.f32.mrf.mxu0
      %8882 = vmatprep.mubr.f32.mxu0 0.0
      %8883 = vmatmul.mubr.f32.gmra.mxu0 %v8762
      %v8884 = vpop.f32.mrf.mxu0
      %v8885 = vadd.f32 0.0, %v8884
      %v8886 = vpop.f32.mrf.mxu0
      %8887 = vmatprep.mubr.f32.mxu0 0.0
      %8888 = vmatmul.mubr.f32.gmra.mxu0 %v8765
      %v8889 = vpop.f32.mrf.mxu0
      %v8890 = vadd.f32 0.0, %v8889
      %v8891 = vpop.f32.mrf.mxu0
      %8892 = vmatprep.mubr.f32.mxu0 0.0
      %8893 = vmatmul.mubr.f32.gmra.mxu0 %v8768
      %v8894 = vpop.f32.mrf.mxu0
      %v8895 = vadd.f32 0.0, %v8894
      %v8896 = vpop.f32.mrf.mxu0
      %8897 = vmatprep.mubr.f32.mxu0 0.0
      %8898 = vmatmul.mubr.f32.gmra.mxu0 %v8771
      %v8899 = vpop.f32.mrf.mxu0
      %v8900 = vadd.f32 0.0, %v8899
      %v8901 = vpop.f32.mrf.mxu0
      %8902 = vmatprep.mubr.f32.mxu0 0.0
      %8903 = vmatmul.mubr.f32.gmra.mxu0 %v8774
      %v8904 = vpop.f32.mrf.mxu0
      %v8905 = vadd.f32 0.0, %v8904
      %v8906 = vpop.f32.mrf.mxu0
      %8907 = vmatprep.mubr.f32.mxu0 0.0
      %8908 = vmatmul.mubr.f32.gmra.mxu0 %v8777
      %v8909 = vpop.f32.mrf.mxu0
      %v8910 = vadd.f32 0.0, %v8909
      %v8911 = vpop.f32.mrf.mxu0
      %8912 = vmatprep.mubr.f32.mxu0 0.0
      %8913 = vmatmul.mubr.f32.gmra.mxu0 %v8780
      %v8914 = vpop.f32.mrf.mxu0
      %v8915 = vadd.f32 0.0, %v8914
      %v8916 = vpop.f32.mrf.mxu0
      %8917 = vmatprep.mubr.f32.mxu0 0.0
      %8918 = vmatmul.mubr.f32.gmra.mxu0 %v8783
      %v8919 = vpop.f32.mrf.mxu0
      %v8920 = vadd.f32 0.0, %v8919
      %v8921 = vpop.f32.mrf.mxu0
      %8922 = vmatprep.mubr.f32.mxu0 0.0
      %8923 = vmatmul.mubr.f32.gmra.mxu0 %v8786
      %v8924 = vpop.f32.mrf.mxu0
      %v8925 = vadd.f32 0.0, %v8924
      %v8926 = vpop.f32.mrf.mxu0
      %8927 = vmatprep.mubr.f32.mxu0 0.0
      %8928 = vmatmul.mubr.f32.gmra.mxu0 %v8789
      %v8929 = vpop.f32.mrf.mxu0
      %v8930 = vadd.f32 0.0, %v8929
      %v8931 = vpop.f32.mrf.mxu0
      %8932 = vmatprep.mubr.f32.mxu0 0.0
      %8933 = vmatmul.mubr.f32.gmra.mxu0 %v8792
      %v8934 = vpop.f32.mrf.mxu0
      %v8935 = vadd.f32 0.0, %v8934
      %v8936 = vpop.f32.mrf.mxu0
      %8937 = vmatprep.mubr.f32.mxu0 0.0
      %8938 = vmatmul.mubr.f32.gmra.mxu0 %v8795
      %v8939 = vpop.f32.mrf.mxu0
      %v8940 = vadd.f32 0.0, %v8939
      %v8941 = vpop.f32.mrf.mxu0
      %8942 = vmatprep.mubr.f32.mxu0 0.0
      %8943 = vmatmul.mubr.f32.gmra.mxu0 %v8798
      %v8944 = vpop.f32.mrf.mxu0
      %v8945 = vadd.f32 0.0, %v8944
      %v8946 = vpop.f32.mrf.mxu0
      %8947 = vdwg.mxu0
      %v8948 = vadd.f32 %v8734, %v8870
      %v8949 = vadd.f32 %v8735, %v8875
      %v8950 = vadd.f32 %v8736, %v8880
      %v8951 = vadd.f32 %v8737, %v8885
      %v8952 = vadd.f32 %v8738, %v8890
      %v8953 = vadd.f32 %v8739, %v8895
      %v8954 = vadd.f32 %v8740, %v8900
      %v8955 = vadd.f32 %v8741, %v8905
      %v8956 = vadd.f32 %v8742, %v8910
      %v8957 = vadd.f32 %v8743, %v8915
      %v8958 = vadd.f32 %v8744, %v8920
      %v8959 = vadd.f32 %v8745, %v8925
      %v8960 = vadd.f32 %v8746, %v8930
      %v8961 = vadd.f32 %v8747, %v8935
      %v8962 = vadd.f32 %v8748, %v8940
      %v8963 = vadd.f32 %v8749, %v8945
      %8964 = vst.msk [vmem:[#allocation6] sm:$0xff] %vm4375, %v8948
      %8965 = vst.msk [vmem:[#allocation6 + $0x8] sm:$0xff] %vm4375, %v8949
      %8966 = vst.msk [vmem:[#allocation6 + $0x10] sm:$0xff] %vm4375, %v8950
      %8967 = vst.msk [vmem:[#allocation6 + $0x18] sm:$0xff] %vm4375, %v8951
      %8968 = vst.msk [vmem:[#allocation6 + $0x20] sm:$0xff] %vm4375, %v8952
      %8969 = vst.msk [vmem:[#allocation6 + $0x28] sm:$0xff] %vm4375, %v8953
      %8970 = vst.msk [vmem:[#allocation6 + $0x30] sm:$0xff] %vm4375, %v8954
      %8971 = vst.msk [vmem:[#allocation6 + $0x38] sm:$0xff] %vm4375, %v8955
      %8972 = vst.msk [vmem:[#allocation6 + $0x40] sm:$0xff] %vm4375, %v8956
      %8973 = vst.msk [vmem:[#allocation6 + $0x48] sm:$0xff] %vm4375, %v8957
      %8974 = vst.msk [vmem:[#allocation6 + $0x50] sm:$0xff] %vm4375, %v8958
      %8975 = vst.msk [vmem:[#allocation6 + $0x58] sm:$0xff] %vm4375, %v8959
      %8976 = vst.msk [vmem:[#allocation6 + $0x60] sm:$0xff] %vm4375, %v8960
      %8977 = vst.msk [vmem:[#allocation6 + $0x68] sm:$0xff] %vm4375, %v8961
      %8978 = vst.msk [vmem:[#allocation6 + $0x70] sm:$0xff] %vm4375, %v8962
      %8979 = vst.msk [vmem:[#allocation6 + $0x78] sm:$0xff] %vm4375, %v8963
      %v8980 = vld [vmem:[%s6304] sm:$0xff]
      %v8981 = vld [vmem:[%s6304 + $0x8] sm:$0xff]
      %v8982 = vld [vmem:[%s6304 + $0x18] sm:$0xff]
      %v8983 = vld [vmem:[%s6304 + $0x20] sm:$0xff]
      %v8984 = vld [vmem:[%s6304 + $0x30] sm:$0xff]
      %v8985 = vld [vmem:[%s6304 + $0x38] sm:$0xff]
      %v8986 = vld [vmem:[%s6304 + $0x48] sm:$0xff]
      %v8987 = vld [vmem:[%s6304 + $0x50] sm:$0xff]
      %v8988 = vld [vmem:[%s6304 + $0x60] sm:$0xff]
      %v8989 = vld [vmem:[%s6304 + $0x68] sm:$0xff]
      %v8990 = vld [vmem:[%s6304 + $0x78] sm:$0xff]
      %v8991 = vld [vmem:[%s6304 + $0x80] sm:$0xff]
      %v8992 = vld [vmem:[%s6304 + $0x90] sm:$0xff]
      %v8993 = vld [vmem:[%s6304 + $0x98] sm:$0xff]
      %v8994 = vld [vmem:[%s6304 + $0xa8] sm:$0xff]
      %v8995 = vld [vmem:[%s6304 + $0xb0] sm:$0xff]
      %v8996 = vld [vmem:[#allocation6] sm:$0xff]
      %v8997 = vld [vmem:[#allocation6 + $0x8] sm:$0xff]
      %v8998 = vld [vmem:[#allocation6 + $0x10] sm:$0xff]
      %v8999 = vld [vmem:[#allocation6 + $0x18] sm:$0xff]
      %v9000 = vld [vmem:[#allocation6 + $0x20] sm:$0xff]
      %v9001 = vld [vmem:[#allocation6 + $0x28] sm:$0xff]
      %v9002 = vld [vmem:[#allocation6 + $0x30] sm:$0xff]
      %v9003 = vld [vmem:[#allocation6 + $0x38] sm:$0xff]
      %v9004 = vld [vmem:[#allocation6 + $0x40] sm:$0xff]
      %v9005 = vld [vmem:[#allocation6 + $0x48] sm:$0xff]
      %v9006 = vld [vmem:[#allocation6 + $0x50] sm:$0xff]
      %v9007 = vld [vmem:[#allocation6 + $0x58] sm:$0xff]
      %v9008 = vld [vmem:[#allocation6 + $0x60] sm:$0xff]
      %v9009 = vld [vmem:[#allocation6 + $0x68] sm:$0xff]
      %v9010 = vld [vmem:[#allocation6 + $0x70] sm:$0xff]
      %v9011 = vld [vmem:[#allocation6 + $0x78] sm:$0xff]
      %s9012 = scalar_lea.vmem %s11, 12
      %v9013 = vld [vmem:[%s9012] sm:$0x3]
      %v9015 = vsel %vm4375, %v8980, 0
      %v9018 = vsel %vm4375, %v8981, 0
      %v9021 = vsel %vm4375, %v8982, 0
      %v9024 = vsel %vm4375, %v8983, 0
      %v9027 = vsel %vm4375, %v8984, 0
      %v9030 = vsel %vm4375, %v8985, 0
      %v9033 = vsel %vm4375, %v8986, 0
      %v9036 = vsel %vm4375, %v8987, 0
      %v9039 = vsel %vm4375, %v8988, 0
      %v9042 = vsel %vm4375, %v8989, 0
      %v9045 = vsel %vm4375, %v8990, 0
      %v9048 = vsel %vm4375, %v8991, 0
      %v9051 = vsel %vm4375, %v8992, 0
      %v9054 = vsel %vm4375, %v8993, 0
      %v9057 = vsel %vm4375, %v8994, 0
      %v9060 = vsel %vm4375, %v8995, 0
      %v9063 = vsel %vm4544, %v9013, 0
      %9065 = vmatprep.subr.mxu0 0.0
      %9066 = vmatpush1.msra.mxu0 0.0
      %9067 = vmatprep.subr.mxu0 0.0
      %9068 = vmatpush1.msra.mxu0 0.0
      %9069 = vmatprep.subr.mxu0 0.0
      %9070 = vmatpush1.msra.mxu0 0.0
      %9071 = vmatprep.subr.mxu0 0.0
      %9072 = vmatpush1.msra.mxu0 0.0
      %9073 = vmatprep.subr.mxu0 0.0
      %9074 = vmatpush1.msra.mxu0 0.0
      %9075 = vmatprep.subr.mxu0 0.0
      %9076 = vmatpush1.msra.mxu0 0.0
      %9077 = vmatprep.subr.mxu0 0.0
      %9078 = vmatpush1.msra.mxu0 0.0
      %9079 = vmatprep.subr.mxu0 0.0
      %9080 = vmatpush1.msra.mxu0 0.0
      %9081 = vmatprep.subr.mxu0 0.0
      %9082 = vmatpush1.msra.mxu0 0.0
      %9083 = vmatprep.subr.mxu0 0.0
      %9084 = vmatpush1.msra.mxu0 0.0
      %9085 = vmatprep.subr.mxu0 0.0
      %9086 = vmatpush1.msra.mxu0 0.0
      %9087 = vmatprep.subr.mxu0 0.0
      %9088 = vmatpush1.msra.mxu0 0.0
      %9089 = vmatprep.subr.mxu0 0.0
      %9090 = vmatpush1.msra.mxu0 0.0
      %9091 = vmatprep.subr.mxu0 0.0
      %9092 = vmatpush1.msra.mxu0 0.0
      %9093 = vmatprep.subr.mxu0 0.0
      %9094 = vmatpush1.msra.mxu0 0.0
      %9095 = vmatprep.subr.mxu0 0.0
      %9096 = vmatpush1.msra.mxu0 %v9063
      %9097 = vmatprep.subr.mxu0 0.0
      %9098 = vmatpush2.msra.mxu0 0.0
      %9099 = vmatprep.subr.mxu0 0.0
      %9100 = vmatpush2.msra.mxu0 0.0
      %9101 = vmatprep.subr.mxu0 0.0
      %9102 = vmatpush2.msra.mxu0 0.0
      %9103 = vmatprep.subr.mxu0 0.0
      %9104 = vmatpush2.msra.mxu0 0.0
      %9105 = vmatprep.subr.mxu0 0.0
      %9106 = vmatpush2.msra.mxu0 0.0
      %9107 = vmatprep.subr.mxu0 0.0
      %9108 = vmatpush2.msra.mxu0 0.0
      %9109 = vmatprep.subr.mxu0 0.0
      %9110 = vmatpush2.msra.mxu0 0.0
      %9111 = vmatprep.subr.mxu0 0.0
      %9112 = vmatpush2.msra.mxu0 0.0
      %9113 = vmatprep.subr.mxu0 0.0
      %9114 = vmatpush2.msra.mxu0 0.0
      %9115 = vmatprep.subr.mxu0 0.0
      %9116 = vmatpush2.msra.mxu0 0.0
      %9117 = vmatprep.subr.mxu0 0.0
      %9118 = vmatpush2.msra.mxu0 0.0
      %9119 = vmatprep.subr.mxu0 0.0
      %9120 = vmatpush2.msra.mxu0 0.0
      %9121 = vmatprep.subr.mxu0 0.0
      %9122 = vmatpush2.msra.mxu0 0.0
      %9123 = vmatprep.subr.mxu0 0.0
      %9124 = vmatpush2.msra.mxu0 0.0
      %9125 = vmatprep.subr.mxu0 0.0
      %9126 = vmatpush2.msra.mxu0 0.0
      %9127 = vmatprep.subr.mxu0 0.0
      %9128 = vmatpush2.msra.mxu0 0.0
      %9129 = vmatprep.mubr.f32.mxu0 0.0
      %9130 = vmatmul.mubr.f32.gmra.mxu0 %v9015
      %v9131 = vpop.f32.mrf.mxu0
      %v9132 = vadd.f32 0.0, %v9131
      %v9133 = vpop.f32.mrf.mxu0
      %9134 = vmatprep.mubr.f32.mxu0 0.0
      %9135 = vmatmul.mubr.f32.gmra.mxu0 %v9018
      %v9136 = vpop.f32.mrf.mxu0
      %v9137 = vadd.f32 0.0, %v9136
      %v9138 = vpop.f32.mrf.mxu0
      %9139 = vmatprep.mubr.f32.mxu0 0.0
      %9140 = vmatmul.mubr.f32.gmra.mxu0 %v9021
      %v9141 = vpop.f32.mrf.mxu0
      %v9142 = vadd.f32 0.0, %v9141
      %v9143 = vpop.f32.mrf.mxu0
      %9144 = vmatprep.mubr.f32.mxu0 0.0
      %9145 = vmatmul.mubr.f32.gmra.mxu0 %v9024
      %v9146 = vpop.f32.mrf.mxu0
      %v9147 = vadd.f32 0.0, %v9146
      %v9148 = vpop.f32.mrf.mxu0
      %9149 = vmatprep.mubr.f32.mxu0 0.0
      %9150 = vmatmul.mubr.f32.gmra.mxu0 %v9027
      %v9151 = vpop.f32.mrf.mxu0
      %v9152 = vadd.f32 0.0, %v9151
      %v9153 = vpop.f32.mrf.mxu0
      %9154 = vmatprep.mubr.f32.mxu0 0.0
      %9155 = vmatmul.mubr.f32.gmra.mxu0 %v9030
      %v9156 = vpop.f32.mrf.mxu0
      %v9157 = vadd.f32 0.0, %v9156
      %v9158 = vpop.f32.mrf.mxu0
      %9159 = vmatprep.mubr.f32.mxu0 0.0
      %9160 = vmatmul.mubr.f32.gmra.mxu0 %v9033
      %v9161 = vpop.f32.mrf.mxu0
      %v9162 = vadd.f32 0.0, %v9161
      %v9163 = vpop.f32.mrf.mxu0
      %9164 = vmatprep.mubr.f32.mxu0 0.0
      %9165 = vmatmul.mubr.f32.gmra.mxu0 %v9036
      %v9166 = vpop.f32.mrf.mxu0
      %v9167 = vadd.f32 0.0, %v9166
      %v9168 = vpop.f32.mrf.mxu0
      %9169 = vmatprep.mubr.f32.mxu0 0.0
      %9170 = vmatmul.mubr.f32.gmra.mxu0 %v9039
      %v9171 = vpop.f32.mrf.mxu0
      %v9172 = vadd.f32 0.0, %v9171
      %v9173 = vpop.f32.mrf.mxu0
      %9174 = vmatprep.mubr.f32.mxu0 0.0
      %9175 = vmatmul.mubr.f32.gmra.mxu0 %v9042
      %v9176 = vpop.f32.mrf.mxu0
      %v9177 = vadd.f32 0.0, %v9176
      %v9178 = vpop.f32.mrf.mxu0
      %9179 = vmatprep.mubr.f32.mxu0 0.0
      %9180 = vmatmul.mubr.f32.gmra.mxu0 %v9045
      %v9181 = vpop.f32.mrf.mxu0
      %v9182 = vadd.f32 0.0, %v9181
      %v9183 = vpop.f32.mrf.mxu0
      %9184 = vmatprep.mubr.f32.mxu0 0.0
      %9185 = vmatmul.mubr.f32.gmra.mxu0 %v9048
      %v9186 = vpop.f32.mrf.mxu0
      %v9187 = vadd.f32 0.0, %v9186
      %v9188 = vpop.f32.mrf.mxu0
      %9189 = vmatprep.mubr.f32.mxu0 0.0
      %9190 = vmatmul.mubr.f32.gmra.mxu0 %v9051
      %v9191 = vpop.f32.mrf.mxu0
      %v9192 = vadd.f32 0.0, %v9191
      %v9193 = vpop.f32.mrf.mxu0
      %9194 = vmatprep.mubr.f32.mxu0 0.0
      %9195 = vmatmul.mubr.f32.gmra.mxu0 %v9054
      %v9196 = vpop.f32.mrf.mxu0
      %v9197 = vadd.f32 0.0, %v9196
      %v9198 = vpop.f32.mrf.mxu0
      %9199 = vmatprep.mubr.f32.mxu0 0.0
      %9200 = vmatmul.mubr.f32.gmra.mxu0 %v9057
      %v9201 = vpop.f32.mrf.mxu0
      %v9202 = vadd.f32 0.0, %v9201
      %v9203 = vpop.f32.mrf.mxu0
      %9204 = vmatprep.mubr.f32.mxu0 0.0
      %9205 = vmatmul.mubr.f32.gmra.mxu0 %v9060
      %v9206 = vpop.f32.mrf.mxu0
      %v9207 = vadd.f32 0.0, %v9206
      %v9208 = vpop.f32.mrf.mxu0
      %9209 = vdwg.mxu0
      %v9210 = vadd.f32 %v8996, %v9132
      %v9211 = vadd.f32 %v8997, %v9137
      %v9212 = vadd.f32 %v8998, %v9142
      %v9213 = vadd.f32 %v8999, %v9147
      %v9214 = vadd.f32 %v9000, %v9152
      %v9215 = vadd.f32 %v9001, %v9157
      %v9216 = vadd.f32 %v9002, %v9162
      %v9217 = vadd.f32 %v9003, %v9167
      %v9218 = vadd.f32 %v9004, %v9172
      %v9219 = vadd.f32 %v9005, %v9177
      %v9220 = vadd.f32 %v9006, %v9182
      %v9221 = vadd.f32 %v9007, %v9187
      %v9222 = vadd.f32 %v9008, %v9192
      %v9223 = vadd.f32 %v9009, %v9197
      %v9224 = vadd.f32 %v9010, %v9202
      %v9225 = vadd.f32 %v9011, %v9207
      %9226 = vst.msk [vmem:[#allocation6] sm:$0xff] %vm4375, %v9210
      %9227 = vst.msk [vmem:[#allocation6 + $0x8] sm:$0xff] %vm4375, %v9211
      %9228 = vst.msk [vmem:[#allocation6 + $0x10] sm:$0xff] %vm4375, %v9212
      %9229 = vst.msk [vmem:[#allocation6 + $0x18] sm:$0xff] %vm4375, %v9213
      %9230 = vst.msk [vmem:[#allocation6 + $0x20] sm:$0xff] %vm4375, %v9214
      %9231 = vst.msk [vmem:[#allocation6 + $0x28] sm:$0xff] %vm4375, %v9215
      %9232 = vst.msk [vmem:[#allocation6 + $0x30] sm:$0xff] %vm4375, %v9216
      %9233 = vst.msk [vmem:[#allocation6 + $0x38] sm:$0xff] %vm4375, %v9217
      %9234 = vst.msk [vmem:[#allocation6 + $0x40] sm:$0xff] %vm4375, %v9218
      %9235 = vst.msk [vmem:[#allocation6 + $0x48] sm:$0xff] %vm4375, %v9219
      %9236 = vst.msk [vmem:[#allocation6 + $0x50] sm:$0xff] %vm4375, %v9220
      %9237 = vst.msk [vmem:[#allocation6 + $0x58] sm:$0xff] %vm4375, %v9221
      %9238 = vst.msk [vmem:[#allocation6 + $0x60] sm:$0xff] %vm4375, %v9222
      %9239 = vst.msk [vmem:[#allocation6 + $0x68] sm:$0xff] %vm4375, %v9223
      %9240 = vst.msk [vmem:[#allocation6 + $0x70] sm:$0xff] %vm4375, %v9224
      %9241 = vst.msk [vmem:[#allocation6 + $0x78] sm:$0xff] %vm4375, %v9225
      %v9242 = vld [vmem:[%s6304 + $0x1] sm:$0xff]
      %v9243 = vld [vmem:[%s6304 + $0x9] sm:$0xff]
      %v9244 = vld [vmem:[%s6304 + $0x19] sm:$0xff]
      %v9245 = vld [vmem:[%s6304 + $0x21] sm:$0xff]
      %v9246 = vld [vmem:[%s6304 + $0x31] sm:$0xff]
      %v9247 = vld [vmem:[%s6304 + $0x39] sm:$0xff]
      %v9248 = vld [vmem:[%s6304 + $0x49] sm:$0xff]
      %v9249 = vld [vmem:[%s6304 + $0x51] sm:$0xff]
      %v9250 = vld [vmem:[%s6304 + $0x61] sm:$0xff]
      %v9251 = vld [vmem:[%s6304 + $0x69] sm:$0xff]
      %v9252 = vld [vmem:[%s6304 + $0x79] sm:$0xff]
      %v9253 = vld [vmem:[%s6304 + $0x81] sm:$0xff]
      %v9254 = vld [vmem:[%s6304 + $0x91] sm:$0xff]
      %v9255 = vld [vmem:[%s6304 + $0x99] sm:$0xff]
      %v9256 = vld [vmem:[%s6304 + $0xa9] sm:$0xff]
      %v9257 = vld [vmem:[%s6304 + $0xb1] sm:$0xff]
      %v9258 = vld [vmem:[#allocation6] sm:$0xff]
      %v9259 = vld [vmem:[#allocation6 + $0x8] sm:$0xff]
      %v9260 = vld [vmem:[#allocation6 + $0x10] sm:$0xff]
      %v9261 = vld [vmem:[#allocation6 + $0x18] sm:$0xff]
      %v9262 = vld [vmem:[#allocation6 + $0x20] sm:$0xff]
      %v9263 = vld [vmem:[#allocation6 + $0x28] sm:$0xff]
      %v9264 = vld [vmem:[#allocation6 + $0x30] sm:$0xff]
      %v9265 = vld [vmem:[#allocation6 + $0x38] sm:$0xff]
      %v9266 = vld [vmem:[#allocation6 + $0x40] sm:$0xff]
      %v9267 = vld [vmem:[#allocation6 + $0x48] sm:$0xff]
      %v9268 = vld [vmem:[#allocation6 + $0x50] sm:$0xff]
      %v9269 = vld [vmem:[#allocation6 + $0x58] sm:$0xff]
      %v9270 = vld [vmem:[#allocation6 + $0x60] sm:$0xff]
      %v9271 = vld [vmem:[#allocation6 + $0x68] sm:$0xff]
      %v9272 = vld [vmem:[#allocation6 + $0x70] sm:$0xff]
      %v9273 = vld [vmem:[#allocation6 + $0x78] sm:$0xff]
      %s9274 = scalar_lea.vmem %s11, 14
      %v9275 = vld [vmem:[%s9274] sm:$0x3]
      %v9277 = vsel %vm4375, %v9242, 0
      %v9280 = vsel %vm4375, %v9243, 0
      %v9283 = vsel %vm4375, %v9244, 0
      %v9286 = vsel %vm4375, %v9245, 0
      %v9289 = vsel %vm4375, %v9246, 0
      %v9292 = vsel %vm4375, %v9247, 0
      %v9295 = vsel %vm4375, %v9248, 0
      %v9298 = vsel %vm4375, %v9249, 0
      %v9301 = vsel %vm4375, %v9250, 0
      %v9304 = vsel %vm4375, %v9251, 0
      %v9307 = vsel %vm4375, %v9252, 0
      %v9310 = vsel %vm4375, %v9253, 0
      %v9313 = vsel %vm4375, %v9254, 0
      %v9316 = vsel %vm4375, %v9255, 0
      %v9319 = vsel %vm4375, %v9256, 0
      %v9322 = vsel %vm4375, %v9257, 0
      %v9325 = vsel %vm4544, %v9275, 0
      %9327 = vmatprep.subr.mxu0 0.0
      %9328 = vmatpush1.msra.mxu0 0.0
      %9329 = vmatprep.subr.mxu0 0.0
      %9330 = vmatpush1.msra.mxu0 0.0
      %9331 = vmatprep.subr.mxu0 0.0
      %9332 = vmatpush1.msra.mxu0 0.0
      %9333 = vmatprep.subr.mxu0 0.0
      %9334 = vmatpush1.msra.mxu0 0.0
      %9335 = vmatprep.subr.mxu0 0.0
      %9336 = vmatpush1.msra.mxu0 0.0
      %9337 = vmatprep.subr.mxu0 0.0
      %9338 = vmatpush1.msra.mxu0 0.0
      %9339 = vmatprep.subr.mxu0 0.0
      %9340 = vmatpush1.msra.mxu0 0.0
      %9341 = vmatprep.subr.mxu0 0.0
      %9342 = vmatpush1.msra.mxu0 0.0
      %9343 = vmatprep.subr.mxu0 0.0
      %9344 = vmatpush1.msra.mxu0 0.0
      %9345 = vmatprep.subr.mxu0 0.0
      %9346 = vmatpush1.msra.mxu0 0.0
      %9347 = vmatprep.subr.mxu0 0.0
      %9348 = vmatpush1.msra.mxu0 0.0
      %9349 = vmatprep.subr.mxu0 0.0
      %9350 = vmatpush1.msra.mxu0 0.0
      %9351 = vmatprep.subr.mxu0 0.0
      %9352 = vmatpush1.msra.mxu0 0.0
      %9353 = vmatprep.subr.mxu0 0.0
      %9354 = vmatpush1.msra.mxu0 0.0
      %9355 = vmatprep.subr.mxu0 0.0
      %9356 = vmatpush1.msra.mxu0 0.0
      %9357 = vmatprep.subr.mxu0 0.0
      %9358 = vmatpush1.msra.mxu0 %v9325
      %9359 = vmatprep.subr.mxu0 0.0
      %9360 = vmatpush2.msra.mxu0 0.0
      %9361 = vmatprep.subr.mxu0 0.0
      %9362 = vmatpush2.msra.mxu0 0.0
      %9363 = vmatprep.subr.mxu0 0.0
      %9364 = vmatpush2.msra.mxu0 0.0
      %9365 = vmatprep.subr.mxu0 0.0
      %9366 = vmatpush2.msra.mxu0 0.0
      %9367 = vmatprep.subr.mxu0 0.0
      %9368 = vmatpush2.msra.mxu0 0.0
      %9369 = vmatprep.subr.mxu0 0.0
      %9370 = vmatpush2.msra.mxu0 0.0
      %9371 = vmatprep.subr.mxu0 0.0
      %9372 = vmatpush2.msra.mxu0 0.0
      %9373 = vmatprep.subr.mxu0 0.0
      %9374 = vmatpush2.msra.mxu0 0.0
      %9375 = vmatprep.subr.mxu0 0.0
      %9376 = vmatpush2.msra.mxu0 0.0
      %9377 = vmatprep.subr.mxu0 0.0
      %9378 = vmatpush2.msra.mxu0 0.0
      %9379 = vmatprep.subr.mxu0 0.0
      %9380 = vmatpush2.msra.mxu0 0.0
      %9381 = vmatprep.subr.mxu0 0.0
      %9382 = vmatpush2.msra.mxu0 0.0
      %9383 = vmatprep.subr.mxu0 0.0
      %9384 = vmatpush2.msra.mxu0 0.0
      %9385 = vmatprep.subr.mxu0 0.0
      %9386 = vmatpush2.msra.mxu0 0.0
      %9387 = vmatprep.subr.mxu0 0.0
      %9388 = vmatpush2.msra.mxu0 0.0
      %9389 = vmatprep.subr.mxu0 0.0
      %9390 = vmatpush2.msra.mxu0 0.0
      %9391 = vmatprep.mubr.f32.mxu0 0.0
      %9392 = vmatmul.mubr.f32.gmra.mxu0 %v9277
      %v9393 = vpop.f32.mrf.mxu0
      %v9394 = vadd.f32 0.0, %v9393
      %v9395 = vpop.f32.mrf.mxu0
      %9396 = vmatprep.mubr.f32.mxu0 0.0
      %9397 = vmatmul.mubr.f32.gmra.mxu0 %v9280
      %v9398 = vpop.f32.mrf.mxu0
      %v9399 = vadd.f32 0.0, %v9398
      %v9400 = vpop.f32.mrf.mxu0
      %9401 = vmatprep.mubr.f32.mxu0 0.0
      %9402 = vmatmul.mubr.f32.gmra.mxu0 %v9283
      %v9403 = vpop.f32.mrf.mxu0
      %v9404 = vadd.f32 0.0, %v9403
      %v9405 = vpop.f32.mrf.mxu0
      %9406 = vmatprep.mubr.f32.mxu0 0.0
      %9407 = vmatmul.mubr.f32.gmra.mxu0 %v9286
      %v9408 = vpop.f32.mrf.mxu0
      %v9409 = vadd.f32 0.0, %v9408
      %v9410 = vpop.f32.mrf.mxu0
      %9411 = vmatprep.mubr.f32.mxu0 0.0
      %9412 = vmatmul.mubr.f32.gmra.mxu0 %v9289
      %v9413 = vpop.f32.mrf.mxu0
      %v9414 = vadd.f32 0.0, %v9413
      %v9415 = vpop.f32.mrf.mxu0
      %9416 = vmatprep.mubr.f32.mxu0 0.0
      %9417 = vmatmul.mubr.f32.gmra.mxu0 %v9292
      %v9418 = vpop.f32.mrf.mxu0
      %v9419 = vadd.f32 0.0, %v9418
      %v9420 = vpop.f32.mrf.mxu0
      %9421 = vmatprep.mubr.f32.mxu0 0.0
      %9422 = vmatmul.mubr.f32.gmra.mxu0 %v9295
      %v9423 = vpop.f32.mrf.mxu0
      %v9424 = vadd.f32 0.0, %v9423
      %v9425 = vpop.f32.mrf.mxu0
      %9426 = vmatprep.mubr.f32.mxu0 0.0
      %9427 = vmatmul.mubr.f32.gmra.mxu0 %v9298
      %v9428 = vpop.f32.mrf.mxu0
      %v9429 = vadd.f32 0.0, %v9428
      %v9430 = vpop.f32.mrf.mxu0
      %9431 = vmatprep.mubr.f32.mxu0 0.0
      %9432 = vmatmul.mubr.f32.gmra.mxu0 %v9301
      %v9433 = vpop.f32.mrf.mxu0
      %v9434 = vadd.f32 0.0, %v9433
      %v9435 = vpop.f32.mrf.mxu0
      %9436 = vmatprep.mubr.f32.mxu0 0.0
      %9437 = vmatmul.mubr.f32.gmra.mxu0 %v9304
      %v9438 = vpop.f32.mrf.mxu0
      %v9439 = vadd.f32 0.0, %v9438
      %v9440 = vpop.f32.mrf.mxu0
      %9441 = vmatprep.mubr.f32.mxu0 0.0
      %9442 = vmatmul.mubr.f32.gmra.mxu0 %v9307
      %v9443 = vpop.f32.mrf.mxu0
      %v9444 = vadd.f32 0.0, %v9443
      %v9445 = vpop.f32.mrf.mxu0
      %9446 = vmatprep.mubr.f32.mxu0 0.0
      %9447 = vmatmul.mubr.f32.gmra.mxu0 %v9310
      %v9448 = vpop.f32.mrf.mxu0
      %v9449 = vadd.f32 0.0, %v9448
      %v9450 = vpop.f32.mrf.mxu0
      %9451 = vmatprep.mubr.f32.mxu0 0.0
      %9452 = vmatmul.mubr.f32.gmra.mxu0 %v9313
      %v9453 = vpop.f32.mrf.mxu0
      %v9454 = vadd.f32 0.0, %v9453
      %v9455 = vpop.f32.mrf.mxu0
      %9456 = vmatprep.mubr.f32.mxu0 0.0
      %9457 = vmatmul.mubr.f32.gmra.mxu0 %v9316
      %v9458 = vpop.f32.mrf.mxu0
      %v9459 = vadd.f32 0.0, %v9458
      %v9460 = vpop.f32.mrf.mxu0
      %9461 = vmatprep.mubr.f32.mxu0 0.0
      %9462 = vmatmul.mubr.f32.gmra.mxu0 %v9319
      %v9463 = vpop.f32.mrf.mxu0
      %v9464 = vadd.f32 0.0, %v9463
      %v9465 = vpop.f32.mrf.mxu0
      %9466 = vmatprep.mubr.f32.mxu0 0.0
      %9467 = vmatmul.mubr.f32.gmra.mxu0 %v9322
      %v9468 = vpop.f32.mrf.mxu0
      %v9469 = vadd.f32 0.0, %v9468
      %v9470 = vpop.f32.mrf.mxu0
      %9471 = vdwg.mxu0
      %v9472 = vadd.f32 %v9258, %v9394
      %v9473 = vadd.f32 %v9259, %v9399
      %v9474 = vadd.f32 %v9260, %v9404
      %v9475 = vadd.f32 %v9261, %v9409
      %v9476 = vadd.f32 %v9262, %v9414
      %v9477 = vadd.f32 %v9263, %v9419
      %v9478 = vadd.f32 %v9264, %v9424
      %v9479 = vadd.f32 %v9265, %v9429
      %v9480 = vadd.f32 %v9266, %v9434
      %v9481 = vadd.f32 %v9267, %v9439
      %v9482 = vadd.f32 %v9268, %v9444
      %v9483 = vadd.f32 %v9269, %v9449
      %v9484 = vadd.f32 %v9270, %v9454
      %v9485 = vadd.f32 %v9271, %v9459
      %v9486 = vadd.f32 %v9272, %v9464
      %v9487 = vadd.f32 %v9273, %v9469
      %9488 = vst.msk [vmem:[#allocation6] sm:$0xff] %vm4375, %v9472
      %9489 = vst.msk [vmem:[#allocation6 + $0x8] sm:$0xff] %vm4375, %v9473
      %9490 = vst.msk [vmem:[#allocation6 + $0x10] sm:$0xff] %vm4375, %v9474
      %9491 = vst.msk [vmem:[#allocation6 + $0x18] sm:$0xff] %vm4375, %v9475
      %9492 = vst.msk [vmem:[#allocation6 + $0x20] sm:$0xff] %vm4375, %v9476
      %9493 = vst.msk [vmem:[#allocation6 + $0x28] sm:$0xff] %vm4375, %v9477
      %9494 = vst.msk [vmem:[#allocation6 + $0x30] sm:$0xff] %vm4375, %v9478
      %9495 = vst.msk [vmem:[#allocation6 + $0x38] sm:$0xff] %vm4375, %v9479
      %9496 = vst.msk [vmem:[#allocation6 + $0x40] sm:$0xff] %vm4375, %v9480
      %9497 = vst.msk [vmem:[#allocation6 + $0x48] sm:$0xff] %vm4375, %v9481
      %9498 = vst.msk [vmem:[#allocation6 + $0x50] sm:$0xff] %vm4375, %v9482
      %9499 = vst.msk [vmem:[#allocation6 + $0x58] sm:$0xff] %vm4375, %v9483
      %9500 = vst.msk [vmem:[#allocation6 + $0x60] sm:$0xff] %vm4375, %v9484
      %9501 = vst.msk [vmem:[#allocation6 + $0x68] sm:$0xff] %vm4375, %v9485
      %9502 = vst.msk [vmem:[#allocation6 + $0x70] sm:$0xff] %vm4375, %v9486
      %9503 = vst.msk [vmem:[#allocation6 + $0x78] sm:$0xff] %vm4375, %v9487
      %v9504 = vld [vmem:[%s6304 + $0x2] sm:$0xff]
      %v9505 = vld [vmem:[%s6304 + $0xa] sm:$0xff]
      %v9506 = vld [vmem:[%s6304 + $0x1a] sm:$0xff]
      %v9507 = vld [vmem:[%s6304 + $0x22] sm:$0xff]
      %v9508 = vld [vmem:[%s6304 + $0x32] sm:$0xff]
      %v9509 = vld [vmem:[%s6304 + $0x3a] sm:$0xff]
      %v9510 = vld [vmem:[%s6304 + $0x4a] sm:$0xff]
      %v9511 = vld [vmem:[%s6304 + $0x52] sm:$0xff]
      %v9512 = vld [vmem:[%s6304 + $0x62] sm:$0xff]
      %v9513 = vld [vmem:[%s6304 + $0x6a] sm:$0xff]
      %v9514 = vld [vmem:[%s6304 + $0x7a] sm:$0xff]
      %v9515 = vld [vmem:[%s6304 + $0x82] sm:$0xff]
      %v9516 = vld [vmem:[%s6304 + $0x92] sm:$0xff]
      %v9517 = vld [vmem:[%s6304 + $0x9a] sm:$0xff]
      %v9518 = vld [vmem:[%s6304 + $0xaa] sm:$0xff]
      %v9519 = vld [vmem:[%s6304 + $0xb2] sm:$0xff]
      %v9520 = vld [vmem:[#allocation6] sm:$0xff]
      %v9521 = vld [vmem:[#allocation6 + $0x8] sm:$0xff]
      %v9522 = vld [vmem:[#allocation6 + $0x10] sm:$0xff]
      %v9523 = vld [vmem:[#allocation6 + $0x18] sm:$0xff]
      %v9524 = vld [vmem:[#allocation6 + $0x20] sm:$0xff]
      %v9525 = vld [vmem:[#allocation6 + $0x28] sm:$0xff]
      %v9526 = vld [vmem:[#allocation6 + $0x30] sm:$0xff]
      %v9527 = vld [vmem:[#allocation6 + $0x38] sm:$0xff]
      %v9528 = vld [vmem:[#allocation6 + $0x40] sm:$0xff]
      %v9529 = vld [vmem:[#allocation6 + $0x48] sm:$0xff]
      %v9530 = vld [vmem:[#allocation6 + $0x50] sm:$0xff]
      %v9531 = vld [vmem:[#allocation6 + $0x58] sm:$0xff]
      %v9532 = vld [vmem:[#allocation6 + $0x60] sm:$0xff]
      %v9533 = vld [vmem:[#allocation6 + $0x68] sm:$0xff]
      %v9534 = vld [vmem:[#allocation6 + $0x70] sm:$0xff]
      %v9535 = vld [vmem:[#allocation6 + $0x78] sm:$0xff]
      %s9536 = scalar_lea.vmem %s11, 16
      %v9537 = vld [vmem:[%s9536] sm:$0x3]
      %v9539 = vsel %vm4375, %v9504, 0
      %v9542 = vsel %vm4375, %v9505, 0
      %v9545 = vsel %vm4375, %v9506, 0
      %v9548 = vsel %vm4375, %v9507, 0
      %v9551 = vsel %vm4375, %v9508, 0
      %v9554 = vsel %vm4375, %v9509, 0
      %v9557 = vsel %vm4375, %v9510, 0
      %v9560 = vsel %vm4375, %v9511, 0
      %v9563 = vsel %vm4375, %v9512, 0
      %v9566 = vsel %vm4375, %v9513, 0
      %v9569 = vsel %vm4375, %v9514, 0
      %v9572 = vsel %vm4375, %v9515, 0
      %v9575 = vsel %vm4375, %v9516, 0
      %v9578 = vsel %vm4375, %v9517, 0
      %v9581 = vsel %vm4375, %v9518, 0
      %v9584 = vsel %vm4375, %v9519, 0
      %v9587 = vsel %vm4544, %v9537, 0
      %9589 = vmatprep.subr.mxu0 0.0
      %9590 = vmatpush1.msra.mxu0 0.0
      %9591 = vmatprep.subr.mxu0 0.0
      %9592 = vmatpush1.msra.mxu0 0.0
      %9593 = vmatprep.subr.mxu0 0.0
      %9594 = vmatpush1.msra.mxu0 0.0
      %9595 = vmatprep.subr.mxu0 0.0
      %9596 = vmatpush1.msra.mxu0 0.0
      %9597 = vmatprep.subr.mxu0 0.0
      %9598 = vmatpush1.msra.mxu0 0.0
      %9599 = vmatprep.subr.mxu0 0.0
      %9600 = vmatpush1.msra.mxu0 0.0
      %9601 = vmatprep.subr.mxu0 0.0
      %9602 = vmatpush1.msra.mxu0 0.0
      %9603 = vmatprep.subr.mxu0 0.0
      %9604 = vmatpush1.msra.mxu0 0.0
      %9605 = vmatprep.subr.mxu0 0.0
      %9606 = vmatpush1.msra.mxu0 0.0
      %9607 = vmatprep.subr.mxu0 0.0
      %9608 = vmatpush1.msra.mxu0 0.0
      %9609 = vmatprep.subr.mxu0 0.0
      %9610 = vmatpush1.msra.mxu0 0.0
      %9611 = vmatprep.subr.mxu0 0.0
      %9612 = vmatpush1.msra.mxu0 0.0
      %9613 = vmatprep.subr.mxu0 0.0
      %9614 = vmatpush1.msra.mxu0 0.0
      %9615 = vmatprep.subr.mxu0 0.0
      %9616 = vmatpush1.msra.mxu0 0.0
      %9617 = vmatprep.subr.mxu0 0.0
      %9618 = vmatpush1.msra.mxu0 0.0
      %9619 = vmatprep.subr.mxu0 0.0
      %9620 = vmatpush1.msra.mxu0 %v9587
      %9621 = vmatprep.subr.mxu0 0.0
      %9622 = vmatpush2.msra.mxu0 0.0
      %9623 = vmatprep.subr.mxu0 0.0
      %9624 = vmatpush2.msra.mxu0 0.0
      %9625 = vmatprep.subr.mxu0 0.0
      %9626 = vmatpush2.msra.mxu0 0.0
      %9627 = vmatprep.subr.mxu0 0.0
      %9628 = vmatpush2.msra.mxu0 0.0
      %9629 = vmatprep.subr.mxu0 0.0
      %9630 = vmatpush2.msra.mxu0 0.0
      %9631 = vmatprep.subr.mxu0 0.0
      %9632 = vmatpush2.msra.mxu0 0.0
      %9633 = vmatprep.subr.mxu0 0.0
      %9634 = vmatpush2.msra.mxu0 0.0
      %9635 = vmatprep.subr.mxu0 0.0
      %9636 = vmatpush2.msra.mxu0 0.0
      %9637 = vmatprep.subr.mxu0 0.0
      %9638 = vmatpush2.msra.mxu0 0.0
      %9639 = vmatprep.subr.mxu0 0.0
      %9640 = vmatpush2.msra.mxu0 0.0
      %9641 = vmatprep.subr.mxu0 0.0
      %9642 = vmatpush2.msra.mxu0 0.0
      %9643 = vmatprep.subr.mxu0 0.0
      %9644 = vmatpush2.msra.mxu0 0.0
      %9645 = vmatprep.subr.mxu0 0.0
      %9646 = vmatpush2.msra.mxu0 0.0
      %9647 = vmatprep.subr.mxu0 0.0
      %9648 = vmatpush2.msra.mxu0 0.0
      %9649 = vmatprep.subr.mxu0 0.0
      %9650 = vmatpush2.msra.mxu0 0.0
      %9651 = vmatprep.subr.mxu0 0.0
      %9652 = vmatpush2.msra.mxu0 0.0
      %9653 = vmatprep.mubr.f32.mxu0 0.0
      %9654 = vmatmul.mubr.f32.gmra.mxu0 %v9539
      %v9655 = vpop.f32.mrf.mxu0
      %v9656 = vadd.f32 0.0, %v9655
      %v9657 = vpop.f32.mrf.mxu0
      %9658 = vmatprep.mubr.f32.mxu0 0.0
      %9659 = vmatmul.mubr.f32.gmra.mxu0 %v9542
      %v9660 = vpop.f32.mrf.mxu0
      %v9661 = vadd.f32 0.0, %v9660
      %v9662 = vpop.f32.mrf.mxu0
      %9663 = vmatprep.mubr.f32.mxu0 0.0
      %9664 = vmatmul.mubr.f32.gmra.mxu0 %v9545
      %v9665 = vpop.f32.mrf.mxu0
      %v9666 = vadd.f32 0.0, %v9665
      %v9667 = vpop.f32.mrf.mxu0
      %9668 = vmatprep.mubr.f32.mxu0 0.0
      %9669 = vmatmul.mubr.f32.gmra.mxu0 %v9548
      %v9670 = vpop.f32.mrf.mxu0
      %v9671 = vadd.f32 0.0, %v9670
      %v9672 = vpop.f32.mrf.mxu0
      %9673 = vmatprep.mubr.f32.mxu0 0.0
      %9674 = vmatmul.mubr.f32.gmra.mxu0 %v9551
      %v9675 = vpop.f32.mrf.mxu0
      %v9676 = vadd.f32 0.0, %v9675
      %v9677 = vpop.f32.mrf.mxu0
      %9678 = vmatprep.mubr.f32.mxu0 0.0
      %9679 = vmatmul.mubr.f32.gmra.mxu0 %v9554
      %v9680 = vpop.f32.mrf.mxu0
      %v9681 = vadd.f32 0.0, %v9680
      %v9682 = vpop.f32.mrf.mxu0
      %9683 = vmatprep.mubr.f32.mxu0 0.0
      %9684 = vmatmul.mubr.f32.gmra.mxu0 %v9557
      %v9685 = vpop.f32.mrf.mxu0
      %v9686 = vadd.f32 0.0, %v9685
      %v9687 = vpop.f32.mrf.mxu0
      %9688 = vmatprep.mubr.f32.mxu0 0.0
      %9689 = vmatmul.mubr.f32.gmra.mxu0 %v9560
      %v9690 = vpop.f32.mrf.mxu0
      %v9691 = vadd.f32 0.0, %v9690
      %v9692 = vpop.f32.mrf.mxu0
      %9693 = vmatprep.mubr.f32.mxu0 0.0
      %9694 = vmatmul.mubr.f32.gmra.mxu0 %v9563
      %v9695 = vpop.f32.mrf.mxu0
      %v9696 = vadd.f32 0.0, %v9695
      %v9697 = vpop.f32.mrf.mxu0
      %9698 = vmatprep.mubr.f32.mxu0 0.0
      %9699 = vmatmul.mubr.f32.gmra.mxu0 %v9566
      %v9700 = vpop.f32.mrf.mxu0
      %v9701 = vadd.f32 0.0, %v9700
      %v9702 = vpop.f32.mrf.mxu0
      %9703 = vmatprep.mubr.f32.mxu0 0.0
      %9704 = vmatmul.mubr.f32.gmra.mxu0 %v9569
      %v9705 = vpop.f32.mrf.mxu0
      %v9706 = vadd.f32 0.0, %v9705
      %v9707 = vpop.f32.mrf.mxu0
      %9708 = vmatprep.mubr.f32.mxu0 0.0
      %9709 = vmatmul.mubr.f32.gmra.mxu0 %v9572
      %v9710 = vpop.f32.mrf.mxu0
      %v9711 = vadd.f32 0.0, %v9710
      %v9712 = vpop.f32.mrf.mxu0
      %9713 = vmatprep.mubr.f32.mxu0 0.0
      %9714 = vmatmul.mubr.f32.gmra.mxu0 %v9575
      %v9715 = vpop.f32.mrf.mxu0
      %v9716 = vadd.f32 0.0, %v9715
      %v9717 = vpop.f32.mrf.mxu0
      %9718 = vmatprep.mubr.f32.mxu0 0.0
      %9719 = vmatmul.mubr.f32.gmra.mxu0 %v9578
      %v9720 = vpop.f32.mrf.mxu0
      %v9721 = vadd.f32 0.0, %v9720
      %v9722 = vpop.f32.mrf.mxu0
      %9723 = vmatprep.mubr.f32.mxu0 0.0
      %9724 = vmatmul.mubr.f32.gmra.mxu0 %v9581
      %v9725 = vpop.f32.mrf.mxu0
      %v9726 = vadd.f32 0.0, %v9725
      %v9727 = vpop.f32.mrf.mxu0
      %9728 = vmatprep.mubr.f32.mxu0 0.0
      %9729 = vmatmul.mubr.f32.gmra.mxu0 %v9584
      %v9730 = vpop.f32.mrf.mxu0
      %v9731 = vadd.f32 0.0, %v9730
      %v9732 = vpop.f32.mrf.mxu0
      %9733 = vdwg.mxu0
      %v9734 = vadd.f32 %v9520, %v9656
      %v9735 = vadd.f32 %v9521, %v9661
      %v9736 = vadd.f32 %v9522, %v9666
      %v9737 = vadd.f32 %v9523, %v9671
      %v9738 = vadd.f32 %v9524, %v9676
      %v9739 = vadd.f32 %v9525, %v9681
      %v9740 = vadd.f32 %v9526, %v9686
      %v9741 = vadd.f32 %v9527, %v9691
      %v9742 = vadd.f32 %v9528, %v9696
      %v9743 = vadd.f32 %v9529, %v9701
      %v9744 = vadd.f32 %v9530, %v9706
      %v9745 = vadd.f32 %v9531, %v9711
      %v9746 = vadd.f32 %v9532, %v9716
      %v9747 = vadd.f32 %v9533, %v9721
      %v9748 = vadd.f32 %v9534, %v9726
      %v9749 = vadd.f32 %v9535, %v9731
      %9750 = vst.msk [vmem:[#allocation6] sm:$0xff] %vm4375, %v9734
      %9751 = vst.msk [vmem:[#allocation6 + $0x8] sm:$0xff] %vm4375, %v9735
      %9752 = vst.msk [vmem:[#allocation6 + $0x10] sm:$0xff] %vm4375, %v9736
      %9753 = vst.msk [vmem:[#allocation6 + $0x18] sm:$0xff] %vm4375, %v9737
      %9754 = vst.msk [vmem:[#allocation6 + $0x20] sm:$0xff] %vm4375, %v9738
      %9755 = vst.msk [vmem:[#allocation6 + $0x28] sm:$0xff] %vm4375, %v9739
      %9756 = vst.msk [vmem:[#allocation6 + $0x30] sm:$0xff] %vm4375, %v9740
      %9757 = vst.msk [vmem:[#allocation6 + $0x38] sm:$0xff] %vm4375, %v9741
      %9758 = vst.msk [vmem:[#allocation6 + $0x40] sm:$0xff] %vm4375, %v9742
      %9759 = vst.msk [vmem:[#allocation6 + $0x48] sm:$0xff] %vm4375, %v9743
      %9760 = vst.msk [vmem:[#allocation6 + $0x50] sm:$0xff] %vm4375, %v9744
      %9761 = vst.msk [vmem:[#allocation6 + $0x58] sm:$0xff] %vm4375, %v9745
      %9762 = vst.msk [vmem:[#allocation6 + $0x60] sm:$0xff] %vm4375, %v9746
      %9763 = vst.msk [vmem:[#allocation6 + $0x68] sm:$0xff] %vm4375, %v9747
      %9764 = vst.msk [vmem:[#allocation6 + $0x70] sm:$0xff] %vm4375, %v9748
      %9765 = vst.msk [vmem:[#allocation6 + $0x78] sm:$0xff] %vm4375, %v9749
      %v9766 = vld [vmem:[#allocation6] sm:$0xff]
      %v9767 = vld [vmem:[#allocation6 + $0x8] sm:$0xff]
      %v9768 = vld [vmem:[#allocation6 + $0x10] sm:$0xff]
      %v9769 = vld [vmem:[#allocation6 + $0x18] sm:$0xff]
      %v9770 = vld [vmem:[#allocation6 + $0x20] sm:$0xff]
      %v9771 = vld [vmem:[#allocation6 + $0x28] sm:$0xff]
      %v9772 = vld [vmem:[#allocation6 + $0x30] sm:$0xff]
      %v9773 = vld [vmem:[#allocation6 + $0x38] sm:$0xff]
      %v9774 = vld [vmem:[#allocation6 + $0x40] sm:$0xff]
      %v9775 = vld [vmem:[#allocation6 + $0x48] sm:$0xff]
      %v9776 = vld [vmem:[#allocation6 + $0x50] sm:$0xff]
      %v9777 = vld [vmem:[#allocation6 + $0x58] sm:$0xff]
      %v9778 = vld [vmem:[#allocation6 + $0x60] sm:$0xff]
      %v9779 = vld [vmem:[#allocation6 + $0x68] sm:$0xff]
      %v9780 = vld [vmem:[#allocation6 + $0x70] sm:$0xff]
      %v9781 = vld [vmem:[#allocation6 + $0x78] sm:$0xff]
      %v9782 = vmax.f32 %v9766, 0.0
      %v9783 = vmax.f32 %v9767, 0.0
      %v9784 = vmax.f32 %v9768, 0.0
      %v9785 = vmax.f32 %v9769, 0.0
      %v9786 = vmax.f32 %v9770, 0.0
      %v9787 = vmax.f32 %v9771, 0.0
      %v9788 = vmax.f32 %v9772, 0.0
      %v9789 = vmax.f32 %v9773, 0.0
      %v9790 = vmax.f32 %v9774, 0.0
      %v9791 = vmax.f32 %v9775, 0.0
      %v9792 = vmax.f32 %v9776, 0.0
      %v9793 = vmax.f32 %v9777, 0.0
      %v9794 = vmax.f32 %v9778, 0.0
      %v9795 = vmax.f32 %v9779, 0.0
      %v9796 = vmax.f32 %v9780, 0.0
      %v9797 = vmax.f32 %v9781, 0.0
      %9798 = vst.msk [vmem:[%s855] sm:$0xff] %vm4422, %v4259
      %9799 = vst.msk [vmem:[%s855 + $0x8] sm:$0xff] %vm4422, %v4260
      %9800 = vst.msk [vmem:[%s855 + $0x10] sm:$0xff] %vm4422, %v4261
      %9801 = vst.msk [vmem:[%s855 + $0x18] sm:$0xff] %vm4422, %v4262
      %9802 = vst.msk [vmem:[%s855 + $0x20] sm:$0xff] %vm4422, %v4263
      %9803 = vst.msk [vmem:[%s855 + $0x28] sm:$0xff] %vm4422, %v4264
      %9804 = vst.msk [vmem:[%s855 + $0x30] sm:$0xff] %vm4422, %v4265
      %9805 = vst.msk [vmem:[%s855 + $0x38] sm:$0xff] %vm4422, %v4266
      %9806 = vst.msk [vmem:[%s855 + $0x40] sm:$0xff] %vm4422, %v4267
      %9807 = vst.msk [vmem:[%s855 + $0x48] sm:$0xff] %vm4422, %v4268
      %9808 = vst.msk [vmem:[%s855 + $0x50] sm:$0xff] %vm4422, %v4269
      %9809 = vst.msk [vmem:[%s855 + $0x58] sm:$0xff] %vm4422, %v4270
      %9810 = vst.msk [vmem:[%s855 + $0x60] sm:$0xff] %vm4422, %v4271
      %9811 = vst.msk [vmem:[%s855 + $0x68] sm:$0xff] %vm4422, %v4272
      %9812 = vst.msk [vmem:[%s855 + $0x70] sm:$0xff] %vm4422, %v4273
      %9813 = vst.msk [vmem:[%s855 + $0x78] sm:$0xff] %vm4422, %v4274
      %9814 = vrot.lane.b32.xlu0 %v7257, 4
      %v9815 = vpop.permute.xlu0 %9814
      %9816 = vrot.lane.b32.xlu0 %v7258, 4
      %v9817 = vpop.permute.xlu0 %9816
      %9818 = vrot.lane.b32.xlu0 %v7259, 4
      %v9819 = vpop.permute.xlu0 %9818
      %9820 = vrot.lane.b32.xlu0 %v7260, 4
      %v9821 = vpop.permute.xlu0 %9820
      %9822 = vrot.lane.b32.xlu0 %v7261, 4
      %v9823 = vpop.permute.xlu0 %9822
      %9824 = vrot.lane.b32.xlu0 %v7262, 4
      %v9825 = vpop.permute.xlu0 %9824
      %9826 = vrot.lane.b32.xlu0 %v7263, 4
      %v9827 = vpop.permute.xlu0 %9826
      %9828 = vrot.lane.b32.xlu0 %v7264, 4
      %v9829 = vpop.permute.xlu0 %9828
      %9830 = vrot.lane.b32.xlu0 %v7265, 4
      %v9831 = vpop.permute.xlu0 %9830
      %9832 = vrot.lane.b32.xlu0 %v7266, 4
      %v9833 = vpop.permute.xlu0 %9832
      %9834 = vrot.lane.b32.xlu0 %v7267, 4
      %v9835 = vpop.permute.xlu0 %9834
      %9836 = vrot.lane.b32.xlu0 %v7268, 4
      %v9837 = vpop.permute.xlu0 %9836
      %9838 = vrot.lane.b32.xlu0 %v7269, 4
      %v9839 = vpop.permute.xlu0 %9838
      %9840 = vrot.lane.b32.xlu0 %v7270, 4
      %v9841 = vpop.permute.xlu0 %9840
      %9842 = vrot.lane.b32.xlu0 %v7271, 4
      %v9843 = vpop.permute.xlu0 %9842
      %9844 = vrot.lane.b32.xlu0 %v7272, 4
      %v9845 = vpop.permute.xlu0 %9844
      %vm9862 = vcmask 48160
      %9863 = vst.msk [vmem:[%s855] sm:$0xff] %vm9862, %v9815
      %9864 = vst.msk [vmem:[%s855 + $0x8] sm:$0xff] %vm9862, %v9817
      %9865 = vst.msk [vmem:[%s855 + $0x10] sm:$0xff] %vm9862, %v9819
      %9866 = vst.msk [vmem:[%s855 + $0x18] sm:$0xff] %vm9862, %v9821
      %9867 = vst.msk [vmem:[%s855 + $0x20] sm:$0xff] %vm9862, %v9823
      %9868 = vst.msk [vmem:[%s855 + $0x28] sm:$0xff] %vm9862, %v9825
      %9869 = vst.msk [vmem:[%s855 + $0x30] sm:$0xff] %vm9862, %v9827
      %9870 = vst.msk [vmem:[%s855 + $0x38] sm:$0xff] %vm9862, %v9829
      %9871 = vst.msk [vmem:[%s855 + $0x40] sm:$0xff] %vm9862, %v9831
      %9872 = vst.msk [vmem:[%s855 + $0x48] sm:$0xff] %vm9862, %v9833
      %9873 = vst.msk [vmem:[%s855 + $0x50] sm:$0xff] %vm9862, %v9835
      %9874 = vst.msk [vmem:[%s855 + $0x58] sm:$0xff] %vm9862, %v9837
      %9875 = vst.msk [vmem:[%s855 + $0x60] sm:$0xff] %vm9862, %v9839
      %9876 = vst.msk [vmem:[%s855 + $0x68] sm:$0xff] %vm9862, %v9841
      %9877 = vst.msk [vmem:[%s855 + $0x70] sm:$0xff] %vm9862, %v9843
      %9878 = vst.msk [vmem:[%s855 + $0x78] sm:$0xff] %vm9862, %v9845
      %9895 = vrot.lane.b32.xlu0 %v9782, 6
      %v9896 = vpop.permute.xlu0 %9895
      %9897 = vrot.lane.b32.xlu0 %v9783, 6
      %v9898 = vpop.permute.xlu0 %9897
      %9899 = vrot.lane.b32.xlu0 %v9784, 6
      %v9900 = vpop.permute.xlu0 %9899
      %9901 = vrot.lane.b32.xlu0 %v9785, 6
      %v9902 = vpop.permute.xlu0 %9901
      %9903 = vrot.lane.b32.xlu0 %v9786, 6
      %v9904 = vpop.permute.xlu0 %9903
      %9905 = vrot.lane.b32.xlu0 %v9787, 6
      %v9906 = vpop.permute.xlu0 %9905
      %9907 = vrot.lane.b32.xlu0 %v9788, 6
      %v9908 = vpop.permute.xlu0 %9907
      %9909 = vrot.lane.b32.xlu0 %v9789, 6
      %v9910 = vpop.permute.xlu0 %9909
      %9911 = vrot.lane.b32.xlu0 %v9790, 6
      %v9912 = vpop.permute.xlu0 %9911
      %9913 = vrot.lane.b32.xlu0 %v9791, 6
      %v9914 = vpop.permute.xlu0 %9913
      %9915 = vrot.lane.b32.xlu0 %v9792, 6
      %v9916 = vpop.permute.xlu0 %9915
      %9917 = vrot.lane.b32.xlu0 %v9793, 6
      %v9918 = vpop.permute.xlu0 %9917
      %9919 = vrot.lane.b32.xlu0 %v9794, 6
      %v9920 = vpop.permute.xlu0 %9919
      %9921 = vrot.lane.b32.xlu0 %v9795, 6
      %v9922 = vpop.permute.xlu0 %9921
      %9923 = vrot.lane.b32.xlu0 %v9796, 6
      %v9924 = vpop.permute.xlu0 %9923
      %9925 = vrot.lane.b32.xlu0 %v9797, 6
      %v9926 = vpop.permute.xlu0 %9925
      %vm9943 = vcmask 64560
      %9944 = vst.msk [vmem:[%s855] sm:$0xff] %vm9943, %v9896
      %9945 = vst.msk [vmem:[%s855 + $0x8] sm:$0xff] %vm9943, %v9898
      %9946 = vst.msk [vmem:[%s855 + $0x10] sm:$0xff] %vm9943, %v9900
      %9947 = vst.msk [vmem:[%s855 + $0x18] sm:$0xff] %vm9943, %v9902
      %9948 = vst.msk [vmem:[%s855 + $0x20] sm:$0xff] %vm9943, %v9904
      %9949 = vst.msk [vmem:[%s855 + $0x28] sm:$0xff] %vm9943, %v9906
      %9950 = vst.msk [vmem:[%s855 + $0x30] sm:$0xff] %vm9943, %v9908
      %9951 = vst.msk [vmem:[%s855 + $0x38] sm:$0xff] %vm9943, %v9910
      %9952 = vst.msk [vmem:[%s855 + $0x40] sm:$0xff] %vm9943, %v9912
      %9953 = vst.msk [vmem:[%s855 + $0x48] sm:$0xff] %vm9943, %v9914
      %9954 = vst.msk [vmem:[%s855 + $0x50] sm:$0xff] %vm9943, %v9916
      %9955 = vst.msk [vmem:[%s855 + $0x58] sm:$0xff] %vm9943, %v9918
      %9956 = vst.msk [vmem:[%s855 + $0x60] sm:$0xff] %vm9943, %v9920
      %9957 = vst.msk [vmem:[%s855 + $0x68] sm:$0xff] %vm9943, %v9922
      %9958 = vst.msk [vmem:[%s855 + $0x70] sm:$0xff] %vm9943, %v9924
      %9959 = vst.msk [vmem:[%s855 + $0x78] sm:$0xff] %vm9943, %v9926
      %s9960 = smul.u32 8, %s29
      %p9961 = scmp.lt.s32.totalorder %s28, 1
      %s9962 = scalar_select %p9961, %s28, 1
      %p9963 = scmp.lt.s32.totalorder %s9960, 15
      %s9964 = scalar_select %p9963, %s9960, 15
      %s9965 = smul.addr %s9964, 2
      %s9966 = smul.addr %s9962, 32
      %s9967 = sadd.s32 %s9965, %s9966
      %s9968 = smul.addr %s9967, 8
      %s9969 = scalar_lea.vmem %s13, %s9968
      // Predicated region
      $region105: #{detect_module_forward.1} parent=71 // pred_check
        %p9970 = pneg %p426
      $region106: #{detect_module_forward.1} parent=71 // pred_check_branch
        %9972 = sbr.rel (%p9970) target = $region108
      $region107: #{detect_module_forward.1} parent=71 // pred_region
        %s9973 = smul.u32 8, %s29
      $region108: #{detect_module_forward.1} parent=71 // pred_fallthru
        _
    $region72: #{detect_module_forward.1} parent=5 // pred_fallthru
      _
    %p9974 = scmp.le.s32.totalorder 2, %s19
    // Predicated region
    $region109: #{detect_module_forward.1} parent=5 // pred_check
      %p9975 = pneg %p9974
    $region110: #{detect_module_forward.1} parent=5 // pred_check_branch
      %9977 = sbr.rel (%p9975) target = $region112
    $region111: #{detect_module_forward.1} parent=5 // pred_region
      %s9978 = ssub.s32 %s19, 2
      // Predicated region
      $region113: #{detect_module_forward.1} parent=111 // pred_check
        %p9979 = pneg %p432
      $region114: #{detect_module_forward.1} parent=111 // pred_check_branch
        %9981 = sbr.rel (%p9979) target = $region116
      $region115: #{detect_module_forward.1} parent=111 // pred_region
        %s9982 = smul.u32 8, %s31
        %p9983 = scmp.lt.s32.totalorder %s30, 1
        %s9984 = scalar_select %p9983, %s30, 1
        %p9985 = scmp.lt.s32.totalorder %s9982, 15
        %s9986 = scalar_select %p9985, %s9982, 15
        %s9987 = smul.addr %s9986, 2
        %s9988 = smul.addr %s9984, 32
        %s9989 = sadd.s32 %s9987, %s9988
        %s9990 = smul.addr %s9989, 8
        %s9991 = scalar_lea.vmem %s13, %s9990
      $region116: #{detect_module_forward.1} parent=111 // pred_fallthru
        _
    $region112: #{detect_module_forward.1} parent=5 // pred_fallthru
      _
  $region6: #{detect_module_forward.1} parent=0 // loop_footer
    %s23 = sadd.s32 1, %s19
  $region7: #{detect_module_forward.1} parent=0 // loop_footer_branch
    %18 = sbr.rel target = $region3
  $region8: #{detect_module_forward.1} parent=0 // loop_exit
    _

</llo_original>
